<compile_context>
chip_gen: v7x
topology: tpu7x:2x2x1
jax: 0.10.0
libtpu: 0.0.40
codegen_flags: <defaults>
</compile_context>

<pallas_src>
import functools

import jax
import jax.numpy as jnp
from jax.experimental import pallas as pl
from jax.experimental.pallas import tpu as pltpu

_EPS = 1e-5
_SLOPE = 0.2
_LANE = 128
_SUBLANE = 8
_ROW_PACK = 16            # bf16 packs two rows per sublane -> 16-row granule
_TILE_M = 512             # large M tiles amortize per-grid-step overhead
_VMEM_BUDGET = 40 << 20   # per-layer resident-block budget (fits v7x's 64 MiB)


def _round_up(x, m):
    return ((x + m - 1) // m) * m


# ----------------------------------------------------------------------------
# Optional: single-buffer grid-invariant blocks (weights, per-channel vectors).
# Probed once so an installation without pipeline_mode/Buffered still runs.
# ----------------------------------------------------------------------------
@functools.lru_cache(maxsize=None)
def _single_buffer_ok():
    def _add(x_ref, c_ref, o_ref):
        o_ref[...] = x_ref[...] + c_ref[...]

    try:
        out = pl.pallas_call(
            _add,
            out_shape=jax.ShapeDtypeStruct((16, 128), jnp.float32),
            grid=(2,),
            in_specs=[pl.BlockSpec((8, 128), lambda i: (i, 0)),
                      pl.BlockSpec((8, 128), lambda i: (0, 0),
                                   pipeline_mode=pl.Buffered(1))],
            out_specs=pl.BlockSpec((8, 128), lambda i: (i, 0)),
        )(jnp.zeros((16, 128), jnp.float32), jnp.ones((8, 128), jnp.float32))
        jax.block_until_ready(out)
        return bool(jnp.all(out == 1.0))
    except Exception:
        return False


def _const_spec(block_shape):
    """BlockSpec for a block that is identical for every grid step."""
    zeros = lambda i: (0,) * len(block_shape)
    if _single_buffer_ok():
        return pl.BlockSpec(block_shape, zeros, pipeline_mode=pl.Buffered(1))
    return pl.BlockSpec(block_shape, zeros)


# ----------------------------------------------------------------------------
# Pallas kernels
# ----------------------------------------------------------------------------
def _matmul_bias_act_kernel(p_ref, w_ref, b_ref, o_ref, *, apply_act):
    """Non-BN layer: out = LeakyReLU(patches @ W^T + b)  (f32 math, bf16 out)."""
    y = jnp.dot(p_ref[...], w_ref[...], preferred_element_type=jnp.float32)
    y = y + b_ref[...]
    if apply_act:
        y = jnp.where(y > 0, y, _SLOPE * y)
    o_ref[...] = y.astype(o_ref.dtype)


def _matmul_bn_act_kernel(p_ref, w_ref, gamma_ref, beta_ref, o_ref, *,
                          valid_m, apply_act):
    """BN layer, single-M-tile fast path: matmul + batch stats + BN + act fused.

    Conv bias is dropped (exactly absorbed by the mean subtraction), so the
    zero-padded patch rows produce exactly-zero conv outputs and contribute
    nothing to the channel sums -- no row masking needed.
    """
    y = jnp.dot(p_ref[...], w_ref[...], preferred_element_type=jnp.float32)
    inv_m = 1.0 / float(valid_m)
    mean = jnp.sum(y, axis=0, keepdims=True) * inv_m            # (1, OC)
    ex2 = jnp.sum(y * y, axis=0, keepdims=True) * inv_m         # (1, OC)
    var = jnp.maximum(ex2 - mean * mean, 0.0)
    inv = jax.lax.rsqrt(var + _EPS)                             # EUP
    scale = gamma_ref[...] * inv
    shift = beta_ref[...] - mean * scale
    y = y * scale + shift
    if apply_act:
        y = jnp.where(y > 0, y, _SLOPE * y)
    o_ref[...] = y.astype(o_ref.dtype)


def _matmul_stats_kernel(p_ref, w_ref, y_ref, psum_ref, pss_ref):
    """BN fallback (n_tiles > 1), pass 1: matmul + per-tile channel stats."""
    y = jnp.dot(p_ref[...], w_ref[...], preferred_element_type=jnp.float32)
    y_ref[...] = y.astype(y_ref.dtype)                          # bf16 intermediate
    oc = y.shape[-1]
    psum_ref[...] = jnp.broadcast_to(jnp.sum(y, axis=0, keepdims=True),
                                     (_SUBLANE, oc))
    pss_ref[...] = jnp.broadcast_to(jnp.sum(y * y, axis=0, keepdims=True),
                                    (_SUBLANE, oc))


def _bn_act_kernel(y_ref, scale_ref, shift_ref, o_ref, *, apply_act):
    """BN fallback, pass 2: out = LeakyReLU(y * scale + shift)."""
    y = y_ref[...].astype(jnp.float32) * scale_ref[...] + shift_ref[...]
    if apply_act:
        y = jnp.where(y > 0, y, _SLOPE * y)
    o_ref[...] = y.astype(o_ref.dtype)


# ----------------------------------------------------------------------------
# Glue: im2col from NHWC (lane-dense C), weight flatten matching its K order
# ----------------------------------------------------------------------------
def _im2col_nhwc(x, kh, kw, stride, pad):
    N, H, W, C = x.shape
    xp = jnp.pad(x, ((0, 0), (pad, pad), (pad, pad), (0, 0)))
    OH = (H + 2 * pad - kh) // stride + 1
    OW = (W + 2 * pad - kw) // stride + 1
    taps = []
    for i in range(kh):
        for j in range(kw):
            taps.append(xp[:, i:i + stride * OH:stride,
                           j:j + stride * OW:stride, :])        # (N, OH, OW, C)
    patches = jnp.concatenate(taps, axis=-1)                    # K = (kh, kw, C)
    return patches.reshape(N * OH * OW, kh * kw * C), OH, OW


def _flatten_weight(w):
    # (OC, C, KH, KW) -> (KH*KW*C, OC), matching im2col K ordering above.
    OC, C, KH, KW = w.shape
    return w.transpose(2, 3, 1, 0).reshape(KH * KW * C, OC)


# ----------------------------------------------------------------------------
# One fused conv (+BN)(+LeakyReLU) layer via Pallas
# ----------------------------------------------------------------------------
def conv_layer_pallas(x_nhwc, w, b, gamma, beta, *, stride, pad, use_bn, use_act):
    N = x_nhwc.shape[0]
    OC, C, KH, KW = w.shape
    patches, OH, OW = _im2col_nhwc(x_nhwc.astype(jnp.bfloat16), KH, KW,
                                   stride, pad)                 # bf16 directly
    M, K = patches.shape

    K_pad = _round_up(K, _LANE)
    OC_pad = _round_up(OC, _LANE)

    # M tile: >= 16 rows (bf16 sublane packing), <= 512, shrunk if the resident
    # (double-buffered) patch + weight + output blocks would exceed the budget.
    def _resident_bytes(tm):
        return 2 * (tm * K_pad * 2 + K_pad * OC_pad * 2 + tm * OC_pad * 2
                    + 4 * OC_pad * 4)

    TM = min(_TILE_M, _round_up(M, _ROW_PACK))
    while TM > _ROW_PACK and _resident_bytes(TM) > _VMEM_BUDGET:
        TM = _round_up(max(_ROW_PACK, TM // 2), _ROW_PACK)
    M_pad = _round_up(M, TM)
    n_tiles = M_pad // TM

    # bf16 operands in HBM; the zero-pad is fused into this single copy.
    p_pad = jnp.pad(patches, ((0, M_pad - M), (0, K_pad - K)))
    wT_pad = jnp.pad(_flatten_weight(w).astype(jnp.bfloat16),
                     ((0, K_pad - K), (0, OC_pad - OC)))

    cparams = pltpu.CompilerParams(
        dimension_semantics=("parallel",),
        vmem_limit_bytes=int(min(max(_resident_bytes(TM) + (8 << 20), 24 << 20),
                                 48 << 20)),
    )
    mm_cost = pl.CostEstimate(
        flops=2 * M_pad * K_pad * OC_pad,
        transcendentals=0,
        bytes_accessed=(M_pad * K_pad * 2 + K_pad * OC_pad * 2
                        + M_pad * OC_pad * 2),
    )

    p_spec = pl.BlockSpec((TM, K_pad), lambda i: (i, 0))
    y_spec = pl.BlockSpec((TM, OC_pad), lambda i: (i, 0))
    w_spec = _const_spec((K_pad, OC_pad))        # grid-invariant: single buffer
    v_spec = _const_spec((1, OC_pad))            # bias / gamma / beta / scale

    if not use_bn:
        b_pad = jnp.pad(b.astype(jnp.float32), (0, OC_pad - OC)).reshape(1, OC_pad)
        out = pl.pallas_call(
            functools.partial(_matmul_bias_act_kernel, apply_act=use_act),
            out_shape=jax.ShapeDtypeStruct((M_pad, OC_pad), jnp.bfloat16),
            grid=(n_tiles,),
            in_specs=[p_spec, w_spec, v_spec],
            out_specs=y_spec,
            compiler_params=cparams,
            cost_estimate=mm_cost,
        )(p_pad, wT_pad, b_pad)

    elif n_tiles == 1:
        # Fully fused conv + BatchNorm(batch stats) + LeakyReLU in ONE kernel;
        # no intermediate HBM round trip and no second pallas_call.
        g_pad = jnp.pad(gamma.astype(jnp.float32),
                        (0, OC_pad - OC)).reshape(1, OC_pad)
        be_pad = jnp.pad(beta.astype(jnp.float32),
                         (0, OC_pad - OC)).reshape(1, OC_pad)
        out = pl.pallas_call(
            functools.partial(_matmul_bn_act_kernel, valid_m=M,
                              apply_act=use_act),
            out_shape=jax.ShapeDtypeStruct((M_pad, OC_pad), jnp.bfloat16),
            grid=(1,),
            in_specs=[p_spec, w_spec, v_spec, v_spec],
            out_specs=y_spec,
            compiler_params=cparams,
            cost_estimate=mm_cost,
        )(p_pad, wT_pad, g_pad, be_pad)

    else:
        # Two-phase fallback for large images: pass 1 emits bf16 y + per-tile
        # channel sums; tiny reduction + BN fold in JAX; pass 2 affine + act.
        stat_spec = pl.BlockSpec((_SUBLANE, OC_pad), lambda i: (i, 0))
        y_pad, psum, pss = pl.pallas_call(
            _matmul_stats_kernel,
            out_shape=(
                jax.ShapeDtypeStruct((M_pad, OC_pad), jnp.bfloat16),
                jax.ShapeDtypeStruct((n_tiles * _SUBLANE, OC_pad), jnp.float32),
                jax.ShapeDtypeStruct((n_tiles * _SUBLANE, OC_pad), jnp.float32),
            ),
            grid=(n_tiles,),
            in_specs=[p_spec, w_spec],
            out_specs=(y_spec, stat_spec, stat_spec),
            compiler_params=cparams,
            cost_estimate=mm_cost,
        )(p_pad, wT_pad)

        s_tot = psum.reshape(n_tiles, _SUBLANE, OC_pad)[:, 0, :OC].sum(axis=0)
        ss_tot = pss.reshape(n_tiles, _SUBLANE, OC_pad)[:, 0, :OC].sum(axis=0)
        mean = s_tot / M
        var = jnp.maximum(ss_tot / M - mean * mean, 0.0)
        inv = jax.lax.rsqrt(var + _EPS)
        scale = gamma.astype(jnp.float32) * inv
        shift = beta.astype(jnp.float32) - mean * scale   # conv bias absorbed
        scale_p = jnp.pad(scale, (0, OC_pad - OC)).reshape(1, OC_pad)
        shift_p = jnp.pad(shift, (0, OC_pad - OC)).reshape(1, OC_pad)

        out = pl.pallas_call(
            functools.partial(_bn_act_kernel, apply_act=use_act),
            out_shape=jax.ShapeDtypeStruct((M_pad, OC_pad), jnp.bfloat16),
            grid=(n_tiles,),
            in_specs=[y_spec, v_spec, v_spec],
            out_specs=y_spec,
            compiler_params=cparams,
            cost_estimate=pl.CostEstimate(
                flops=3 * M_pad * OC_pad, transcendentals=0,
                bytes_accessed=2 * M_pad * OC_pad * 2 + 2 * OC_pad * 4),
        )(y_pad, scale_p, shift_p)

    return out[:M, :OC].reshape(N, OH, OW, OC)


def final_conv_jax(x_nhwc, w, b, *, stride, pad):
    # 512 -> 1 conv: OC=1 GEMV over a handful of rows; kept off the Pallas/MXU
    # path (a 1-wide output would fully mask MXU columns / vector stores).
    N = x_nhwc.shape[0]
    OC, C, KH, KW = w.shape
    patches, OH, OW = _im2col_nhwc(x_nhwc, KH, KW, stride, pad)
    y = patches.astype(jnp.float32) @ _flatten_weight(w).astype(jnp.float32)
    y = y + b.astype(jnp.float32)
    return y.reshape(N, OH, OW, OC)


# ----------------------------------------------------------------------------
# Parameter setup (deterministic, synthetic) — glue
# ----------------------------------------------------------------------------
def spectral_normalize(w, key, n_iter=1, eps=1e-12):
    """Mimics torch spectral_norm's single power-iteration per forward call."""
    OC = w.shape[0]
    w_mat = w.reshape(OC, -1)
    u = jax.random.normal(key, (OC,), dtype=jnp.float32)
    u = u / (jnp.linalg.norm(u) + eps)
    v = None
    for _ in range(n_iter):
        v = w_mat.T @ u
        v = v / (jnp.linalg.norm(v) + eps)
        u = w_mat @ v
        u = u / (jnp.linalg.norm(u) + eps)
    sigma = u @ (w_mat @ v)
    return w / sigma


def build_params(input_channels, key):
    # (C_in, C_out, stride, use_bn, use_act)
    cfg = [
        (input_channels, 64, 2, False, True),
        (64, 128, 2, True, True),
        (128, 256, 2, True, True),
        (256, 512, 2, True, True),
        (512, 1, 1, False, False),
    ]
    params = []
    for (cin, cout, stride, use_bn, use_act) in cfg:
        key, kw_, kb_, ku_ = jax.random.split(key, 4)
        fan_in = cin * 4 * 4
        bound = 1.0 / jnp.sqrt(fan_in)
        w = jax.random.uniform(kw_, (cout, cin, 4, 4), jnp.float32,
                               -bound, bound)
        w = spectral_normalize(w, ku_)             # spectral-normalized weight
        b = jax.random.uniform(kb_, (cout,), jnp.float32, -bound, bound)
        gamma = jnp.ones((cout,), jnp.float32)     # BatchNorm2d default init
        beta = jnp.zeros((cout,), jnp.float32)
        params.append(dict(w=w, b=b, gamma=gamma, beta=beta, stride=stride,
                           pad=1, use_bn=use_bn, use_act=use_act))
    return params


def discriminator_forward(x_nchw, params):
    y = jnp.transpose(x_nchw, (0, 2, 3, 1))        # NHWC residency
    for p in params:
        if p["w"].shape[0] == 1:                   # final 512 -> 1 conv
            y = final_conv_jax(y, p["w"], p["b"],
                               stride=p["stride"], pad=p["pad"])
        else:
            y = conv_layer_pallas(y, p["w"], p["b"], p["gamma"], p["beta"],
                                  stride=p["stride"], pad=p["pad"],
                                  use_bn=p["use_bn"], use_act=p["use_act"])
    return jnp.transpose(y, (0, 3, 1, 2))          # back to NCHW once, at exit


# ----------------------------------------------------------------------------
if __name__ == "__main__":
    key = jax.random.PRNGKey(0)
    kx, kp = jax.random.split(key)

    N, C, H, W = 2, 3, 32, 32      # 32x32 so all 5 convs produce valid sizes
    x = jax.random.normal(kx, (N, C, H, W), dtype=jnp.float32)

    params = build_params(C, kp)
    _single_buffer_ok()            # probe Buffered(1) support outside the trace
    fwd = jax.jit(lambda inp: discriminator_forward(inp, params))
    out = jax.block_until_ready(fwd(x))            # expected shape (2, 1, 1, 1)

    assert out.shape == (N, 1, 1, 1), out.shape
    assert bool(jnp.all(jnp.isfinite(out)))
    print("KERNEL_OK")
</pallas_src>

<mosaic_0001>
module attributes {stable_mosaic.version = 11 : i64} {
  func.func @_add(%arg0: i32, %arg1: memref<8x128xf32, #tpu.memory_space<vmem>>, %arg2: memref<8x128xf32, #tpu.memory_space<vmem>>, %arg3: memref<8x128xf32, #tpu.memory_space<vmem>>) attributes {dimension_semantics = [#tpu.dimension_semantics<arbitrary>], iteration_bounds = array<i64: 2>, scalar_prefetch = 0 : i64, scratch_operands = 0 : i64, tpu.core_type = #tpu.core_type<tc>, window_params = [{transform_indices = @transform_0, window_bounds = array<i64: 8, 128>}, {pipeline_mode = #tpu.pipeline_mode<synchronous>, transform_indices = @transform_1, window_bounds = array<i64: 8, 128>}, {transform_indices = @transform_2, window_bounds = array<i64: 8, 128>}]} {
    %c0 = arith.constant 0 : index
    %c0_0 = arith.constant 0 : index
    %0 = vector.load %arg1[%c0, %c0_0] : memref<8x128xf32, #tpu.memory_space<vmem>>, vector<8x128xf32>
    %c0_1 = arith.constant 0 : index
    %c0_2 = arith.constant 0 : index
    %1 = vector.load %arg2[%c0_1, %c0_2] : memref<8x128xf32, #tpu.memory_space<vmem>>, vector<8x128xf32>
    %2 = arith.addf %0, %1 : vector<8x128xf32>
    %c0_3 = arith.constant 0 : index
    %c0_4 = arith.constant 0 : index
    %3 = vector.load %arg3[%c0_3, %c0_4] : memref<8x128xf32, #tpu.memory_space<vmem>>, vector<8x128xf32>
    tpu.vector_store %arg3[%c0_3, %c0_4], %2 {strides = array<i32>} : memref<8x128xf32, #tpu.memory_space<vmem>>, vector<8x128xf32>,
    return
  }
  func.func @transform_0(%arg0: i32) -> (i32, i32) {
    %c0_i32 = arith.constant 0 : i32
    %c0_i32_0 = arith.constant 0 : i32
    return %arg0, %c0_i32 : i32, i32
  }
  func.func @transform_1(%arg0: i32) -> (i32, i32) {
    %c0_i32 = arith.constant 0 : i32
    %c0_i32_0 = arith.constant 0 : i32
    %c0_i32_1 = arith.constant 0 : i32
    return %c0_i32, %c0_i32_0 : i32, i32
  }
  func.func @transform_2(%arg0: i32) -> (i32, i32) {
    %c0_i32 = arith.constant 0 : i32
    %c0_i32_0 = arith.constant 0 : i32
    return %arg0, %c0_i32 : i32, i32
  }
}

module attributes {stable_mosaic.version = 11 : i64} {
  func.func @_matmul_bias_act_kernel(%arg0: i32, %arg1: memref<512x128xbf16, #tpu.memory_space<vmem>>, %arg2: memref<128x128xbf16, #tpu.memory_space<vmem>>, %arg3: memref<1x128xf32, #tpu.memory_space<vmem>>, %arg4: memref<512x128xbf16, #tpu.memory_space<vmem>>) attributes {dimension_semantics = [#tpu.dimension_semantics<parallel>], iteration_bounds = array<i64: 1>, scalar_prefetch = 0 : i64, scratch_operands = 0 : i64, tpu.core_type = #tpu.core_type<tc>, window_params = [{transform_indices = @transform_0, window_bounds = array<i64: 512, 128>}, {pipeline_mode = #tpu.pipeline_mode<synchronous>, transform_indices = @transform_1, window_bounds = array<i64: 128, 128>}, {pipeline_mode = #tpu.pipeline_mode<synchronous>, transform_indices = @transform_2, window_bounds = array<i64: 1, 128>}, {transform_indices = @transform_3, window_bounds = array<i64: 512, 128>}]} {
    %c0 = arith.constant 0 : index
    %c0_0 = arith.constant 0 : index
    %0 = vector.load %arg1[%c0, %c0_0] : memref<512x128xbf16, #tpu.memory_space<vmem>>, vector<512x128xbf16>
    %c0_1 = arith.constant 0 : index
    %c0_2 = arith.constant 0 : index
    %1 = vector.load %arg2[%c0_1, %c0_2] : memref<128x128xbf16, #tpu.memory_space<vmem>>, vector<128x128xbf16>
    %cst = arith.constant dense<0.000000e+00> : vector<512x128xf32>
    %2 = tpu.matmul %0, %1, %cst {dimension_numbers = #tpu.dot_dimension_numbers<[1], [0], [0], [1], [0, 0, 1, 1], [], []>} : vector<512x128xbf16>, vector<128x128xbf16>, vector<512x128xf32> -> vector<512x128xf32>
    %c0_3 = arith.constant 0 : index
    %c0_4 = arith.constant 0 : index
    %3 = vector.load %arg3[%c0_3, %c0_4] : memref<1x128xf32, #tpu.memory_space<vmem>>, vector<1x128xf32>
    %4 = vector.broadcast %3 : vector<1x128xf32> to vector<512x128xf32>
    %5 = arith.addf %2, %4 : vector<512x128xf32>
    %cst_5 = arith.constant 0.000000e+00 : f32
    %6 = vector.broadcast %cst_5 : f32 to vector<512x128xf32>
    %7 = arith.cmpf ogt, %5, %6 : vector<512x128xf32>
    %cst_6 = arith.constant 2.000000e-01 : f32
    %8 = vector.broadcast %cst_6 : f32 to vector<512x128xf32>
    %9 = arith.mulf %8, %5 : vector<512x128xf32>
    %10 = arith.select %7, %5, %9 : vector<512x128xi1>, vector<512x128xf32>
    %11 = arith.truncf %10 : vector<512x128xf32> to vector<512x128xbf16>
    %c0_7 = arith.constant 0 : index
    %c0_8 = arith.constant 0 : index
    %12 = vector.load %arg4[%c0_7, %c0_8] : memref<512x128xbf16, #tpu.memory_space<vmem>>, vector<512x128xbf16>
    tpu.vector_store %arg4[%c0_7, %c0_8], %11 {strides = array<i32>} : memref<512x128xbf16, #tpu.memory_space<vmem>>, vector<512x128xbf16>,
    return
  }
  func.func @transform_0(%arg0: i32) -> (i32, i32) {
    %c0_i32 = arith.constant 0 : i32
    %c0_i32_0 = arith.constant 0 : i32
    return %arg0, %c0_i32 : i32, i32
  }
  func.func @transform_1(%arg0: i32) -> (i32, i32) {
    %c0_i32 = arith.constant 0 : i32
    %c0_i32_0 = arith.constant 0 : i32
    %c0_i32_1 = arith.constant 0 : i32
    return %c0_i32, %c0_i32_0 : i32, i32
  }
  func.func @transform_2(%arg0: i32) -> (i32, i32) {
    %c0_i32 = arith.constant 0 : i32
    %c0_i32_0 = arith.constant 0 : i32
    %c0_i32_1 = arith.constant 0 : i32
    return %c0_i32, %c0_i32_0 : i32, i32
  }
  func.func @transform_3(%arg0: i32) -> (i32, i32) {
    %c0_i32 = arith.constant 0 : i32
    %c0_i32_0 = arith.constant 0 : i32
    return %arg0, %c0_i32 : i32, i32
  }
}

module attributes {stable_mosaic.version = 11 : i64} {
  func.func @_matmul_bn_act_kernel(%arg0: i32, %arg1: memref<128x1024xbf16, #tpu.memory_space<vmem>>, %arg2: memref<1024x128xbf16, #tpu.memory_space<vmem>>, %arg3: memref<1x128xf32, #tpu.memory_space<vmem>>, %arg4: memref<1x128xf32, #tpu.memory_space<vmem>>, %arg5: memref<128x128xbf16, #tpu.memory_space<vmem>>) attributes {dimension_semantics = [#tpu.dimension_semantics<parallel>], iteration_bounds = array<i64: 1>, scalar_prefetch = 0 : i64, scratch_operands = 0 : i64, tpu.core_type = #tpu.core_type<tc>, window_params = [{transform_indices = @transform_0, window_bounds = array<i64: 128, 1024>}, {pipeline_mode = #tpu.pipeline_mode<synchronous>, transform_indices = @transform_1, window_bounds = array<i64: 1024, 128>}, {pipeline_mode = #tpu.pipeline_mode<synchronous>, transform_indices = @transform_2, window_bounds = array<i64: 1, 128>}, {pipeline_mode = #tpu.pipeline_mode<synchronous>, transform_indices = @transform_3, window_bounds = array<i64: 1, 128>}, {transform_indices = @transform_4, window_bounds = array<i64: 128, 128>}]} {
    %c0 = arith.constant 0 : index
    %c0_0 = arith.constant 0 : index
    %0 = vector.load %arg1[%c0, %c0_0] : memref<128x1024xbf16, #tpu.memory_space<vmem>>, vector<128x1024xbf16>
    %c0_1 = arith.constant 0 : index
    %c0_2 = arith.constant 0 : index
    %1 = vector.load %arg2[%c0_1, %c0_2] : memref<1024x128xbf16, #tpu.memory_space<vmem>>, vector<1024x128xbf16>
    %cst = arith.constant dense<0.000000e+00> : vector<128x128xf32>
    %2 = tpu.matmul %0, %1, %cst {dimension_numbers = #tpu.dot_dimension_numbers<[1], [0], [0], [1], [0, 0, 1, 1], [], []>} : vector<128x1024xbf16>, vector<1024x128xbf16>, vector<128x128xf32> -> vector<128x128xf32>
    %cst_3 = arith.constant dense<0.000000e+00> : vector<128xf32>
    %3 = vector.multi_reduction <add>, %2, %cst_3 [0] : vector<128x128xf32> to vector<128xf32>
    %4 = vector.shape_cast %3 : vector<128xf32> to vector<1x128xf32>
    %cst_4 = arith.constant 7.812500e-03 : f32
    %5 = vector.broadcast %cst_4 : f32 to vector<1x128xf32>
    %6 = arith.mulf %4, %5 : vector<1x128xf32>
    %7 = arith.mulf %2, %2 : vector<128x128xf32>
    %cst_5 = arith.constant dense<0.000000e+00> : vector<128xf32>
    %8 = vector.multi_reduction <add>, %7, %cst_5 [0] : vector<128x128xf32> to vector<128xf32>
    %9 = vector.shape_cast %8 : vector<128xf32> to vector<1x128xf32>
    %cst_6 = arith.constant 7.812500e-03 : f32
    %10 = vector.broadcast %cst_6 : f32 to vector<1x128xf32>
    %11 = arith.mulf %9, %10 : vector<1x128xf32>
    %12 = arith.mulf %6, %6 : vector<1x128xf32>
    %13 = arith.subf %11, %12 : vector<1x128xf32>
    %cst_7 = arith.constant 0.000000e+00 : f32
    %14 = vector.broadcast %cst_7 : f32 to vector<1x128xf32>
    %15 = arith.maximumf %13, %14 : vector<1x128xf32>
    %cst_8 = arith.constant 9.99999974E-6 : f32
    %16 = vector.broadcast %cst_8 : f32 to vector<1x128xf32>
    %17 = arith.addf %15, %16 : vector<1x128xf32>
    %18 = math.rsqrt %17 : vector<1x128xf32>
    %c0_9 = arith.constant 0 : index
    %c0_10 = arith.constant 0 : index
    %19 = vector.load %arg3[%c0_9, %c0_10] : memref<1x128xf32, #tpu.memory_space<vmem>>, vector<1x128xf32>
    %20 = arith.mulf %19, %18 : vector<1x128xf32>
    %c0_11 = arith.constant 0 : index
    %c0_12 = arith.constant 0 : index
    %21 = vector.load %arg4[%c0_11, %c0_12] : memref<1x128xf32, #tpu.memory_space<vmem>>, vector<1x128xf32>
    %22 = arith.mulf %6, %20 : vector<1x128xf32>
    %23 = arith.subf %21, %22 : vector<1x128xf32>
    %24 = vector.broadcast %20 : vector<1x128xf32> to vector<128x128xf32>
    %25 = arith.mulf %2, %24 : vector<128x128xf32>
    %26 = vector.broadcast %23 : vector<1x128xf32> to vector<128x128xf32>
    %27 = arith.addf %25, %26 : vector<128x128xf32>
    %cst_13 = arith.constant 0.000000e+00 : f32
    %28 = vector.broadcast %cst_13 : f32 to vector<128x128xf32>
    %29 = arith.cmpf ogt, %27, %28 : vector<128x128xf32>
    %cst_14 = arith.constant 2.000000e-01 : f32
    %30 = vector.broadcast %cst_14 : f32 to vector<128x128xf32>
    %31 = arith.mulf %30, %27 : vector<128x128xf32>
    %32 = arith.select %29, %27, %31 : vector<128x128xi1>, vector<128x128xf32>
    %33 = arith.truncf %32 : vector<128x128xf32> to vector<128x128xbf16>
    %c0_15 = arith.constant 0 : index
    %c0_16 = arith.constant 0 : index
    %34 = vector.load %arg5[%c0_15, %c0_16] : memref<128x128xbf16, #tpu.memory_space<vmem>>, vector<128x128xbf16>
    tpu.vector_store %arg5[%c0_15, %c0_16], %33 {strides = array<i32>} : memref<128x128xbf16, #tpu.memory_space<vmem>>, vector<128x128xbf16>,
    return
  }
  func.func @transform_0(%arg0: i32) -> (i32, i32) {
    %c0_i32 = arith.constant 0 : i32
    %c0_i32_0 = arith.constant 0 : i32
    return %arg0, %c0_i32 : i32, i32
  }
  func.func @transform_1(%arg0: i32) -> (i32, i32) {
    %c0_i32 = arith.constant 0 : i32
    %c0_i32_0 = arith.constant 0 : i32
    %c0_i32_1 = arith.constant 0 : i32
    return %c0_i32, %c0_i32_0 : i32, i32
  }
  func.func @transform_2(%arg0: i32) -> (i32, i32) {
    %c0_i32 = arith.constant 0 : i32
    %c0_i32_0 = arith.constant 0 : i32
    %c0_i32_1 = arith.constant 0 : i32
    return %c0_i32, %c0_i32_0 : i32, i32
  }
  func.func @transform_3(%arg0: i32) -> (i32, i32) {
    %c0_i32 = arith.constant 0 : i32
    %c0_i32_0 = arith.constant 0 : i32
    %c0_i32_1 = arith.constant 0 : i32
    return %c0_i32, %c0_i32_0 : i32, i32
  }
  func.func @transform_4(%arg0: i32) -> (i32, i32) {
    %c0_i32 = arith.constant 0 : i32
    %c0_i32_0 = arith.constant 0 : i32
    return %arg0, %c0_i32 : i32, i32
  }
}

module attributes {stable_mosaic.version = 11 : i64} {
  func.func @_matmul_bn_act_kernel(%arg0: i32, %arg1: memref<32x2048xbf16, #tpu.memory_space<vmem>>, %arg2: memref<2048x256xbf16, #tpu.memory_space<vmem>>, %arg3: memref<1x256xf32, #tpu.memory_space<vmem>>, %arg4: memref<1x256xf32, #tpu.memory_space<vmem>>, %arg5: memref<32x256xbf16, #tpu.memory_space<vmem>>) attributes {dimension_semantics = [#tpu.dimension_semantics<parallel>], iteration_bounds = array<i64: 1>, scalar_prefetch = 0 : i64, scratch_operands = 0 : i64, tpu.core_type = #tpu.core_type<tc>, window_params = [{transform_indices = @transform_0, window_bounds = array<i64: 32, 2048>}, {pipeline_mode = #tpu.pipeline_mode<synchronous>, transform_indices = @transform_1, window_bounds = array<i64: 2048, 256>}, {pipeline_mode = #tpu.pipeline_mode<synchronous>, transform_indices = @transform_2, window_bounds = array<i64: 1, 256>}, {pipeline_mode = #tpu.pipeline_mode<synchronous>, transform_indices = @transform_3, window_bounds = array<i64: 1, 256>}, {transform_indices = @transform_4, window_bounds = array<i64: 32, 256>}]} {
    %c0 = arith.constant 0 : index
    %c0_0 = arith.constant 0 : index
    %0 = vector.load %arg1[%c0, %c0_0] : memref<32x2048xbf16, #tpu.memory_space<vmem>>, vector<32x2048xbf16>
    %c0_1 = arith.constant 0 : index
    %c0_2 = arith.constant 0 : index
    %1 = vector.load %arg2[%c0_1, %c0_2] : memref<2048x256xbf16, #tpu.memory_space<vmem>>, vector<2048x256xbf16>
    %cst = arith.constant dense<0.000000e+00> : vector<32x256xf32>
    %2 = tpu.matmul %0, %1, %cst {dimension_numbers = #tpu.dot_dimension_numbers<[1], [0], [0], [1], [0, 0, 1, 1], [], []>} : vector<32x2048xbf16>, vector<2048x256xbf16>, vector<32x256xf32> -> vector<32x256xf32>
    %cst_3 = arith.constant dense<0.000000e+00> : vector<256xf32>
    %3 = vector.multi_reduction <add>, %2, %cst_3 [0] : vector<32x256xf32> to vector<256xf32>
    %4 = vector.shape_cast %3 : vector<256xf32> to vector<1x256xf32>
    %cst_4 = arith.constant 3.125000e-02 : f32
    %5 = vector.broadcast %cst_4 : f32 to vector<1x256xf32>
    %6 = arith.mulf %4, %5 : vector<1x256xf32>
    %7 = arith.mulf %2, %2 : vector<32x256xf32>
    %cst_5 = arith.constant dense<0.000000e+00> : vector<256xf32>
    %8 = vector.multi_reduction <add>, %7, %cst_5 [0] : vector<32x256xf32> to vector<256xf32>
    %9 = vector.shape_cast %8 : vector<256xf32> to vector<1x256xf32>
    %cst_6 = arith.constant 3.125000e-02 : f32
    %10 = vector.broadcast %cst_6 : f32 to vector<1x256xf32>
    %11 = arith.mulf %9, %10 : vector<1x256xf32>
    %12 = arith.mulf %6, %6 : vector<1x256xf32>
    %13 = arith.subf %11, %12 : vector<1x256xf32>
    %cst_7 = arith.constant 0.000000e+00 : f32
    %14 = vector.broadcast %cst_7 : f32 to vector<1x256xf32>
    %15 = arith.maximumf %13, %14 : vector<1x256xf32>
    %cst_8 = arith.constant 9.99999974E-6 : f32
    %16 = vector.broadcast %cst_8 : f32 to vector<1x256xf32>
    %17 = arith.addf %15, %16 : vector<1x256xf32>
    %18 = math.rsqrt %17 : vector<1x256xf32>
    %c0_9 = arith.constant 0 : index
    %c0_10 = arith.constant 0 : index
    %19 = vector.load %arg3[%c0_9, %c0_10] : memref<1x256xf32, #tpu.memory_space<vmem>>, vector<1x256xf32>
    %20 = arith.mulf %19, %18 : vector<1x256xf32>
    %c0_11 = arith.constant 0 : index
    %c0_12 = arith.constant 0 : index
    %21 = vector.load %arg4[%c0_11, %c0_12] : memref<1x256xf32, #tpu.memory_space<vmem>>, vector<1x256xf32>
    %22 = arith.mulf %6, %20 : vector<1x256xf32>
    %23 = arith.subf %21, %22 : vector<1x256xf32>
    %24 = vector.broadcast %20 : vector<1x256xf32> to vector<32x256xf32>
    %25 = arith.mulf %2, %24 : vector<32x256xf32>
    %26 = vector.broadcast %23 : vector<1x256xf32> to vector<32x256xf32>
    %27 = arith.addf %25, %26 : vector<32x256xf32>
    %cst_13 = arith.constant 0.000000e+00 : f32
    %28 = vector.broadcast %cst_13 : f32 to vector<32x256xf32>
    %29 = arith.cmpf ogt, %27, %28 : vector<32x256xf32>
    %cst_14 = arith.constant 2.000000e-01 : f32
    %30 = vector.broadcast %cst_14 : f32 to vector<32x256xf32>
    %31 = arith.mulf %30, %27 : vector<32x256xf32>
    %32 = arith.select %29, %27, %31 : vector<32x256xi1>, vector<32x256xf32>
    %33 = arith.truncf %32 : vector<32x256xf32> to vector<32x256xbf16>
    %c0_15 = arith.constant 0 : index
    %c0_16 = arith.constant 0 : index
    %34 = vector.load %arg5[%c0_15, %c0_16] : memref<32x256xbf16, #tpu.memory_space<vmem>>, vector<32x256xbf16>
    tpu.vector_store %arg5[%c0_15, %c0_16], %33 {strides = array<i32>} : memref<32x256xbf16, #tpu.memory_space<vmem>>, vector<32x256xbf16>,
    return
  }
  func.func @transform_0(%arg0: i32) -> (i32, i32) {
    %c0_i32 = arith.constant 0 : i32
    %c0_i32_0 = arith.constant 0 : i32
    return %arg0, %c0_i32 : i32, i32
  }
  func.func @transform_1(%arg0: i32) -> (i32, i32) {
    %c0_i32 = arith.constant 0 : i32
    %c0_i32_0 = arith.constant 0 : i32
    %c0_i32_1 = arith.constant 0 : i32
    return %c0_i32, %c0_i32_0 : i32, i32
  }
  func.func @transform_2(%arg0: i32) -> (i32, i32) {
    %c0_i32 = arith.constant 0 : i32
    %c0_i32_0 = arith.constant 0 : i32
    %c0_i32_1 = arith.constant 0 : i32
    return %c0_i32, %c0_i32_0 : i32, i32
  }
  func.func @transform_3(%arg0: i32) -> (i32, i32) {
    %c0_i32 = arith.constant 0 : i32
    %c0_i32_0 = arith.constant 0 : i32
    %c0_i32_1 = arith.constant 0 : i32
    return %c0_i32, %c0_i32_0 : i32, i32
  }
  func.func @transform_4(%arg0: i32) -> (i32, i32) {
    %c0_i32 = arith.constant 0 : i32
    %c0_i32_0 = arith.constant 0 : i32
    return %arg0, %c0_i32 : i32, i32
  }
}

module attributes {stable_mosaic.version = 11 : i64} {
  func.func @_matmul_bn_act_kernel(%arg0: i32, %arg1: memref<16x4096xbf16, #tpu.memory_space<vmem>>, %arg2: memref<4096x512xbf16, #tpu.memory_space<vmem>>, %arg3: memref<1x512xf32, #tpu.memory_space<vmem>>, %arg4: memref<1x512xf32, #tpu.memory_space<vmem>>, %arg5: memref<16x512xbf16, #tpu.memory_space<vmem>>) attributes {dimension_semantics = [#tpu.dimension_semantics<parallel>], iteration_bounds = array<i64: 1>, scalar_prefetch = 0 : i64, scratch_operands = 0 : i64, tpu.core_type = #tpu.core_type<tc>, window_params = [{transform_indices = @transform_0, window_bounds = array<i64: 16, 4096>}, {pipeline_mode = #tpu.pipeline_mode<synchronous>, transform_indices = @transform_1, window_bounds = array<i64: 4096, 512>}, {pipeline_mode = #tpu.pipeline_mode<synchronous>, transform_indices = @transform_2, window_bounds = array<i64: 1, 512>}, {pipeline_mode = #tpu.pipeline_mode<synchronous>, transform_indices = @transform_3, window_bounds = array<i64: 1, 512>}, {transform_indices = @transform_4, window_bounds = array<i64: 16, 512>}]} {
    %c0 = arith.constant 0 : index
    %c0_0 = arith.constant 0 : index
    %0 = vector.load %arg1[%c0, %c0_0] : memref<16x4096xbf16, #tpu.memory_space<vmem>>, vector<16x4096xbf16>
    %c0_1 = arith.constant 0 : index
    %c0_2 = arith.constant 0 : index
    %1 = vector.load %arg2[%c0_1, %c0_2] : memref<4096x512xbf16, #tpu.memory_space<vmem>>, vector<4096x512xbf16>
    %cst = arith.constant dense<0.000000e+00> : vector<16x512xf32>
    %2 = tpu.matmul %0, %1, %cst {dimension_numbers = #tpu.dot_dimension_numbers<[1], [0], [0], [1], [0, 0, 1, 1], [], []>} : vector<16x4096xbf16>, vector<4096x512xbf16>, vector<16x512xf32> -> vector<16x512xf32>
    %cst_3 = arith.constant dense<0.000000e+00> : vector<512xf32>
    %3 = vector.multi_reduction <add>, %2, %cst_3 [0] : vector<16x512xf32> to vector<512xf32>
    %4 = vector.shape_cast %3 : vector<512xf32> to vector<1x512xf32>
    %cst_4 = arith.constant 1.250000e-01 : f32
    %5 = vector.broadcast %cst_4 : f32 to vector<1x512xf32>
    %6 = arith.mulf %4, %5 : vector<1x512xf32>
    %7 = arith.mulf %2, %2 : vector<16x512xf32>
    %cst_5 = arith.constant dense<0.000000e+00> : vector<512xf32>
    %8 = vector.multi_reduction <add>, %7, %cst_5 [0] : vector<16x512xf32> to vector<512xf32>
    %9 = vector.shape_cast %8 : vector<512xf32> to vector<1x512xf32>
    %cst_6 = arith.constant 1.250000e-01 : f32
    %10 = vector.broadcast %cst_6 : f32 to vector<1x512xf32>
    %11 = arith.mulf %9, %10 : vector<1x512xf32>
    %12 = arith.mulf %6, %6 : vector<1x512xf32>
    %13 = arith.subf %11, %12 : vector<1x512xf32>
    %cst_7 = arith.constant 0.000000e+00 : f32
    %14 = vector.broadcast %cst_7 : f32 to vector<1x512xf32>
    %15 = arith.maximumf %13, %14 : vector<1x512xf32>
    %cst_8 = arith.constant 9.99999974E-6 : f32
    %16 = vector.broadcast %cst_8 : f32 to vector<1x512xf32>
    %17 = arith.addf %15, %16 : vector<1x512xf32>
    %18 = math.rsqrt %17 : vector<1x512xf32>
    %c0_9 = arith.constant 0 : index
    %c0_10 = arith.constant 0 : index
    %19 = vector.load %arg3[%c0_9, %c0_10] : memref<1x512xf32, #tpu.memory_space<vmem>>, vector<1x512xf32>
    %20 = arith.mulf %19, %18 : vector<1x512xf32>
    %c0_11 = arith.constant 0 : index
    %c0_12 = arith.constant 0 : index
    %21 = vector.load %arg4[%c0_11, %c0_12] : memref<1x512xf32, #tpu.memory_space<vmem>>, vector<1x512xf32>
    %22 = arith.mulf %6, %20 : vector<1x512xf32>
    %23 = arith.subf %21, %22 : vector<1x512xf32>
    %24 = vector.broadcast %20 : vector<1x512xf32> to vector<16x512xf32>
    %25 = arith.mulf %2, %24 : vector<16x512xf32>
    %26 = vector.broadcast %23 : vector<1x512xf32> to vector<16x512xf32>
    %27 = arith.addf %25, %26 : vector<16x512xf32>
    %cst_13 = arith.constant 0.000000e+00 : f32
    %28 = vector.broadcast %cst_13 : f32 to vector<16x512xf32>
    %29 = arith.cmpf ogt, %27, %28 : vector<16x512xf32>
    %cst_14 = arith.constant 2.000000e-01 : f32
    %30 = vector.broadcast %cst_14 : f32 to vector<16x512xf32>
    %31 = arith.mulf %30, %27 : vector<16x512xf32>
    %32 = arith.select %29, %27, %31 : vector<16x512xi1>, vector<16x512xf32>
    %33 = arith.truncf %32 : vector<16x512xf32> to vector<16x512xbf16>
    %c0_15 = arith.constant 0 : index
    %c0_16 = arith.constant 0 : index
    %34 = vector.load %arg5[%c0_15, %c0_16] : memref<16x512xbf16, #tpu.memory_space<vmem>>, vector<16x512xbf16>
    tpu.vector_store %arg5[%c0_15, %c0_16], %33 {strides = array<i32>} : memref<16x512xbf16, #tpu.memory_space<vmem>>, vector<16x512xbf16>,
    return
  }
  func.func @transform_0(%arg0: i32) -> (i32, i32) {
    %c0_i32 = arith.constant 0 : i32
    %c0_i32_0 = arith.constant 0 : i32
    return %arg0, %c0_i32 : i32, i32
  }
  func.func @transform_1(%arg0: i32) -> (i32, i32) {
    %c0_i32 = arith.constant 0 : i32
    %c0_i32_0 = arith.constant 0 : i32
    %c0_i32_1 = arith.constant 0 : i32
    return %c0_i32, %c0_i32_0 : i32, i32
  }
  func.func @transform_2(%arg0: i32) -> (i32, i32) {
    %c0_i32 = arith.constant 0 : i32
    %c0_i32_0 = arith.constant 0 : i32
    %c0_i32_1 = arith.constant 0 : i32
    return %c0_i32, %c0_i32_0 : i32, i32
  }
  func.func @transform_3(%arg0: i32) -> (i32, i32) {
    %c0_i32 = arith.constant 0 : i32
    %c0_i32_0 = arith.constant 0 : i32
    %c0_i32_1 = arith.constant 0 : i32
    return %c0_i32, %c0_i32_0 : i32, i32
  }
  func.func @transform_4(%arg0: i32) -> (i32, i32) {
    %c0_i32 = arith.constant 0 : i32
    %c0_i32_0 = arith.constant 0 : i32
    return %arg0, %c0_i32 : i32, i32
  }
}

</mosaic_0001>

<llo_original>
// kernel: tpu_custom_call.1
$region0: #{tpu_custom_call.1}
  #allocation0 [shape = 'u32[]', space=smem, size = 0x4, offset = 0x4, fixed_abs, tag = 'smem constant byte address 0x4 - core index']
  #allocation1 [shape = 'u32[144,128]{1,0:T(1,128)}', space=vmem, size = 0x12000, scoped, tag = 'internal scratch']
  %s0 = inlined_call_operand.hbm [shape: f32[16,128], index: 0, kind: input, shape index: {}]
  %s1 = inlined_call_operand.hbm [shape: f32[8,128], index: 1, kind: input, shape index: {}]
  %s2 = inlined_call_operand.hbm [shape: f32[16,128], index: 2, kind: output, shape index: {}]
  %s3 = sld [smem:[#allocation0]]
  $region49: #{tpu_custom_call.1} parent=0
    _
  %s5 = ssub.s32 1, %s3
  %s6 = scalar_select 0, %s5, %s3
  $region1: #{tpu_custom_call.1} parent=0
    #allocation2 [shape = 'u8[8192]{0}', space=vmem, size = 0x2000, scoped, tag = 'input window, operand 0']
    #allocation3 [shape = 's32[2]{0}', space=sflag, size = 0x8, scoped, tag = 'scoped memory for tpu_custom_call.1']
    #allocation4 [shape = 's32[2]{0}', space=sflag, size = 0x8, scoped, tag = 'scoped memory for tpu_custom_call.1']
    #allocation5 [shape = 'u8[4096]{0}', space=vmem, size = 0x1000, scoped, tag = 'input window, operand 1, single buffered']
    #allocation6 [shape = 's32[1]{0}', space=sflag, size = 0x4, scoped, tag = 'scoped memory for tpu_custom_call.1']
    #allocation7 [shape = 'u8[8192]{0}', space=vmem, size = 0x2000, scoped, tag = 'output window, operand 0']
    %7 = vsyncpa [#allocation3], 0
    %s8 = scalar_lea.sflag [#allocation3], 1
    %9 = vsyncpa %s8, 0
    %10 = vsyncpa [#allocation6], 0
    %11 = vsyncpa [#allocation4], 0
    %s12 = scalar_lea.sflag [#allocation4], 1
    %13 = vsyncpa %s12, 0
    loop: start=0, step=1, limit=4
    $region2: #{tpu_custom_call.1} parent=1 // loop_pre_header
      _
    $region3: #{tpu_custom_call.1} parent=1 // loop_header
      %s15 = sphi 0, %s19
      %p16 = scmp.ge.s32.totalorder %s15, 4
      %s25 = sphi 0, %s27
      %s28 = sphi 0, %s25
      %s29 = sphi 0, %s28
      %s45 = sphi 0, %s29
      %s49 = sphi 0, %s49
      %s51 = sphi 0, %s49
      %s52 = sphi 0, %s51
      %s66 = sphi 0, %s52
      %s72 = sphi 0, %s74
      %s75 = sphi 0, %s72
      %s76 = sphi 0, %s75
      %s92 = sphi 0, %s76
    $region4: #{tpu_custom_call.1} parent=1 // loop_header_branch
      %18 = sbr.rel (%p16) target = $region8
    $region5: #{tpu_custom_call.1} parent=1 // loop_body
      %s20 = ssub.s32 %s15, 1
      %s21 = ssub.s32 %s15, 2
      %s22 = sadd.s32 %s15, 1
      %s23 = ssub.s32 %s15, %s22
      %p24 = scmp.eq.s32.totalorder %s23, 0
      %s26 = sadd.s32 %s25, 1
      %s27 = scalar_select %p24, %s25, %s26
      %p30 = pneg %p24
      %p31 = scmp.eq.s32.totalorder %s15, 1
      %p32 = por %p30, %p31
      %p33 = scmp.ne.s32.totalorder %s25, %s28
      %p34 = scmp.eq.s32.totalorder %s15, 0
      %p35 = por %p33, %p34
      %p36 = scmp.ne.s32.totalorder %s25, %s28
      %p37 = scmp.eq.s32.totalorder %s20, 1
      %p38 = por %p36, %p37
      %p39 = scmp.ne.s32.totalorder %s28, %s29
      %p40 = scmp.eq.s32.totalorder %s20, 0
      %p41 = por %p39, %p40
      %p42 = scmp.ne.s32.totalorder %s28, %s29
      %p43 = scmp.eq.s32.totalorder %s21, 1
      %p44 = por %p42, %p43
      %p46 = scmp.ne.s32.totalorder %s29, %s45
      %p47 = scmp.eq.s32.totalorder %s21, 0
      %p48 = por %p46, %p47
      %s50 = sadd.s32 %s49, 1
      %p53 = scmp.eq.s32.totalorder %s15, 1
      %p54 = scmp.ne.s32.totalorder %s49, %s51
      %p55 = scmp.eq.s32.totalorder %s15, 0
      %p56 = por %p54, %p55
      %p57 = scmp.ne.s32.totalorder %s49, %s51
      %p58 = scmp.eq.s32.totalorder %s20, 1
      %p59 = por %p57, %p58
      %p60 = scmp.ne.s32.totalorder %s51, %s52
      %p61 = scmp.eq.s32.totalorder %s20, 0
      %p62 = por %p60, %p61
      %p63 = scmp.ne.s32.totalorder %s51, %s52
      %p64 = scmp.eq.s32.totalorder %s21, 1
      %p65 = por %p63, %p64
      %p67 = scmp.ne.s32.totalorder %s52, %s66
      %p68 = scmp.eq.s32.totalorder %s21, 0
      %p69 = por %p67, %p68
      %s70 = ssub.s32 %s15, %s22
      %p71 = scmp.eq.s32.totalorder %s70, 0
      %s73 = sadd.s32 %s72, 1
      %s74 = scalar_select %p71, %s72, %s73
      %p77 = pneg %p71
      %p78 = scmp.eq.s32.totalorder %s15, 1
      %p79 = por %p77, %p78
      %p80 = scmp.ne.s32.totalorder %s72, %s75
      %p81 = scmp.eq.s32.totalorder %s15, 0
      %p82 = por %p80, %p81
      %p83 = scmp.ne.s32.totalorder %s72, %s75
      %p84 = scmp.eq.s32.totalorder %s20, 1
      %p85 = por %p83, %p84
      %p86 = scmp.ne.s32.totalorder %s75, %s76
      %p87 = scmp.eq.s32.totalorder %s20, 0
      %p88 = por %p86, %p87
      %p89 = scmp.ne.s32.totalorder %s75, %s76
      %p90 = scmp.eq.s32.totalorder %s21, 1
      %p91 = por %p89, %p90
      %p93 = scmp.ne.s32.totalorder %s76, %s92
      %p94 = scmp.eq.s32.totalorder %s21, 0
      %p95 = por %p93, %p94
      %p96 = scmp.le.s32.totalorder 1, %s15
      %p97 = scmp.lt.s32.totalorder %s15, 3
      %p98 = pnand %p96, %p97
      %p99 = pneg %p98
      // Predicated region
      $region9: #{tpu_custom_call.1} parent=5 // pred_check
        _
      $region10: #{tpu_custom_call.1} parent=5 // pred_check_branch
        %101 = sbr.rel (%p98) target = $region12
      $region11: #{tpu_custom_call.1} parent=5 // pred_region
        %s102 = ssub.s32 %s15, 1
        // Predicated region
        $region13: #{tpu_custom_call.1} parent=11 // pred_check
          %p103 = pneg %p62
        $region14: #{tpu_custom_call.1} parent=11 // pred_check_branch
          %105 = sbr.rel (%p103) target = $region16
        $region15: #{tpu_custom_call.1} parent=11 // pred_region
          %s107 = ssub.s32 128, 128
          %108 = vsyncadd [#allocation6], %s107
          %s110 = sshll.u32 [#allocation5], 4
          %s111 = int_to_ptr.vmem [resolvable:$true] %s110
          %113 = dma.hbm_to_vmem [thread:$0]  %s1, 128, %s111, [#allocation6]
        $region16: #{tpu_custom_call.1} parent=11 // pred_fallthru
          _
      $region12: #{tpu_custom_call.1} parent=5 // pred_fallthru
        _
      %p114 = scmp.lt.s32.totalorder %s15, 2
      // Predicated region
      $region17: #{tpu_custom_call.1} parent=5 // pred_check
        %p115 = pneg %p114
      $region18: #{tpu_custom_call.1} parent=5 // pred_check_branch
        %117 = sbr.rel (%p115) target = $region20
      $region19: #{tpu_custom_call.1} parent=5 // pred_region
        // Predicated region
        $region21: #{tpu_custom_call.1} parent=19 // pred_check
          %p118 = pneg %p35
        $region22: #{tpu_custom_call.1} parent=19 // pred_check_branch
          %120 = sbr.rel (%p118) target = $region24
        $region23: #{tpu_custom_call.1} parent=19 // pred_region
          %s121 = sand.u32 %s25, 1
          %s122 = scalar_lea.sflag [#allocation3], %s121
          %s123 = sand.u32 %s25, 1
          %s124 = smul.addr %s123, 8
          %s125 = scalar_lea.vmem [#allocation2], %s124
          %s127 = ssub.s32 128, 128
          %128 = vsyncadd %s122, %s127
          %s129 = smul.addr %s15, 128
          %s130 = scalar_lea.hbm %s0, %s129
          %s132 = sshll.u32 %s125, 4
          %s133 = int_to_ptr.vmem [resolvable:$true] %s132
          %135 = dma.hbm_to_vmem [thread:$0]  %s130, 128, %s133, %s122
        $region24: #{tpu_custom_call.1} parent=19 // pred_fallthru
          _
      $region20: #{tpu_custom_call.1} parent=5 // pred_fallthru
        _
      %p136 = scmp.le.s32.totalorder 1, %s15
      %p137 = scmp.lt.s32.totalorder %s15, 3
      %p138 = pnand %p136, %p137
      %p139 = pneg %p138
      // Predicated region
      $region25: #{tpu_custom_call.1} parent=5 // pred_check
        _
      $region26: #{tpu_custom_call.1} parent=5 // pred_check_branch
        %141 = sbr.rel (%p138) target = $region28
      $region27: #{tpu_custom_call.1} parent=5 // pred_region
        %s142 = ssub.s32 %s15, 1
        %s143 = sand.u32 %s28, 1
        %s144 = scalar_lea.sflag [#allocation3], %s143
        %s145 = sand.u32 %s28, 1
        %s146 = smul.addr %s145, 8
        %s147 = scalar_lea.vmem [#allocation2], %s146
        // Predicated region
        $region29: #{tpu_custom_call.1} parent=27 // pred_check
          %p148 = pneg %p41
        $region30: #{tpu_custom_call.1} parent=27 // pred_check_branch
          %150 = sbr.rel (%p148) target = $region32
        $region31: #{tpu_custom_call.1} parent=27 // pred_region
          %151 = dma.done %s144, 128
        $region32: #{tpu_custom_call.1} parent=27 // pred_fallthru
          _
        // Predicated region
        $region33: #{tpu_custom_call.1} parent=27 // pred_check
          %p152 = pneg %p62
        $region34: #{tpu_custom_call.1} parent=27 // pred_check_branch
          %154 = sbr.rel (%p152) target = $region36
        $region35: #{tpu_custom_call.1} parent=27 // pred_region
          %155 = dma.done [#allocation6], 128
        $region36: #{tpu_custom_call.1} parent=27 // pred_fallthru
          _
        %s156 = sand.u32 %s28, 1
        %s157 = scalar_lea.sflag [#allocation3], %s156
        %s158 = sand.u32 %s28, 1
        %s159 = smul.addr %s158, 8
        %s160 = scalar_lea.vmem [#allocation2], %s159
        %p161 = pneg %p41
        %p162 = pneg %p38
        %p163 = pneg %p62
        %p164 = pneg %p59
        %p165 = pneg %p88
        %p166 = pneg %p85
        %s167 = sand.u32 %s75, 1
        %s168 = scalar_lea.sflag [#allocation4], %s167
        %s169 = sand.u32 %s75, 1
        %s170 = smul.addr %s169, 8
        %s171 = scalar_lea.vmem [#allocation7], %s170
        %v172 = vld [vmem:[%s147] sm:$0xff]
        %v173 = vld [vmem:[#allocation5] sm:$0xff]
        %v174 = vadd.f32 %v172, %v173
        %175 = vst [vmem:[%s171] sm:$0xff] %v174
        %s176 = sand.u32 %s75, 1
        %s177 = scalar_lea.sflag [#allocation4], %s176
        %s178 = sand.u32 %s75, 1
        %s179 = smul.addr %s178, 8
        %s180 = scalar_lea.vmem [#allocation7], %s179
        // Predicated region
        $region37: #{tpu_custom_call.1} parent=27 // pred_check
          %p181 = pneg %p85
        $region38: #{tpu_custom_call.1} parent=27 // pred_check_branch
          %183 = sbr.rel (%p181) target = $region40
        $region39: #{tpu_custom_call.1} parent=27 // pred_region
          %s185 = ssub.s32 128, 128
          %186 = vsyncadd %s177, %s185
          %s187 = smul.addr %s20, 128
          %s188 = scalar_lea.hbm %s2, %s187
          %s190 = sshll.u32 %s180, 4
          %s191 = int_to_ptr.vmem [resolvable:$true] %s190
          %193 = dma.vmem_to_hbm [thread:$0]  %s191, 128, %s188, %s177
        $region40: #{tpu_custom_call.1} parent=27 // pred_fallthru
          _
      $region28: #{tpu_custom_call.1} parent=5 // pred_fallthru
        _
      %p194 = scmp.le.s32.totalorder 2, %s15
      // Predicated region
      $region41: #{tpu_custom_call.1} parent=5 // pred_check
        %p195 = pneg %p194
      $region42: #{tpu_custom_call.1} parent=5 // pred_check_branch
        %197 = sbr.rel (%p195) target = $region44
      $region43: #{tpu_custom_call.1} parent=5 // pred_region
        %s198 = ssub.s32 %s15, 2
        // Predicated region
        $region45: #{tpu_custom_call.1} parent=43 // pred_check
          %p199 = pneg %p91
        $region46: #{tpu_custom_call.1} parent=43 // pred_check_branch
          %201 = sbr.rel (%p199) target = $region48
        $region47: #{tpu_custom_call.1} parent=43 // pred_region
          %s202 = sand.u32 %s76, 1
          %s203 = scalar_lea.sflag [#allocation4], %s202
          %s204 = sand.u32 %s76, 1
          %s205 = smul.addr %s204, 8
          %s206 = scalar_lea.vmem [#allocation7], %s205
          %207 = dma.done %s203, 128
        $region48: #{tpu_custom_call.1} parent=43 // pred_fallthru
          _
      $region44: #{tpu_custom_call.1} parent=5 // pred_fallthru
        _
    $region6: #{tpu_custom_call.1} parent=1 // loop_footer
      %s19 = sadd.s32 1, %s15
    $region7: #{tpu_custom_call.1} parent=1 // loop_footer_branch
      %14 = sbr.rel target = $region3
    $region8: #{tpu_custom_call.1} parent=1 // loop_exit
      _
    %208 = vsyncpa [#allocation3], 1
    %s209 = scalar_lea.sflag [#allocation3], 1
    %210 = vsyncpa %s209, 1
    %211 = vsyncpa [#allocation6], 1
    %212 = vsyncpa [#allocation4], 1
    %s213 = scalar_lea.sflag [#allocation4], 1
    %214 = vsyncpa %s213, 1

// kernel: _lambda_.4
$region0: #{_lambda_.4}
  #allocation0 [shape = 'u32[]', space=smem, size = 0x4, offset = 0x4, fixed_abs, tag = 'smem constant byte address 0x4 - core index']
  #allocation1 [shape = 'u32[144,128]{1,0:T(1,128)}', space=vmem, size = 0x12000, scoped, tag = 'internal scratch']
  %s0 = inlined_call_operand.vmem [shape: bf16[512,128], index: 0, kind: input, shape index: {}]
  %s1 = inlined_call_operand.vmem [shape: bf16[128,128], index: 1, kind: input, shape index: {}]
  %s2 = inlined_call_operand.vmem [shape: f32[1,128], index: 2, kind: input, shape index: {}]
  %s3 = inlined_call_operand.vmem [shape: bf16[512,128], index: 3, kind: output, shape index: {}]
  %s4 = sld [smem:[#allocation0]]
  $region22: #{_lambda_.4} parent=0
    _
  %s6 = ssub.s32 1, %s4
  %s7 = scalar_select 0, %s6, %s4
  // Predicated region
  $region2: #{_lambda_.4} parent=0 // pred_check
    _
  $region3: #{_lambda_.4} parent=0 // pred_check_branch
    %9 = sbr.rel (0) target = $region5
  $region4: #{_lambda_.4} parent=0 // pred_region
    _
  $region5: #{_lambda_.4} parent=0 // pred_fallthru
    _
  // Predicated region
  $region6: #{_lambda_.4} parent=0 // pred_check
    _
  $region7: #{_lambda_.4} parent=0 // pred_check_branch
    %11 = sbr.rel (0) target = $region9
  $region8: #{_lambda_.4} parent=0 // pred_region
    _
  $region9: #{_lambda_.4} parent=0 // pred_fallthru
    _
  // Predicated region
  $region10: #{_lambda_.4} parent=0 // pred_check
    _
  $region11: #{_lambda_.4} parent=0 // pred_check_branch
    %13 = sbr.rel (0) target = $region13
  $region12: #{_lambda_.4} parent=0 // pred_region
    _
  $region13: #{_lambda_.4} parent=0 // pred_fallthru
    _
  %v15 = vld [vmem:[%s0] sm:$0xf]
  %v16 = vld [vmem:[%s0 + $0x4] sm:$0xf]
  %v17 = vld [vmem:[%s0 + $0x8] sm:$0xf]
  %v18 = vld [vmem:[%s0 + $0xc] sm:$0xf]
  %v19 = vld [vmem:[%s0 + $0x10] sm:$0xf]
  %v20 = vld [vmem:[%s0 + $0x14] sm:$0xf]
  %v21 = vld [vmem:[%s0 + $0x18] sm:$0xf]
  %v22 = vld [vmem:[%s0 + $0x1c] sm:$0xf]
  %v23 = vld [vmem:[%s0 + $0x20] sm:$0xf]
  %v24 = vld [vmem:[%s0 + $0x24] sm:$0xf]
  %v25 = vld [vmem:[%s0 + $0x28] sm:$0xf]
  %v26 = vld [vmem:[%s0 + $0x2c] sm:$0xf]
  %v27 = vld [vmem:[%s0 + $0x30] sm:$0xf]
  %v28 = vld [vmem:[%s0 + $0x34] sm:$0xf]
  %v29 = vld [vmem:[%s0 + $0x38] sm:$0xf]
  %v30 = vld [vmem:[%s0 + $0x3c] sm:$0xf]
  %v31 = vld [vmem:[%s0 + $0x40] sm:$0xf]
  %v32 = vld [vmem:[%s0 + $0x44] sm:$0xf]
  %v33 = vld [vmem:[%s0 + $0x48] sm:$0xf]
  %v34 = vld [vmem:[%s0 + $0x4c] sm:$0xf]
  %v35 = vld [vmem:[%s0 + $0x50] sm:$0xf]
  %v36 = vld [vmem:[%s0 + $0x54] sm:$0xf]
  %v37 = vld [vmem:[%s0 + $0x58] sm:$0xf]
  %v38 = vld [vmem:[%s0 + $0x5c] sm:$0xf]
  %v39 = vld [vmem:[%s0 + $0x60] sm:$0xf]
  %v40 = vld [vmem:[%s0 + $0x64] sm:$0xf]
  %v41 = vld [vmem:[%s0 + $0x68] sm:$0xf]
  %v42 = vld [vmem:[%s0 + $0x6c] sm:$0xf]
  %v43 = vld [vmem:[%s0 + $0x70] sm:$0xf]
  %v44 = vld [vmem:[%s0 + $0x74] sm:$0xf]
  %v45 = vld [vmem:[%s0 + $0x78] sm:$0xf]
  %v46 = vld [vmem:[%s0 + $0x7c] sm:$0xf]
  %v47 = vld [vmem:[%s0 + $0x80] sm:$0xf]
  %v48 = vld [vmem:[%s0 + $0x84] sm:$0xf]
  %v49 = vld [vmem:[%s0 + $0x88] sm:$0xf]
  %v50 = vld [vmem:[%s0 + $0x8c] sm:$0xf]
  %v51 = vld [vmem:[%s0 + $0x90] sm:$0xf]
  %v52 = vld [vmem:[%s0 + $0x94] sm:$0xf]
  %v53 = vld [vmem:[%s0 + $0x98] sm:$0xf]
  %v54 = vld [vmem:[%s0 + $0x9c] sm:$0xf]
  %v55 = vld [vmem:[%s0 + $0xa0] sm:$0xf]
  %v56 = vld [vmem:[%s0 + $0xa4] sm:$0xf]
  %v57 = vld [vmem:[%s0 + $0xa8] sm:$0xf]
  %v58 = vld [vmem:[%s0 + $0xac] sm:$0xf]
  %v59 = vld [vmem:[%s0 + $0xb0] sm:$0xf]
  %v60 = vld [vmem:[%s0 + $0xb4] sm:$0xf]
  %v61 = vld [vmem:[%s0 + $0xb8] sm:$0xf]
  %v62 = vld [vmem:[%s0 + $0xbc] sm:$0xf]
  %v63 = vld [vmem:[%s0 + $0xc0] sm:$0xf]
  %v64 = vld [vmem:[%s0 + $0xc4] sm:$0xf]
  %v65 = vld [vmem:[%s0 + $0xc8] sm:$0xf]
  %v66 = vld [vmem:[%s0 + $0xcc] sm:$0xf]
  %v67 = vld [vmem:[%s0 + $0xd0] sm:$0xf]
  %v68 = vld [vmem:[%s0 + $0xd4] sm:$0xf]
  %v69 = vld [vmem:[%s0 + $0xd8] sm:$0xf]
  %v70 = vld [vmem:[%s0 + $0xdc] sm:$0xf]
  %v71 = vld [vmem:[%s0 + $0xe0] sm:$0xf]
  %v72 = vld [vmem:[%s0 + $0xe4] sm:$0xf]
  %v73 = vld [vmem:[%s0 + $0xe8] sm:$0xf]
  %v74 = vld [vmem:[%s0 + $0xec] sm:$0xf]
  %v75 = vld [vmem:[%s0 + $0xf0] sm:$0xf]
  %v76 = vld [vmem:[%s0 + $0xf4] sm:$0xf]
  %v77 = vld [vmem:[%s0 + $0xf8] sm:$0xf]
  %v78 = vld [vmem:[%s0 + $0xfc] sm:$0xf]
  %v79 = vld [vmem:[%s1] sm:$0xf]
  %v80 = vld [vmem:[%s1 + $0x4] sm:$0xf]
  %v81 = vld [vmem:[%s1 + $0x8] sm:$0xf]
  %v82 = vld [vmem:[%s1 + $0xc] sm:$0xf]
  %v83 = vld [vmem:[%s1 + $0x10] sm:$0xf]
  %v84 = vld [vmem:[%s1 + $0x14] sm:$0xf]
  %v85 = vld [vmem:[%s1 + $0x18] sm:$0xf]
  %v86 = vld [vmem:[%s1 + $0x1c] sm:$0xf]
  %v87 = vld [vmem:[%s1 + $0x20] sm:$0xf]
  %v88 = vld [vmem:[%s1 + $0x24] sm:$0xf]
  %v89 = vld [vmem:[%s1 + $0x28] sm:$0xf]
  %v90 = vld [vmem:[%s1 + $0x2c] sm:$0xf]
  %v91 = vld [vmem:[%s1 + $0x30] sm:$0xf]
  %v92 = vld [vmem:[%s1 + $0x34] sm:$0xf]
  %v93 = vld [vmem:[%s1 + $0x38] sm:$0xf]
  %v94 = vld [vmem:[%s1 + $0x3c] sm:$0xf]
  %v95 = vld [vmem:[%s2] sm:$0x1]
  %v97 = vlaneseq
  %v98 = vshrl.u32 %v97, 7
  %v99 = vsub.s32 0, %v98
  %v100 = vrot.slane %v95, %v99
  %v166 = vunpack.c.l.b16 %v15
  %v167 = vunpack.c.l.b16 %v16
  %v168 = vunpack.c.l.b16 %v17
  %v169 = vunpack.c.l.b16 %v18
  %v170 = vunpack.c.l.b16 %v19
  %v171 = vunpack.c.l.b16 %v20
  %v172 = vunpack.c.l.b16 %v21
  %v173 = vunpack.c.l.b16 %v22
  %v174 = vunpack.c.l.b16 %v23
  %v175 = vunpack.c.l.b16 %v24
  %v176 = vunpack.c.l.b16 %v25
  %v177 = vunpack.c.l.b16 %v26
  %v178 = vunpack.c.l.b16 %v27
  %v179 = vunpack.c.l.b16 %v28
  %v180 = vunpack.c.l.b16 %v29
  %v181 = vunpack.c.l.b16 %v30
  %v182 = vunpack.c.l.b16 %v31
  %v183 = vunpack.c.l.b16 %v32
  %v184 = vunpack.c.l.b16 %v33
  %v185 = vunpack.c.l.b16 %v34
  %v186 = vunpack.c.l.b16 %v35
  %v187 = vunpack.c.l.b16 %v36
  %v188 = vunpack.c.l.b16 %v37
  %v189 = vunpack.c.l.b16 %v38
  %v190 = vunpack.c.l.b16 %v39
  %v191 = vunpack.c.l.b16 %v40
  %v192 = vunpack.c.l.b16 %v41
  %v193 = vunpack.c.l.b16 %v42
  %v194 = vunpack.c.l.b16 %v43
  %v195 = vunpack.c.l.b16 %v44
  %v196 = vunpack.c.l.b16 %v45
  %v197 = vunpack.c.l.b16 %v46
  %v198 = vunpack.c.l.b16 %v47
  %v199 = vunpack.c.l.b16 %v48
  %v200 = vunpack.c.l.b16 %v49
  %v201 = vunpack.c.l.b16 %v50
  %v202 = vunpack.c.l.b16 %v51
  %v203 = vunpack.c.l.b16 %v52
  %v204 = vunpack.c.l.b16 %v53
  %v205 = vunpack.c.l.b16 %v54
  %v206 = vunpack.c.l.b16 %v55
  %v207 = vunpack.c.l.b16 %v56
  %v208 = vunpack.c.l.b16 %v57
  %v209 = vunpack.c.l.b16 %v58
  %v210 = vunpack.c.l.b16 %v59
  %v211 = vunpack.c.l.b16 %v60
  %v212 = vunpack.c.l.b16 %v61
  %v213 = vunpack.c.l.b16 %v62
  %v214 = vunpack.c.l.b16 %v63
  %v215 = vunpack.c.l.b16 %v64
  %v216 = vunpack.c.l.b16 %v65
  %v217 = vunpack.c.l.b16 %v66
  %v218 = vunpack.c.l.b16 %v67
  %v219 = vunpack.c.l.b16 %v68
  %v220 = vunpack.c.l.b16 %v69
  %v221 = vunpack.c.l.b16 %v70
  %v222 = vunpack.c.l.b16 %v71
  %v223 = vunpack.c.l.b16 %v72
  %v224 = vunpack.c.l.b16 %v73
  %v225 = vunpack.c.l.b16 %v74
  %v226 = vunpack.c.l.b16 %v75
  %v227 = vunpack.c.l.b16 %v76
  %v228 = vunpack.c.l.b16 %v77
  %v229 = vunpack.c.l.b16 %v78
  %v230 = vpack.c.b16 %v167, %v166
  %v231 = vpack.c.b16 %v169, %v168
  %v232 = vpack.c.b16 %v171, %v170
  %v233 = vpack.c.b16 %v173, %v172
  %v234 = vpack.c.b16 %v175, %v174
  %v235 = vpack.c.b16 %v177, %v176
  %v236 = vpack.c.b16 %v179, %v178
  %v237 = vpack.c.b16 %v181, %v180
  %v238 = vpack.c.b16 %v183, %v182
  %v239 = vpack.c.b16 %v185, %v184
  %v240 = vpack.c.b16 %v187, %v186
  %v241 = vpack.c.b16 %v189, %v188
  %v242 = vpack.c.b16 %v191, %v190
  %v243 = vpack.c.b16 %v193, %v192
  %v244 = vpack.c.b16 %v195, %v194
  %v245 = vpack.c.b16 %v197, %v196
  %v246 = vpack.c.b16 %v199, %v198
  %v247 = vpack.c.b16 %v201, %v200
  %v248 = vpack.c.b16 %v203, %v202
  %v249 = vpack.c.b16 %v205, %v204
  %v250 = vpack.c.b16 %v207, %v206
  %v251 = vpack.c.b16 %v209, %v208
  %v252 = vpack.c.b16 %v211, %v210
  %v253 = vpack.c.b16 %v213, %v212
  %v254 = vpack.c.b16 %v215, %v214
  %v255 = vpack.c.b16 %v217, %v216
  %v256 = vpack.c.b16 %v219, %v218
  %v257 = vpack.c.b16 %v221, %v220
  %v258 = vpack.c.b16 %v223, %v222
  %v259 = vpack.c.b16 %v225, %v224
  %v260 = vpack.c.b16 %v227, %v226
  %v261 = vpack.c.b16 %v229, %v228
  %v310 = vunpack.c.l.b16 %v79
  %v311 = vunpack.c.l.b16 %v80
  %v312 = vunpack.c.l.b16 %v81
  %v313 = vunpack.c.l.b16 %v82
  %v314 = vunpack.c.l.b16 %v83
  %v315 = vunpack.c.l.b16 %v84
  %v316 = vunpack.c.l.b16 %v85
  %v317 = vunpack.c.l.b16 %v86
  %v318 = vunpack.c.l.b16 %v87
  %v319 = vunpack.c.l.b16 %v88
  %v320 = vunpack.c.l.b16 %v89
  %v321 = vunpack.c.l.b16 %v90
  %v322 = vunpack.c.l.b16 %v91
  %v323 = vunpack.c.l.b16 %v92
  %v324 = vunpack.c.l.b16 %v93
  %v325 = vunpack.c.l.b16 %v94
  %v326 = vpack.c.b16 %v311, %v310
  %v327 = vpack.c.b16 %v313, %v312
  %v328 = vpack.c.b16 %v315, %v314
  %v329 = vpack.c.b16 %v317, %v316
  %v330 = vpack.c.b16 %v319, %v318
  %v331 = vpack.c.b16 %v321, %v320
  %v332 = vpack.c.b16 %v323, %v322
  %v333 = vpack.c.b16 %v325, %v324
  %342 = vmatprep.subr.bf16.mxu0 0
  %343 = vmatpush1.bf16.msra.mxu0 %v326
  %344 = vmatprep.subr.bf16.mxu0 0
  %345 = vmatpush1.bf16.msra.mxu0 %v327
  %346 = vmatprep.subr.bf16.mxu0 0
  %347 = vmatpush1.bf16.msra.mxu0 %v328
  %348 = vmatprep.subr.bf16.mxu0 0
  %349 = vmatpush1.bf16.msra.mxu0 %v329
  %350 = vmatprep.subr.bf16.mxu0 0
  %351 = vmatpush1.bf16.msra.mxu0 %v330
  %352 = vmatprep.subr.bf16.mxu0 0
  %353 = vmatpush1.bf16.msra.mxu0 %v331
  %354 = vmatprep.subr.bf16.mxu0 0
  %355 = vmatpush1.bf16.msra.mxu0 %v332
  %356 = vmatprep.subr.bf16.mxu0 0
  %357 = vmatpush1.bf16.msra.mxu0 %v333
  %358 = vmatprep.subr.bf16.mxu0 0
  %359 = vmatpush1.bf16.msra.mxu0 0
  %360 = vmatprep.subr.bf16.mxu0 0
  %361 = vmatpush1.bf16.msra.mxu0 0
  %362 = vmatprep.subr.bf16.mxu0 0
  %363 = vmatpush1.bf16.msra.mxu0 0
  %364 = vmatprep.subr.bf16.mxu0 0
  %365 = vmatpush1.bf16.msra.mxu0 0
  %366 = vmatprep.subr.bf16.mxu0 0
  %367 = vmatpush1.bf16.msra.mxu0 0
  %368 = vmatprep.subr.bf16.mxu0 0
  %369 = vmatpush1.bf16.msra.mxu0 0
  %370 = vmatprep.subr.bf16.mxu0 0
  %371 = vmatpush1.bf16.msra.mxu0 0
  %372 = vmatprep.subr.bf16.mxu0 0
  %373 = vmatpush1.bf16.msra.mxu0 0
  %374 = vmatprep.mubr.bf16.mxu0 0
  %375 = vmatmul.mubr.bf16.gmra.mrb[0].mxu0 %v230
  %v376 = vpop.f32.mrb[0].mxu0
  %v377 = vadd.f32 %v100, %v376
  %v378 = vpop.f32.mrb[0].mxu0
  %v379 = vpop.f32.mrb[0].mxu0
  %v380 = vadd.f32 %v100, %v379
  %v381 = vpop.f32.mrb[0].mxu0
  %382 = vmatprep.mubr.bf16.mxu0 0
  %383 = vmatmul.mubr.bf16.gmra.mrb[0].mxu0 %v231
  %v384 = vpop.f32.mrb[0].mxu0
  %v385 = vadd.f32 %v100, %v384
  %v386 = vpop.f32.mrb[0].mxu0
  %v387 = vpop.f32.mrb[0].mxu0
  %v388 = vadd.f32 %v100, %v387
  %v389 = vpop.f32.mrb[0].mxu0
  %390 = vmatprep.mubr.bf16.mxu0 0
  %391 = vmatmul.mubr.bf16.gmra.mrb[0].mxu0 %v232
  %v392 = vpop.f32.mrb[0].mxu0
  %v393 = vadd.f32 %v100, %v392
  %v394 = vpop.f32.mrb[0].mxu0
  %v395 = vpop.f32.mrb[0].mxu0
  %v396 = vadd.f32 %v100, %v395
  %v397 = vpop.f32.mrb[0].mxu0
  %398 = vmatprep.mubr.bf16.mxu0 0
  %399 = vmatmul.mubr.bf16.gmra.mrb[0].mxu0 %v233
  %v400 = vpop.f32.mrb[0].mxu0
  %v401 = vadd.f32 %v100, %v400
  %v402 = vpop.f32.mrb[0].mxu0
  %v403 = vpop.f32.mrb[0].mxu0
  %v404 = vadd.f32 %v100, %v403
  %v405 = vpop.f32.mrb[0].mxu0
  %406 = vmatprep.mubr.bf16.mxu0 0
  %407 = vmatmul.mubr.bf16.gmra.mrb[0].mxu0 %v234
  %v408 = vpop.f32.mrb[0].mxu0
  %v409 = vadd.f32 %v100, %v408
  %v410 = vpop.f32.mrb[0].mxu0
  %v411 = vpop.f32.mrb[0].mxu0
  %v412 = vadd.f32 %v100, %v411
  %v413 = vpop.f32.mrb[0].mxu0
  %414 = vmatprep.mubr.bf16.mxu0 0
  %415 = vmatmul.mubr.bf16.gmra.mrb[0].mxu0 %v235
  %v416 = vpop.f32.mrb[0].mxu0
  %v417 = vadd.f32 %v100, %v416
  %v418 = vpop.f32.mrb[0].mxu0
  %v419 = vpop.f32.mrb[0].mxu0
  %v420 = vadd.f32 %v100, %v419
  %v421 = vpop.f32.mrb[0].mxu0
  %422 = vmatprep.mubr.bf16.mxu0 0
  %423 = vmatmul.mubr.bf16.gmra.mrb[0].mxu0 %v236
  %v424 = vpop.f32.mrb[0].mxu0
  %v425 = vadd.f32 %v100, %v424
  %v426 = vpop.f32.mrb[0].mxu0
  %v427 = vpop.f32.mrb[0].mxu0
  %v428 = vadd.f32 %v100, %v427
  %v429 = vpop.f32.mrb[0].mxu0
  %430 = vmatprep.mubr.bf16.mxu0 0
  %431 = vmatmul.mubr.bf16.gmra.mrb[0].mxu0 %v237
  %v432 = vpop.f32.mrb[0].mxu0
  %v433 = vadd.f32 %v100, %v432
  %v434 = vpop.f32.mrb[0].mxu0
  %v435 = vpop.f32.mrb[0].mxu0
  %v436 = vadd.f32 %v100, %v435
  %v437 = vpop.f32.mrb[0].mxu0
  %438 = vmatprep.mubr.bf16.mxu0 0
  %439 = vmatmul.mubr.bf16.gmra.mrb[0].mxu0 %v238
  %v440 = vpop.f32.mrb[0].mxu0
  %v441 = vadd.f32 %v100, %v440
  %v442 = vpop.f32.mrb[0].mxu0
  %v443 = vpop.f32.mrb[0].mxu0
  %v444 = vadd.f32 %v100, %v443
  %v445 = vpop.f32.mrb[0].mxu0
  %446 = vmatprep.mubr.bf16.mxu0 0
  %447 = vmatmul.mubr.bf16.gmra.mrb[0].mxu0 %v239
  %v448 = vpop.f32.mrb[0].mxu0
  %v449 = vadd.f32 %v100, %v448
  %v450 = vpop.f32.mrb[0].mxu0
  %v451 = vpop.f32.mrb[0].mxu0
  %v452 = vadd.f32 %v100, %v451
  %v453 = vpop.f32.mrb[0].mxu0
  %454 = vmatprep.mubr.bf16.mxu0 0
  %455 = vmatmul.mubr.bf16.gmra.mrb[0].mxu0 %v240
  %v456 = vpop.f32.mrb[0].mxu0
  %v457 = vadd.f32 %v100, %v456
  %v458 = vpop.f32.mrb[0].mxu0
  %v459 = vpop.f32.mrb[0].mxu0
  %v460 = vadd.f32 %v100, %v459
  %v461 = vpop.f32.mrb[0].mxu0
  %462 = vmatprep.mubr.bf16.mxu0 0
  %463 = vmatmul.mubr.bf16.gmra.mrb[0].mxu0 %v241
  %v464 = vpop.f32.mrb[0].mxu0
  %v465 = vadd.f32 %v100, %v464
  %v466 = vpop.f32.mrb[0].mxu0
  %v467 = vpop.f32.mrb[0].mxu0
  %v468 = vadd.f32 %v100, %v467
  %v469 = vpop.f32.mrb[0].mxu0
  %470 = vmatprep.mubr.bf16.mxu0 0
  %471 = vmatmul.mubr.bf16.gmra.mrb[0].mxu0 %v242
  %v472 = vpop.f32.mrb[0].mxu0
  %v473 = vadd.f32 %v100, %v472
  %v474 = vpop.f32.mrb[0].mxu0
  %v475 = vpop.f32.mrb[0].mxu0
  %v476 = vadd.f32 %v100, %v475
  %v477 = vpop.f32.mrb[0].mxu0
  %478 = vmatprep.mubr.bf16.mxu0 0
  %479 = vmatmul.mubr.bf16.gmra.mrb[0].mxu0 %v243
  %v480 = vpop.f32.mrb[0].mxu0
  %v481 = vadd.f32 %v100, %v480
  %v482 = vpop.f32.mrb[0].mxu0
  %v483 = vpop.f32.mrb[0].mxu0
  %v484 = vadd.f32 %v100, %v483
  %v485 = vpop.f32.mrb[0].mxu0
  %486 = vmatprep.mubr.bf16.mxu0 0
  %487 = vmatmul.mubr.bf16.gmra.mrb[0].mxu0 %v244
  %v488 = vpop.f32.mrb[0].mxu0
  %v489 = vadd.f32 %v100, %v488
  %v490 = vpop.f32.mrb[0].mxu0
  %v491 = vpop.f32.mrb[0].mxu0
  %v492 = vadd.f32 %v100, %v491
  %v493 = vpop.f32.mrb[0].mxu0
  %494 = vmatprep.mubr.bf16.mxu0 0
  %495 = vmatmul.mubr.bf16.gmra.mrb[0].mxu0 %v245
  %v496 = vpop.f32.mrb[0].mxu0
  %v497 = vadd.f32 %v100, %v496
  %v498 = vpop.f32.mrb[0].mxu0
  %v499 = vpop.f32.mrb[0].mxu0
  %v500 = vadd.f32 %v100, %v499
  %v501 = vpop.f32.mrb[0].mxu0
  %502 = vmatprep.mubr.bf16.mxu0 0
  %503 = vmatmul.mubr.bf16.gmra.mrb[0].mxu0 %v246
  %v504 = vpop.f32.mrb[0].mxu0
  %v505 = vadd.f32 %v100, %v504
  %v506 = vpop.f32.mrb[0].mxu0
  %v507 = vpop.f32.mrb[0].mxu0
  %v508 = vadd.f32 %v100, %v507
  %v509 = vpop.f32.mrb[0].mxu0
  %510 = vmatprep.mubr.bf16.mxu0 0
  %511 = vmatmul.mubr.bf16.gmra.mrb[0].mxu0 %v247
  %v512 = vpop.f32.mrb[0].mxu0
  %v513 = vadd.f32 %v100, %v512
  %v514 = vpop.f32.mrb[0].mxu0
  %v515 = vpop.f32.mrb[0].mxu0
  %v516 = vadd.f32 %v100, %v515
  %v517 = vpop.f32.mrb[0].mxu0
  %518 = vmatprep.mubr.bf16.mxu0 0
  %519 = vmatmul.mubr.bf16.gmra.mrb[0].mxu0 %v248
  %v520 = vpop.f32.mrb[0].mxu0
  %v521 = vadd.f32 %v100, %v520
  %v522 = vpop.f32.mrb[0].mxu0
  %v523 = vpop.f32.mrb[0].mxu0
  %v524 = vadd.f32 %v100, %v523
  %v525 = vpop.f32.mrb[0].mxu0
  %526 = vmatprep.mubr.bf16.mxu0 0
  %527 = vmatmul.mubr.bf16.gmra.mrb[0].mxu0 %v249
  %v528 = vpop.f32.mrb[0].mxu0
  %v529 = vadd.f32 %v100, %v528
  %v530 = vpop.f32.mrb[0].mxu0
  %v531 = vpop.f32.mrb[0].mxu0
  %v532 = vadd.f32 %v100, %v531
  %v533 = vpop.f32.mrb[0].mxu0
  %534 = vmatprep.mubr.bf16.mxu0 0
  %535 = vmatmul.mubr.bf16.gmra.mrb[0].mxu0 %v250
  %v536 = vpop.f32.mrb[0].mxu0
  %v537 = vadd.f32 %v100, %v536
  %v538 = vpop.f32.mrb[0].mxu0
  %v539 = vpop.f32.mrb[0].mxu0
  %v540 = vadd.f32 %v100, %v539
  %v541 = vpop.f32.mrb[0].mxu0
  %542 = vmatprep.mubr.bf16.mxu0 0
  %543 = vmatmul.mubr.bf16.gmra.mrb[0].mxu0 %v251
  %v544 = vpop.f32.mrb[0].mxu0
  %v545 = vadd.f32 %v100, %v544
  %v546 = vpop.f32.mrb[0].mxu0
  %v547 = vpop.f32.mrb[0].mxu0
  %v548 = vadd.f32 %v100, %v547
  %v549 = vpop.f32.mrb[0].mxu0
  %550 = vmatprep.mubr.bf16.mxu0 0
  %551 = vmatmul.mubr.bf16.gmra.mrb[0].mxu0 %v252
  %v552 = vpop.f32.mrb[0].mxu0
  %v553 = vadd.f32 %v100, %v552
  %v554 = vpop.f32.mrb[0].mxu0
  %v555 = vpop.f32.mrb[0].mxu0
  %v556 = vadd.f32 %v100, %v555
  %v557 = vpop.f32.mrb[0].mxu0
  %558 = vmatprep.mubr.bf16.mxu0 0
  %559 = vmatmul.mubr.bf16.gmra.mrb[0].mxu0 %v253
  %v560 = vpop.f32.mrb[0].mxu0
  %v561 = vadd.f32 %v100, %v560
  %v562 = vpop.f32.mrb[0].mxu0
  %v563 = vpop.f32.mrb[0].mxu0
  %v564 = vadd.f32 %v100, %v563
  %v565 = vpop.f32.mrb[0].mxu0
  %566 = vmatprep.mubr.bf16.mxu0 0
  %567 = vmatmul.mubr.bf16.gmra.mrb[0].mxu0 %v254
  %v568 = vpop.f32.mrb[0].mxu0
  %v569 = vadd.f32 %v100, %v568
  %v570 = vpop.f32.mrb[0].mxu0
  %v571 = vpop.f32.mrb[0].mxu0
  %v572 = vadd.f32 %v100, %v571
  %v573 = vpop.f32.mrb[0].mxu0
  %574 = vmatprep.mubr.bf16.mxu0 0
  %575 = vmatmul.mubr.bf16.gmra.mrb[0].mxu0 %v255
  %v576 = vpop.f32.mrb[0].mxu0
  %v577 = vadd.f32 %v100, %v576
  %v578 = vpop.f32.mrb[0].mxu0
  %v579 = vpop.f32.mrb[0].mxu0
  %v580 = vadd.f32 %v100, %v579
  %v581 = vpop.f32.mrb[0].mxu0
  %582 = vmatprep.mubr.bf16.mxu0 0
  %583 = vmatmul.mubr.bf16.gmra.mrb[0].mxu0 %v256
  %v584 = vpop.f32.mrb[0].mxu0
  %v585 = vadd.f32 %v100, %v584
  %v586 = vpop.f32.mrb[0].mxu0
  %v587 = vpop.f32.mrb[0].mxu0
  %v588 = vadd.f32 %v100, %v587
  %v589 = vpop.f32.mrb[0].mxu0
  %590 = vmatprep.mubr.bf16.mxu0 0
  %591 = vmatmul.mubr.bf16.gmra.mrb[0].mxu0 %v257
  %v592 = vpop.f32.mrb[0].mxu0
  %v593 = vadd.f32 %v100, %v592
  %v594 = vpop.f32.mrb[0].mxu0
  %v595 = vpop.f32.mrb[0].mxu0
  %v596 = vadd.f32 %v100, %v595
  %v597 = vpop.f32.mrb[0].mxu0
  %598 = vmatprep.mubr.bf16.mxu0 0
  %599 = vmatmul.mubr.bf16.gmra.mrb[0].mxu0 %v258
  %v600 = vpop.f32.mrb[0].mxu0
  %v601 = vadd.f32 %v100, %v600
  %v602 = vpop.f32.mrb[0].mxu0
  %v603 = vpop.f32.mrb[0].mxu0
  %v604 = vadd.f32 %v100, %v603
  %v605 = vpop.f32.mrb[0].mxu0
  %606 = vmatprep.mubr.bf16.mxu0 0
  %607 = vmatmul.mubr.bf16.gmra.mrb[0].mxu0 %v259
  %v608 = vpop.f32.mrb[0].mxu0
  %v609 = vadd.f32 %v100, %v608
  %v610 = vpop.f32.mrb[0].mxu0
  %v611 = vpop.f32.mrb[0].mxu0
  %v612 = vadd.f32 %v100, %v611
  %v613 = vpop.f32.mrb[0].mxu0
  %614 = vmatprep.mubr.bf16.mxu0 0
  %615 = vmatmul.mubr.bf16.gmra.mrb[0].mxu0 %v260
  %v616 = vpop.f32.mrb[0].mxu0
  %v617 = vadd.f32 %v100, %v616
  %v618 = vpop.f32.mrb[0].mxu0
  %v619 = vpop.f32.mrb[0].mxu0
  %v620 = vadd.f32 %v100, %v619
  %v621 = vpop.f32.mrb[0].mxu0
  %622 = vmatprep.mubr.bf16.mxu0 0
  %623 = vmatmul.mubr.bf16.gmra.mrb[0].mxu0 %v261
  %v624 = vpop.f32.mrb[0].mxu0
  %v625 = vadd.f32 %v100, %v624
  %v626 = vpop.f32.mrb[0].mxu0
  %v627 = vpop.f32.mrb[0].mxu0
  %v628 = vadd.f32 %v100, %v627
  %v629 = vpop.f32.mrb[0].mxu0
  %630 = vdwg.mxu0
  %vm631 = vcmp.gt.f32.partialorder %v377, 0.0
  %vm632 = vcmp.gt.f32.partialorder %v380, 0.0
  %vm633 = vcmp.gt.f32.partialorder %v385, 0.0
  %vm634 = vcmp.gt.f32.partialorder %v388, 0.0
  %vm635 = vcmp.gt.f32.partialorder %v393, 0.0
  %vm636 = vcmp.gt.f32.partialorder %v396, 0.0
  %vm637 = vcmp.gt.f32.partialorder %v401, 0.0
  %vm638 = vcmp.gt.f32.partialorder %v404, 0.0
  %vm639 = vcmp.gt.f32.partialorder %v409, 0.0
  %vm640 = vcmp.gt.f32.partialorder %v412, 0.0
  %vm641 = vcmp.gt.f32.partialorder %v417, 0.0
  %vm642 = vcmp.gt.f32.partialorder %v420, 0.0
  %vm643 = vcmp.gt.f32.partialorder %v425, 0.0
  %vm644 = vcmp.gt.f32.partialorder %v428, 0.0
  %vm645 = vcmp.gt.f32.partialorder %v433, 0.0
  %vm646 = vcmp.gt.f32.partialorder %v436, 0.0
  %vm647 = vcmp.gt.f32.partialorder %v441, 0.0
  %vm648 = vcmp.gt.f32.partialorder %v444, 0.0
  %vm649 = vcmp.gt.f32.partialorder %v449, 0.0
  %vm650 = vcmp.gt.f32.partialorder %v452, 0.0
  %vm651 = vcmp.gt.f32.partialorder %v457, 0.0
  %vm652 = vcmp.gt.f32.partialorder %v460, 0.0
  %vm653 = vcmp.gt.f32.partialorder %v465, 0.0
  %vm654 = vcmp.gt.f32.partialorder %v468, 0.0
  %vm655 = vcmp.gt.f32.partialorder %v473, 0.0
  %vm656 = vcmp.gt.f32.partialorder %v476, 0.0
  %vm657 = vcmp.gt.f32.partialorder %v481, 0.0
  %vm658 = vcmp.gt.f32.partialorder %v484, 0.0
  %vm659 = vcmp.gt.f32.partialorder %v489, 0.0
  %vm660 = vcmp.gt.f32.partialorder %v492, 0.0
  %vm661 = vcmp.gt.f32.partialorder %v497, 0.0
  %vm662 = vcmp.gt.f32.partialorder %v500, 0.0
  %vm663 = vcmp.gt.f32.partialorder %v505, 0.0
  %vm664 = vcmp.gt.f32.partialorder %v508, 0.0
  %vm665 = vcmp.gt.f32.partialorder %v513, 0.0
  %vm666 = vcmp.gt.f32.partialorder %v516, 0.0
  %vm667 = vcmp.gt.f32.partialorder %v521, 0.0
  %vm668 = vcmp.gt.f32.partialorder %v524, 0.0
  %vm669 = vcmp.gt.f32.partialorder %v529, 0.0
  %vm670 = vcmp.gt.f32.partialorder %v532, 0.0
  %vm671 = vcmp.gt.f32.partialorder %v537, 0.0
  %vm672 = vcmp.gt.f32.partialorder %v540, 0.0
  %vm673 = vcmp.gt.f32.partialorder %v545, 0.0
  %vm674 = vcmp.gt.f32.partialorder %v548, 0.0
  %vm675 = vcmp.gt.f32.partialorder %v553, 0.0
  %vm676 = vcmp.gt.f32.partialorder %v556, 0.0
  %vm677 = vcmp.gt.f32.partialorder %v561, 0.0
  %vm678 = vcmp.gt.f32.partialorder %v564, 0.0
  %vm679 = vcmp.gt.f32.partialorder %v569, 0.0
  %vm680 = vcmp.gt.f32.partialorder %v572, 0.0
  %vm681 = vcmp.gt.f32.partialorder %v577, 0.0
  %vm682 = vcmp.gt.f32.partialorder %v580, 0.0
  %vm683 = vcmp.gt.f32.partialorder %v585, 0.0
  %vm684 = vcmp.gt.f32.partialorder %v588, 0.0
  %vm685 = vcmp.gt.f32.partialorder %v593, 0.0
  %vm686 = vcmp.gt.f32.partialorder %v596, 0.0
  %vm687 = vcmp.gt.f32.partialorder %v601, 0.0
  %vm688 = vcmp.gt.f32.partialorder %v604, 0.0
  %vm689 = vcmp.gt.f32.partialorder %v609, 0.0
  %vm690 = vcmp.gt.f32.partialorder %v612, 0.0
  %vm691 = vcmp.gt.f32.partialorder %v617, 0.0
  %vm692 = vcmp.gt.f32.partialorder %v620, 0.0
  %vm693 = vcmp.gt.f32.partialorder %v625, 0.0
  %vm694 = vcmp.gt.f32.partialorder %v628, 0.0
  %v695 = vmul.f32 %v377, 0.2
  %v696 = vmul.f32 %v380, 0.2
  %v697 = vmul.f32 %v385, 0.2
  %v698 = vmul.f32 %v388, 0.2
  %v699 = vmul.f32 %v393, 0.2
  %v700 = vmul.f32 %v396, 0.2
  %v701 = vmul.f32 %v401, 0.2
  %v702 = vmul.f32 %v404, 0.2
  %v703 = vmul.f32 %v409, 0.2
  %v704 = vmul.f32 %v412, 0.2
  %v705 = vmul.f32 %v417, 0.2
  %v706 = vmul.f32 %v420, 0.2
  %v707 = vmul.f32 %v425, 0.2
  %v708 = vmul.f32 %v428, 0.2
  %v709 = vmul.f32 %v433, 0.2
  %v710 = vmul.f32 %v436, 0.2
  %v711 = vmul.f32 %v441, 0.2
  %v712 = vmul.f32 %v444, 0.2
  %v713 = vmul.f32 %v449, 0.2
  %v714 = vmul.f32 %v452, 0.2
  %v715 = vmul.f32 %v457, 0.2
  %v716 = vmul.f32 %v460, 0.2
  %v717 = vmul.f32 %v465, 0.2
  %v718 = vmul.f32 %v468, 0.2
  %v719 = vmul.f32 %v473, 0.2
  %v720 = vmul.f32 %v476, 0.2
  %v721 = vmul.f32 %v481, 0.2
  %v722 = vmul.f32 %v484, 0.2
  %v723 = vmul.f32 %v489, 0.2
  %v724 = vmul.f32 %v492, 0.2
  %v725 = vmul.f32 %v497, 0.2
  %v726 = vmul.f32 %v500, 0.2
  %v727 = vmul.f32 %v505, 0.2
  %v728 = vmul.f32 %v508, 0.2
  %v729 = vmul.f32 %v513, 0.2
  %v730 = vmul.f32 %v516, 0.2
  %v731 = vmul.f32 %v521, 0.2
  %v732 = vmul.f32 %v524, 0.2
  %v733 = vmul.f32 %v529, 0.2
  %v734 = vmul.f32 %v532, 0.2
  %v735 = vmul.f32 %v537, 0.2
  %v736 = vmul.f32 %v540, 0.2
  %v737 = vmul.f32 %v545, 0.2
  %v738 = vmul.f32 %v548, 0.2
  %v739 = vmul.f32 %v553, 0.2
  %v740 = vmul.f32 %v556, 0.2
  %v741 = vmul.f32 %v561, 0.2
  %v742 = vmul.f32 %v564, 0.2
  %v743 = vmul.f32 %v569, 0.2
  %v744 = vmul.f32 %v572, 0.2
  %v745 = vmul.f32 %v577, 0.2
  %v746 = vmul.f32 %v580, 0.2
  %v747 = vmul.f32 %v585, 0.2
  %v748 = vmul.f32 %v588, 0.2
  %v749 = vmul.f32 %v593, 0.2
  %v750 = vmul.f32 %v596, 0.2
  %v751 = vmul.f32 %v601, 0.2
  %v752 = vmul.f32 %v604, 0.2
  %v753 = vmul.f32 %v609, 0.2
  %v754 = vmul.f32 %v612, 0.2
  %v755 = vmul.f32 %v617, 0.2
  %v756 = vmul.f32 %v620, 0.2
  %v757 = vmul.f32 %v625, 0.2
  %v758 = vmul.f32 %v628, 0.2
  %v759 = vsel %vm631, %v377, %v695
  %v760 = vsel %vm632, %v380, %v696
  %v761 = vsel %vm633, %v385, %v697
  %v762 = vsel %vm634, %v388, %v698
  %v763 = vsel %vm635, %v393, %v699
  %v764 = vsel %vm636, %v396, %v700
  %v765 = vsel %vm637, %v401, %v701
  %v766 = vsel %vm638, %v404, %v702
  %v767 = vsel %vm639, %v409, %v703
  %v768 = vsel %vm640, %v412, %v704
  %v769 = vsel %vm641, %v417, %v705
  %v770 = vsel %vm642, %v420, %v706
  %v771 = vsel %vm643, %v425, %v707
  %v772 = vsel %vm644, %v428, %v708
  %v773 = vsel %vm645, %v433, %v709
  %v774 = vsel %vm646, %v436, %v710
  %v775 = vsel %vm647, %v441, %v711
  %v776 = vsel %vm648, %v444, %v712
  %v777 = vsel %vm649, %v449, %v713
  %v778 = vsel %vm650, %v452, %v714
  %v779 = vsel %vm651, %v457, %v715
  %v780 = vsel %vm652, %v460, %v716
  %v781 = vsel %vm653, %v465, %v717
  %v782 = vsel %vm654, %v468, %v718
  %v783 = vsel %vm655, %v473, %v719
  %v784 = vsel %vm656, %v476, %v720
  %v785 = vsel %vm657, %v481, %v721
  %v786 = vsel %vm658, %v484, %v722
  %v787 = vsel %vm659, %v489, %v723
  %v788 = vsel %vm660, %v492, %v724
  %v789 = vsel %vm661, %v497, %v725
  %v790 = vsel %vm662, %v500, %v726
  %v791 = vsel %vm663, %v505, %v727
  %v792 = vsel %vm664, %v508, %v728
  %v793 = vsel %vm665, %v513, %v729
  %v794 = vsel %vm666, %v516, %v730
  %v795 = vsel %vm667, %v521, %v731
  %v796 = vsel %vm668, %v524, %v732
  %v797 = vsel %vm669, %v529, %v733
  %v798 = vsel %vm670, %v532, %v734
  %v799 = vsel %vm671, %v537, %v735
  %v800 = vsel %vm672, %v540, %v736
  %v801 = vsel %vm673, %v545, %v737
  %v802 = vsel %vm674, %v548, %v738
  %v803 = vsel %vm675, %v553, %v739
  %v804 = vsel %vm676, %v556, %v740
  %v805 = vsel %vm677, %v561, %v741
  %v806 = vsel %vm678, %v564, %v742
  %v807 = vsel %vm679, %v569, %v743
  %v808 = vsel %vm680, %v572, %v744
  %v809 = vsel %vm681, %v577, %v745
  %v810 = vsel %vm682, %v580, %v746
  %v811 = vsel %vm683, %v585, %v747
  %v812 = vsel %vm684, %v588, %v748
  %v813 = vsel %vm685, %v593, %v749
  %v814 = vsel %vm686, %v596, %v750
  %v815 = vsel %vm687, %v601, %v751
  %v816 = vsel %vm688, %v604, %v752
  %v817 = vsel %vm689, %v609, %v753
  %v818 = vsel %vm690, %v612, %v754
  %v819 = vsel %vm691, %v617, %v755
  %v820 = vsel %vm692, %v620, %v756
  %v821 = vsel %vm693, %v625, %v757
  %v822 = vsel %vm694, %v628, %v758
  %v823 = vpack.c.bf16 %v760, %v759
  %v824 = vpack.c.bf16 %v762, %v761
  %v825 = vpack.c.bf16 %v764, %v763
  %v826 = vpack.c.bf16 %v766, %v765
  %v827 = vpack.c.bf16 %v768, %v767
  %v828 = vpack.c.bf16 %v770, %v769
  %v829 = vpack.c.bf16 %v772, %v771
  %v830 = vpack.c.bf16 %v774, %v773
  %v831 = vpack.c.bf16 %v776, %v775
  %v832 = vpack.c.bf16 %v778, %v777
  %v833 = vpack.c.bf16 %v780, %v779
  %v834 = vpack.c.bf16 %v782, %v781
  %v835 = vpack.c.bf16 %v784, %v783
  %v836 = vpack.c.bf16 %v786, %v785
  %v837 = vpack.c.bf16 %v788, %v787
  %v838 = vpack.c.bf16 %v790, %v789
  %v839 = vpack.c.bf16 %v792, %v791
  %v840 = vpack.c.bf16 %v794, %v793
  %v841 = vpack.c.bf16 %v796, %v795
  %v842 = vpack.c.bf16 %v798, %v797
  %v843 = vpack.c.bf16 %v800, %v799
  %v844 = vpack.c.bf16 %v802, %v801
  %v845 = vpack.c.bf16 %v804, %v803
  %v846 = vpack.c.bf16 %v806, %v805
  %v847 = vpack.c.bf16 %v808, %v807
  %v848 = vpack.c.bf16 %v810, %v809
  %v849 = vpack.c.bf16 %v812, %v811
  %v850 = vpack.c.bf16 %v814, %v813
  %v851 = vpack.c.bf16 %v816, %v815
  %v852 = vpack.c.bf16 %v818, %v817
  %v853 = vpack.c.bf16 %v820, %v819
  %v854 = vpack.c.bf16 %v822, %v821
  %v887 = vunpack.c.l.b16 %v823
  %v888 = vunpack.c.h.b16 %v823
  %v889 = vunpack.c.l.b16 %v824
  %v890 = vunpack.c.h.b16 %v824
  %v891 = vunpack.c.l.b16 %v825
  %v892 = vunpack.c.h.b16 %v825
  %v893 = vunpack.c.l.b16 %v826
  %v894 = vunpack.c.h.b16 %v826
  %v895 = vunpack.c.l.b16 %v827
  %v896 = vunpack.c.h.b16 %v827
  %v897 = vunpack.c.l.b16 %v828
  %v898 = vunpack.c.h.b16 %v828
  %v899 = vunpack.c.l.b16 %v829
  %v900 = vunpack.c.h.b16 %v829
  %v901 = vunpack.c.l.b16 %v830
  %v902 = vunpack.c.h.b16 %v830
  %v903 = vunpack.c.l.b16 %v831
  %v904 = vunpack.c.h.b16 %v831
  %v905 = vunpack.c.l.b16 %v832
  %v906 = vunpack.c.h.b16 %v832
  %v907 = vunpack.c.l.b16 %v833
  %v908 = vunpack.c.h.b16 %v833
  %v909 = vunpack.c.l.b16 %v834
  %v910 = vunpack.c.h.b16 %v834
  %v911 = vunpack.c.l.b16 %v835
  %v912 = vunpack.c.h.b16 %v835
  %v913 = vunpack.c.l.b16 %v836
  %v914 = vunpack.c.h.b16 %v836
  %v915 = vunpack.c.l.b16 %v837
  %v916 = vunpack.c.h.b16 %v837
  %v917 = vunpack.c.l.b16 %v838
  %v918 = vunpack.c.h.b16 %v838
  %v919 = vunpack.c.l.b16 %v839
  %v920 = vunpack.c.h.b16 %v839
  %v921 = vunpack.c.l.b16 %v840
  %v922 = vunpack.c.h.b16 %v840
  %v923 = vunpack.c.l.b16 %v841
  %v924 = vunpack.c.h.b16 %v841
  %v925 = vunpack.c.l.b16 %v842
  %v926 = vunpack.c.h.b16 %v842
  %v927 = vunpack.c.l.b16 %v843
  %v928 = vunpack.c.h.b16 %v843
  %v929 = vunpack.c.l.b16 %v844
  %v930 = vunpack.c.h.b16 %v844
  %v931 = vunpack.c.l.b16 %v845
  %v932 = vunpack.c.h.b16 %v845
  %v933 = vunpack.c.l.b16 %v846
  %v934 = vunpack.c.h.b16 %v846
  %v935 = vunpack.c.l.b16 %v847
  %v936 = vunpack.c.h.b16 %v847
  %v937 = vunpack.c.l.b16 %v848
  %v938 = vunpack.c.h.b16 %v848
  %v939 = vunpack.c.l.b16 %v849
  %v940 = vunpack.c.h.b16 %v849
  %v941 = vunpack.c.l.b16 %v850
  %v942 = vunpack.c.h.b16 %v850
  %v943 = vunpack.c.l.b16 %v851
  %v944 = vunpack.c.h.b16 %v851
  %v945 = vunpack.c.l.b16 %v852
  %v946 = vunpack.c.h.b16 %v852
  %v947 = vunpack.c.l.b16 %v853
  %v948 = vunpack.c.h.b16 %v853
  %v949 = vunpack.c.l.b16 %v854
  %v950 = vunpack.c.h.b16 %v854
  %v951 = vpack.c.b16 %v887, %v887
  %v952 = vpack.c.b16 %v888, %v888
  %v953 = vpack.c.b16 %v889, %v889
  %v954 = vpack.c.b16 %v890, %v890
  %v955 = vpack.c.b16 %v891, %v891
  %v956 = vpack.c.b16 %v892, %v892
  %v957 = vpack.c.b16 %v893, %v893
  %v958 = vpack.c.b16 %v894, %v894
  %v959 = vpack.c.b16 %v895, %v895
  %v960 = vpack.c.b16 %v896, %v896
  %v961 = vpack.c.b16 %v897, %v897
  %v962 = vpack.c.b16 %v898, %v898
  %v963 = vpack.c.b16 %v899, %v899
  %v964 = vpack.c.b16 %v900, %v900
  %v965 = vpack.c.b16 %v901, %v901
  %v966 = vpack.c.b16 %v902, %v902
  %v967 = vpack.c.b16 %v903, %v903
  %v968 = vpack.c.b16 %v904, %v904
  %v969 = vpack.c.b16 %v905, %v905
  %v970 = vpack.c.b16 %v906, %v906
  %v971 = vpack.c.b16 %v907, %v907
  %v972 = vpack.c.b16 %v908, %v908
  %v973 = vpack.c.b16 %v909, %v909
  %v974 = vpack.c.b16 %v910, %v910
  %v975 = vpack.c.b16 %v911, %v911
  %v976 = vpack.c.b16 %v912, %v912
  %v977 = vpack.c.b16 %v913, %v913
  %v978 = vpack.c.b16 %v914, %v914
  %v979 = vpack.c.b16 %v915, %v915
  %v980 = vpack.c.b16 %v916, %v916
  %v981 = vpack.c.b16 %v917, %v917
  %v982 = vpack.c.b16 %v918, %v918
  %v983 = vpack.c.b16 %v919, %v919
  %v984 = vpack.c.b16 %v920, %v920
  %v985 = vpack.c.b16 %v921, %v921
  %v986 = vpack.c.b16 %v922, %v922
  %v987 = vpack.c.b16 %v923, %v923
  %v988 = vpack.c.b16 %v924, %v924
  %v989 = vpack.c.b16 %v925, %v925
  %v990 = vpack.c.b16 %v926, %v926
  %v991 = vpack.c.b16 %v927, %v927
  %v992 = vpack.c.b16 %v928, %v928
  %v993 = vpack.c.b16 %v929, %v929
  %v994 = vpack.c.b16 %v930, %v930
  %v995 = vpack.c.b16 %v931, %v931
  %v996 = vpack.c.b16 %v932, %v932
  %v997 = vpack.c.b16 %v933, %v933
  %v998 = vpack.c.b16 %v934, %v934
  %v999 = vpack.c.b16 %v935, %v935
  %v1000 = vpack.c.b16 %v936, %v936
  %v1001 = vpack.c.b16 %v937, %v937
  %v1002 = vpack.c.b16 %v938, %v938
  %v1003 = vpack.c.b16 %v939, %v939
  %v1004 = vpack.c.b16 %v940, %v940
  %v1005 = vpack.c.b16 %v941, %v941
  %v1006 = vpack.c.b16 %v942, %v942
  %v1007 = vpack.c.b16 %v943, %v943
  %v1008 = vpack.c.b16 %v944, %v944
  %v1009 = vpack.c.b16 %v945, %v945
  %v1010 = vpack.c.b16 %v946, %v946
  %v1011 = vpack.c.b16 %v947, %v947
  %v1012 = vpack.c.b16 %v948, %v948
  %v1013 = vpack.c.b16 %v949, %v949
  %v1014 = vpack.c.b16 %v950, %v950
  %1079 = vst [vmem:[%s3] sm:$0xf] %v951
  %1080 = vst [vmem:[%s3 + $0x4] sm:$0xf] %v952
  %1081 = vst [vmem:[%s3 + $0x8] sm:$0xf] %v953
  %1082 = vst [vmem:[%s3 + $0xc] sm:$0xf] %v954
  %1083 = vst [vmem:[%s3 + $0x10] sm:$0xf] %v955
  %1084 = vst [vmem:[%s3 + $0x14] sm:$0xf] %v956
  %1085 = vst [vmem:[%s3 + $0x18] sm:$0xf] %v957
  %1086 = vst [vmem:[%s3 + $0x1c] sm:$0xf] %v958
  %1087 = vst [vmem:[%s3 + $0x20] sm:$0xf] %v959
  %1088 = vst [vmem:[%s3 + $0x24] sm:$0xf] %v960
  %1089 = vst [vmem:[%s3 + $0x28] sm:$0xf] %v961
  %1090 = vst [vmem:[%s3 + $0x2c] sm:$0xf] %v962
  %1091 = vst [vmem:[%s3 + $0x30] sm:$0xf] %v963
  %1092 = vst [vmem:[%s3 + $0x34] sm:$0xf] %v964
  %1093 = vst [vmem:[%s3 + $0x38] sm:$0xf] %v965
  %1094 = vst [vmem:[%s3 + $0x3c] sm:$0xf] %v966
  %1095 = vst [vmem:[%s3 + $0x40] sm:$0xf] %v967
  %1096 = vst [vmem:[%s3 + $0x44] sm:$0xf] %v968
  %1097 = vst [vmem:[%s3 + $0x48] sm:$0xf] %v969
  %1098 = vst [vmem:[%s3 + $0x4c] sm:$0xf] %v970
  %1099 = vst [vmem:[%s3 + $0x50] sm:$0xf] %v971
  %1100 = vst [vmem:[%s3 + $0x54] sm:$0xf] %v972
  %1101 = vst [vmem:[%s3 + $0x58] sm:$0xf] %v973
  %1102 = vst [vmem:[%s3 + $0x5c] sm:$0xf] %v974
  %1103 = vst [vmem:[%s3 + $0x60] sm:$0xf] %v975
  %1104 = vst [vmem:[%s3 + $0x64] sm:$0xf] %v976
  %1105 = vst [vmem:[%s3 + $0x68] sm:$0xf] %v977
  %1106 = vst [vmem:[%s3 + $0x6c] sm:$0xf] %v978
  %1107 = vst [vmem:[%s3 + $0x70] sm:$0xf] %v979
  %1108 = vst [vmem:[%s3 + $0x74] sm:$0xf] %v980
  %1109 = vst [vmem:[%s3 + $0x78] sm:$0xf] %v981
  %1110 = vst [vmem:[%s3 + $0x7c] sm:$0xf] %v982
  %1111 = vst [vmem:[%s3 + $0x80] sm:$0xf] %v983
  %1112 = vst [vmem:[%s3 + $0x84] sm:$0xf] %v984
  %1113 = vst [vmem:[%s3 + $0x88] sm:$0xf] %v985
  %1114 = vst [vmem:[%s3 + $0x8c] sm:$0xf] %v986
  %1115 = vst [vmem:[%s3 + $0x90] sm:$0xf] %v987
  %1116 = vst [vmem:[%s3 + $0x94] sm:$0xf] %v988
  %1117 = vst [vmem:[%s3 + $0x98] sm:$0xf] %v989
  %1118 = vst [vmem:[%s3 + $0x9c] sm:$0xf] %v990
  %1119 = vst [vmem:[%s3 + $0xa0] sm:$0xf] %v991
  %1120 = vst [vmem:[%s3 + $0xa4] sm:$0xf] %v992
  %1121 = vst [vmem:[%s3 + $0xa8] sm:$0xf] %v993
  %1122 = vst [vmem:[%s3 + $0xac] sm:$0xf] %v994
  %1123 = vst [vmem:[%s3 + $0xb0] sm:$0xf] %v995
  %1124 = vst [vmem:[%s3 + $0xb4] sm:$0xf] %v996
  %1125 = vst [vmem:[%s3 + $0xb8] sm:$0xf] %v997
  %1126 = vst [vmem:[%s3 + $0xbc] sm:$0xf] %v998
  %1127 = vst [vmem:[%s3 + $0xc0] sm:$0xf] %v999
  %1128 = vst [vmem:[%s3 + $0xc4] sm:$0xf] %v1000
  %1129 = vst [vmem:[%s3 + $0xc8] sm:$0xf] %v1001
  %1130 = vst [vmem:[%s3 + $0xcc] sm:$0xf] %v1002
  %1131 = vst [vmem:[%s3 + $0xd0] sm:$0xf] %v1003
  %1132 = vst [vmem:[%s3 + $0xd4] sm:$0xf] %v1004
  %1133 = vst [vmem:[%s3 + $0xd8] sm:$0xf] %v1005
  %1134 = vst [vmem:[%s3 + $0xdc] sm:$0xf] %v1006
  %1135 = vst [vmem:[%s3 + $0xe0] sm:$0xf] %v1007
  %1136 = vst [vmem:[%s3 + $0xe4] sm:$0xf] %v1008
  %1137 = vst [vmem:[%s3 + $0xe8] sm:$0xf] %v1009
  %1138 = vst [vmem:[%s3 + $0xec] sm:$0xf] %v1010
  %1139 = vst [vmem:[%s3 + $0xf0] sm:$0xf] %v1011
  %1140 = vst [vmem:[%s3 + $0xf4] sm:$0xf] %v1012
  %1141 = vst [vmem:[%s3 + $0xf8] sm:$0xf] %v1013
  %1142 = vst [vmem:[%s3 + $0xfc] sm:$0xf] %v1014
  // Predicated region
  $region14: #{_lambda_.4} parent=0 // pred_check
    _
  $region15: #{_lambda_.4} parent=0 // pred_check_branch
    %1144 = sbr.rel (0) target = $region17
  $region16: #{_lambda_.4} parent=0 // pred_region
    _
  $region17: #{_lambda_.4} parent=0 // pred_fallthru
    _
  // Predicated region
  $region18: #{_lambda_.4} parent=0 // pred_check
    _
  $region19: #{_lambda_.4} parent=0 // pred_check_branch
    %1146 = sbr.rel (0) target = $region21
  $region20: #{_lambda_.4} parent=0 // pred_region
    _
  $region21: #{_lambda_.4} parent=0 // pred_fallthru
    _

// kernel: _lambda_.5
$region0: #{_lambda_.5}
  #allocation0 [shape = 'u32[]', space=smem, size = 0x4, offset = 0x4, fixed_abs, tag = 'smem constant byte address 0x4 - core index']
  #allocation1 [shape = 'u32[144,128]{1,0:T(1,128)}', space=vmem, size = 0x12000, scoped, tag = 'internal scratch']
  %s0 = inlined_call_operand.vmem [shape: bf16[128,1024], index: 0, kind: input, shape index: {}]
  %s1 = inlined_call_operand.vmem [shape: bf16[1024,128], index: 1, kind: input, shape index: {}]
  %s2 = inlined_call_operand.vmem [shape: f32[1,128], index: 2, kind: input, shape index: {}]
  %s3 = inlined_call_operand.vmem [shape: f32[1,128], index: 3, kind: input, shape index: {}]
  %s4 = inlined_call_operand.vmem [shape: bf16[128,128], index: 4, kind: output, shape index: {}]
  %s5 = sld [smem:[#allocation0]]
  $region26: #{_lambda_.5} parent=0
    _
  %s7 = ssub.s32 1, %s5
  %s8 = scalar_select 0, %s7, %s5
  // Predicated region
  $region2: #{_lambda_.5} parent=0 // pred_check
    _
  $region3: #{_lambda_.5} parent=0 // pred_check_branch
    %10 = sbr.rel (0) target = $region5
  $region4: #{_lambda_.5} parent=0 // pred_region
    _
  $region5: #{_lambda_.5} parent=0 // pred_fallthru
    _
  // Predicated region
  $region6: #{_lambda_.5} parent=0 // pred_check
    _
  $region7: #{_lambda_.5} parent=0 // pred_check_branch
    %12 = sbr.rel (0) target = $region9
  $region8: #{_lambda_.5} parent=0 // pred_region
    _
  $region9: #{_lambda_.5} parent=0 // pred_fallthru
    _
  // Predicated region
  $region10: #{_lambda_.5} parent=0 // pred_check
    _
  $region11: #{_lambda_.5} parent=0 // pred_check_branch
    %14 = sbr.rel (0) target = $region13
  $region12: #{_lambda_.5} parent=0 // pred_region
    _
  $region13: #{_lambda_.5} parent=0 // pred_fallthru
    _
  // Predicated region
  $region14: #{_lambda_.5} parent=0 // pred_check
    _
  $region15: #{_lambda_.5} parent=0 // pred_check_branch
    %16 = sbr.rel (0) target = $region17
  $region16: #{_lambda_.5} parent=0 // pred_region
    _
  $region17: #{_lambda_.5} parent=0 // pred_fallthru
    _
  %v18 = vld [vmem:[%s0] sm:$0xff]
  %v19 = vld [vmem:[%s0 + $0x8] sm:$0xff]
  %v20 = vld [vmem:[%s0 + $0x10] sm:$0xff]
  %v21 = vld [vmem:[%s0 + $0x18] sm:$0xff]
  %v22 = vld [vmem:[%s0 + $0x20] sm:$0xff]
  %v23 = vld [vmem:[%s0 + $0x28] sm:$0xff]
  %v24 = vld [vmem:[%s0 + $0x30] sm:$0xff]
  %v25 = vld [vmem:[%s0 + $0x38] sm:$0xff]
  %v26 = vld [vmem:[%s0 + $0x40] sm:$0xff]
  %v27 = vld [vmem:[%s0 + $0x48] sm:$0xff]
  %v28 = vld [vmem:[%s0 + $0x50] sm:$0xff]
  %v29 = vld [vmem:[%s0 + $0x58] sm:$0xff]
  %v30 = vld [vmem:[%s0 + $0x60] sm:$0xff]
  %v31 = vld [vmem:[%s0 + $0x68] sm:$0xff]
  %v32 = vld [vmem:[%s0 + $0x70] sm:$0xff]
  %v33 = vld [vmem:[%s0 + $0x78] sm:$0xff]
  %v34 = vld [vmem:[%s0 + $0x80] sm:$0xff]
  %v35 = vld [vmem:[%s0 + $0x88] sm:$0xff]
  %v36 = vld [vmem:[%s0 + $0x90] sm:$0xff]
  %v37 = vld [vmem:[%s0 + $0x98] sm:$0xff]
  %v38 = vld [vmem:[%s0 + $0xa0] sm:$0xff]
  %v39 = vld [vmem:[%s0 + $0xa8] sm:$0xff]
  %v40 = vld [vmem:[%s0 + $0xb0] sm:$0xff]
  %v41 = vld [vmem:[%s0 + $0xb8] sm:$0xff]
  %v42 = vld [vmem:[%s0 + $0xc0] sm:$0xff]
  %v43 = vld [vmem:[%s0 + $0xc8] sm:$0xff]
  %v44 = vld [vmem:[%s0 + $0xd0] sm:$0xff]
  %v45 = vld [vmem:[%s0 + $0xd8] sm:$0xff]
  %v46 = vld [vmem:[%s0 + $0xe0] sm:$0xff]
  %v47 = vld [vmem:[%s0 + $0xe8] sm:$0xff]
  %v48 = vld [vmem:[%s0 + $0xf0] sm:$0xff]
  %v49 = vld [vmem:[%s0 + $0xf8] sm:$0xff]
  %v50 = vld [vmem:[%s0 + $0x100] sm:$0xff]
  %v51 = vld [vmem:[%s0 + $0x108] sm:$0xff]
  %v52 = vld [vmem:[%s0 + $0x110] sm:$0xff]
  %v53 = vld [vmem:[%s0 + $0x118] sm:$0xff]
  %v54 = vld [vmem:[%s0 + $0x120] sm:$0xff]
  %v55 = vld [vmem:[%s0 + $0x128] sm:$0xff]
  %v56 = vld [vmem:[%s0 + $0x130] sm:$0xff]
  %v57 = vld [vmem:[%s0 + $0x138] sm:$0xff]
  %v58 = vld [vmem:[%s0 + $0x140] sm:$0xff]
  %v59 = vld [vmem:[%s0 + $0x148] sm:$0xff]
  %v60 = vld [vmem:[%s0 + $0x150] sm:$0xff]
  %v61 = vld [vmem:[%s0 + $0x158] sm:$0xff]
  %v62 = vld [vmem:[%s0 + $0x160] sm:$0xff]
  %v63 = vld [vmem:[%s0 + $0x168] sm:$0xff]
  %v64 = vld [vmem:[%s0 + $0x170] sm:$0xff]
  %v65 = vld [vmem:[%s0 + $0x178] sm:$0xff]
  %v66 = vld [vmem:[%s0 + $0x180] sm:$0xff]
  %v67 = vld [vmem:[%s0 + $0x188] sm:$0xff]
  %v68 = vld [vmem:[%s0 + $0x190] sm:$0xff]
  %v69 = vld [vmem:[%s0 + $0x198] sm:$0xff]
  %v70 = vld [vmem:[%s0 + $0x1a0] sm:$0xff]
  %v71 = vld [vmem:[%s0 + $0x1a8] sm:$0xff]
  %v72 = vld [vmem:[%s0 + $0x1b0] sm:$0xff]
  %v73 = vld [vmem:[%s0 + $0x1b8] sm:$0xff]
  %v74 = vld [vmem:[%s0 + $0x1c0] sm:$0xff]
  %v75 = vld [vmem:[%s0 + $0x1c8] sm:$0xff]
  %v76 = vld [vmem:[%s0 + $0x1d0] sm:$0xff]
  %v77 = vld [vmem:[%s0 + $0x1d8] sm:$0xff]
  %v78 = vld [vmem:[%s0 + $0x1e0] sm:$0xff]
  %v79 = vld [vmem:[%s0 + $0x1e8] sm:$0xff]
  %v80 = vld [vmem:[%s0 + $0x1f0] sm:$0xff]
  %v81 = vld [vmem:[%s0 + $0x1f8] sm:$0xff]
  %v82 = vld [vmem:[%s1] sm:$0xf]
  %v83 = vld [vmem:[%s1 + $0x4] sm:$0xf]
  %v84 = vld [vmem:[%s1 + $0x8] sm:$0xf]
  %v85 = vld [vmem:[%s1 + $0xc] sm:$0xf]
  %v86 = vld [vmem:[%s1 + $0x10] sm:$0xf]
  %v87 = vld [vmem:[%s1 + $0x14] sm:$0xf]
  %v88 = vld [vmem:[%s1 + $0x18] sm:$0xf]
  %v89 = vld [vmem:[%s1 + $0x1c] sm:$0xf]
  %v90 = vld [vmem:[%s1 + $0x20] sm:$0xf]
  %v91 = vld [vmem:[%s1 + $0x24] sm:$0xf]
  %v92 = vld [vmem:[%s1 + $0x28] sm:$0xf]
  %v93 = vld [vmem:[%s1 + $0x2c] sm:$0xf]
  %v94 = vld [vmem:[%s1 + $0x30] sm:$0xf]
  %v95 = vld [vmem:[%s1 + $0x34] sm:$0xf]
  %v96 = vld [vmem:[%s1 + $0x38] sm:$0xf]
  %v97 = vld [vmem:[%s1 + $0x3c] sm:$0xf]
  %v98 = vld [vmem:[%s1 + $0x40] sm:$0xf]
  %v99 = vld [vmem:[%s1 + $0x44] sm:$0xf]
  %v100 = vld [vmem:[%s1 + $0x48] sm:$0xf]
  %v101 = vld [vmem:[%s1 + $0x4c] sm:$0xf]
  %v102 = vld [vmem:[%s1 + $0x50] sm:$0xf]
  %v103 = vld [vmem:[%s1 + $0x54] sm:$0xf]
  %v104 = vld [vmem:[%s1 + $0x58] sm:$0xf]
  %v105 = vld [vmem:[%s1 + $0x5c] sm:$0xf]
  %v106 = vld [vmem:[%s1 + $0x60] sm:$0xf]
  %v107 = vld [vmem:[%s1 + $0x64] sm:$0xf]
  %v108 = vld [vmem:[%s1 + $0x68] sm:$0xf]
  %v109 = vld [vmem:[%s1 + $0x6c] sm:$0xf]
  %v110 = vld [vmem:[%s1 + $0x70] sm:$0xf]
  %v111 = vld [vmem:[%s1 + $0x74] sm:$0xf]
  %v112 = vld [vmem:[%s1 + $0x78] sm:$0xf]
  %v113 = vld [vmem:[%s1 + $0x7c] sm:$0xf]
  %v114 = vld [vmem:[%s1 + $0x80] sm:$0xf]
  %v115 = vld [vmem:[%s1 + $0x84] sm:$0xf]
  %v116 = vld [vmem:[%s1 + $0x88] sm:$0xf]
  %v117 = vld [vmem:[%s1 + $0x8c] sm:$0xf]
  %v118 = vld [vmem:[%s1 + $0x90] sm:$0xf]
  %v119 = vld [vmem:[%s1 + $0x94] sm:$0xf]
  %v120 = vld [vmem:[%s1 + $0x98] sm:$0xf]
  %v121 = vld [vmem:[%s1 + $0x9c] sm:$0xf]
  %v122 = vld [vmem:[%s1 + $0xa0] sm:$0xf]
  %v123 = vld [vmem:[%s1 + $0xa4] sm:$0xf]
  %v124 = vld [vmem:[%s1 + $0xa8] sm:$0xf]
  %v125 = vld [vmem:[%s1 + $0xac] sm:$0xf]
  %v126 = vld [vmem:[%s1 + $0xb0] sm:$0xf]
  %v127 = vld [vmem:[%s1 + $0xb4] sm:$0xf]
  %v128 = vld [vmem:[%s1 + $0xb8] sm:$0xf]
  %v129 = vld [vmem:[%s1 + $0xbc] sm:$0xf]
  %v130 = vld [vmem:[%s1 + $0xc0] sm:$0xf]
  %v131 = vld [vmem:[%s1 + $0xc4] sm:$0xf]
  %v132 = vld [vmem:[%s1 + $0xc8] sm:$0xf]
  %v133 = vld [vmem:[%s1 + $0xcc] sm:$0xf]
  %v134 = vld [vmem:[%s1 + $0xd0] sm:$0xf]
  %v135 = vld [vmem:[%s1 + $0xd4] sm:$0xf]
  %v136 = vld [vmem:[%s1 + $0xd8] sm:$0xf]
  %v137 = vld [vmem:[%s1 + $0xdc] sm:$0xf]
  %v138 = vld [vmem:[%s1 + $0xe0] sm:$0xf]
  %v139 = vld [vmem:[%s1 + $0xe4] sm:$0xf]
  %v140 = vld [vmem:[%s1 + $0xe8] sm:$0xf]
  %v141 = vld [vmem:[%s1 + $0xec] sm:$0xf]
  %v142 = vld [vmem:[%s1 + $0xf0] sm:$0xf]
  %v143 = vld [vmem:[%s1 + $0xf4] sm:$0xf]
  %v144 = vld [vmem:[%s1 + $0xf8] sm:$0xf]
  %v145 = vld [vmem:[%s1 + $0xfc] sm:$0xf]
  %v146 = vld [vmem:[%s1 + $0x100] sm:$0xf]
  %v147 = vld [vmem:[%s1 + $0x104] sm:$0xf]
  %v148 = vld [vmem:[%s1 + $0x108] sm:$0xf]
  %v149 = vld [vmem:[%s1 + $0x10c] sm:$0xf]
  %v150 = vld [vmem:[%s1 + $0x110] sm:$0xf]
  %v151 = vld [vmem:[%s1 + $0x114] sm:$0xf]
  %v152 = vld [vmem:[%s1 + $0x118] sm:$0xf]
  %v153 = vld [vmem:[%s1 + $0x11c] sm:$0xf]
  %v154 = vld [vmem:[%s1 + $0x120] sm:$0xf]
  %v155 = vld [vmem:[%s1 + $0x124] sm:$0xf]
  %v156 = vld [vmem:[%s1 + $0x128] sm:$0xf]
  %v157 = vld [vmem:[%s1 + $0x12c] sm:$0xf]
  %v158 = vld [vmem:[%s1 + $0x130] sm:$0xf]
  %v159 = vld [vmem:[%s1 + $0x134] sm:$0xf]
  %v160 = vld [vmem:[%s1 + $0x138] sm:$0xf]
  %v161 = vld [vmem:[%s1 + $0x13c] sm:$0xf]
  %v162 = vld [vmem:[%s1 + $0x140] sm:$0xf]
  %v163 = vld [vmem:[%s1 + $0x144] sm:$0xf]
  %v164 = vld [vmem:[%s1 + $0x148] sm:$0xf]
  %v165 = vld [vmem:[%s1 + $0x14c] sm:$0xf]
  %v166 = vld [vmem:[%s1 + $0x150] sm:$0xf]
  %v167 = vld [vmem:[%s1 + $0x154] sm:$0xf]
  %v168 = vld [vmem:[%s1 + $0x158] sm:$0xf]
  %v169 = vld [vmem:[%s1 + $0x15c] sm:$0xf]
  %v170 = vld [vmem:[%s1 + $0x160] sm:$0xf]
  %v171 = vld [vmem:[%s1 + $0x164] sm:$0xf]
  %v172 = vld [vmem:[%s1 + $0x168] sm:$0xf]
  %v173 = vld [vmem:[%s1 + $0x16c] sm:$0xf]
  %v174 = vld [vmem:[%s1 + $0x170] sm:$0xf]
  %v175 = vld [vmem:[%s1 + $0x174] sm:$0xf]
  %v176 = vld [vmem:[%s1 + $0x178] sm:$0xf]
  %v177 = vld [vmem:[%s1 + $0x17c] sm:$0xf]
  %v178 = vld [vmem:[%s1 + $0x180] sm:$0xf]
  %v179 = vld [vmem:[%s1 + $0x184] sm:$0xf]
  %v180 = vld [vmem:[%s1 + $0x188] sm:$0xf]
  %v181 = vld [vmem:[%s1 + $0x18c] sm:$0xf]
  %v182 = vld [vmem:[%s1 + $0x190] sm:$0xf]
  %v183 = vld [vmem:[%s1 + $0x194] sm:$0xf]
  %v184 = vld [vmem:[%s1 + $0x198] sm:$0xf]
  %v185 = vld [vmem:[%s1 + $0x19c] sm:$0xf]
  %v186 = vld [vmem:[%s1 + $0x1a0] sm:$0xf]
  %v187 = vld [vmem:[%s1 + $0x1a4] sm:$0xf]
  %v188 = vld [vmem:[%s1 + $0x1a8] sm:$0xf]
  %v189 = vld [vmem:[%s1 + $0x1ac] sm:$0xf]
  %v190 = vld [vmem:[%s1 + $0x1b0] sm:$0xf]
  %v191 = vld [vmem:[%s1 + $0x1b4] sm:$0xf]
  %v192 = vld [vmem:[%s1 + $0x1b8] sm:$0xf]
  %v193 = vld [vmem:[%s1 + $0x1bc] sm:$0xf]
  %v194 = vld [vmem:[%s1 + $0x1c0] sm:$0xf]
  %v195 = vld [vmem:[%s1 + $0x1c4] sm:$0xf]
  %v196 = vld [vmem:[%s1 + $0x1c8] sm:$0xf]
  %v197 = vld [vmem:[%s1 + $0x1cc] sm:$0xf]
  %v198 = vld [vmem:[%s1 + $0x1d0] sm:$0xf]
  %v199 = vld [vmem:[%s1 + $0x1d4] sm:$0xf]
  %v200 = vld [vmem:[%s1 + $0x1d8] sm:$0xf]
  %v201 = vld [vmem:[%s1 + $0x1dc] sm:$0xf]
  %v202 = vld [vmem:[%s1 + $0x1e0] sm:$0xf]
  %v203 = vld [vmem:[%s1 + $0x1e4] sm:$0xf]
  %v204 = vld [vmem:[%s1 + $0x1e8] sm:$0xf]
  %v205 = vld [vmem:[%s1 + $0x1ec] sm:$0xf]
  %v206 = vld [vmem:[%s1 + $0x1f0] sm:$0xf]
  %v207 = vld [vmem:[%s1 + $0x1f4] sm:$0xf]
  %v208 = vld [vmem:[%s1 + $0x1f8] sm:$0xf]
  %v209 = vld [vmem:[%s1 + $0x1fc] sm:$0xf]
  %v274 = vunpack.c.l.b16 %v18
  %v275 = vunpack.c.h.b16 %v18
  %v276 = vunpack.c.l.b16 %v19
  %v277 = vunpack.c.h.b16 %v19
  %v278 = vunpack.c.l.b16 %v20
  %v279 = vunpack.c.h.b16 %v20
  %v280 = vunpack.c.l.b16 %v21
  %v281 = vunpack.c.h.b16 %v21
  %v282 = vunpack.c.l.b16 %v22
  %v283 = vunpack.c.h.b16 %v22
  %v284 = vunpack.c.l.b16 %v23
  %v285 = vunpack.c.h.b16 %v23
  %v286 = vunpack.c.l.b16 %v24
  %v287 = vunpack.c.h.b16 %v24
  %v288 = vunpack.c.l.b16 %v25
  %v289 = vunpack.c.h.b16 %v25
  %v290 = vunpack.c.l.b16 %v26
  %v291 = vunpack.c.h.b16 %v26
  %v292 = vunpack.c.l.b16 %v27
  %v293 = vunpack.c.h.b16 %v27
  %v294 = vunpack.c.l.b16 %v28
  %v295 = vunpack.c.h.b16 %v28
  %v296 = vunpack.c.l.b16 %v29
  %v297 = vunpack.c.h.b16 %v29
  %v298 = vunpack.c.l.b16 %v30
  %v299 = vunpack.c.h.b16 %v30
  %v300 = vunpack.c.l.b16 %v31
  %v301 = vunpack.c.h.b16 %v31
  %v302 = vunpack.c.l.b16 %v32
  %v303 = vunpack.c.h.b16 %v32
  %v304 = vunpack.c.l.b16 %v33
  %v305 = vunpack.c.h.b16 %v33
  %v306 = vunpack.c.l.b16 %v34
  %v307 = vunpack.c.h.b16 %v34
  %v308 = vunpack.c.l.b16 %v35
  %v309 = vunpack.c.h.b16 %v35
  %v310 = vunpack.c.l.b16 %v36
  %v311 = vunpack.c.h.b16 %v36
  %v312 = vunpack.c.l.b16 %v37
  %v313 = vunpack.c.h.b16 %v37
  %v314 = vunpack.c.l.b16 %v38
  %v315 = vunpack.c.h.b16 %v38
  %v316 = vunpack.c.l.b16 %v39
  %v317 = vunpack.c.h.b16 %v39
  %v318 = vunpack.c.l.b16 %v40
  %v319 = vunpack.c.h.b16 %v40
  %v320 = vunpack.c.l.b16 %v41
  %v321 = vunpack.c.h.b16 %v41
  %v322 = vunpack.c.l.b16 %v42
  %v323 = vunpack.c.h.b16 %v42
  %v324 = vunpack.c.l.b16 %v43
  %v325 = vunpack.c.h.b16 %v43
  %v326 = vunpack.c.l.b16 %v44
  %v327 = vunpack.c.h.b16 %v44
  %v328 = vunpack.c.l.b16 %v45
  %v329 = vunpack.c.h.b16 %v45
  %v330 = vunpack.c.l.b16 %v46
  %v331 = vunpack.c.h.b16 %v46
  %v332 = vunpack.c.l.b16 %v47
  %v333 = vunpack.c.h.b16 %v47
  %v334 = vunpack.c.l.b16 %v48
  %v335 = vunpack.c.h.b16 %v48
  %v336 = vunpack.c.l.b16 %v49
  %v337 = vunpack.c.h.b16 %v49
  %v338 = vunpack.c.l.b16 %v50
  %v339 = vunpack.c.h.b16 %v50
  %v340 = vunpack.c.l.b16 %v51
  %v341 = vunpack.c.h.b16 %v51
  %v342 = vunpack.c.l.b16 %v52
  %v343 = vunpack.c.h.b16 %v52
  %v344 = vunpack.c.l.b16 %v53
  %v345 = vunpack.c.h.b16 %v53
  %v346 = vunpack.c.l.b16 %v54
  %v347 = vunpack.c.h.b16 %v54
  %v348 = vunpack.c.l.b16 %v55
  %v349 = vunpack.c.h.b16 %v55
  %v350 = vunpack.c.l.b16 %v56
  %v351 = vunpack.c.h.b16 %v56
  %v352 = vunpack.c.l.b16 %v57
  %v353 = vunpack.c.h.b16 %v57
  %v354 = vunpack.c.l.b16 %v58
  %v355 = vunpack.c.h.b16 %v58
  %v356 = vunpack.c.l.b16 %v59
  %v357 = vunpack.c.h.b16 %v59
  %v358 = vunpack.c.l.b16 %v60
  %v359 = vunpack.c.h.b16 %v60
  %v360 = vunpack.c.l.b16 %v61
  %v361 = vunpack.c.h.b16 %v61
  %v362 = vunpack.c.l.b16 %v62
  %v363 = vunpack.c.h.b16 %v62
  %v364 = vunpack.c.l.b16 %v63
  %v365 = vunpack.c.h.b16 %v63
  %v366 = vunpack.c.l.b16 %v64
  %v367 = vunpack.c.h.b16 %v64
  %v368 = vunpack.c.l.b16 %v65
  %v369 = vunpack.c.h.b16 %v65
  %v370 = vunpack.c.l.b16 %v66
  %v371 = vunpack.c.h.b16 %v66
  %v372 = vunpack.c.l.b16 %v67
  %v373 = vunpack.c.h.b16 %v67
  %v374 = vunpack.c.l.b16 %v68
  %v375 = vunpack.c.h.b16 %v68
  %v376 = vunpack.c.l.b16 %v69
  %v377 = vunpack.c.h.b16 %v69
  %v378 = vunpack.c.l.b16 %v70
  %v379 = vunpack.c.h.b16 %v70
  %v380 = vunpack.c.l.b16 %v71
  %v381 = vunpack.c.h.b16 %v71
  %v382 = vunpack.c.l.b16 %v72
  %v383 = vunpack.c.h.b16 %v72
  %v384 = vunpack.c.l.b16 %v73
  %v385 = vunpack.c.h.b16 %v73
  %v386 = vunpack.c.l.b16 %v74
  %v387 = vunpack.c.h.b16 %v74
  %v388 = vunpack.c.l.b16 %v75
  %v389 = vunpack.c.h.b16 %v75
  %v390 = vunpack.c.l.b16 %v76
  %v391 = vunpack.c.h.b16 %v76
  %v392 = vunpack.c.l.b16 %v77
  %v393 = vunpack.c.h.b16 %v77
  %v394 = vunpack.c.l.b16 %v78
  %v395 = vunpack.c.h.b16 %v78
  %v396 = vunpack.c.l.b16 %v79
  %v397 = vunpack.c.h.b16 %v79
  %v398 = vunpack.c.l.b16 %v80
  %v399 = vunpack.c.h.b16 %v80
  %v400 = vunpack.c.l.b16 %v81
  %v401 = vunpack.c.h.b16 %v81
  %v402 = vpack.c.b16 %v282, %v274
  %v403 = vpack.c.b16 %v283, %v275
  %v404 = vpack.c.b16 %v284, %v276
  %v405 = vpack.c.b16 %v285, %v277
  %v406 = vpack.c.b16 %v286, %v278
  %v407 = vpack.c.b16 %v287, %v279
  %v408 = vpack.c.b16 %v288, %v280
  %v409 = vpack.c.b16 %v289, %v281
  %v410 = vpack.c.b16 %v298, %v290
  %v411 = vpack.c.b16 %v299, %v291
  %v412 = vpack.c.b16 %v300, %v292
  %v413 = vpack.c.b16 %v301, %v293
  %v414 = vpack.c.b16 %v302, %v294
  %v415 = vpack.c.b16 %v303, %v295
  %v416 = vpack.c.b16 %v304, %v296
  %v417 = vpack.c.b16 %v305, %v297
  %v418 = vpack.c.b16 %v314, %v306
  %v419 = vpack.c.b16 %v315, %v307
  %v420 = vpack.c.b16 %v316, %v308
  %v421 = vpack.c.b16 %v317, %v309
  %v422 = vpack.c.b16 %v318, %v310
  %v423 = vpack.c.b16 %v319, %v311
  %v424 = vpack.c.b16 %v320, %v312
  %v425 = vpack.c.b16 %v321, %v313
  %v426 = vpack.c.b16 %v330, %v322
  %v427 = vpack.c.b16 %v331, %v323
  %v428 = vpack.c.b16 %v332, %v324
  %v429 = vpack.c.b16 %v333, %v325
  %v430 = vpack.c.b16 %v334, %v326
  %v431 = vpack.c.b16 %v335, %v327
  %v432 = vpack.c.b16 %v336, %v328
  %v433 = vpack.c.b16 %v337, %v329
  %v434 = vpack.c.b16 %v346, %v338
  %v435 = vpack.c.b16 %v347, %v339
  %v436 = vpack.c.b16 %v348, %v340
  %v437 = vpack.c.b16 %v349, %v341
  %v438 = vpack.c.b16 %v350, %v342
  %v439 = vpack.c.b16 %v351, %v343
  %v440 = vpack.c.b16 %v352, %v344
  %v441 = vpack.c.b16 %v353, %v345
  %v442 = vpack.c.b16 %v362, %v354
  %v443 = vpack.c.b16 %v363, %v355
  %v444 = vpack.c.b16 %v364, %v356
  %v445 = vpack.c.b16 %v365, %v357
  %v446 = vpack.c.b16 %v366, %v358
  %v447 = vpack.c.b16 %v367, %v359
  %v448 = vpack.c.b16 %v368, %v360
  %v449 = vpack.c.b16 %v369, %v361
  %v450 = vpack.c.b16 %v378, %v370
  %v451 = vpack.c.b16 %v379, %v371
  %v452 = vpack.c.b16 %v380, %v372
  %v453 = vpack.c.b16 %v381, %v373
  %v454 = vpack.c.b16 %v382, %v374
  %v455 = vpack.c.b16 %v383, %v375
  %v456 = vpack.c.b16 %v384, %v376
  %v457 = vpack.c.b16 %v385, %v377
  %v458 = vpack.c.b16 %v394, %v386
  %v459 = vpack.c.b16 %v395, %v387
  %v460 = vpack.c.b16 %v396, %v388
  %v461 = vpack.c.b16 %v397, %v389
  %v462 = vpack.c.b16 %v398, %v390
  %v463 = vpack.c.b16 %v399, %v391
  %v464 = vpack.c.b16 %v400, %v392
  %v465 = vpack.c.b16 %v401, %v393
  %v658 = vunpack.c.l.b16 %v82
  %v659 = vunpack.c.l.b16 %v83
  %v660 = vunpack.c.l.b16 %v84
  %v661 = vunpack.c.l.b16 %v85
  %v662 = vunpack.c.l.b16 %v86
  %v663 = vunpack.c.l.b16 %v87
  %v664 = vunpack.c.l.b16 %v88
  %v665 = vunpack.c.l.b16 %v89
  %v666 = vunpack.c.l.b16 %v90
  %v667 = vunpack.c.l.b16 %v91
  %v668 = vunpack.c.l.b16 %v92
  %v669 = vunpack.c.l.b16 %v93
  %v670 = vunpack.c.l.b16 %v94
  %v671 = vunpack.c.l.b16 %v95
  %v672 = vunpack.c.l.b16 %v96
  %v673 = vunpack.c.l.b16 %v97
  %v674 = vunpack.c.l.b16 %v98
  %v675 = vunpack.c.l.b16 %v99
  %v676 = vunpack.c.l.b16 %v100
  %v677 = vunpack.c.l.b16 %v101
  %v678 = vunpack.c.l.b16 %v102
  %v679 = vunpack.c.l.b16 %v103
  %v680 = vunpack.c.l.b16 %v104
  %v681 = vunpack.c.l.b16 %v105
  %v682 = vunpack.c.l.b16 %v106
  %v683 = vunpack.c.l.b16 %v107
  %v684 = vunpack.c.l.b16 %v108
  %v685 = vunpack.c.l.b16 %v109
  %v686 = vunpack.c.l.b16 %v110
  %v687 = vunpack.c.l.b16 %v111
  %v688 = vunpack.c.l.b16 %v112
  %v689 = vunpack.c.l.b16 %v113
  %v690 = vunpack.c.l.b16 %v114
  %v691 = vunpack.c.l.b16 %v115
  %v692 = vunpack.c.l.b16 %v116
  %v693 = vunpack.c.l.b16 %v117
  %v694 = vunpack.c.l.b16 %v118
  %v695 = vunpack.c.l.b16 %v119
  %v696 = vunpack.c.l.b16 %v120
  %v697 = vunpack.c.l.b16 %v121
  %v698 = vunpack.c.l.b16 %v122
  %v699 = vunpack.c.l.b16 %v123
  %v700 = vunpack.c.l.b16 %v124
  %v701 = vunpack.c.l.b16 %v125
  %v702 = vunpack.c.l.b16 %v126
  %v703 = vunpack.c.l.b16 %v127
  %v704 = vunpack.c.l.b16 %v128
  %v705 = vunpack.c.l.b16 %v129
  %v706 = vunpack.c.l.b16 %v130
  %v707 = vunpack.c.l.b16 %v131
  %v708 = vunpack.c.l.b16 %v132
  %v709 = vunpack.c.l.b16 %v133
  %v710 = vunpack.c.l.b16 %v134
  %v711 = vunpack.c.l.b16 %v135
  %v712 = vunpack.c.l.b16 %v136
  %v713 = vunpack.c.l.b16 %v137
  %v714 = vunpack.c.l.b16 %v138
  %v715 = vunpack.c.l.b16 %v139
  %v716 = vunpack.c.l.b16 %v140
  %v717 = vunpack.c.l.b16 %v141
  %v718 = vunpack.c.l.b16 %v142
  %v719 = vunpack.c.l.b16 %v143
  %v720 = vunpack.c.l.b16 %v144
  %v721 = vunpack.c.l.b16 %v145
  %v722 = vunpack.c.l.b16 %v146
  %v723 = vunpack.c.l.b16 %v147
  %v724 = vunpack.c.l.b16 %v148
  %v725 = vunpack.c.l.b16 %v149
  %v726 = vunpack.c.l.b16 %v150
  %v727 = vunpack.c.l.b16 %v151
  %v728 = vunpack.c.l.b16 %v152
  %v729 = vunpack.c.l.b16 %v153
  %v730 = vunpack.c.l.b16 %v154
  %v731 = vunpack.c.l.b16 %v155
  %v732 = vunpack.c.l.b16 %v156
  %v733 = vunpack.c.l.b16 %v157
  %v734 = vunpack.c.l.b16 %v158
  %v735 = vunpack.c.l.b16 %v159
  %v736 = vunpack.c.l.b16 %v160
  %v737 = vunpack.c.l.b16 %v161
  %v738 = vunpack.c.l.b16 %v162
  %v739 = vunpack.c.l.b16 %v163
  %v740 = vunpack.c.l.b16 %v164
  %v741 = vunpack.c.l.b16 %v165
  %v742 = vunpack.c.l.b16 %v166
  %v743 = vunpack.c.l.b16 %v167
  %v744 = vunpack.c.l.b16 %v168
  %v745 = vunpack.c.l.b16 %v169
  %v746 = vunpack.c.l.b16 %v170
  %v747 = vunpack.c.l.b16 %v171
  %v748 = vunpack.c.l.b16 %v172
  %v749 = vunpack.c.l.b16 %v173
  %v750 = vunpack.c.l.b16 %v174
  %v751 = vunpack.c.l.b16 %v175
  %v752 = vunpack.c.l.b16 %v176
  %v753 = vunpack.c.l.b16 %v177
  %v754 = vunpack.c.l.b16 %v178
  %v755 = vunpack.c.l.b16 %v179
  %v756 = vunpack.c.l.b16 %v180
  %v757 = vunpack.c.l.b16 %v181
  %v758 = vunpack.c.l.b16 %v182
  %v759 = vunpack.c.l.b16 %v183
  %v760 = vunpack.c.l.b16 %v184
  %v761 = vunpack.c.l.b16 %v185
  %v762 = vunpack.c.l.b16 %v186
  %v763 = vunpack.c.l.b16 %v187
  %v764 = vunpack.c.l.b16 %v188
  %v765 = vunpack.c.l.b16 %v189
  %v766 = vunpack.c.l.b16 %v190
  %v767 = vunpack.c.l.b16 %v191
  %v768 = vunpack.c.l.b16 %v192
  %v769 = vunpack.c.l.b16 %v193
  %v770 = vunpack.c.l.b16 %v194
  %v771 = vunpack.c.l.b16 %v195
  %v772 = vunpack.c.l.b16 %v196
  %v773 = vunpack.c.l.b16 %v197
  %v774 = vunpack.c.l.b16 %v198
  %v775 = vunpack.c.l.b16 %v199
  %v776 = vunpack.c.l.b16 %v200
  %v777 = vunpack.c.l.b16 %v201
  %v778 = vunpack.c.l.b16 %v202
  %v779 = vunpack.c.l.b16 %v203
  %v780 = vunpack.c.l.b16 %v204
  %v781 = vunpack.c.l.b16 %v205
  %v782 = vunpack.c.l.b16 %v206
  %v783 = vunpack.c.l.b16 %v207
  %v784 = vunpack.c.l.b16 %v208
  %v785 = vunpack.c.l.b16 %v209
  %v786 = vpack.c.b16 %v659, %v658
  %v787 = vpack.c.b16 %v661, %v660
  %v788 = vpack.c.b16 %v663, %v662
  %v789 = vpack.c.b16 %v665, %v664
  %v790 = vpack.c.b16 %v667, %v666
  %v791 = vpack.c.b16 %v669, %v668
  %v792 = vpack.c.b16 %v671, %v670
  %v793 = vpack.c.b16 %v673, %v672
  %v794 = vpack.c.b16 %v675, %v674
  %v795 = vpack.c.b16 %v677, %v676
  %v796 = vpack.c.b16 %v679, %v678
  %v797 = vpack.c.b16 %v681, %v680
  %v798 = vpack.c.b16 %v683, %v682
  %v799 = vpack.c.b16 %v685, %v684
  %v800 = vpack.c.b16 %v687, %v686
  %v801 = vpack.c.b16 %v689, %v688
  %v802 = vpack.c.b16 %v691, %v690
  %v803 = vpack.c.b16 %v693, %v692
  %v804 = vpack.c.b16 %v695, %v694
  %v805 = vpack.c.b16 %v697, %v696
  %v806 = vpack.c.b16 %v699, %v698
  %v807 = vpack.c.b16 %v701, %v700
  %v808 = vpack.c.b16 %v703, %v702
  %v809 = vpack.c.b16 %v705, %v704
  %v810 = vpack.c.b16 %v707, %v706
  %v811 = vpack.c.b16 %v709, %v708
  %v812 = vpack.c.b16 %v711, %v710
  %v813 = vpack.c.b16 %v713, %v712
  %v814 = vpack.c.b16 %v715, %v714
  %v815 = vpack.c.b16 %v717, %v716
  %v816 = vpack.c.b16 %v719, %v718
  %v817 = vpack.c.b16 %v721, %v720
  %v818 = vpack.c.b16 %v723, %v722
  %v819 = vpack.c.b16 %v725, %v724
  %v820 = vpack.c.b16 %v727, %v726
  %v821 = vpack.c.b16 %v729, %v728
  %v822 = vpack.c.b16 %v731, %v730
  %v823 = vpack.c.b16 %v733, %v732
  %v824 = vpack.c.b16 %v735, %v734
  %v825 = vpack.c.b16 %v737, %v736
  %v826 = vpack.c.b16 %v739, %v738
  %v827 = vpack.c.b16 %v741, %v740
  %v828 = vpack.c.b16 %v743, %v742
  %v829 = vpack.c.b16 %v745, %v744
  %v830 = vpack.c.b16 %v747, %v746
  %v831 = vpack.c.b16 %v749, %v748
  %v832 = vpack.c.b16 %v751, %v750
  %v833 = vpack.c.b16 %v753, %v752
  %v834 = vpack.c.b16 %v755, %v754
  %v835 = vpack.c.b16 %v757, %v756
  %v836 = vpack.c.b16 %v759, %v758
  %v837 = vpack.c.b16 %v761, %v760
  %v838 = vpack.c.b16 %v763, %v762
  %v839 = vpack.c.b16 %v765, %v764
  %v840 = vpack.c.b16 %v767, %v766
  %v841 = vpack.c.b16 %v769, %v768
  %v842 = vpack.c.b16 %v771, %v770
  %v843 = vpack.c.b16 %v773, %v772
  %v844 = vpack.c.b16 %v775, %v774
  %v845 = vpack.c.b16 %v777, %v776
  %v846 = vpack.c.b16 %v779, %v778
  %v847 = vpack.c.b16 %v781, %v780
  %v848 = vpack.c.b16 %v783, %v782
  %v849 = vpack.c.b16 %v785, %v784
  %914 = vmatprep.subr.bf16.mxu0 0
  %915 = vmatpush1.bf16.msra.mxu0 %v786
  %916 = vmatprep.subr.bf16.mxu0 0
  %917 = vmatpush1.bf16.msra.mxu0 %v787
  %918 = vmatprep.subr.bf16.mxu0 0
  %919 = vmatpush1.bf16.msra.mxu0 %v788
  %920 = vmatprep.subr.bf16.mxu0 0
  %921 = vmatpush1.bf16.msra.mxu0 %v789
  %922 = vmatprep.subr.bf16.mxu0 0
  %923 = vmatpush1.bf16.msra.mxu0 %v790
  %924 = vmatprep.subr.bf16.mxu0 0
  %925 = vmatpush1.bf16.msra.mxu0 %v791
  %926 = vmatprep.subr.bf16.mxu0 0
  %927 = vmatpush1.bf16.msra.mxu0 %v792
  %928 = vmatprep.subr.bf16.mxu0 0
  %929 = vmatpush1.bf16.msra.mxu0 %v793
  %930 = vmatprep.subr.bf16.mxu0 0
  %931 = vmatpush1.bf16.msra.mxu0 %v794
  %932 = vmatprep.subr.bf16.mxu0 0
  %933 = vmatpush1.bf16.msra.mxu0 %v795
  %934 = vmatprep.subr.bf16.mxu0 0
  %935 = vmatpush1.bf16.msra.mxu0 %v796
  %936 = vmatprep.subr.bf16.mxu0 0
  %937 = vmatpush1.bf16.msra.mxu0 %v797
  %938 = vmatprep.subr.bf16.mxu0 0
  %939 = vmatpush1.bf16.msra.mxu0 %v798
  %940 = vmatprep.subr.bf16.mxu0 0
  %941 = vmatpush1.bf16.msra.mxu0 %v799
  %942 = vmatprep.subr.bf16.mxu0 0
  %943 = vmatpush1.bf16.msra.mxu0 %v800
  %944 = vmatprep.subr.bf16.mxu0 0
  %945 = vmatpush1.bf16.msra.mxu0 %v801
  %946 = vmatprep.mubr.bf16.mxu0 %v403
  %947 = vmatmul.mubr.bf16.gmra.mrb[0].mxu0 %v402
  %v948 = vpop.f32.mrb[0].mxu0
  %v949 = vadd.f32 0.0, %v948
  %v950 = vpop.f32.mrb[0].mxu0
  %v951 = vpop.f32.mrb[0].mxu0
  %v952 = vadd.f32 0.0, %v951
  %v953 = vpop.f32.mrb[0].mxu0
  %954 = vmatprep.mubr.bf16.mxu0 %v411
  %955 = vmatmul.mubr.bf16.gmra.mrb[0].mxu0 %v410
  %v956 = vpop.f32.mrb[0].mxu0
  %v957 = vadd.f32 0.0, %v956
  %v958 = vpop.f32.mrb[0].mxu0
  %v959 = vpop.f32.mrb[0].mxu0
  %v960 = vadd.f32 0.0, %v959
  %v961 = vpop.f32.mrb[0].mxu0
  %962 = vmatprep.mubr.bf16.mxu0 %v419
  %963 = vmatmul.mubr.bf16.gmra.mrb[0].mxu0 %v418
  %v964 = vpop.f32.mrb[0].mxu0
  %v965 = vadd.f32 0.0, %v964
  %v966 = vpop.f32.mrb[0].mxu0
  %v967 = vpop.f32.mrb[0].mxu0
  %v968 = vadd.f32 0.0, %v967
  %v969 = vpop.f32.mrb[0].mxu0
  %970 = vmatprep.mubr.bf16.mxu0 %v427
  %971 = vmatmul.mubr.bf16.gmra.mrb[0].mxu0 %v426
  %v972 = vpop.f32.mrb[0].mxu0
  %v973 = vadd.f32 0.0, %v972
  %v974 = vpop.f32.mrb[0].mxu0
  %v975 = vpop.f32.mrb[0].mxu0
  %v976 = vadd.f32 0.0, %v975
  %v977 = vpop.f32.mrb[0].mxu0
  %978 = vmatprep.mubr.bf16.mxu0 %v435
  %979 = vmatmul.mubr.bf16.gmra.mrb[0].mxu0 %v434
  %v980 = vpop.f32.mrb[0].mxu0
  %v981 = vadd.f32 0.0, %v980
  %v982 = vpop.f32.mrb[0].mxu0
  %v983 = vpop.f32.mrb[0].mxu0
  %v984 = vadd.f32 0.0, %v983
  %v985 = vpop.f32.mrb[0].mxu0
  %986 = vmatprep.mubr.bf16.mxu0 %v443
  %987 = vmatmul.mubr.bf16.gmra.mrb[0].mxu0 %v442
  %v988 = vpop.f32.mrb[0].mxu0
  %v989 = vadd.f32 0.0, %v988
  %v990 = vpop.f32.mrb[0].mxu0
  %v991 = vpop.f32.mrb[0].mxu0
  %v992 = vadd.f32 0.0, %v991
  %v993 = vpop.f32.mrb[0].mxu0
  %994 = vmatprep.mubr.bf16.mxu0 %v451
  %995 = vmatmul.mubr.bf16.gmra.mrb[0].mxu0 %v450
  %v996 = vpop.f32.mrb[0].mxu0
  %v997 = vadd.f32 0.0, %v996
  %v998 = vpop.f32.mrb[0].mxu0
  %v999 = vpop.f32.mrb[0].mxu0
  %v1000 = vadd.f32 0.0, %v999
  %v1001 = vpop.f32.mrb[0].mxu0
  %1002 = vmatprep.mubr.bf16.mxu0 %v459
  %1003 = vmatmul.mubr.bf16.gmra.mrb[0].mxu0 %v458
  %v1004 = vpop.f32.mrb[0].mxu0
  %v1005 = vadd.f32 0.0, %v1004
  %v1006 = vpop.f32.mrb[0].mxu0
  %v1007 = vpop.f32.mrb[0].mxu0
  %v1008 = vadd.f32 0.0, %v1007
  %v1009 = vpop.f32.mrb[0].mxu0
  %1010 = vdwg.mxu0
  %1011 = vmatprep.subr.bf16.mxu0 0
  %1012 = vmatpush1.bf16.msra.mxu0 %v802
  %1013 = vmatprep.subr.bf16.mxu0 0
  %1014 = vmatpush1.bf16.msra.mxu0 %v803
  %1015 = vmatprep.subr.bf16.mxu0 0
  %1016 = vmatpush1.bf16.msra.mxu0 %v804
  %1017 = vmatprep.subr.bf16.mxu0 0
  %1018 = vmatpush1.bf16.msra.mxu0 %v805
  %1019 = vmatprep.subr.bf16.mxu0 0
  %1020 = vmatpush1.bf16.msra.mxu0 %v806
  %1021 = vmatprep.subr.bf16.mxu0 0
  %1022 = vmatpush1.bf16.msra.mxu0 %v807
  %1023 = vmatprep.subr.bf16.mxu0 0
  %1024 = vmatpush1.bf16.msra.mxu0 %v808
  %1025 = vmatprep.subr.bf16.mxu0 0
  %1026 = vmatpush1.bf16.msra.mxu0 %v809
  %1027 = vmatprep.subr.bf16.mxu0 0
  %1028 = vmatpush1.bf16.msra.mxu0 %v810
  %1029 = vmatprep.subr.bf16.mxu0 0
  %1030 = vmatpush1.bf16.msra.mxu0 %v811
  %1031 = vmatprep.subr.bf16.mxu0 0
  %1032 = vmatpush1.bf16.msra.mxu0 %v812
  %1033 = vmatprep.subr.bf16.mxu0 0
  %1034 = vmatpush1.bf16.msra.mxu0 %v813
  %1035 = vmatprep.subr.bf16.mxu0 0
  %1036 = vmatpush1.bf16.msra.mxu0 %v814
  %1037 = vmatprep.subr.bf16.mxu0 0
  %1038 = vmatpush1.bf16.msra.mxu0 %v815
  %1039 = vmatprep.subr.bf16.mxu0 0
  %1040 = vmatpush1.bf16.msra.mxu0 %v816
  %1041 = vmatprep.subr.bf16.mxu0 0
  %1042 = vmatpush1.bf16.msra.mxu0 %v817
  %1043 = vmatprep.mubr.bf16.mxu0 %v405
  %1044 = vmatmul.mubr.bf16.gmra.mrb[0].mxu0 %v404
  %v1045 = vpop.f32.mrb[0].mxu0
  %v1046 = vadd.f32 %v949, %v1045
  %v1047 = vpop.f32.mrb[0].mxu0
  %v1048 = vpop.f32.mrb[0].mxu0
  %v1049 = vadd.f32 %v952, %v1048
  %v1050 = vpop.f32.mrb[0].mxu0
  %1051 = vmatprep.mubr.bf16.mxu0 %v413
  %1052 = vmatmul.mubr.bf16.gmra.mrb[0].mxu0 %v412
  %v1053 = vpop.f32.mrb[0].mxu0
  %v1054 = vadd.f32 %v957, %v1053
  %v1055 = vpop.f32.mrb[0].mxu0
  %v1056 = vpop.f32.mrb[0].mxu0
  %v1057 = vadd.f32 %v960, %v1056
  %v1058 = vpop.f32.mrb[0].mxu0
  %1059 = vmatprep.mubr.bf16.mxu0 %v421
  %1060 = vmatmul.mubr.bf16.gmra.mrb[0].mxu0 %v420
  %v1061 = vpop.f32.mrb[0].mxu0
  %v1062 = vadd.f32 %v965, %v1061
  %v1063 = vpop.f32.mrb[0].mxu0
  %v1064 = vpop.f32.mrb[0].mxu0
  %v1065 = vadd.f32 %v968, %v1064
  %v1066 = vpop.f32.mrb[0].mxu0
  %1067 = vmatprep.mubr.bf16.mxu0 %v429
  %1068 = vmatmul.mubr.bf16.gmra.mrb[0].mxu0 %v428
  %v1069 = vpop.f32.mrb[0].mxu0
  %v1070 = vadd.f32 %v973, %v1069
  %v1071 = vpop.f32.mrb[0].mxu0
  %v1072 = vpop.f32.mrb[0].mxu0
  %v1073 = vadd.f32 %v976, %v1072
  %v1074 = vpop.f32.mrb[0].mxu0
  %1075 = vmatprep.mubr.bf16.mxu0 %v437
  %1076 = vmatmul.mubr.bf16.gmra.mrb[0].mxu0 %v436
  %v1077 = vpop.f32.mrb[0].mxu0
  %v1078 = vadd.f32 %v981, %v1077
  %v1079 = vpop.f32.mrb[0].mxu0
  %v1080 = vpop.f32.mrb[0].mxu0
  %v1081 = vadd.f32 %v984, %v1080
  %v1082 = vpop.f32.mrb[0].mxu0
  %1083 = vmatprep.mubr.bf16.mxu0 %v445
  %1084 = vmatmul.mubr.bf16.gmra.mrb[0].mxu0 %v444
  %v1085 = vpop.f32.mrb[0].mxu0
  %v1086 = vadd.f32 %v989, %v1085
  %v1087 = vpop.f32.mrb[0].mxu0
  %v1088 = vpop.f32.mrb[0].mxu0
  %v1089 = vadd.f32 %v992, %v1088
  %v1090 = vpop.f32.mrb[0].mxu0
  %1091 = vmatprep.mubr.bf16.mxu0 %v453
  %1092 = vmatmul.mubr.bf16.gmra.mrb[0].mxu0 %v452
  %v1093 = vpop.f32.mrb[0].mxu0
  %v1094 = vadd.f32 %v997, %v1093
  %v1095 = vpop.f32.mrb[0].mxu0
  %v1096 = vpop.f32.mrb[0].mxu0
  %v1097 = vadd.f32 %v1000, %v1096
  %v1098 = vpop.f32.mrb[0].mxu0
  %1099 = vmatprep.mubr.bf16.mxu0 %v461
  %1100 = vmatmul.mubr.bf16.gmra.mrb[0].mxu0 %v460
  %v1101 = vpop.f32.mrb[0].mxu0
  %v1102 = vadd.f32 %v1005, %v1101
  %v1103 = vpop.f32.mrb[0].mxu0
  %v1104 = vpop.f32.mrb[0].mxu0
  %v1105 = vadd.f32 %v1008, %v1104
  %v1106 = vpop.f32.mrb[0].mxu0
  %1107 = vdwg.mxu0
  %1108 = vmatprep.subr.bf16.mxu0 0
  %1109 = vmatpush1.bf16.msra.mxu0 %v818
  %1110 = vmatprep.subr.bf16.mxu0 0
  %1111 = vmatpush1.bf16.msra.mxu0 %v819
  %1112 = vmatprep.subr.bf16.mxu0 0
  %1113 = vmatpush1.bf16.msra.mxu0 %v820
  %1114 = vmatprep.subr.bf16.mxu0 0
  %1115 = vmatpush1.bf16.msra.mxu0 %v821
  %1116 = vmatprep.subr.bf16.mxu0 0
  %1117 = vmatpush1.bf16.msra.mxu0 %v822
  %1118 = vmatprep.subr.bf16.mxu0 0
  %1119 = vmatpush1.bf16.msra.mxu0 %v823
  %1120 = vmatprep.subr.bf16.mxu0 0
  %1121 = vmatpush1.bf16.msra.mxu0 %v824
  %1122 = vmatprep.subr.bf16.mxu0 0
  %1123 = vmatpush1.bf16.msra.mxu0 %v825
  %1124 = vmatprep.subr.bf16.mxu0 0
  %1125 = vmatpush1.bf16.msra.mxu0 %v826
  %1126 = vmatprep.subr.bf16.mxu0 0
  %1127 = vmatpush1.bf16.msra.mxu0 %v827
  %1128 = vmatprep.subr.bf16.mxu0 0
  %1129 = vmatpush1.bf16.msra.mxu0 %v828
  %1130 = vmatprep.subr.bf16.mxu0 0
  %1131 = vmatpush1.bf16.msra.mxu0 %v829
  %1132 = vmatprep.subr.bf16.mxu0 0
  %1133 = vmatpush1.bf16.msra.mxu0 %v830
  %1134 = vmatprep.subr.bf16.mxu0 0
  %1135 = vmatpush1.bf16.msra.mxu0 %v831
  %1136 = vmatprep.subr.bf16.mxu0 0
  %1137 = vmatpush1.bf16.msra.mxu0 %v832
  %1138 = vmatprep.subr.bf16.mxu0 0
  %1139 = vmatpush1.bf16.msra.mxu0 %v833
  %1140 = vmatprep.mubr.bf16.mxu0 %v407
  %1141 = vmatmul.mubr.bf16.gmra.mrb[0].mxu0 %v406
  %v1142 = vpop.f32.mrb[0].mxu0
  %v1143 = vadd.f32 %v1046, %v1142
  %v1144 = vpop.f32.mrb[0].mxu0
  %v1145 = vpop.f32.mrb[0].mxu0
  %v1146 = vadd.f32 %v1049, %v1145
  %v1147 = vpop.f32.mrb[0].mxu0
  %1148 = vmatprep.mubr.bf16.mxu0 %v415
  %1149 = vmatmul.mubr.bf16.gmra.mrb[0].mxu0 %v414
  %v1150 = vpop.f32.mrb[0].mxu0
  %v1151 = vadd.f32 %v1054, %v1150
  %v1152 = vpop.f32.mrb[0].mxu0
  %v1153 = vpop.f32.mrb[0].mxu0
  %v1154 = vadd.f32 %v1057, %v1153
  %v1155 = vpop.f32.mrb[0].mxu0
  %1156 = vmatprep.mubr.bf16.mxu0 %v423
  %1157 = vmatmul.mubr.bf16.gmra.mrb[0].mxu0 %v422
  %v1158 = vpop.f32.mrb[0].mxu0
  %v1159 = vadd.f32 %v1062, %v1158
  %v1160 = vpop.f32.mrb[0].mxu0
  %v1161 = vpop.f32.mrb[0].mxu0
  %v1162 = vadd.f32 %v1065, %v1161
  %v1163 = vpop.f32.mrb[0].mxu0
  %1164 = vmatprep.mubr.bf16.mxu0 %v431
  %1165 = vmatmul.mubr.bf16.gmra.mrb[0].mxu0 %v430
  %v1166 = vpop.f32.mrb[0].mxu0
  %v1167 = vadd.f32 %v1070, %v1166
  %v1168 = vpop.f32.mrb[0].mxu0
  %v1169 = vpop.f32.mrb[0].mxu0
  %v1170 = vadd.f32 %v1073, %v1169
  %v1171 = vpop.f32.mrb[0].mxu0
  %1172 = vmatprep.mubr.bf16.mxu0 %v439
  %1173 = vmatmul.mubr.bf16.gmra.mrb[0].mxu0 %v438
  %v1174 = vpop.f32.mrb[0].mxu0
  %v1175 = vadd.f32 %v1078, %v1174
  %v1176 = vpop.f32.mrb[0].mxu0
  %v1177 = vpop.f32.mrb[0].mxu0
  %v1178 = vadd.f32 %v1081, %v1177
  %v1179 = vpop.f32.mrb[0].mxu0
  %1180 = vmatprep.mubr.bf16.mxu0 %v447
  %1181 = vmatmul.mubr.bf16.gmra.mrb[0].mxu0 %v446
  %v1182 = vpop.f32.mrb[0].mxu0
  %v1183 = vadd.f32 %v1086, %v1182
  %v1184 = vpop.f32.mrb[0].mxu0
  %v1185 = vpop.f32.mrb[0].mxu0
  %v1186 = vadd.f32 %v1089, %v1185
  %v1187 = vpop.f32.mrb[0].mxu0
  %1188 = vmatprep.mubr.bf16.mxu0 %v455
  %1189 = vmatmul.mubr.bf16.gmra.mrb[0].mxu0 %v454
  %v1190 = vpop.f32.mrb[0].mxu0
  %v1191 = vadd.f32 %v1094, %v1190
  %v1192 = vpop.f32.mrb[0].mxu0
  %v1193 = vpop.f32.mrb[0].mxu0
  %v1194 = vadd.f32 %v1097, %v1193
  %v1195 = vpop.f32.mrb[0].mxu0
  %1196 = vmatprep.mubr.bf16.mxu0 %v463
  %1197 = vmatmul.mubr.bf16.gmra.mrb[0].mxu0 %v462
  %v1198 = vpop.f32.mrb[0].mxu0
  %v1199 = vadd.f32 %v1102, %v1198
  %v1200 = vpop.f32.mrb[0].mxu0
  %v1201 = vpop.f32.mrb[0].mxu0
  %v1202 = vadd.f32 %v1105, %v1201
  %v1203 = vpop.f32.mrb[0].mxu0
  %1204 = vdwg.mxu0
  %1205 = vmatprep.subr.bf16.mxu0 0
  %1206 = vmatpush1.bf16.msra.mxu0 %v834
  %1207 = vmatprep.subr.bf16.mxu0 0
  %1208 = vmatpush1.bf16.msra.mxu0 %v835
  %1209 = vmatprep.subr.bf16.mxu0 0
  %1210 = vmatpush1.bf16.msra.mxu0 %v836
  %1211 = vmatprep.subr.bf16.mxu0 0
  %1212 = vmatpush1.bf16.msra.mxu0 %v837
  %1213 = vmatprep.subr.bf16.mxu0 0
  %1214 = vmatpush1.bf16.msra.mxu0 %v838
  %1215 = vmatprep.subr.bf16.mxu0 0
  %1216 = vmatpush1.bf16.msra.mxu0 %v839
  %1217 = vmatprep.subr.bf16.mxu0 0
  %1218 = vmatpush1.bf16.msra.mxu0 %v840
  %1219 = vmatprep.subr.bf16.mxu0 0
  %1220 = vmatpush1.bf16.msra.mxu0 %v841
  %1221 = vmatprep.subr.bf16.mxu0 0
  %1222 = vmatpush1.bf16.msra.mxu0 %v842
  %1223 = vmatprep.subr.bf16.mxu0 0
  %1224 = vmatpush1.bf16.msra.mxu0 %v843
  %1225 = vmatprep.subr.bf16.mxu0 0
  %1226 = vmatpush1.bf16.msra.mxu0 %v844
  %1227 = vmatprep.subr.bf16.mxu0 0
  %1228 = vmatpush1.bf16.msra.mxu0 %v845
  %1229 = vmatprep.subr.bf16.mxu0 0
  %1230 = vmatpush1.bf16.msra.mxu0 %v846
  %1231 = vmatprep.subr.bf16.mxu0 0
  %1232 = vmatpush1.bf16.msra.mxu0 %v847
  %1233 = vmatprep.subr.bf16.mxu0 0
  %1234 = vmatpush1.bf16.msra.mxu0 %v848
  %1235 = vmatprep.subr.bf16.mxu0 0
  %1236 = vmatpush1.bf16.msra.mxu0 %v849
  %1237 = vmatprep.mubr.bf16.mxu0 %v409
  %1238 = vmatmul.mubr.bf16.gmra.mrb[0].mxu0 %v408
  %v1239 = vpop.f32.mrb[0].mxu0
  %v1240 = vadd.f32 %v1143, %v1239
  %v1241 = vpop.f32.mrb[0].mxu0
  %v1242 = vpop.f32.mrb[0].mxu0
  %v1243 = vadd.f32 %v1146, %v1242
  %v1244 = vpop.f32.mrb[0].mxu0
  %1245 = vmatprep.mubr.bf16.mxu0 %v417
  %1246 = vmatmul.mubr.bf16.gmra.mrb[0].mxu0 %v416
  %v1247 = vpop.f32.mrb[0].mxu0
  %v1248 = vadd.f32 %v1151, %v1247
  %v1249 = vpop.f32.mrb[0].mxu0
  %v1250 = vpop.f32.mrb[0].mxu0
  %v1251 = vadd.f32 %v1154, %v1250
  %v1252 = vpop.f32.mrb[0].mxu0
  %1253 = vmatprep.mubr.bf16.mxu0 %v425
  %1254 = vmatmul.mubr.bf16.gmra.mrb[0].mxu0 %v424
  %v1255 = vpop.f32.mrb[0].mxu0
  %v1256 = vadd.f32 %v1159, %v1255
  %v1257 = vpop.f32.mrb[0].mxu0
  %v1258 = vpop.f32.mrb[0].mxu0
  %v1259 = vadd.f32 %v1162, %v1258
  %v1260 = vpop.f32.mrb[0].mxu0
  %1261 = vmatprep.mubr.bf16.mxu0 %v433
  %1262 = vmatmul.mubr.bf16.gmra.mrb[0].mxu0 %v432
  %v1263 = vpop.f32.mrb[0].mxu0
  %v1264 = vadd.f32 %v1167, %v1263
  %v1265 = vpop.f32.mrb[0].mxu0
  %v1266 = vpop.f32.mrb[0].mxu0
  %v1267 = vadd.f32 %v1170, %v1266
  %v1268 = vpop.f32.mrb[0].mxu0
  %1269 = vmatprep.mubr.bf16.mxu0 %v441
  %1270 = vmatmul.mubr.bf16.gmra.mrb[0].mxu0 %v440
  %v1271 = vpop.f32.mrb[0].mxu0
  %v1272 = vadd.f32 %v1175, %v1271
  %v1273 = vpop.f32.mrb[0].mxu0
  %v1274 = vpop.f32.mrb[0].mxu0
  %v1275 = vadd.f32 %v1178, %v1274
  %v1276 = vpop.f32.mrb[0].mxu0
  %1277 = vmatprep.mubr.bf16.mxu0 %v449
  %1278 = vmatmul.mubr.bf16.gmra.mrb[0].mxu0 %v448
  %v1279 = vpop.f32.mrb[0].mxu0
  %v1280 = vadd.f32 %v1183, %v1279
  %v1281 = vpop.f32.mrb[0].mxu0
  %v1282 = vpop.f32.mrb[0].mxu0
  %v1283 = vadd.f32 %v1186, %v1282
  %v1284 = vpop.f32.mrb[0].mxu0
  %1285 = vmatprep.mubr.bf16.mxu0 %v457
  %1286 = vmatmul.mubr.bf16.gmra.mrb[0].mxu0 %v456
  %v1287 = vpop.f32.mrb[0].mxu0
  %v1288 = vadd.f32 %v1191, %v1287
  %v1289 = vpop.f32.mrb[0].mxu0
  %v1290 = vpop.f32.mrb[0].mxu0
  %v1291 = vadd.f32 %v1194, %v1290
  %v1292 = vpop.f32.mrb[0].mxu0
  %1293 = vmatprep.mubr.bf16.mxu0 %v465
  %1294 = vmatmul.mubr.bf16.gmra.mrb[0].mxu0 %v464
  %v1295 = vpop.f32.mrb[0].mxu0
  %v1296 = vadd.f32 %v1199, %v1295
  %v1297 = vpop.f32.mrb[0].mxu0
  %v1298 = vpop.f32.mrb[0].mxu0
  %v1299 = vadd.f32 %v1202, %v1298
  %v1300 = vpop.f32.mrb[0].mxu0
  %1301 = vdwg.mxu0
  %v1302 = vadd.f32 %v1240, %v1243
  %v1303 = vadd.f32 %v1302, %v1248
  %v1304 = vadd.f32 %v1303, %v1251
  %v1305 = vadd.f32 %v1304, %v1256
  %v1306 = vadd.f32 %v1305, %v1259
  %v1307 = vadd.f32 %v1306, %v1264
  %v1308 = vadd.f32 %v1307, %v1267
  %v1309 = vadd.f32 %v1308, %v1272
  %v1310 = vadd.f32 %v1309, %v1275
  %v1311 = vadd.f32 %v1310, %v1280
  %v1312 = vadd.f32 %v1311, %v1283
  %v1313 = vadd.f32 %v1312, %v1288
  %v1314 = vadd.f32 %v1313, %v1291
  %v1315 = vadd.f32 %v1314, %v1296
  %v1316 = vadd.f32 %v1315, %v1299
  %v1317 = vrot.slane %v1316, 4
  %v1318 = vadd.f32 %v1316, %v1317
  %v1319 = vrot.slane %v1318, 2
  %v1320 = vadd.f32 %v1318, %v1319
  %v1321 = vrot.slane %v1320, 1
  %v1322 = vadd.f32 %v1320, %v1321
  %v1323 = vmul.f32 %v1322, 0.0078125
  %v1324 = vmul.f32 %v1240, %v1240
  %v1325 = vmul.f32 %v1243, %v1243
  %v1326 = vmul.f32 %v1248, %v1248
  %v1327 = vmul.f32 %v1251, %v1251
  %v1328 = vmul.f32 %v1256, %v1256
  %v1329 = vmul.f32 %v1259, %v1259
  %v1330 = vmul.f32 %v1264, %v1264
  %v1331 = vmul.f32 %v1267, %v1267
  %v1332 = vmul.f32 %v1272, %v1272
  %v1333 = vmul.f32 %v1275, %v1275
  %v1334 = vmul.f32 %v1280, %v1280
  %v1335 = vmul.f32 %v1283, %v1283
  %v1336 = vmul.f32 %v1288, %v1288
  %v1337 = vmul.f32 %v1291, %v1291
  %v1338 = vmul.f32 %v1296, %v1296
  %v1339 = vmul.f32 %v1299, %v1299
  %v1340 = vadd.f32 %v1324, %v1325
  %v1341 = vadd.f32 %v1340, %v1326
  %v1342 = vadd.f32 %v1341, %v1327
  %v1343 = vadd.f32 %v1342, %v1328
  %v1344 = vadd.f32 %v1343, %v1329
  %v1345 = vadd.f32 %v1344, %v1330
  %v1346 = vadd.f32 %v1345, %v1331
  %v1347 = vadd.f32 %v1346, %v1332
  %v1348 = vadd.f32 %v1347, %v1333
  %v1349 = vadd.f32 %v1348, %v1334
  %v1350 = vadd.f32 %v1349, %v1335
  %v1351 = vadd.f32 %v1350, %v1336
  %v1352 = vadd.f32 %v1351, %v1337
  %v1353 = vadd.f32 %v1352, %v1338
  %v1354 = vadd.f32 %v1353, %v1339
  %v1355 = vrot.slane %v1354, 4
  %v1356 = vadd.f32 %v1354, %v1355
  %v1357 = vrot.slane %v1356, 2
  %v1358 = vadd.f32 %v1356, %v1357
  %v1359 = vrot.slane %v1358, 1
  %v1360 = vadd.f32 %v1358, %v1359
  %v1361 = vmul.f32 %v1360, 0.0078125
  %v1362 = vmul.f32 %v1323, %v1323
  %v1363 = vsub.f32 %v1361, %v1362
  %v1364 = vmax.f32 %v1363, 0.0
  %v1365 = vadd.f32 %v1364, 1e-05
  %v1366 = vrsqrt.pop %v1365
  %v1367 = vld [vmem:[%s2] sm:$0x1]
  %v1368 = vmul.f32 %v1367, %v1366
  %v1369 = vld [vmem:[%s3] sm:$0x1]
  %v1370 = vmul.f32 %v1323, %v1368
  %v1371 = vsub.f32 %v1369, %v1370
  %v1373 = vlaneseq
  %v1374 = vshrl.u32 %v1373, 7
  %v1375 = vsub.s32 0, %v1374
  %v1376 = vrot.slane %v1368, %v1375
  %v1378 = vmul.f32 %v1240, %v1376
  %v1379 = vmul.f32 %v1243, %v1376
  %v1380 = vmul.f32 %v1248, %v1376
  %v1381 = vmul.f32 %v1251, %v1376
  %v1382 = vmul.f32 %v1256, %v1376
  %v1383 = vmul.f32 %v1259, %v1376
  %v1384 = vmul.f32 %v1264, %v1376
  %v1385 = vmul.f32 %v1267, %v1376
  %v1386 = vmul.f32 %v1272, %v1376
  %v1387 = vmul.f32 %v1275, %v1376
  %v1388 = vmul.f32 %v1280, %v1376
  %v1389 = vmul.f32 %v1283, %v1376
  %v1390 = vmul.f32 %v1288, %v1376
  %v1391 = vmul.f32 %v1291, %v1376
  %v1392 = vmul.f32 %v1296, %v1376
  %v1393 = vmul.f32 %v1299, %v1376
  %v1395 = vlaneseq
  %v1396 = vshrl.u32 %v1395, 7
  %v1397 = vsub.s32 0, %v1396
  %v1398 = vrot.slane %v1371, %v1397
  %v1400 = vadd.f32 %v1378, %v1398
  %v1401 = vadd.f32 %v1379, %v1398
  %v1402 = vadd.f32 %v1380, %v1398
  %v1403 = vadd.f32 %v1381, %v1398
  %v1404 = vadd.f32 %v1382, %v1398
  %v1405 = vadd.f32 %v1383, %v1398
  %v1406 = vadd.f32 %v1384, %v1398
  %v1407 = vadd.f32 %v1385, %v1398
  %v1408 = vadd.f32 %v1386, %v1398
  %v1409 = vadd.f32 %v1387, %v1398
  %v1410 = vadd.f32 %v1388, %v1398
  %v1411 = vadd.f32 %v1389, %v1398
  %v1412 = vadd.f32 %v1390, %v1398
  %v1413 = vadd.f32 %v1391, %v1398
  %v1414 = vadd.f32 %v1392, %v1398
  %v1415 = vadd.f32 %v1393, %v1398
  %vm1416 = vcmp.gt.f32.partialorder %v1400, 0.0
  %vm1417 = vcmp.gt.f32.partialorder %v1401, 0.0
  %vm1418 = vcmp.gt.f32.partialorder %v1402, 0.0
  %vm1419 = vcmp.gt.f32.partialorder %v1403, 0.0
  %vm1420 = vcmp.gt.f32.partialorder %v1404, 0.0
  %vm1421 = vcmp.gt.f32.partialorder %v1405, 0.0
  %vm1422 = vcmp.gt.f32.partialorder %v1406, 0.0
  %vm1423 = vcmp.gt.f32.partialorder %v1407, 0.0
  %vm1424 = vcmp.gt.f32.partialorder %v1408, 0.0
  %vm1425 = vcmp.gt.f32.partialorder %v1409, 0.0
  %vm1426 = vcmp.gt.f32.partialorder %v1410, 0.0
  %vm1427 = vcmp.gt.f32.partialorder %v1411, 0.0
  %vm1428 = vcmp.gt.f32.partialorder %v1412, 0.0
  %vm1429 = vcmp.gt.f32.partialorder %v1413, 0.0
  %vm1430 = vcmp.gt.f32.partialorder %v1414, 0.0
  %vm1431 = vcmp.gt.f32.partialorder %v1415, 0.0
  %v1432 = vmul.f32 %v1400, 0.2
  %v1433 = vmul.f32 %v1401, 0.2
  %v1434 = vmul.f32 %v1402, 0.2
  %v1435 = vmul.f32 %v1403, 0.2
  %v1436 = vmul.f32 %v1404, 0.2
  %v1437 = vmul.f32 %v1405, 0.2
  %v1438 = vmul.f32 %v1406, 0.2
  %v1439 = vmul.f32 %v1407, 0.2
  %v1440 = vmul.f32 %v1408, 0.2
  %v1441 = vmul.f32 %v1409, 0.2
  %v1442 = vmul.f32 %v1410, 0.2
  %v1443 = vmul.f32 %v1411, 0.2
  %v1444 = vmul.f32 %v1412, 0.2
  %v1445 = vmul.f32 %v1413, 0.2
  %v1446 = vmul.f32 %v1414, 0.2
  %v1447 = vmul.f32 %v1415, 0.2
  %v1448 = vsel %vm1416, %v1400, %v1432
  %v1449 = vsel %vm1417, %v1401, %v1433
  %v1450 = vsel %vm1418, %v1402, %v1434
  %v1451 = vsel %vm1419, %v1403, %v1435
  %v1452 = vsel %vm1420, %v1404, %v1436
  %v1453 = vsel %vm1421, %v1405, %v1437
  %v1454 = vsel %vm1422, %v1406, %v1438
  %v1455 = vsel %vm1423, %v1407, %v1439
  %v1456 = vsel %vm1424, %v1408, %v1440
  %v1457 = vsel %vm1425, %v1409, %v1441
  %v1458 = vsel %vm1426, %v1410, %v1442
  %v1459 = vsel %vm1427, %v1411, %v1443
  %v1460 = vsel %vm1428, %v1412, %v1444
  %v1461 = vsel %vm1429, %v1413, %v1445
  %v1462 = vsel %vm1430, %v1414, %v1446
  %v1463 = vsel %vm1431, %v1415, %v1447
  %v1464 = vpack.c.bf16 %v1449, %v1448
  %v1465 = vpack.c.bf16 %v1451, %v1450
  %v1466 = vpack.c.bf16 %v1453, %v1452
  %v1467 = vpack.c.bf16 %v1455, %v1454
  %v1468 = vpack.c.bf16 %v1457, %v1456
  %v1469 = vpack.c.bf16 %v1459, %v1458
  %v1470 = vpack.c.bf16 %v1461, %v1460
  %v1471 = vpack.c.bf16 %v1463, %v1462
  %v1480 = vunpack.c.l.b16 %v1464
  %v1481 = vunpack.c.h.b16 %v1464
  %v1482 = vunpack.c.l.b16 %v1465
  %v1483 = vunpack.c.h.b16 %v1465
  %v1484 = vunpack.c.l.b16 %v1466
  %v1485 = vunpack.c.h.b16 %v1466
  %v1486 = vunpack.c.l.b16 %v1467
  %v1487 = vunpack.c.h.b16 %v1467
  %v1488 = vunpack.c.l.b16 %v1468
  %v1489 = vunpack.c.h.b16 %v1468
  %v1490 = vunpack.c.l.b16 %v1469
  %v1491 = vunpack.c.h.b16 %v1469
  %v1492 = vunpack.c.l.b16 %v1470
  %v1493 = vunpack.c.h.b16 %v1470
  %v1494 = vunpack.c.l.b16 %v1471
  %v1495 = vunpack.c.h.b16 %v1471
  %v1496 = vpack.c.b16 %v1480, %v1480
  %v1497 = vpack.c.b16 %v1481, %v1481
  %v1498 = vpack.c.b16 %v1482, %v1482
  %v1499 = vpack.c.b16 %v1483, %v1483
  %v1500 = vpack.c.b16 %v1484, %v1484
  %v1501 = vpack.c.b16 %v1485, %v1485
  %v1502 = vpack.c.b16 %v1486, %v1486
  %v1503 = vpack.c.b16 %v1487, %v1487
  %v1504 = vpack.c.b16 %v1488, %v1488
  %v1505 = vpack.c.b16 %v1489, %v1489
  %v1506 = vpack.c.b16 %v1490, %v1490
  %v1507 = vpack.c.b16 %v1491, %v1491
  %v1508 = vpack.c.b16 %v1492, %v1492
  %v1509 = vpack.c.b16 %v1493, %v1493
  %v1510 = vpack.c.b16 %v1494, %v1494
  %v1511 = vpack.c.b16 %v1495, %v1495
  %1528 = vst [vmem:[%s4] sm:$0xf] %v1496
  %1529 = vst [vmem:[%s4 + $0x4] sm:$0xf] %v1497
  %1530 = vst [vmem:[%s4 + $0x8] sm:$0xf] %v1498
  %1531 = vst [vmem:[%s4 + $0xc] sm:$0xf] %v1499
  %1532 = vst [vmem:[%s4 + $0x10] sm:$0xf] %v1500
  %1533 = vst [vmem:[%s4 + $0x14] sm:$0xf] %v1501
  %1534 = vst [vmem:[%s4 + $0x18] sm:$0xf] %v1502
  %1535 = vst [vmem:[%s4 + $0x1c] sm:$0xf] %v1503
  %1536 = vst [vmem:[%s4 + $0x20] sm:$0xf] %v1504
  %1537 = vst [vmem:[%s4 + $0x24] sm:$0xf] %v1505
  %1538 = vst [vmem:[%s4 + $0x28] sm:$0xf] %v1506
  %1539 = vst [vmem:[%s4 + $0x2c] sm:$0xf] %v1507
  %1540 = vst [vmem:[%s4 + $0x30] sm:$0xf] %v1508
  %1541 = vst [vmem:[%s4 + $0x34] sm:$0xf] %v1509
  %1542 = vst [vmem:[%s4 + $0x38] sm:$0xf] %v1510
  %1543 = vst [vmem:[%s4 + $0x3c] sm:$0xf] %v1511
  // Predicated region
  $region18: #{_lambda_.5} parent=0 // pred_check
    _
  $region19: #{_lambda_.5} parent=0 // pred_check_branch
    %1545 = sbr.rel (0) target = $region21
  $region20: #{_lambda_.5} parent=0 // pred_region
    _
  $region21: #{_lambda_.5} parent=0 // pred_fallthru
    _
  // Predicated region
  $region22: #{_lambda_.5} parent=0 // pred_check
    _
  $region23: #{_lambda_.5} parent=0 // pred_check_branch
    %1547 = sbr.rel (0) target = $region25
  $region24: #{_lambda_.5} parent=0 // pred_region
    _
  $region25: #{_lambda_.5} parent=0 // pred_fallthru
    _

// kernel: _lambda_.6
$region0: #{_lambda_.6}
  #allocation0 [shape = 'u32[]', space=smem, size = 0x4, offset = 0x4, fixed_abs, tag = 'smem constant byte address 0x4 - core index']
  #allocation1 [shape = 'u32[144,128]{1,0:T(1,128)}', space=vmem, size = 0x12000, scoped, tag = 'internal scratch']
  %s0 = inlined_call_operand.vmem [shape: bf16[32,2048], index: 0, kind: input, shape index: {}]
  %s1 = inlined_call_operand.vmem [shape: bf16[2048,256], index: 1, kind: input, shape index: {}]
  %s2 = inlined_call_operand.vmem [shape: f32[1,256], index: 2, kind: input, shape index: {}]
  %s3 = inlined_call_operand.vmem [shape: f32[1,256], index: 3, kind: input, shape index: {}]
  %s4 = inlined_call_operand.vmem [shape: bf16[32,256], index: 4, kind: output, shape index: {}]
  %s5 = sld [smem:[#allocation0]]
  $region26: #{_lambda_.6} parent=0
    _
  %s7 = ssub.s32 1, %s5
  %s8 = scalar_select 0, %s7, %s5
  // Predicated region
  $region2: #{_lambda_.6} parent=0 // pred_check
    _
  $region3: #{_lambda_.6} parent=0 // pred_check_branch
    %10 = sbr.rel (0) target = $region5
  $region4: #{_lambda_.6} parent=0 // pred_region
    _
  $region5: #{_lambda_.6} parent=0 // pred_fallthru
    _
  // Predicated region
  $region6: #{_lambda_.6} parent=0 // pred_check
    _
  $region7: #{_lambda_.6} parent=0 // pred_check_branch
    %12 = sbr.rel (0) target = $region9
  $region8: #{_lambda_.6} parent=0 // pred_region
    _
  $region9: #{_lambda_.6} parent=0 // pred_fallthru
    _
  // Predicated region
  $region10: #{_lambda_.6} parent=0 // pred_check
    _
  $region11: #{_lambda_.6} parent=0 // pred_check_branch
    %14 = sbr.rel (0) target = $region13
  $region12: #{_lambda_.6} parent=0 // pred_region
    _
  $region13: #{_lambda_.6} parent=0 // pred_fallthru
    _
  // Predicated region
  $region14: #{_lambda_.6} parent=0 // pred_check
    _
  $region15: #{_lambda_.6} parent=0 // pred_check_branch
    %16 = sbr.rel (0) target = $region17
  $region16: #{_lambda_.6} parent=0 // pred_region
    _
  $region17: #{_lambda_.6} parent=0 // pred_fallthru
    _
  %v17 = vld [vmem:[%s0] sm:$0xff]
  %v18 = vld [vmem:[%s0 + $0x8] sm:$0xff]
  %v19 = vld [vmem:[%s0 + $0x10] sm:$0xff]
  %v20 = vld [vmem:[%s0 + $0x18] sm:$0xff]
  %v21 = vld [vmem:[%s0 + $0x20] sm:$0xff]
  %v22 = vld [vmem:[%s0 + $0x28] sm:$0xff]
  %v23 = vld [vmem:[%s0 + $0x30] sm:$0xff]
  %v24 = vld [vmem:[%s0 + $0x38] sm:$0xff]
  %v25 = vld [vmem:[%s0 + $0x40] sm:$0xff]
  %v26 = vld [vmem:[%s0 + $0x48] sm:$0xff]
  %v27 = vld [vmem:[%s0 + $0x50] sm:$0xff]
  %v28 = vld [vmem:[%s0 + $0x58] sm:$0xff]
  %v29 = vld [vmem:[%s0 + $0x60] sm:$0xff]
  %v30 = vld [vmem:[%s0 + $0x68] sm:$0xff]
  %v31 = vld [vmem:[%s0 + $0x70] sm:$0xff]
  %v32 = vld [vmem:[%s0 + $0x78] sm:$0xff]
  %v33 = vld [vmem:[%s0 + $0x80] sm:$0xff]
  %v34 = vld [vmem:[%s0 + $0x88] sm:$0xff]
  %v35 = vld [vmem:[%s0 + $0x90] sm:$0xff]
  %v36 = vld [vmem:[%s0 + $0x98] sm:$0xff]
  %v37 = vld [vmem:[%s0 + $0xa0] sm:$0xff]
  %v38 = vld [vmem:[%s0 + $0xa8] sm:$0xff]
  %v39 = vld [vmem:[%s0 + $0xb0] sm:$0xff]
  %v40 = vld [vmem:[%s0 + $0xb8] sm:$0xff]
  %v41 = vld [vmem:[%s0 + $0xc0] sm:$0xff]
  %v42 = vld [vmem:[%s0 + $0xc8] sm:$0xff]
  %v43 = vld [vmem:[%s0 + $0xd0] sm:$0xff]
  %v44 = vld [vmem:[%s0 + $0xd8] sm:$0xff]
  %v45 = vld [vmem:[%s0 + $0xe0] sm:$0xff]
  %v46 = vld [vmem:[%s0 + $0xe8] sm:$0xff]
  %v47 = vld [vmem:[%s0 + $0xf0] sm:$0xff]
  %v48 = vld [vmem:[%s0 + $0xf8] sm:$0xff]
  %v49 = vld [vmem:[%s1] sm:$0xff]
  %v50 = vld [vmem:[%s1 + $0x8] sm:$0xff]
  %v51 = vld [vmem:[%s1 + $0x10] sm:$0xff]
  %v52 = vld [vmem:[%s1 + $0x18] sm:$0xff]
  %v53 = vld [vmem:[%s1 + $0x20] sm:$0xff]
  %v54 = vld [vmem:[%s1 + $0x28] sm:$0xff]
  %v55 = vld [vmem:[%s1 + $0x30] sm:$0xff]
  %v56 = vld [vmem:[%s1 + $0x38] sm:$0xff]
  %v57 = vld [vmem:[%s1 + $0x40] sm:$0xff]
  %v58 = vld [vmem:[%s1 + $0x48] sm:$0xff]
  %v59 = vld [vmem:[%s1 + $0x50] sm:$0xff]
  %v60 = vld [vmem:[%s1 + $0x58] sm:$0xff]
  %v61 = vld [vmem:[%s1 + $0x60] sm:$0xff]
  %v62 = vld [vmem:[%s1 + $0x68] sm:$0xff]
  %v63 = vld [vmem:[%s1 + $0x70] sm:$0xff]
  %v64 = vld [vmem:[%s1 + $0x78] sm:$0xff]
  %v65 = vld [vmem:[%s1 + $0x80] sm:$0xff]
  %v66 = vld [vmem:[%s1 + $0x88] sm:$0xff]
  %v67 = vld [vmem:[%s1 + $0x90] sm:$0xff]
  %v68 = vld [vmem:[%s1 + $0x98] sm:$0xff]
  %v69 = vld [vmem:[%s1 + $0xa0] sm:$0xff]
  %v70 = vld [vmem:[%s1 + $0xa8] sm:$0xff]
  %v71 = vld [vmem:[%s1 + $0xb0] sm:$0xff]
  %v72 = vld [vmem:[%s1 + $0xb8] sm:$0xff]
  %v73 = vld [vmem:[%s1 + $0xc0] sm:$0xff]
  %v74 = vld [vmem:[%s1 + $0xc8] sm:$0xff]
  %v75 = vld [vmem:[%s1 + $0xd0] sm:$0xff]
  %v76 = vld [vmem:[%s1 + $0xd8] sm:$0xff]
  %v77 = vld [vmem:[%s1 + $0xe0] sm:$0xff]
  %v78 = vld [vmem:[%s1 + $0xe8] sm:$0xff]
  %v79 = vld [vmem:[%s1 + $0xf0] sm:$0xff]
  %v80 = vld [vmem:[%s1 + $0xf8] sm:$0xff]
  %v81 = vld [vmem:[%s1 + $0x100] sm:$0xff]
  %v82 = vld [vmem:[%s1 + $0x108] sm:$0xff]
  %v83 = vld [vmem:[%s1 + $0x110] sm:$0xff]
  %v84 = vld [vmem:[%s1 + $0x118] sm:$0xff]
  %v85 = vld [vmem:[%s1 + $0x120] sm:$0xff]
  %v86 = vld [vmem:[%s1 + $0x128] sm:$0xff]
  %v87 = vld [vmem:[%s1 + $0x130] sm:$0xff]
  %v88 = vld [vmem:[%s1 + $0x138] sm:$0xff]
  %v89 = vld [vmem:[%s1 + $0x140] sm:$0xff]
  %v90 = vld [vmem:[%s1 + $0x148] sm:$0xff]
  %v91 = vld [vmem:[%s1 + $0x150] sm:$0xff]
  %v92 = vld [vmem:[%s1 + $0x158] sm:$0xff]
  %v93 = vld [vmem:[%s1 + $0x160] sm:$0xff]
  %v94 = vld [vmem:[%s1 + $0x168] sm:$0xff]
  %v95 = vld [vmem:[%s1 + $0x170] sm:$0xff]
  %v96 = vld [vmem:[%s1 + $0x178] sm:$0xff]
  %v97 = vld [vmem:[%s1 + $0x180] sm:$0xff]
  %v98 = vld [vmem:[%s1 + $0x188] sm:$0xff]
  %v99 = vld [vmem:[%s1 + $0x190] sm:$0xff]
  %v100 = vld [vmem:[%s1 + $0x198] sm:$0xff]
  %v101 = vld [vmem:[%s1 + $0x1a0] sm:$0xff]
  %v102 = vld [vmem:[%s1 + $0x1a8] sm:$0xff]
  %v103 = vld [vmem:[%s1 + $0x1b0] sm:$0xff]
  %v104 = vld [vmem:[%s1 + $0x1b8] sm:$0xff]
  %v105 = vld [vmem:[%s1 + $0x1c0] sm:$0xff]
  %v106 = vld [vmem:[%s1 + $0x1c8] sm:$0xff]
  %v107 = vld [vmem:[%s1 + $0x1d0] sm:$0xff]
  %v108 = vld [vmem:[%s1 + $0x1d8] sm:$0xff]
  %v109 = vld [vmem:[%s1 + $0x1e0] sm:$0xff]
  %v110 = vld [vmem:[%s1 + $0x1e8] sm:$0xff]
  %v111 = vld [vmem:[%s1 + $0x1f0] sm:$0xff]
  %v112 = vld [vmem:[%s1 + $0x1f8] sm:$0xff]
  %v113 = vld [vmem:[%s1 + $0x200] sm:$0xff]
  %v114 = vld [vmem:[%s1 + $0x208] sm:$0xff]
  %v115 = vld [vmem:[%s1 + $0x210] sm:$0xff]
  %v116 = vld [vmem:[%s1 + $0x218] sm:$0xff]
  %v117 = vld [vmem:[%s1 + $0x220] sm:$0xff]
  %v118 = vld [vmem:[%s1 + $0x228] sm:$0xff]
  %v119 = vld [vmem:[%s1 + $0x230] sm:$0xff]
  %v120 = vld [vmem:[%s1 + $0x238] sm:$0xff]
  %v121 = vld [vmem:[%s1 + $0x240] sm:$0xff]
  %v122 = vld [vmem:[%s1 + $0x248] sm:$0xff]
  %v123 = vld [vmem:[%s1 + $0x250] sm:$0xff]
  %v124 = vld [vmem:[%s1 + $0x258] sm:$0xff]
  %v125 = vld [vmem:[%s1 + $0x260] sm:$0xff]
  %v126 = vld [vmem:[%s1 + $0x268] sm:$0xff]
  %v127 = vld [vmem:[%s1 + $0x270] sm:$0xff]
  %v128 = vld [vmem:[%s1 + $0x278] sm:$0xff]
  %v129 = vld [vmem:[%s1 + $0x280] sm:$0xff]
  %v130 = vld [vmem:[%s1 + $0x288] sm:$0xff]
  %v131 = vld [vmem:[%s1 + $0x290] sm:$0xff]
  %v132 = vld [vmem:[%s1 + $0x298] sm:$0xff]
  %v133 = vld [vmem:[%s1 + $0x2a0] sm:$0xff]
  %v134 = vld [vmem:[%s1 + $0x2a8] sm:$0xff]
  %v135 = vld [vmem:[%s1 + $0x2b0] sm:$0xff]
  %v136 = vld [vmem:[%s1 + $0x2b8] sm:$0xff]
  %v137 = vld [vmem:[%s1 + $0x2c0] sm:$0xff]
  %v138 = vld [vmem:[%s1 + $0x2c8] sm:$0xff]
  %v139 = vld [vmem:[%s1 + $0x2d0] sm:$0xff]
  %v140 = vld [vmem:[%s1 + $0x2d8] sm:$0xff]
  %v141 = vld [vmem:[%s1 + $0x2e0] sm:$0xff]
  %v142 = vld [vmem:[%s1 + $0x2e8] sm:$0xff]
  %v143 = vld [vmem:[%s1 + $0x2f0] sm:$0xff]
  %v144 = vld [vmem:[%s1 + $0x2f8] sm:$0xff]
  %v145 = vld [vmem:[%s1 + $0x300] sm:$0xff]
  %v146 = vld [vmem:[%s1 + $0x308] sm:$0xff]
  %v147 = vld [vmem:[%s1 + $0x310] sm:$0xff]
  %v148 = vld [vmem:[%s1 + $0x318] sm:$0xff]
  %v149 = vld [vmem:[%s1 + $0x320] sm:$0xff]
  %v150 = vld [vmem:[%s1 + $0x328] sm:$0xff]
  %v151 = vld [vmem:[%s1 + $0x330] sm:$0xff]
  %v152 = vld [vmem:[%s1 + $0x338] sm:$0xff]
  %v153 = vld [vmem:[%s1 + $0x340] sm:$0xff]
  %v154 = vld [vmem:[%s1 + $0x348] sm:$0xff]
  %v155 = vld [vmem:[%s1 + $0x350] sm:$0xff]
  %v156 = vld [vmem:[%s1 + $0x358] sm:$0xff]
  %v157 = vld [vmem:[%s1 + $0x360] sm:$0xff]
  %v158 = vld [vmem:[%s1 + $0x368] sm:$0xff]
  %v159 = vld [vmem:[%s1 + $0x370] sm:$0xff]
  %v160 = vld [vmem:[%s1 + $0x378] sm:$0xff]
  %v161 = vld [vmem:[%s1 + $0x380] sm:$0xff]
  %v162 = vld [vmem:[%s1 + $0x388] sm:$0xff]
  %v163 = vld [vmem:[%s1 + $0x390] sm:$0xff]
  %v164 = vld [vmem:[%s1 + $0x398] sm:$0xff]
  %v165 = vld [vmem:[%s1 + $0x3a0] sm:$0xff]
  %v166 = vld [vmem:[%s1 + $0x3a8] sm:$0xff]
  %v167 = vld [vmem:[%s1 + $0x3b0] sm:$0xff]
  %v168 = vld [vmem:[%s1 + $0x3b8] sm:$0xff]
  %v169 = vld [vmem:[%s1 + $0x3c0] sm:$0xff]
  %v170 = vld [vmem:[%s1 + $0x3c8] sm:$0xff]
  %v171 = vld [vmem:[%s1 + $0x3d0] sm:$0xff]
  %v172 = vld [vmem:[%s1 + $0x3d8] sm:$0xff]
  %v173 = vld [vmem:[%s1 + $0x3e0] sm:$0xff]
  %v174 = vld [vmem:[%s1 + $0x3e8] sm:$0xff]
  %v175 = vld [vmem:[%s1 + $0x3f0] sm:$0xff]
  %v176 = vld [vmem:[%s1 + $0x3f8] sm:$0xff]
  %v177 = vld [vmem:[%s1 + $0x400] sm:$0xff]
  %v178 = vld [vmem:[%s1 + $0x408] sm:$0xff]
  %v179 = vld [vmem:[%s1 + $0x410] sm:$0xff]
  %v180 = vld [vmem:[%s1 + $0x418] sm:$0xff]
  %v181 = vld [vmem:[%s1 + $0x420] sm:$0xff]
  %v182 = vld [vmem:[%s1 + $0x428] sm:$0xff]
  %v183 = vld [vmem:[%s1 + $0x430] sm:$0xff]
  %v184 = vld [vmem:[%s1 + $0x438] sm:$0xff]
  %v185 = vld [vmem:[%s1 + $0x440] sm:$0xff]
  %v186 = vld [vmem:[%s1 + $0x448] sm:$0xff]
  %v187 = vld [vmem:[%s1 + $0x450] sm:$0xff]
  %v188 = vld [vmem:[%s1 + $0x458] sm:$0xff]
  %v189 = vld [vmem:[%s1 + $0x460] sm:$0xff]
  %v190 = vld [vmem:[%s1 + $0x468] sm:$0xff]
  %v191 = vld [vmem:[%s1 + $0x470] sm:$0xff]
  %v192 = vld [vmem:[%s1 + $0x478] sm:$0xff]
  %v193 = vld [vmem:[%s1 + $0x480] sm:$0xff]
  %v194 = vld [vmem:[%s1 + $0x488] sm:$0xff]
  %v195 = vld [vmem:[%s1 + $0x490] sm:$0xff]
  %v196 = vld [vmem:[%s1 + $0x498] sm:$0xff]
  %v197 = vld [vmem:[%s1 + $0x4a0] sm:$0xff]
  %v198 = vld [vmem:[%s1 + $0x4a8] sm:$0xff]
  %v199 = vld [vmem:[%s1 + $0x4b0] sm:$0xff]
  %v200 = vld [vmem:[%s1 + $0x4b8] sm:$0xff]
  %v201 = vld [vmem:[%s1 + $0x4c0] sm:$0xff]
  %v202 = vld [vmem:[%s1 + $0x4c8] sm:$0xff]
  %v203 = vld [vmem:[%s1 + $0x4d0] sm:$0xff]
  %v204 = vld [vmem:[%s1 + $0x4d8] sm:$0xff]
  %v205 = vld [vmem:[%s1 + $0x4e0] sm:$0xff]
  %v206 = vld [vmem:[%s1 + $0x4e8] sm:$0xff]
  %v207 = vld [vmem:[%s1 + $0x4f0] sm:$0xff]
  %v208 = vld [vmem:[%s1 + $0x4f8] sm:$0xff]
  %v209 = vld [vmem:[%s1 + $0x500] sm:$0xff]
  %v210 = vld [vmem:[%s1 + $0x508] sm:$0xff]
  %v211 = vld [vmem:[%s1 + $0x510] sm:$0xff]
  %v212 = vld [vmem:[%s1 + $0x518] sm:$0xff]
  %v213 = vld [vmem:[%s1 + $0x520] sm:$0xff]
  %v214 = vld [vmem:[%s1 + $0x528] sm:$0xff]
  %v215 = vld [vmem:[%s1 + $0x530] sm:$0xff]
  %v216 = vld [vmem:[%s1 + $0x538] sm:$0xff]
  %v217 = vld [vmem:[%s1 + $0x540] sm:$0xff]
  %v218 = vld [vmem:[%s1 + $0x548] sm:$0xff]
  %v219 = vld [vmem:[%s1 + $0x550] sm:$0xff]
  %v220 = vld [vmem:[%s1 + $0x558] sm:$0xff]
  %v221 = vld [vmem:[%s1 + $0x560] sm:$0xff]
  %v222 = vld [vmem:[%s1 + $0x568] sm:$0xff]
  %v223 = vld [vmem:[%s1 + $0x570] sm:$0xff]
  %v224 = vld [vmem:[%s1 + $0x578] sm:$0xff]
  %v225 = vld [vmem:[%s1 + $0x580] sm:$0xff]
  %v226 = vld [vmem:[%s1 + $0x588] sm:$0xff]
  %v227 = vld [vmem:[%s1 + $0x590] sm:$0xff]
  %v228 = vld [vmem:[%s1 + $0x598] sm:$0xff]
  %v229 = vld [vmem:[%s1 + $0x5a0] sm:$0xff]
  %v230 = vld [vmem:[%s1 + $0x5a8] sm:$0xff]
  %v231 = vld [vmem:[%s1 + $0x5b0] sm:$0xff]
  %v232 = vld [vmem:[%s1 + $0x5b8] sm:$0xff]
  %v233 = vld [vmem:[%s1 + $0x5c0] sm:$0xff]
  %v234 = vld [vmem:[%s1 + $0x5c8] sm:$0xff]
  %v235 = vld [vmem:[%s1 + $0x5d0] sm:$0xff]
  %v236 = vld [vmem:[%s1 + $0x5d8] sm:$0xff]
  %v237 = vld [vmem:[%s1 + $0x5e0] sm:$0xff]
  %v238 = vld [vmem:[%s1 + $0x5e8] sm:$0xff]
  %v239 = vld [vmem:[%s1 + $0x5f0] sm:$0xff]
  %v240 = vld [vmem:[%s1 + $0x5f8] sm:$0xff]
  %v241 = vld [vmem:[%s1 + $0x600] sm:$0xff]
  %v242 = vld [vmem:[%s1 + $0x608] sm:$0xff]
  %v243 = vld [vmem:[%s1 + $0x610] sm:$0xff]
  %v244 = vld [vmem:[%s1 + $0x618] sm:$0xff]
  %v245 = vld [vmem:[%s1 + $0x620] sm:$0xff]
  %v246 = vld [vmem:[%s1 + $0x628] sm:$0xff]
  %v247 = vld [vmem:[%s1 + $0x630] sm:$0xff]
  %v248 = vld [vmem:[%s1 + $0x638] sm:$0xff]
  %v249 = vld [vmem:[%s1 + $0x640] sm:$0xff]
  %v250 = vld [vmem:[%s1 + $0x648] sm:$0xff]
  %v251 = vld [vmem:[%s1 + $0x650] sm:$0xff]
  %v252 = vld [vmem:[%s1 + $0x658] sm:$0xff]
  %v253 = vld [vmem:[%s1 + $0x660] sm:$0xff]
  %v254 = vld [vmem:[%s1 + $0x668] sm:$0xff]
  %v255 = vld [vmem:[%s1 + $0x670] sm:$0xff]
  %v256 = vld [vmem:[%s1 + $0x678] sm:$0xff]
  %v257 = vld [vmem:[%s1 + $0x680] sm:$0xff]
  %v258 = vld [vmem:[%s1 + $0x688] sm:$0xff]
  %v259 = vld [vmem:[%s1 + $0x690] sm:$0xff]
  %v260 = vld [vmem:[%s1 + $0x698] sm:$0xff]
  %v261 = vld [vmem:[%s1 + $0x6a0] sm:$0xff]
  %v262 = vld [vmem:[%s1 + $0x6a8] sm:$0xff]
  %v263 = vld [vmem:[%s1 + $0x6b0] sm:$0xff]
  %v264 = vld [vmem:[%s1 + $0x6b8] sm:$0xff]
  %v265 = vld [vmem:[%s1 + $0x6c0] sm:$0xff]
  %v266 = vld [vmem:[%s1 + $0x6c8] sm:$0xff]
  %v267 = vld [vmem:[%s1 + $0x6d0] sm:$0xff]
  %v268 = vld [vmem:[%s1 + $0x6d8] sm:$0xff]
  %v269 = vld [vmem:[%s1 + $0x6e0] sm:$0xff]
  %v270 = vld [vmem:[%s1 + $0x6e8] sm:$0xff]
  %v271 = vld [vmem:[%s1 + $0x6f0] sm:$0xff]
  %v272 = vld [vmem:[%s1 + $0x6f8] sm:$0xff]
  %v273 = vld [vmem:[%s1 + $0x700] sm:$0xff]
  %v274 = vld [vmem:[%s1 + $0x708] sm:$0xff]
  %v275 = vld [vmem:[%s1 + $0x710] sm:$0xff]
  %v276 = vld [vmem:[%s1 + $0x718] sm:$0xff]
  %v277 = vld [vmem:[%s1 + $0x720] sm:$0xff]
  %v278 = vld [vmem:[%s1 + $0x728] sm:$0xff]
  %v279 = vld [vmem:[%s1 + $0x730] sm:$0xff]
  %v280 = vld [vmem:[%s1 + $0x738] sm:$0xff]
  %v281 = vld [vmem:[%s1 + $0x740] sm:$0xff]
  %v282 = vld [vmem:[%s1 + $0x748] sm:$0xff]
  %v283 = vld [vmem:[%s1 + $0x750] sm:$0xff]
  %v284 = vld [vmem:[%s1 + $0x758] sm:$0xff]
  %v285 = vld [vmem:[%s1 + $0x760] sm:$0xff]
  %v286 = vld [vmem:[%s1 + $0x768] sm:$0xff]
  %v287 = vld [vmem:[%s1 + $0x770] sm:$0xff]
  %v288 = vld [vmem:[%s1 + $0x778] sm:$0xff]
  %v289 = vld [vmem:[%s1 + $0x780] sm:$0xff]
  %v290 = vld [vmem:[%s1 + $0x788] sm:$0xff]
  %v291 = vld [vmem:[%s1 + $0x790] sm:$0xff]
  %v292 = vld [vmem:[%s1 + $0x798] sm:$0xff]
  %v293 = vld [vmem:[%s1 + $0x7a0] sm:$0xff]
  %v294 = vld [vmem:[%s1 + $0x7a8] sm:$0xff]
  %v295 = vld [vmem:[%s1 + $0x7b0] sm:$0xff]
  %v296 = vld [vmem:[%s1 + $0x7b8] sm:$0xff]
  %v297 = vld [vmem:[%s1 + $0x7c0] sm:$0xff]
  %v298 = vld [vmem:[%s1 + $0x7c8] sm:$0xff]
  %v299 = vld [vmem:[%s1 + $0x7d0] sm:$0xff]
  %v300 = vld [vmem:[%s1 + $0x7d8] sm:$0xff]
  %v301 = vld [vmem:[%s1 + $0x7e0] sm:$0xff]
  %v302 = vld [vmem:[%s1 + $0x7e8] sm:$0xff]
  %v303 = vld [vmem:[%s1 + $0x7f0] sm:$0xff]
  %v304 = vld [vmem:[%s1 + $0x7f8] sm:$0xff]
  %v337 = vunpack.c.l.b16 %v17
  %v338 = vunpack.c.h.b16 %v17
  %v339 = vunpack.c.l.b16 %v18
  %v340 = vunpack.c.h.b16 %v18
  %v341 = vunpack.c.l.b16 %v19
  %v342 = vunpack.c.h.b16 %v19
  %v343 = vunpack.c.l.b16 %v20
  %v344 = vunpack.c.h.b16 %v20
  %v345 = vunpack.c.l.b16 %v21
  %v346 = vunpack.c.h.b16 %v21
  %v347 = vunpack.c.l.b16 %v22
  %v348 = vunpack.c.h.b16 %v22
  %v349 = vunpack.c.l.b16 %v23
  %v350 = vunpack.c.h.b16 %v23
  %v351 = vunpack.c.l.b16 %v24
  %v352 = vunpack.c.h.b16 %v24
  %v353 = vunpack.c.l.b16 %v25
  %v354 = vunpack.c.h.b16 %v25
  %v355 = vunpack.c.l.b16 %v26
  %v356 = vunpack.c.h.b16 %v26
  %v357 = vunpack.c.l.b16 %v27
  %v358 = vunpack.c.h.b16 %v27
  %v359 = vunpack.c.l.b16 %v28
  %v360 = vunpack.c.h.b16 %v28
  %v361 = vunpack.c.l.b16 %v29
  %v362 = vunpack.c.h.b16 %v29
  %v363 = vunpack.c.l.b16 %v30
  %v364 = vunpack.c.h.b16 %v30
  %v365 = vunpack.c.l.b16 %v31
  %v366 = vunpack.c.h.b16 %v31
  %v367 = vunpack.c.l.b16 %v32
  %v368 = vunpack.c.h.b16 %v32
  %v369 = vunpack.c.l.b16 %v33
  %v370 = vunpack.c.h.b16 %v33
  %v371 = vunpack.c.l.b16 %v34
  %v372 = vunpack.c.h.b16 %v34
  %v373 = vunpack.c.l.b16 %v35
  %v374 = vunpack.c.h.b16 %v35
  %v375 = vunpack.c.l.b16 %v36
  %v376 = vunpack.c.h.b16 %v36
  %v377 = vunpack.c.l.b16 %v37
  %v378 = vunpack.c.h.b16 %v37
  %v379 = vunpack.c.l.b16 %v38
  %v380 = vunpack.c.h.b16 %v38
  %v381 = vunpack.c.l.b16 %v39
  %v382 = vunpack.c.h.b16 %v39
  %v383 = vunpack.c.l.b16 %v40
  %v384 = vunpack.c.h.b16 %v40
  %v385 = vunpack.c.l.b16 %v41
  %v386 = vunpack.c.h.b16 %v41
  %v387 = vunpack.c.l.b16 %v42
  %v388 = vunpack.c.h.b16 %v42
  %v389 = vunpack.c.l.b16 %v43
  %v390 = vunpack.c.h.b16 %v43
  %v391 = vunpack.c.l.b16 %v44
  %v392 = vunpack.c.h.b16 %v44
  %v393 = vunpack.c.l.b16 %v45
  %v394 = vunpack.c.h.b16 %v45
  %v395 = vunpack.c.l.b16 %v46
  %v396 = vunpack.c.h.b16 %v46
  %v397 = vunpack.c.l.b16 %v47
  %v398 = vunpack.c.h.b16 %v47
  %v399 = vunpack.c.l.b16 %v48
  %v400 = vunpack.c.h.b16 %v48
  %v401 = vpack.c.b16 %v353, %v337
  %v402 = vpack.c.b16 %v354, %v338
  %v403 = vpack.c.b16 %v355, %v339
  %v404 = vpack.c.b16 %v356, %v340
  %v405 = vpack.c.b16 %v357, %v341
  %v406 = vpack.c.b16 %v358, %v342
  %v407 = vpack.c.b16 %v359, %v343
  %v408 = vpack.c.b16 %v360, %v344
  %v409 = vpack.c.b16 %v361, %v345
  %v410 = vpack.c.b16 %v362, %v346
  %v411 = vpack.c.b16 %v363, %v347
  %v412 = vpack.c.b16 %v364, %v348
  %v413 = vpack.c.b16 %v365, %v349
  %v414 = vpack.c.b16 %v366, %v350
  %v415 = vpack.c.b16 %v367, %v351
  %v416 = vpack.c.b16 %v368, %v352
  %v417 = vpack.c.b16 %v385, %v369
  %v418 = vpack.c.b16 %v386, %v370
  %v419 = vpack.c.b16 %v387, %v371
  %v420 = vpack.c.b16 %v388, %v372
  %v421 = vpack.c.b16 %v389, %v373
  %v422 = vpack.c.b16 %v390, %v374
  %v423 = vpack.c.b16 %v391, %v375
  %v424 = vpack.c.b16 %v392, %v376
  %v425 = vpack.c.b16 %v393, %v377
  %v426 = vpack.c.b16 %v394, %v378
  %v427 = vpack.c.b16 %v395, %v379
  %v428 = vpack.c.b16 %v396, %v380
  %v429 = vpack.c.b16 %v397, %v381
  %v430 = vpack.c.b16 %v398, %v382
  %v431 = vpack.c.b16 %v399, %v383
  %v432 = vpack.c.b16 %v400, %v384
  %v721 = vunpack.c.l.b16 %v49
  %v722 = vunpack.c.h.b16 %v49
  %v723 = vunpack.c.l.b16 %v50
  %v724 = vunpack.c.h.b16 %v50
  %v725 = vunpack.c.l.b16 %v51
  %v726 = vunpack.c.h.b16 %v51
  %v727 = vunpack.c.l.b16 %v52
  %v728 = vunpack.c.h.b16 %v52
  %v729 = vunpack.c.l.b16 %v53
  %v730 = vunpack.c.h.b16 %v53
  %v731 = vunpack.c.l.b16 %v54
  %v732 = vunpack.c.h.b16 %v54
  %v733 = vunpack.c.l.b16 %v55
  %v734 = vunpack.c.h.b16 %v55
  %v735 = vunpack.c.l.b16 %v56
  %v736 = vunpack.c.h.b16 %v56
  %v737 = vunpack.c.l.b16 %v57
  %v738 = vunpack.c.h.b16 %v57
  %v739 = vunpack.c.l.b16 %v58
  %v740 = vunpack.c.h.b16 %v58
  %v741 = vunpack.c.l.b16 %v59
  %v742 = vunpack.c.h.b16 %v59
  %v743 = vunpack.c.l.b16 %v60
  %v744 = vunpack.c.h.b16 %v60
  %v745 = vunpack.c.l.b16 %v61
  %v746 = vunpack.c.h.b16 %v61
  %v747 = vunpack.c.l.b16 %v62
  %v748 = vunpack.c.h.b16 %v62
  %v749 = vunpack.c.l.b16 %v63
  %v750 = vunpack.c.h.b16 %v63
  %v751 = vunpack.c.l.b16 %v64
  %v752 = vunpack.c.h.b16 %v64
  %v753 = vunpack.c.l.b16 %v65
  %v754 = vunpack.c.h.b16 %v65
  %v755 = vunpack.c.l.b16 %v66
  %v756 = vunpack.c.h.b16 %v66
  %v757 = vunpack.c.l.b16 %v67
  %v758 = vunpack.c.h.b16 %v67
  %v759 = vunpack.c.l.b16 %v68
  %v760 = vunpack.c.h.b16 %v68
  %v761 = vunpack.c.l.b16 %v69
  %v762 = vunpack.c.h.b16 %v69
  %v763 = vunpack.c.l.b16 %v70
  %v764 = vunpack.c.h.b16 %v70
  %v765 = vunpack.c.l.b16 %v71
  %v766 = vunpack.c.h.b16 %v71
  %v767 = vunpack.c.l.b16 %v72
  %v768 = vunpack.c.h.b16 %v72
  %v769 = vunpack.c.l.b16 %v73
  %v770 = vunpack.c.h.b16 %v73
  %v771 = vunpack.c.l.b16 %v74
  %v772 = vunpack.c.h.b16 %v74
  %v773 = vunpack.c.l.b16 %v75
  %v774 = vunpack.c.h.b16 %v75
  %v775 = vunpack.c.l.b16 %v76
  %v776 = vunpack.c.h.b16 %v76
  %v777 = vunpack.c.l.b16 %v77
  %v778 = vunpack.c.h.b16 %v77
  %v779 = vunpack.c.l.b16 %v78
  %v780 = vunpack.c.h.b16 %v78
  %v781 = vunpack.c.l.b16 %v79
  %v782 = vunpack.c.h.b16 %v79
  %v783 = vunpack.c.l.b16 %v80
  %v784 = vunpack.c.h.b16 %v80
  %v785 = vunpack.c.l.b16 %v81
  %v786 = vunpack.c.h.b16 %v81
  %v787 = vunpack.c.l.b16 %v82
  %v788 = vunpack.c.h.b16 %v82
  %v789 = vunpack.c.l.b16 %v83
  %v790 = vunpack.c.h.b16 %v83
  %v791 = vunpack.c.l.b16 %v84
  %v792 = vunpack.c.h.b16 %v84
  %v793 = vunpack.c.l.b16 %v85
  %v794 = vunpack.c.h.b16 %v85
  %v795 = vunpack.c.l.b16 %v86
  %v796 = vunpack.c.h.b16 %v86
  %v797 = vunpack.c.l.b16 %v87
  %v798 = vunpack.c.h.b16 %v87
  %v799 = vunpack.c.l.b16 %v88
  %v800 = vunpack.c.h.b16 %v88
  %v801 = vunpack.c.l.b16 %v89
  %v802 = vunpack.c.h.b16 %v89
  %v803 = vunpack.c.l.b16 %v90
  %v804 = vunpack.c.h.b16 %v90
  %v805 = vunpack.c.l.b16 %v91
  %v806 = vunpack.c.h.b16 %v91
  %v807 = vunpack.c.l.b16 %v92
  %v808 = vunpack.c.h.b16 %v92
  %v809 = vunpack.c.l.b16 %v93
  %v810 = vunpack.c.h.b16 %v93
  %v811 = vunpack.c.l.b16 %v94
  %v812 = vunpack.c.h.b16 %v94
  %v813 = vunpack.c.l.b16 %v95
  %v814 = vunpack.c.h.b16 %v95
  %v815 = vunpack.c.l.b16 %v96
  %v816 = vunpack.c.h.b16 %v96
  %v817 = vunpack.c.l.b16 %v97
  %v818 = vunpack.c.h.b16 %v97
  %v819 = vunpack.c.l.b16 %v98
  %v820 = vunpack.c.h.b16 %v98
  %v821 = vunpack.c.l.b16 %v99
  %v822 = vunpack.c.h.b16 %v99
  %v823 = vunpack.c.l.b16 %v100
  %v824 = vunpack.c.h.b16 %v100
  %v825 = vunpack.c.l.b16 %v101
  %v826 = vunpack.c.h.b16 %v101
  %v827 = vunpack.c.l.b16 %v102
  %v828 = vunpack.c.h.b16 %v102
  %v829 = vunpack.c.l.b16 %v103
  %v830 = vunpack.c.h.b16 %v103
  %v831 = vunpack.c.l.b16 %v104
  %v832 = vunpack.c.h.b16 %v104
  %v833 = vunpack.c.l.b16 %v105
  %v834 = vunpack.c.h.b16 %v105
  %v835 = vunpack.c.l.b16 %v106
  %v836 = vunpack.c.h.b16 %v106
  %v837 = vunpack.c.l.b16 %v107
  %v838 = vunpack.c.h.b16 %v107
  %v839 = vunpack.c.l.b16 %v108
  %v840 = vunpack.c.h.b16 %v108
  %v841 = vunpack.c.l.b16 %v109
  %v842 = vunpack.c.h.b16 %v109
  %v843 = vunpack.c.l.b16 %v110
  %v844 = vunpack.c.h.b16 %v110
  %v845 = vunpack.c.l.b16 %v111
  %v846 = vunpack.c.h.b16 %v111
  %v847 = vunpack.c.l.b16 %v112
  %v848 = vunpack.c.h.b16 %v112
  %v849 = vunpack.c.l.b16 %v113
  %v850 = vunpack.c.h.b16 %v113
  %v851 = vunpack.c.l.b16 %v114
  %v852 = vunpack.c.h.b16 %v114
  %v853 = vunpack.c.l.b16 %v115
  %v854 = vunpack.c.h.b16 %v115
  %v855 = vunpack.c.l.b16 %v116
  %v856 = vunpack.c.h.b16 %v116
  %v857 = vunpack.c.l.b16 %v117
  %v858 = vunpack.c.h.b16 %v117
  %v859 = vunpack.c.l.b16 %v118
  %v860 = vunpack.c.h.b16 %v118
  %v861 = vunpack.c.l.b16 %v119
  %v862 = vunpack.c.h.b16 %v119
  %v863 = vunpack.c.l.b16 %v120
  %v864 = vunpack.c.h.b16 %v120
  %v865 = vunpack.c.l.b16 %v121
  %v866 = vunpack.c.h.b16 %v121
  %v867 = vunpack.c.l.b16 %v122
  %v868 = vunpack.c.h.b16 %v122
  %v869 = vunpack.c.l.b16 %v123
  %v870 = vunpack.c.h.b16 %v123
  %v871 = vunpack.c.l.b16 %v124
  %v872 = vunpack.c.h.b16 %v124
  %v873 = vunpack.c.l.b16 %v125
  %v874 = vunpack.c.h.b16 %v125
  %v875 = vunpack.c.l.b16 %v126
  %v876 = vunpack.c.h.b16 %v126
  %v877 = vunpack.c.l.b16 %v127
  %v878 = vunpack.c.h.b16 %v127
  %v879 = vunpack.c.l.b16 %v128
  %v880 = vunpack.c.h.b16 %v128
  %v881 = vunpack.c.l.b16 %v129
  %v882 = vunpack.c.h.b16 %v129
  %v883 = vunpack.c.l.b16 %v130
  %v884 = vunpack.c.h.b16 %v130
  %v885 = vunpack.c.l.b16 %v131
  %v886 = vunpack.c.h.b16 %v131
  %v887 = vunpack.c.l.b16 %v132
  %v888 = vunpack.c.h.b16 %v132
  %v889 = vunpack.c.l.b16 %v133
  %v890 = vunpack.c.h.b16 %v133
  %v891 = vunpack.c.l.b16 %v134
  %v892 = vunpack.c.h.b16 %v134
  %v893 = vunpack.c.l.b16 %v135
  %v894 = vunpack.c.h.b16 %v135
  %v895 = vunpack.c.l.b16 %v136
  %v896 = vunpack.c.h.b16 %v136
  %v897 = vunpack.c.l.b16 %v137
  %v898 = vunpack.c.h.b16 %v137
  %v899 = vunpack.c.l.b16 %v138
  %v900 = vunpack.c.h.b16 %v138
  %v901 = vunpack.c.l.b16 %v139
  %v902 = vunpack.c.h.b16 %v139
  %v903 = vunpack.c.l.b16 %v140
  %v904 = vunpack.c.h.b16 %v140
  %v905 = vunpack.c.l.b16 %v141
  %v906 = vunpack.c.h.b16 %v141
  %v907 = vunpack.c.l.b16 %v142
  %v908 = vunpack.c.h.b16 %v142
  %v909 = vunpack.c.l.b16 %v143
  %v910 = vunpack.c.h.b16 %v143
  %v911 = vunpack.c.l.b16 %v144
  %v912 = vunpack.c.h.b16 %v144
  %v913 = vunpack.c.l.b16 %v145
  %v914 = vunpack.c.h.b16 %v145
  %v915 = vunpack.c.l.b16 %v146
  %v916 = vunpack.c.h.b16 %v146
  %v917 = vunpack.c.l.b16 %v147
  %v918 = vunpack.c.h.b16 %v147
  %v919 = vunpack.c.l.b16 %v148
  %v920 = vunpack.c.h.b16 %v148
  %v921 = vunpack.c.l.b16 %v149
  %v922 = vunpack.c.h.b16 %v149
  %v923 = vunpack.c.l.b16 %v150
  %v924 = vunpack.c.h.b16 %v150
  %v925 = vunpack.c.l.b16 %v151
  %v926 = vunpack.c.h.b16 %v151
  %v927 = vunpack.c.l.b16 %v152
  %v928 = vunpack.c.h.b16 %v152
  %v929 = vunpack.c.l.b16 %v153
  %v930 = vunpack.c.h.b16 %v153
  %v931 = vunpack.c.l.b16 %v154
  %v932 = vunpack.c.h.b16 %v154
  %v933 = vunpack.c.l.b16 %v155
  %v934 = vunpack.c.h.b16 %v155
  %v935 = vunpack.c.l.b16 %v156
  %v936 = vunpack.c.h.b16 %v156
  %v937 = vunpack.c.l.b16 %v157
  %v938 = vunpack.c.h.b16 %v157
  %v939 = vunpack.c.l.b16 %v158
  %v940 = vunpack.c.h.b16 %v158
  %v941 = vunpack.c.l.b16 %v159
  %v942 = vunpack.c.h.b16 %v159
  %v943 = vunpack.c.l.b16 %v160
  %v944 = vunpack.c.h.b16 %v160
  %v945 = vunpack.c.l.b16 %v161
  %v946 = vunpack.c.h.b16 %v161
  %v947 = vunpack.c.l.b16 %v162
  %v948 = vunpack.c.h.b16 %v162
  %v949 = vunpack.c.l.b16 %v163
  %v950 = vunpack.c.h.b16 %v163
  %v951 = vunpack.c.l.b16 %v164
  %v952 = vunpack.c.h.b16 %v164
  %v953 = vunpack.c.l.b16 %v165
  %v954 = vunpack.c.h.b16 %v165
  %v955 = vunpack.c.l.b16 %v166
  %v956 = vunpack.c.h.b16 %v166
  %v957 = vunpack.c.l.b16 %v167
  %v958 = vunpack.c.h.b16 %v167
  %v959 = vunpack.c.l.b16 %v168
  %v960 = vunpack.c.h.b16 %v168
  %v961 = vunpack.c.l.b16 %v169
  %v962 = vunpack.c.h.b16 %v169
  %v963 = vunpack.c.l.b16 %v170
  %v964 = vunpack.c.h.b16 %v170
  %v965 = vunpack.c.l.b16 %v171
  %v966 = vunpack.c.h.b16 %v171
  %v967 = vunpack.c.l.b16 %v172
  %v968 = vunpack.c.h.b16 %v172
  %v969 = vunpack.c.l.b16 %v173
  %v970 = vunpack.c.h.b16 %v173
  %v971 = vunpack.c.l.b16 %v174
  %v972 = vunpack.c.h.b16 %v174
  %v973 = vunpack.c.l.b16 %v175
  %v974 = vunpack.c.h.b16 %v175
  %v975 = vunpack.c.l.b16 %v176
  %v976 = vunpack.c.h.b16 %v176
  %v977 = vunpack.c.l.b16 %v177
  %v978 = vunpack.c.h.b16 %v177
  %v979 = vunpack.c.l.b16 %v178
  %v980 = vunpack.c.h.b16 %v178
  %v981 = vunpack.c.l.b16 %v179
  %v982 = vunpack.c.h.b16 %v179
  %v983 = vunpack.c.l.b16 %v180
  %v984 = vunpack.c.h.b16 %v180
  %v985 = vunpack.c.l.b16 %v181
  %v986 = vunpack.c.h.b16 %v181
  %v987 = vunpack.c.l.b16 %v182
  %v988 = vunpack.c.h.b16 %v182
  %v989 = vunpack.c.l.b16 %v183
  %v990 = vunpack.c.h.b16 %v183
  %v991 = vunpack.c.l.b16 %v184
  %v992 = vunpack.c.h.b16 %v184
  %v993 = vunpack.c.l.b16 %v185
  %v994 = vunpack.c.h.b16 %v185
  %v995 = vunpack.c.l.b16 %v186
  %v996 = vunpack.c.h.b16 %v186
  %v997 = vunpack.c.l.b16 %v187
  %v998 = vunpack.c.h.b16 %v187
  %v999 = vunpack.c.l.b16 %v188
  %v1000 = vunpack.c.h.b16 %v188
  %v1001 = vunpack.c.l.b16 %v189
  %v1002 = vunpack.c.h.b16 %v189
  %v1003 = vunpack.c.l.b16 %v190
  %v1004 = vunpack.c.h.b16 %v190
  %v1005 = vunpack.c.l.b16 %v191
  %v1006 = vunpack.c.h.b16 %v191
  %v1007 = vunpack.c.l.b16 %v192
  %v1008 = vunpack.c.h.b16 %v192
  %v1009 = vunpack.c.l.b16 %v193
  %v1010 = vunpack.c.h.b16 %v193
  %v1011 = vunpack.c.l.b16 %v194
  %v1012 = vunpack.c.h.b16 %v194
  %v1013 = vunpack.c.l.b16 %v195
  %v1014 = vunpack.c.h.b16 %v195
  %v1015 = vunpack.c.l.b16 %v196
  %v1016 = vunpack.c.h.b16 %v196
  %v1017 = vunpack.c.l.b16 %v197
  %v1018 = vunpack.c.h.b16 %v197
  %v1019 = vunpack.c.l.b16 %v198
  %v1020 = vunpack.c.h.b16 %v198
  %v1021 = vunpack.c.l.b16 %v199
  %v1022 = vunpack.c.h.b16 %v199
  %v1023 = vunpack.c.l.b16 %v200
  %v1024 = vunpack.c.h.b16 %v200
  %v1025 = vunpack.c.l.b16 %v201
  %v1026 = vunpack.c.h.b16 %v201
  %v1027 = vunpack.c.l.b16 %v202
  %v1028 = vunpack.c.h.b16 %v202
  %v1029 = vunpack.c.l.b16 %v203
  %v1030 = vunpack.c.h.b16 %v203
  %v1031 = vunpack.c.l.b16 %v204
  %v1032 = vunpack.c.h.b16 %v204
  %v1033 = vunpack.c.l.b16 %v205
  %v1034 = vunpack.c.h.b16 %v205
  %v1035 = vunpack.c.l.b16 %v206
  %v1036 = vunpack.c.h.b16 %v206
  %v1037 = vunpack.c.l.b16 %v207
  %v1038 = vunpack.c.h.b16 %v207
  %v1039 = vunpack.c.l.b16 %v208
  %v1040 = vunpack.c.h.b16 %v208
  %v1041 = vunpack.c.l.b16 %v209
  %v1042 = vunpack.c.h.b16 %v209
  %v1043 = vunpack.c.l.b16 %v210
  %v1044 = vunpack.c.h.b16 %v210
  %v1045 = vunpack.c.l.b16 %v211
  %v1046 = vunpack.c.h.b16 %v211
  %v1047 = vunpack.c.l.b16 %v212
  %v1048 = vunpack.c.h.b16 %v212
  %v1049 = vunpack.c.l.b16 %v213
  %v1050 = vunpack.c.h.b16 %v213
  %v1051 = vunpack.c.l.b16 %v214
  %v1052 = vunpack.c.h.b16 %v214
  %v1053 = vunpack.c.l.b16 %v215
  %v1054 = vunpack.c.h.b16 %v215
  %v1055 = vunpack.c.l.b16 %v216
  %v1056 = vunpack.c.h.b16 %v216
  %v1057 = vunpack.c.l.b16 %v217
  %v1058 = vunpack.c.h.b16 %v217
  %v1059 = vunpack.c.l.b16 %v218
  %v1060 = vunpack.c.h.b16 %v218
  %v1061 = vunpack.c.l.b16 %v219
  %v1062 = vunpack.c.h.b16 %v219
  %v1063 = vunpack.c.l.b16 %v220
  %v1064 = vunpack.c.h.b16 %v220
  %v1065 = vunpack.c.l.b16 %v221
  %v1066 = vunpack.c.h.b16 %v221
  %v1067 = vunpack.c.l.b16 %v222
  %v1068 = vunpack.c.h.b16 %v222
  %v1069 = vunpack.c.l.b16 %v223
  %v1070 = vunpack.c.h.b16 %v223
  %v1071 = vunpack.c.l.b16 %v224
  %v1072 = vunpack.c.h.b16 %v224
  %v1073 = vunpack.c.l.b16 %v225
  %v1074 = vunpack.c.h.b16 %v225
  %v1075 = vunpack.c.l.b16 %v226
  %v1076 = vunpack.c.h.b16 %v226
  %v1077 = vunpack.c.l.b16 %v227
  %v1078 = vunpack.c.h.b16 %v227
  %v1079 = vunpack.c.l.b16 %v228
  %v1080 = vunpack.c.h.b16 %v228
  %v1081 = vunpack.c.l.b16 %v229
  %v1082 = vunpack.c.h.b16 %v229
  %v1083 = vunpack.c.l.b16 %v230
  %v1084 = vunpack.c.h.b16 %v230
  %v1085 = vunpack.c.l.b16 %v231
  %v1086 = vunpack.c.h.b16 %v231
  %v1087 = vunpack.c.l.b16 %v232
  %v1088 = vunpack.c.h.b16 %v232
  %v1089 = vunpack.c.l.b16 %v233
  %v1090 = vunpack.c.h.b16 %v233
  %v1091 = vunpack.c.l.b16 %v234
  %v1092 = vunpack.c.h.b16 %v234
  %v1093 = vunpack.c.l.b16 %v235
  %v1094 = vunpack.c.h.b16 %v235
  %v1095 = vunpack.c.l.b16 %v236
  %v1096 = vunpack.c.h.b16 %v236
  %v1097 = vunpack.c.l.b16 %v237
  %v1098 = vunpack.c.h.b16 %v237
  %v1099 = vunpack.c.l.b16 %v238
  %v1100 = vunpack.c.h.b16 %v238
  %v1101 = vunpack.c.l.b16 %v239
  %v1102 = vunpack.c.h.b16 %v239
  %v1103 = vunpack.c.l.b16 %v240
  %v1104 = vunpack.c.h.b16 %v240
  %v1105 = vunpack.c.l.b16 %v241
  %v1106 = vunpack.c.h.b16 %v241
  %v1107 = vunpack.c.l.b16 %v242
  %v1108 = vunpack.c.h.b16 %v242
  %v1109 = vunpack.c.l.b16 %v243
  %v1110 = vunpack.c.h.b16 %v243
  %v1111 = vunpack.c.l.b16 %v244
  %v1112 = vunpack.c.h.b16 %v244
  %v1113 = vunpack.c.l.b16 %v245
  %v1114 = vunpack.c.h.b16 %v245
  %v1115 = vunpack.c.l.b16 %v246
  %v1116 = vunpack.c.h.b16 %v246
  %v1117 = vunpack.c.l.b16 %v247
  %v1118 = vunpack.c.h.b16 %v247
  %v1119 = vunpack.c.l.b16 %v248
  %v1120 = vunpack.c.h.b16 %v248
  %v1121 = vunpack.c.l.b16 %v249
  %v1122 = vunpack.c.h.b16 %v249
  %v1123 = vunpack.c.l.b16 %v250
  %v1124 = vunpack.c.h.b16 %v250
  %v1125 = vunpack.c.l.b16 %v251
  %v1126 = vunpack.c.h.b16 %v251
  %v1127 = vunpack.c.l.b16 %v252
  %v1128 = vunpack.c.h.b16 %v252
  %v1129 = vunpack.c.l.b16 %v253
  %v1130 = vunpack.c.h.b16 %v253
  %v1131 = vunpack.c.l.b16 %v254
  %v1132 = vunpack.c.h.b16 %v254
  %v1133 = vunpack.c.l.b16 %v255
  %v1134 = vunpack.c.h.b16 %v255
  %v1135 = vunpack.c.l.b16 %v256
  %v1136 = vunpack.c.h.b16 %v256
  %v1137 = vunpack.c.l.b16 %v257
  %v1138 = vunpack.c.h.b16 %v257
  %v1139 = vunpack.c.l.b16 %v258
  %v1140 = vunpack.c.h.b16 %v258
  %v1141 = vunpack.c.l.b16 %v259
  %v1142 = vunpack.c.h.b16 %v259
  %v1143 = vunpack.c.l.b16 %v260
  %v1144 = vunpack.c.h.b16 %v260
  %v1145 = vunpack.c.l.b16 %v261
  %v1146 = vunpack.c.h.b16 %v261
  %v1147 = vunpack.c.l.b16 %v262
  %v1148 = vunpack.c.h.b16 %v262
  %v1149 = vunpack.c.l.b16 %v263
  %v1150 = vunpack.c.h.b16 %v263
  %v1151 = vunpack.c.l.b16 %v264
  %v1152 = vunpack.c.h.b16 %v264
  %v1153 = vunpack.c.l.b16 %v265
  %v1154 = vunpack.c.h.b16 %v265
  %v1155 = vunpack.c.l.b16 %v266
  %v1156 = vunpack.c.h.b16 %v266
  %v1157 = vunpack.c.l.b16 %v267
  %v1158 = vunpack.c.h.b16 %v267
  %v1159 = vunpack.c.l.b16 %v268
  %v1160 = vunpack.c.h.b16 %v268
  %v1161 = vunpack.c.l.b16 %v269
  %v1162 = vunpack.c.h.b16 %v269
  %v1163 = vunpack.c.l.b16 %v270
  %v1164 = vunpack.c.h.b16 %v270
  %v1165 = vunpack.c.l.b16 %v271
  %v1166 = vunpack.c.h.b16 %v271
  %v1167 = vunpack.c.l.b16 %v272
  %v1168 = vunpack.c.h.b16 %v272
  %v1169 = vunpack.c.l.b16 %v273
  %v1170 = vunpack.c.h.b16 %v273
  %v1171 = vunpack.c.l.b16 %v274
  %v1172 = vunpack.c.h.b16 %v274
  %v1173 = vunpack.c.l.b16 %v275
  %v1174 = vunpack.c.h.b16 %v275
  %v1175 = vunpack.c.l.b16 %v276
  %v1176 = vunpack.c.h.b16 %v276
  %v1177 = vunpack.c.l.b16 %v277
  %v1178 = vunpack.c.h.b16 %v277
  %v1179 = vunpack.c.l.b16 %v278
  %v1180 = vunpack.c.h.b16 %v278
  %v1181 = vunpack.c.l.b16 %v279
  %v1182 = vunpack.c.h.b16 %v279
  %v1183 = vunpack.c.l.b16 %v280
  %v1184 = vunpack.c.h.b16 %v280
  %v1185 = vunpack.c.l.b16 %v281
  %v1186 = vunpack.c.h.b16 %v281
  %v1187 = vunpack.c.l.b16 %v282
  %v1188 = vunpack.c.h.b16 %v282
  %v1189 = vunpack.c.l.b16 %v283
  %v1190 = vunpack.c.h.b16 %v283
  %v1191 = vunpack.c.l.b16 %v284
  %v1192 = vunpack.c.h.b16 %v284
  %v1193 = vunpack.c.l.b16 %v285
  %v1194 = vunpack.c.h.b16 %v285
  %v1195 = vunpack.c.l.b16 %v286
  %v1196 = vunpack.c.h.b16 %v286
  %v1197 = vunpack.c.l.b16 %v287
  %v1198 = vunpack.c.h.b16 %v287
  %v1199 = vunpack.c.l.b16 %v288
  %v1200 = vunpack.c.h.b16 %v288
  %v1201 = vunpack.c.l.b16 %v289
  %v1202 = vunpack.c.h.b16 %v289
  %v1203 = vunpack.c.l.b16 %v290
  %v1204 = vunpack.c.h.b16 %v290
  %v1205 = vunpack.c.l.b16 %v291
  %v1206 = vunpack.c.h.b16 %v291
  %v1207 = vunpack.c.l.b16 %v292
  %v1208 = vunpack.c.h.b16 %v292
  %v1209 = vunpack.c.l.b16 %v293
  %v1210 = vunpack.c.h.b16 %v293
  %v1211 = vunpack.c.l.b16 %v294
  %v1212 = vunpack.c.h.b16 %v294
  %v1213 = vunpack.c.l.b16 %v295
  %v1214 = vunpack.c.h.b16 %v295
  %v1215 = vunpack.c.l.b16 %v296
  %v1216 = vunpack.c.h.b16 %v296
  %v1217 = vunpack.c.l.b16 %v297
  %v1218 = vunpack.c.h.b16 %v297
  %v1219 = vunpack.c.l.b16 %v298
  %v1220 = vunpack.c.h.b16 %v298
  %v1221 = vunpack.c.l.b16 %v299
  %v1222 = vunpack.c.h.b16 %v299
  %v1223 = vunpack.c.l.b16 %v300
  %v1224 = vunpack.c.h.b16 %v300
  %v1225 = vunpack.c.l.b16 %v301
  %v1226 = vunpack.c.h.b16 %v301
  %v1227 = vunpack.c.l.b16 %v302
  %v1228 = vunpack.c.h.b16 %v302
  %v1229 = vunpack.c.l.b16 %v303
  %v1230 = vunpack.c.h.b16 %v303
  %v1231 = vunpack.c.l.b16 %v304
  %v1232 = vunpack.c.h.b16 %v304
  %v1233 = vpack.c.b16 %v723, %v721
  %v1234 = vpack.c.b16 %v724, %v722
  %v1235 = vpack.c.b16 %v727, %v725
  %v1236 = vpack.c.b16 %v728, %v726
  %v1237 = vpack.c.b16 %v731, %v729
  %v1238 = vpack.c.b16 %v732, %v730
  %v1239 = vpack.c.b16 %v735, %v733
  %v1240 = vpack.c.b16 %v736, %v734
  %v1241 = vpack.c.b16 %v739, %v737
  %v1242 = vpack.c.b16 %v740, %v738
  %v1243 = vpack.c.b16 %v743, %v741
  %v1244 = vpack.c.b16 %v744, %v742
  %v1245 = vpack.c.b16 %v747, %v745
  %v1246 = vpack.c.b16 %v748, %v746
  %v1247 = vpack.c.b16 %v751, %v749
  %v1248 = vpack.c.b16 %v752, %v750
  %v1249 = vpack.c.b16 %v755, %v753
  %v1250 = vpack.c.b16 %v756, %v754
  %v1251 = vpack.c.b16 %v759, %v757
  %v1252 = vpack.c.b16 %v760, %v758
  %v1253 = vpack.c.b16 %v763, %v761
  %v1254 = vpack.c.b16 %v764, %v762
  %v1255 = vpack.c.b16 %v767, %v765
  %v1256 = vpack.c.b16 %v768, %v766
  %v1257 = vpack.c.b16 %v771, %v769
  %v1258 = vpack.c.b16 %v772, %v770
  %v1259 = vpack.c.b16 %v775, %v773
  %v1260 = vpack.c.b16 %v776, %v774
  %v1261 = vpack.c.b16 %v779, %v777
  %v1262 = vpack.c.b16 %v780, %v778
  %v1263 = vpack.c.b16 %v783, %v781
  %v1264 = vpack.c.b16 %v784, %v782
  %v1265 = vpack.c.b16 %v787, %v785
  %v1266 = vpack.c.b16 %v788, %v786
  %v1267 = vpack.c.b16 %v791, %v789
  %v1268 = vpack.c.b16 %v792, %v790
  %v1269 = vpack.c.b16 %v795, %v793
  %v1270 = vpack.c.b16 %v796, %v794
  %v1271 = vpack.c.b16 %v799, %v797
  %v1272 = vpack.c.b16 %v800, %v798
  %v1273 = vpack.c.b16 %v803, %v801
  %v1274 = vpack.c.b16 %v804, %v802
  %v1275 = vpack.c.b16 %v807, %v805
  %v1276 = vpack.c.b16 %v808, %v806
  %v1277 = vpack.c.b16 %v811, %v809
  %v1278 = vpack.c.b16 %v812, %v810
  %v1279 = vpack.c.b16 %v815, %v813
  %v1280 = vpack.c.b16 %v816, %v814
  %v1281 = vpack.c.b16 %v819, %v817
  %v1282 = vpack.c.b16 %v820, %v818
  %v1283 = vpack.c.b16 %v823, %v821
  %v1284 = vpack.c.b16 %v824, %v822
  %v1285 = vpack.c.b16 %v827, %v825
  %v1286 = vpack.c.b16 %v828, %v826
  %v1287 = vpack.c.b16 %v831, %v829
  %v1288 = vpack.c.b16 %v832, %v830
  %v1289 = vpack.c.b16 %v835, %v833
  %v1290 = vpack.c.b16 %v836, %v834
  %v1291 = vpack.c.b16 %v839, %v837
  %v1292 = vpack.c.b16 %v840, %v838
  %v1293 = vpack.c.b16 %v843, %v841
  %v1294 = vpack.c.b16 %v844, %v842
  %v1295 = vpack.c.b16 %v847, %v845
  %v1296 = vpack.c.b16 %v848, %v846
  %v1297 = vpack.c.b16 %v851, %v849
  %v1298 = vpack.c.b16 %v852, %v850
  %v1299 = vpack.c.b16 %v855, %v853
  %v1300 = vpack.c.b16 %v856, %v854
  %v1301 = vpack.c.b16 %v859, %v857
  %v1302 = vpack.c.b16 %v860, %v858
  %v1303 = vpack.c.b16 %v863, %v861
  %v1304 = vpack.c.b16 %v864, %v862
  %v1305 = vpack.c.b16 %v867, %v865
  %v1306 = vpack.c.b16 %v868, %v866
  %v1307 = vpack.c.b16 %v871, %v869
  %v1308 = vpack.c.b16 %v872, %v870
  %v1309 = vpack.c.b16 %v875, %v873
  %v1310 = vpack.c.b16 %v876, %v874
  %v1311 = vpack.c.b16 %v879, %v877
  %v1312 = vpack.c.b16 %v880, %v878
  %v1313 = vpack.c.b16 %v883, %v881
  %v1314 = vpack.c.b16 %v884, %v882
  %v1315 = vpack.c.b16 %v887, %v885
  %v1316 = vpack.c.b16 %v888, %v886
  %v1317 = vpack.c.b16 %v891, %v889
  %v1318 = vpack.c.b16 %v892, %v890
  %v1319 = vpack.c.b16 %v895, %v893
  %v1320 = vpack.c.b16 %v896, %v894
  %v1321 = vpack.c.b16 %v899, %v897
  %v1322 = vpack.c.b16 %v900, %v898
  %v1323 = vpack.c.b16 %v903, %v901
  %v1324 = vpack.c.b16 %v904, %v902
  %v1325 = vpack.c.b16 %v907, %v905
  %v1326 = vpack.c.b16 %v908, %v906
  %v1327 = vpack.c.b16 %v911, %v909
  %v1328 = vpack.c.b16 %v912, %v910
  %v1329 = vpack.c.b16 %v915, %v913
  %v1330 = vpack.c.b16 %v916, %v914
  %v1331 = vpack.c.b16 %v919, %v917
  %v1332 = vpack.c.b16 %v920, %v918
  %v1333 = vpack.c.b16 %v923, %v921
  %v1334 = vpack.c.b16 %v924, %v922
  %v1335 = vpack.c.b16 %v927, %v925
  %v1336 = vpack.c.b16 %v928, %v926
  %v1337 = vpack.c.b16 %v931, %v929
  %v1338 = vpack.c.b16 %v932, %v930
  %v1339 = vpack.c.b16 %v935, %v933
  %v1340 = vpack.c.b16 %v936, %v934
  %v1341 = vpack.c.b16 %v939, %v937
  %v1342 = vpack.c.b16 %v940, %v938
  %v1343 = vpack.c.b16 %v943, %v941
  %v1344 = vpack.c.b16 %v944, %v942
  %v1345 = vpack.c.b16 %v947, %v945
  %v1346 = vpack.c.b16 %v948, %v946
  %v1347 = vpack.c.b16 %v951, %v949
  %v1348 = vpack.c.b16 %v952, %v950
  %v1349 = vpack.c.b16 %v955, %v953
  %v1350 = vpack.c.b16 %v956, %v954
  %v1351 = vpack.c.b16 %v959, %v957
  %v1352 = vpack.c.b16 %v960, %v958
  %v1353 = vpack.c.b16 %v963, %v961
  %v1354 = vpack.c.b16 %v964, %v962
  %v1355 = vpack.c.b16 %v967, %v965
  %v1356 = vpack.c.b16 %v968, %v966
  %v1357 = vpack.c.b16 %v971, %v969
  %v1358 = vpack.c.b16 %v972, %v970
  %v1359 = vpack.c.b16 %v975, %v973
  %v1360 = vpack.c.b16 %v976, %v974
  %v1361 = vpack.c.b16 %v979, %v977
  %v1362 = vpack.c.b16 %v980, %v978
  %v1363 = vpack.c.b16 %v983, %v981
  %v1364 = vpack.c.b16 %v984, %v982
  %v1365 = vpack.c.b16 %v987, %v985
  %v1366 = vpack.c.b16 %v988, %v986
  %v1367 = vpack.c.b16 %v991, %v989
  %v1368 = vpack.c.b16 %v992, %v990
  %v1369 = vpack.c.b16 %v995, %v993
  %v1370 = vpack.c.b16 %v996, %v994
  %v1371 = vpack.c.b16 %v999, %v997
  %v1372 = vpack.c.b16 %v1000, %v998
  %v1373 = vpack.c.b16 %v1003, %v1001
  %v1374 = vpack.c.b16 %v1004, %v1002
  %v1375 = vpack.c.b16 %v1007, %v1005
  %v1376 = vpack.c.b16 %v1008, %v1006
  %v1377 = vpack.c.b16 %v1011, %v1009
  %v1378 = vpack.c.b16 %v1012, %v1010
  %v1379 = vpack.c.b16 %v1015, %v1013
  %v1380 = vpack.c.b16 %v1016, %v1014
  %v1381 = vpack.c.b16 %v1019, %v1017
  %v1382 = vpack.c.b16 %v1020, %v1018
  %v1383 = vpack.c.b16 %v1023, %v1021
  %v1384 = vpack.c.b16 %v1024, %v1022
  %v1385 = vpack.c.b16 %v1027, %v1025
  %v1386 = vpack.c.b16 %v1028, %v1026
  %v1387 = vpack.c.b16 %v1031, %v1029
  %v1388 = vpack.c.b16 %v1032, %v1030
  %v1389 = vpack.c.b16 %v1035, %v1033
  %v1390 = vpack.c.b16 %v1036, %v1034
  %v1391 = vpack.c.b16 %v1039, %v1037
  %v1392 = vpack.c.b16 %v1040, %v1038
  %v1393 = vpack.c.b16 %v1043, %v1041
  %v1394 = vpack.c.b16 %v1044, %v1042
  %v1395 = vpack.c.b16 %v1047, %v1045
  %v1396 = vpack.c.b16 %v1048, %v1046
  %v1397 = vpack.c.b16 %v1051, %v1049
  %v1398 = vpack.c.b16 %v1052, %v1050
  %v1399 = vpack.c.b16 %v1055, %v1053
  %v1400 = vpack.c.b16 %v1056, %v1054
  %v1401 = vpack.c.b16 %v1059, %v1057
  %v1402 = vpack.c.b16 %v1060, %v1058
  %v1403 = vpack.c.b16 %v1063, %v1061
  %v1404 = vpack.c.b16 %v1064, %v1062
  %v1405 = vpack.c.b16 %v1067, %v1065
  %v1406 = vpack.c.b16 %v1068, %v1066
  %v1407 = vpack.c.b16 %v1071, %v1069
  %v1408 = vpack.c.b16 %v1072, %v1070
  %v1409 = vpack.c.b16 %v1075, %v1073
  %v1410 = vpack.c.b16 %v1076, %v1074
  %v1411 = vpack.c.b16 %v1079, %v1077
  %v1412 = vpack.c.b16 %v1080, %v1078
  %v1413 = vpack.c.b16 %v1083, %v1081
  %v1414 = vpack.c.b16 %v1084, %v1082
  %v1415 = vpack.c.b16 %v1087, %v1085
  %v1416 = vpack.c.b16 %v1088, %v1086
  %v1417 = vpack.c.b16 %v1091, %v1089
  %v1418 = vpack.c.b16 %v1092, %v1090
  %v1419 = vpack.c.b16 %v1095, %v1093
  %v1420 = vpack.c.b16 %v1096, %v1094
  %v1421 = vpack.c.b16 %v1099, %v1097
  %v1422 = vpack.c.b16 %v1100, %v1098
  %v1423 = vpack.c.b16 %v1103, %v1101
  %v1424 = vpack.c.b16 %v1104, %v1102
  %v1425 = vpack.c.b16 %v1107, %v1105
  %v1426 = vpack.c.b16 %v1108, %v1106
  %v1427 = vpack.c.b16 %v1111, %v1109
  %v1428 = vpack.c.b16 %v1112, %v1110
  %v1429 = vpack.c.b16 %v1115, %v1113
  %v1430 = vpack.c.b16 %v1116, %v1114
  %v1431 = vpack.c.b16 %v1119, %v1117
  %v1432 = vpack.c.b16 %v1120, %v1118
  %v1433 = vpack.c.b16 %v1123, %v1121
  %v1434 = vpack.c.b16 %v1124, %v1122
  %v1435 = vpack.c.b16 %v1127, %v1125
  %v1436 = vpack.c.b16 %v1128, %v1126
  %v1437 = vpack.c.b16 %v1131, %v1129
  %v1438 = vpack.c.b16 %v1132, %v1130
  %v1439 = vpack.c.b16 %v1135, %v1133
  %v1440 = vpack.c.b16 %v1136, %v1134
  %v1441 = vpack.c.b16 %v1139, %v1137
  %v1442 = vpack.c.b16 %v1140, %v1138
  %v1443 = vpack.c.b16 %v1143, %v1141
  %v1444 = vpack.c.b16 %v1144, %v1142
  %v1445 = vpack.c.b16 %v1147, %v1145
  %v1446 = vpack.c.b16 %v1148, %v1146
  %v1447 = vpack.c.b16 %v1151, %v1149
  %v1448 = vpack.c.b16 %v1152, %v1150
  %v1449 = vpack.c.b16 %v1155, %v1153
  %v1450 = vpack.c.b16 %v1156, %v1154
  %v1451 = vpack.c.b16 %v1159, %v1157
  %v1452 = vpack.c.b16 %v1160, %v1158
  %v1453 = vpack.c.b16 %v1163, %v1161
  %v1454 = vpack.c.b16 %v1164, %v1162
  %v1455 = vpack.c.b16 %v1167, %v1165
  %v1456 = vpack.c.b16 %v1168, %v1166
  %v1457 = vpack.c.b16 %v1171, %v1169
  %v1458 = vpack.c.b16 %v1172, %v1170
  %v1459 = vpack.c.b16 %v1175, %v1173
  %v1460 = vpack.c.b16 %v1176, %v1174
  %v1461 = vpack.c.b16 %v1179, %v1177
  %v1462 = vpack.c.b16 %v1180, %v1178
  %v1463 = vpack.c.b16 %v1183, %v1181
  %v1464 = vpack.c.b16 %v1184, %v1182
  %v1465 = vpack.c.b16 %v1187, %v1185
  %v1466 = vpack.c.b16 %v1188, %v1186
  %v1467 = vpack.c.b16 %v1191, %v1189
  %v1468 = vpack.c.b16 %v1192, %v1190
  %v1469 = vpack.c.b16 %v1195, %v1193
  %v1470 = vpack.c.b16 %v1196, %v1194
  %v1471 = vpack.c.b16 %v1199, %v1197
  %v1472 = vpack.c.b16 %v1200, %v1198
  %v1473 = vpack.c.b16 %v1203, %v1201
  %v1474 = vpack.c.b16 %v1204, %v1202
  %v1475 = vpack.c.b16 %v1207, %v1205
  %v1476 = vpack.c.b16 %v1208, %v1206
  %v1477 = vpack.c.b16 %v1211, %v1209
  %v1478 = vpack.c.b16 %v1212, %v1210
  %v1479 = vpack.c.b16 %v1215, %v1213
  %v1480 = vpack.c.b16 %v1216, %v1214
  %v1481 = vpack.c.b16 %v1219, %v1217
  %v1482 = vpack.c.b16 %v1220, %v1218
  %v1483 = vpack.c.b16 %v1223, %v1221
  %v1484 = vpack.c.b16 %v1224, %v1222
  %v1485 = vpack.c.b16 %v1227, %v1225
  %v1486 = vpack.c.b16 %v1228, %v1226
  %v1487 = vpack.c.b16 %v1231, %v1229
  %v1488 = vpack.c.b16 %v1232, %v1230
  %1745 = vmatprep.subr.bf16.mxu0 %v1234
  %1746 = vmatpush1.bf16.msra.mxu0 %v1233
  %1747 = vmatprep.subr.bf16.mxu0 %v1236
  %1748 = vmatpush1.bf16.msra.mxu0 %v1235
  %1749 = vmatprep.subr.bf16.mxu0 %v1238
  %1750 = vmatpush1.bf16.msra.mxu0 %v1237
  %1751 = vmatprep.subr.bf16.mxu0 %v1240
  %1752 = vmatpush1.bf16.msra.mxu0 %v1239
  %1753 = vmatprep.subr.bf16.mxu0 %v1242
  %1754 = vmatpush1.bf16.msra.mxu0 %v1241
  %1755 = vmatprep.subr.bf16.mxu0 %v1244
  %1756 = vmatpush1.bf16.msra.mxu0 %v1243
  %1757 = vmatprep.subr.bf16.mxu0 %v1246
  %1758 = vmatpush1.bf16.msra.mxu0 %v1245
  %1759 = vmatprep.subr.bf16.mxu0 %v1248
  %1760 = vmatpush1.bf16.msra.mxu0 %v1247
  %1761 = vmatprep.subr.bf16.mxu0 %v1250
  %1762 = vmatpush1.bf16.msra.mxu0 %v1249
  %1763 = vmatprep.subr.bf16.mxu0 %v1252
  %1764 = vmatpush1.bf16.msra.mxu0 %v1251
  %1765 = vmatprep.subr.bf16.mxu0 %v1254
  %1766 = vmatpush1.bf16.msra.mxu0 %v1253
  %1767 = vmatprep.subr.bf16.mxu0 %v1256
  %1768 = vmatpush1.bf16.msra.mxu0 %v1255
  %1769 = vmatprep.subr.bf16.mxu0 %v1258
  %1770 = vmatpush1.bf16.msra.mxu0 %v1257
  %1771 = vmatprep.subr.bf16.mxu0 %v1260
  %1772 = vmatpush1.bf16.msra.mxu0 %v1259
  %1773 = vmatprep.subr.bf16.mxu0 %v1262
  %1774 = vmatpush1.bf16.msra.mxu0 %v1261
  %1775 = vmatprep.subr.bf16.mxu0 %v1264
  %1776 = vmatpush1.bf16.msra.mxu0 %v1263
  %1777 = vmatprep.mubr.bf16.mxu0 %v402
  %1778 = vmatmul.mubr.bf16.gmra.mrb[0].mxu0 %v401
  %v1779 = vpop.f32.mrb[0].mxu0
  %v1780 = vadd.f32 0.0, %v1779
  %v1781 = vpop.f32.mrb[0].mxu0
  %v1782 = vadd.f32 0.0, %v1781
  %v1783 = vpop.f32.mrb[0].mxu0
  %v1784 = vadd.f32 0.0, %v1783
  %v1785 = vpop.f32.mrb[0].mxu0
  %v1786 = vadd.f32 0.0, %v1785
  %1787 = vmatprep.mubr.bf16.mxu0 %v418
  %1788 = vmatmul.mubr.bf16.gmra.mrb[0].mxu0 %v417
  %v1789 = vpop.f32.mrb[0].mxu0
  %v1790 = vadd.f32 0.0, %v1789
  %v1791 = vpop.f32.mrb[0].mxu0
  %v1792 = vadd.f32 0.0, %v1791
  %v1793 = vpop.f32.mrb[0].mxu0
  %v1794 = vadd.f32 0.0, %v1793
  %v1795 = vpop.f32.mrb[0].mxu0
  %v1796 = vadd.f32 0.0, %v1795
  %1797 = vdwg.mxu0
  %1798 = vmatprep.subr.bf16.mxu0 %v1266
  %1799 = vmatpush1.bf16.msra.mxu0 %v1265
  %1800 = vmatprep.subr.bf16.mxu0 %v1268
  %1801 = vmatpush1.bf16.msra.mxu0 %v1267
  %1802 = vmatprep.subr.bf16.mxu0 %v1270
  %1803 = vmatpush1.bf16.msra.mxu0 %v1269
  %1804 = vmatprep.subr.bf16.mxu0 %v1272
  %1805 = vmatpush1.bf16.msra.mxu0 %v1271
  %1806 = vmatprep.subr.bf16.mxu0 %v1274
  %1807 = vmatpush1.bf16.msra.mxu0 %v1273
  %1808 = vmatprep.subr.bf16.mxu0 %v1276
  %1809 = vmatpush1.bf16.msra.mxu0 %v1275
  %1810 = vmatprep.subr.bf16.mxu0 %v1278
  %1811 = vmatpush1.bf16.msra.mxu0 %v1277
  %1812 = vmatprep.subr.bf16.mxu0 %v1280
  %1813 = vmatpush1.bf16.msra.mxu0 %v1279
  %1814 = vmatprep.subr.bf16.mxu0 %v1282
  %1815 = vmatpush1.bf16.msra.mxu0 %v1281
  %1816 = vmatprep.subr.bf16.mxu0 %v1284
  %1817 = vmatpush1.bf16.msra.mxu0 %v1283
  %1818 = vmatprep.subr.bf16.mxu0 %v1286
  %1819 = vmatpush1.bf16.msra.mxu0 %v1285
  %1820 = vmatprep.subr.bf16.mxu0 %v1288
  %1821 = vmatpush1.bf16.msra.mxu0 %v1287
  %1822 = vmatprep.subr.bf16.mxu0 %v1290
  %1823 = vmatpush1.bf16.msra.mxu0 %v1289
  %1824 = vmatprep.subr.bf16.mxu0 %v1292
  %1825 = vmatpush1.bf16.msra.mxu0 %v1291
  %1826 = vmatprep.subr.bf16.mxu0 %v1294
  %1827 = vmatpush1.bf16.msra.mxu0 %v1293
  %1828 = vmatprep.subr.bf16.mxu0 %v1296
  %1829 = vmatpush1.bf16.msra.mxu0 %v1295
  %1830 = vmatprep.mubr.bf16.mxu0 %v404
  %1831 = vmatmul.mubr.bf16.gmra.mrb[0].mxu0 %v403
  %v1832 = vpop.f32.mrb[0].mxu0
  %v1833 = vadd.f32 %v1780, %v1832
  %v1834 = vpop.f32.mrb[0].mxu0
  %v1835 = vadd.f32 %v1782, %v1834
  %v1836 = vpop.f32.mrb[0].mxu0
  %v1837 = vadd.f32 %v1784, %v1836
  %v1838 = vpop.f32.mrb[0].mxu0
  %v1839 = vadd.f32 %v1786, %v1838
  %1840 = vmatprep.mubr.bf16.mxu0 %v420
  %1841 = vmatmul.mubr.bf16.gmra.mrb[0].mxu0 %v419
  %v1842 = vpop.f32.mrb[0].mxu0
  %v1843 = vadd.f32 %v1790, %v1842
  %v1844 = vpop.f32.mrb[0].mxu0
  %v1845 = vadd.f32 %v1792, %v1844
  %v1846 = vpop.f32.mrb[0].mxu0
  %v1847 = vadd.f32 %v1794, %v1846
  %v1848 = vpop.f32.mrb[0].mxu0
  %v1849 = vadd.f32 %v1796, %v1848
  %1850 = vdwg.mxu0
  %1851 = vmatprep.subr.bf16.mxu0 %v1298
  %1852 = vmatpush1.bf16.msra.mxu0 %v1297
  %1853 = vmatprep.subr.bf16.mxu0 %v1300
  %1854 = vmatpush1.bf16.msra.mxu0 %v1299
  %1855 = vmatprep.subr.bf16.mxu0 %v1302
  %1856 = vmatpush1.bf16.msra.mxu0 %v1301
  %1857 = vmatprep.subr.bf16.mxu0 %v1304
  %1858 = vmatpush1.bf16.msra.mxu0 %v1303
  %1859 = vmatprep.subr.bf16.mxu0 %v1306
  %1860 = vmatpush1.bf16.msra.mxu0 %v1305
  %1861 = vmatprep.subr.bf16.mxu0 %v1308
  %1862 = vmatpush1.bf16.msra.mxu0 %v1307
  %1863 = vmatprep.subr.bf16.mxu0 %v1310
  %1864 = vmatpush1.bf16.msra.mxu0 %v1309
  %1865 = vmatprep.subr.bf16.mxu0 %v1312
  %1866 = vmatpush1.bf16.msra.mxu0 %v1311
  %1867 = vmatprep.subr.bf16.mxu0 %v1314
  %1868 = vmatpush1.bf16.msra.mxu0 %v1313
  %1869 = vmatprep.subr.bf16.mxu0 %v1316
  %1870 = vmatpush1.bf16.msra.mxu0 %v1315
  %1871 = vmatprep.subr.bf16.mxu0 %v1318
  %1872 = vmatpush1.bf16.msra.mxu0 %v1317
  %1873 = vmatprep.subr.bf16.mxu0 %v1320
  %1874 = vmatpush1.bf16.msra.mxu0 %v1319
  %1875 = vmatprep.subr.bf16.mxu0 %v1322
  %1876 = vmatpush1.bf16.msra.mxu0 %v1321
  %1877 = vmatprep.subr.bf16.mxu0 %v1324
  %1878 = vmatpush1.bf16.msra.mxu0 %v1323
  %1879 = vmatprep.subr.bf16.mxu0 %v1326
  %1880 = vmatpush1.bf16.msra.mxu0 %v1325
  %1881 = vmatprep.subr.bf16.mxu0 %v1328
  %1882 = vmatpush1.bf16.msra.mxu0 %v1327
  %1883 = vmatprep.mubr.bf16.mxu0 %v406
  %1884 = vmatmul.mubr.bf16.gmra.mrb[0].mxu0 %v405
  %v1885 = vpop.f32.mrb[0].mxu0
  %v1886 = vadd.f32 %v1833, %v1885
  %v1887 = vpop.f32.mrb[0].mxu0
  %v1888 = vadd.f32 %v1835, %v1887
  %v1889 = vpop.f32.mrb[0].mxu0
  %v1890 = vadd.f32 %v1837, %v1889
  %v1891 = vpop.f32.mrb[0].mxu0
  %v1892 = vadd.f32 %v1839, %v1891
  %1893 = vmatprep.mubr.bf16.mxu0 %v422
  %1894 = vmatmul.mubr.bf16.gmra.mrb[0].mxu0 %v421
  %v1895 = vpop.f32.mrb[0].mxu0
  %v1896 = vadd.f32 %v1843, %v1895
  %v1897 = vpop.f32.mrb[0].mxu0
  %v1898 = vadd.f32 %v1845, %v1897
  %v1899 = vpop.f32.mrb[0].mxu0
  %v1900 = vadd.f32 %v1847, %v1899
  %v1901 = vpop.f32.mrb[0].mxu0
  %v1902 = vadd.f32 %v1849, %v1901
  %1903 = vdwg.mxu0
  %1904 = vmatprep.subr.bf16.mxu0 %v1330
  %1905 = vmatpush1.bf16.msra.mxu0 %v1329
  %1906 = vmatprep.subr.bf16.mxu0 %v1332
  %1907 = vmatpush1.bf16.msra.mxu0 %v1331
  %1908 = vmatprep.subr.bf16.mxu0 %v1334
  %1909 = vmatpush1.bf16.msra.mxu0 %v1333
  %1910 = vmatprep.subr.bf16.mxu0 %v1336
  %1911 = vmatpush1.bf16.msra.mxu0 %v1335
  %1912 = vmatprep.subr.bf16.mxu0 %v1338
  %1913 = vmatpush1.bf16.msra.mxu0 %v1337
  %1914 = vmatprep.subr.bf16.mxu0 %v1340
  %1915 = vmatpush1.bf16.msra.mxu0 %v1339
  %1916 = vmatprep.subr.bf16.mxu0 %v1342
  %1917 = vmatpush1.bf16.msra.mxu0 %v1341
  %1918 = vmatprep.subr.bf16.mxu0 %v1344
  %1919 = vmatpush1.bf16.msra.mxu0 %v1343
  %1920 = vmatprep.subr.bf16.mxu0 %v1346
  %1921 = vmatpush1.bf16.msra.mxu0 %v1345
  %1922 = vmatprep.subr.bf16.mxu0 %v1348
  %1923 = vmatpush1.bf16.msra.mxu0 %v1347
  %1924 = vmatprep.subr.bf16.mxu0 %v1350
  %1925 = vmatpush1.bf16.msra.mxu0 %v1349
  %1926 = vmatprep.subr.bf16.mxu0 %v1352
  %1927 = vmatpush1.bf16.msra.mxu0 %v1351
  %1928 = vmatprep.subr.bf16.mxu0 %v1354
  %1929 = vmatpush1.bf16.msra.mxu0 %v1353
  %1930 = vmatprep.subr.bf16.mxu0 %v1356
  %1931 = vmatpush1.bf16.msra.mxu0 %v1355
  %1932 = vmatprep.subr.bf16.mxu0 %v1358
  %1933 = vmatpush1.bf16.msra.mxu0 %v1357
  %1934 = vmatprep.subr.bf16.mxu0 %v1360
  %1935 = vmatpush1.bf16.msra.mxu0 %v1359
  %1936 = vmatprep.mubr.bf16.mxu0 %v408
  %1937 = vmatmul.mubr.bf16.gmra.mrb[0].mxu0 %v407
  %v1938 = vpop.f32.mrb[0].mxu0
  %v1939 = vadd.f32 %v1886, %v1938
  %v1940 = vpop.f32.mrb[0].mxu0
  %v1941 = vadd.f32 %v1888, %v1940
  %v1942 = vpop.f32.mrb[0].mxu0
  %v1943 = vadd.f32 %v1890, %v1942
  %v1944 = vpop.f32.mrb[0].mxu0
  %v1945 = vadd.f32 %v1892, %v1944
  %1946 = vmatprep.mubr.bf16.mxu0 %v424
  %1947 = vmatmul.mubr.bf16.gmra.mrb[0].mxu0 %v423
  %v1948 = vpop.f32.mrb[0].mxu0
  %v1949 = vadd.f32 %v1896, %v1948
  %v1950 = vpop.f32.mrb[0].mxu0
  %v1951 = vadd.f32 %v1898, %v1950
  %v1952 = vpop.f32.mrb[0].mxu0
  %v1953 = vadd.f32 %v1900, %v1952
  %v1954 = vpop.f32.mrb[0].mxu0
  %v1955 = vadd.f32 %v1902, %v1954
  %1956 = vdwg.mxu0
  %1957 = vmatprep.subr.bf16.mxu0 %v1362
  %1958 = vmatpush1.bf16.msra.mxu0 %v1361
  %1959 = vmatprep.subr.bf16.mxu0 %v1364
  %1960 = vmatpush1.bf16.msra.mxu0 %v1363
  %1961 = vmatprep.subr.bf16.mxu0 %v1366
  %1962 = vmatpush1.bf16.msra.mxu0 %v1365
  %1963 = vmatprep.subr.bf16.mxu0 %v1368
  %1964 = vmatpush1.bf16.msra.mxu0 %v1367
  %1965 = vmatprep.subr.bf16.mxu0 %v1370
  %1966 = vmatpush1.bf16.msra.mxu0 %v1369
  %1967 = vmatprep.subr.bf16.mxu0 %v1372
  %1968 = vmatpush1.bf16.msra.mxu0 %v1371
  %1969 = vmatprep.subr.bf16.mxu0 %v1374
  %1970 = vmatpush1.bf16.msra.mxu0 %v1373
  %1971 = vmatprep.subr.bf16.mxu0 %v1376
  %1972 = vmatpush1.bf16.msra.mxu0 %v1375
  %1973 = vmatprep.subr.bf16.mxu0 %v1378
  %1974 = vmatpush1.bf16.msra.mxu0 %v1377
  %1975 = vmatprep.subr.bf16.mxu0 %v1380
  %1976 = vmatpush1.bf16.msra.mxu0 %v1379
  %1977 = vmatprep.subr.bf16.mxu0 %v1382
  %1978 = vmatpush1.bf16.msra.mxu0 %v1381
  %1979 = vmatprep.subr.bf16.mxu0 %v1384
  %1980 = vmatpush1.bf16.msra.mxu0 %v1383
  %1981 = vmatprep.subr.bf16.mxu0 %v1386
  %1982 = vmatpush1.bf16.msra.mxu0 %v1385
  %1983 = vmatprep.subr.bf16.mxu0 %v1388
  %1984 = vmatpush1.bf16.msra.mxu0 %v1387
  %1985 = vmatprep.subr.bf16.mxu0 %v1390
  %1986 = vmatpush1.bf16.msra.mxu0 %v1389
  %1987 = vmatprep.subr.bf16.mxu0 %v1392
  %1988 = vmatpush1.bf16.msra.mxu0 %v1391
  %1989 = vmatprep.mubr.bf16.mxu0 %v410
  %1990 = vmatmul.mubr.bf16.gmra.mrb[0].mxu0 %v409
  %v1991 = vpop.f32.mrb[0].mxu0
  %v1992 = vadd.f32 %v1939, %v1991
  %v1993 = vpop.f32.mrb[0].mxu0
  %v1994 = vadd.f32 %v1941, %v1993
  %v1995 = vpop.f32.mrb[0].mxu0
  %v1996 = vadd.f32 %v1943, %v1995
  %v1997 = vpop.f32.mrb[0].mxu0
  %v1998 = vadd.f32 %v1945, %v1997
  %1999 = vmatprep.mubr.bf16.mxu0 %v426
  %2000 = vmatmul.mubr.bf16.gmra.mrb[0].mxu0 %v425
  %v2001 = vpop.f32.mrb[0].mxu0
  %v2002 = vadd.f32 %v1949, %v2001
  %v2003 = vpop.f32.mrb[0].mxu0
  %v2004 = vadd.f32 %v1951, %v2003
  %v2005 = vpop.f32.mrb[0].mxu0
  %v2006 = vadd.f32 %v1953, %v2005
  %v2007 = vpop.f32.mrb[0].mxu0
  %v2008 = vadd.f32 %v1955, %v2007
  %2009 = vdwg.mxu0
  %2010 = vmatprep.subr.bf16.mxu0 %v1394
  %2011 = vmatpush1.bf16.msra.mxu0 %v1393
  %2012 = vmatprep.subr.bf16.mxu0 %v1396
  %2013 = vmatpush1.bf16.msra.mxu0 %v1395
  %2014 = vmatprep.subr.bf16.mxu0 %v1398
  %2015 = vmatpush1.bf16.msra.mxu0 %v1397
  %2016 = vmatprep.subr.bf16.mxu0 %v1400
  %2017 = vmatpush1.bf16.msra.mxu0 %v1399
  %2018 = vmatprep.subr.bf16.mxu0 %v1402
  %2019 = vmatpush1.bf16.msra.mxu0 %v1401
  %2020 = vmatprep.subr.bf16.mxu0 %v1404
  %2021 = vmatpush1.bf16.msra.mxu0 %v1403
  %2022 = vmatprep.subr.bf16.mxu0 %v1406
  %2023 = vmatpush1.bf16.msra.mxu0 %v1405
  %2024 = vmatprep.subr.bf16.mxu0 %v1408
  %2025 = vmatpush1.bf16.msra.mxu0 %v1407
  %2026 = vmatprep.subr.bf16.mxu0 %v1410
  %2027 = vmatpush1.bf16.msra.mxu0 %v1409
  %2028 = vmatprep.subr.bf16.mxu0 %v1412
  %2029 = vmatpush1.bf16.msra.mxu0 %v1411
  %2030 = vmatprep.subr.bf16.mxu0 %v1414
  %2031 = vmatpush1.bf16.msra.mxu0 %v1413
  %2032 = vmatprep.subr.bf16.mxu0 %v1416
  %2033 = vmatpush1.bf16.msra.mxu0 %v1415
  %2034 = vmatprep.subr.bf16.mxu0 %v1418
  %2035 = vmatpush1.bf16.msra.mxu0 %v1417
  %2036 = vmatprep.subr.bf16.mxu0 %v1420
  %2037 = vmatpush1.bf16.msra.mxu0 %v1419
  %2038 = vmatprep.subr.bf16.mxu0 %v1422
  %2039 = vmatpush1.bf16.msra.mxu0 %v1421
  %2040 = vmatprep.subr.bf16.mxu0 %v1424
  %2041 = vmatpush1.bf16.msra.mxu0 %v1423
  %2042 = vmatprep.mubr.bf16.mxu0 %v412
  %2043 = vmatmul.mubr.bf16.gmra.mrb[0].mxu0 %v411
  %v2044 = vpop.f32.mrb[0].mxu0
  %v2045 = vadd.f32 %v1992, %v2044
  %v2046 = vpop.f32.mrb[0].mxu0
  %v2047 = vadd.f32 %v1994, %v2046
  %v2048 = vpop.f32.mrb[0].mxu0
  %v2049 = vadd.f32 %v1996, %v2048
  %v2050 = vpop.f32.mrb[0].mxu0
  %v2051 = vadd.f32 %v1998, %v2050
  %2052 = vmatprep.mubr.bf16.mxu0 %v428
  %2053 = vmatmul.mubr.bf16.gmra.mrb[0].mxu0 %v427
  %v2054 = vpop.f32.mrb[0].mxu0
  %v2055 = vadd.f32 %v2002, %v2054
  %v2056 = vpop.f32.mrb[0].mxu0
  %v2057 = vadd.f32 %v2004, %v2056
  %v2058 = vpop.f32.mrb[0].mxu0
  %v2059 = vadd.f32 %v2006, %v2058
  %v2060 = vpop.f32.mrb[0].mxu0
  %v2061 = vadd.f32 %v2008, %v2060
  %2062 = vdwg.mxu0
  %2063 = vmatprep.subr.bf16.mxu0 %v1426
  %2064 = vmatpush1.bf16.msra.mxu0 %v1425
  %2065 = vmatprep.subr.bf16.mxu0 %v1428
  %2066 = vmatpush1.bf16.msra.mxu0 %v1427
  %2067 = vmatprep.subr.bf16.mxu0 %v1430
  %2068 = vmatpush1.bf16.msra.mxu0 %v1429
  %2069 = vmatprep.subr.bf16.mxu0 %v1432
  %2070 = vmatpush1.bf16.msra.mxu0 %v1431
  %2071 = vmatprep.subr.bf16.mxu0 %v1434
  %2072 = vmatpush1.bf16.msra.mxu0 %v1433
  %2073 = vmatprep.subr.bf16.mxu0 %v1436
  %2074 = vmatpush1.bf16.msra.mxu0 %v1435
  %2075 = vmatprep.subr.bf16.mxu0 %v1438
  %2076 = vmatpush1.bf16.msra.mxu0 %v1437
  %2077 = vmatprep.subr.bf16.mxu0 %v1440
  %2078 = vmatpush1.bf16.msra.mxu0 %v1439
  %2079 = vmatprep.subr.bf16.mxu0 %v1442
  %2080 = vmatpush1.bf16.msra.mxu0 %v1441
  %2081 = vmatprep.subr.bf16.mxu0 %v1444
  %2082 = vmatpush1.bf16.msra.mxu0 %v1443
  %2083 = vmatprep.subr.bf16.mxu0 %v1446
  %2084 = vmatpush1.bf16.msra.mxu0 %v1445
  %2085 = vmatprep.subr.bf16.mxu0 %v1448
  %2086 = vmatpush1.bf16.msra.mxu0 %v1447
  %2087 = vmatprep.subr.bf16.mxu0 %v1450
  %2088 = vmatpush1.bf16.msra.mxu0 %v1449
  %2089 = vmatprep.subr.bf16.mxu0 %v1452
  %2090 = vmatpush1.bf16.msra.mxu0 %v1451
  %2091 = vmatprep.subr.bf16.mxu0 %v1454
  %2092 = vmatpush1.bf16.msra.mxu0 %v1453
  %2093 = vmatprep.subr.bf16.mxu0 %v1456
  %2094 = vmatpush1.bf16.msra.mxu0 %v1455
  %2095 = vmatprep.mubr.bf16.mxu0 %v414
  %2096 = vmatmul.mubr.bf16.gmra.mrb[0].mxu0 %v413
  %v2097 = vpop.f32.mrb[0].mxu0
  %v2098 = vadd.f32 %v2045, %v2097
  %v2099 = vpop.f32.mrb[0].mxu0
  %v2100 = vadd.f32 %v2047, %v2099
  %v2101 = vpop.f32.mrb[0].mxu0
  %v2102 = vadd.f32 %v2049, %v2101
  %v2103 = vpop.f32.mrb[0].mxu0
  %v2104 = vadd.f32 %v2051, %v2103
  %2105 = vmatprep.mubr.bf16.mxu0 %v430
  %2106 = vmatmul.mubr.bf16.gmra.mrb[0].mxu0 %v429
  %v2107 = vpop.f32.mrb[0].mxu0
  %v2108 = vadd.f32 %v2055, %v2107
  %v2109 = vpop.f32.mrb[0].mxu0
  %v2110 = vadd.f32 %v2057, %v2109
  %v2111 = vpop.f32.mrb[0].mxu0
  %v2112 = vadd.f32 %v2059, %v2111
  %v2113 = vpop.f32.mrb[0].mxu0
  %v2114 = vadd.f32 %v2061, %v2113
  %2115 = vdwg.mxu0
  %2116 = vmatprep.subr.bf16.mxu0 %v1458
  %2117 = vmatpush1.bf16.msra.mxu0 %v1457
  %2118 = vmatprep.subr.bf16.mxu0 %v1460
  %2119 = vmatpush1.bf16.msra.mxu0 %v1459
  %2120 = vmatprep.subr.bf16.mxu0 %v1462
  %2121 = vmatpush1.bf16.msra.mxu0 %v1461
  %2122 = vmatprep.subr.bf16.mxu0 %v1464
  %2123 = vmatpush1.bf16.msra.mxu0 %v1463
  %2124 = vmatprep.subr.bf16.mxu0 %v1466
  %2125 = vmatpush1.bf16.msra.mxu0 %v1465
  %2126 = vmatprep.subr.bf16.mxu0 %v1468
  %2127 = vmatpush1.bf16.msra.mxu0 %v1467
  %2128 = vmatprep.subr.bf16.mxu0 %v1470
  %2129 = vmatpush1.bf16.msra.mxu0 %v1469
  %2130 = vmatprep.subr.bf16.mxu0 %v1472
  %2131 = vmatpush1.bf16.msra.mxu0 %v1471
  %2132 = vmatprep.subr.bf16.mxu0 %v1474
  %2133 = vmatpush1.bf16.msra.mxu0 %v1473
  %2134 = vmatprep.subr.bf16.mxu0 %v1476
  %2135 = vmatpush1.bf16.msra.mxu0 %v1475
  %2136 = vmatprep.subr.bf16.mxu0 %v1478
  %2137 = vmatpush1.bf16.msra.mxu0 %v1477
  %2138 = vmatprep.subr.bf16.mxu0 %v1480
  %2139 = vmatpush1.bf16.msra.mxu0 %v1479
  %2140 = vmatprep.subr.bf16.mxu0 %v1482
  %2141 = vmatpush1.bf16.msra.mxu0 %v1481
  %2142 = vmatprep.subr.bf16.mxu0 %v1484
  %2143 = vmatpush1.bf16.msra.mxu0 %v1483
  %2144 = vmatprep.subr.bf16.mxu0 %v1486
  %2145 = vmatpush1.bf16.msra.mxu0 %v1485
  %2146 = vmatprep.subr.bf16.mxu0 %v1488
  %2147 = vmatpush1.bf16.msra.mxu0 %v1487
  %2148 = vmatprep.mubr.bf16.mxu0 %v416
  %2149 = vmatmul.mubr.bf16.gmra.mrb[0].mxu0 %v415
  %v2150 = vpop.f32.mrb[0].mxu0
  %v2151 = vadd.f32 %v2098, %v2150
  %v2152 = vpop.f32.mrb[0].mxu0
  %v2153 = vadd.f32 %v2100, %v2152
  %v2154 = vpop.f32.mrb[0].mxu0
  %v2155 = vadd.f32 %v2102, %v2154
  %v2156 = vpop.f32.mrb[0].mxu0
  %v2157 = vadd.f32 %v2104, %v2156
  %2158 = vmatprep.mubr.bf16.mxu0 %v432
  %2159 = vmatmul.mubr.bf16.gmra.mrb[0].mxu0 %v431
  %v2160 = vpop.f32.mrb[0].mxu0
  %v2161 = vadd.f32 %v2108, %v2160
  %v2162 = vpop.f32.mrb[0].mxu0
  %v2163 = vadd.f32 %v2110, %v2162
  %v2164 = vpop.f32.mrb[0].mxu0
  %v2165 = vadd.f32 %v2112, %v2164
  %v2166 = vpop.f32.mrb[0].mxu0
  %v2167 = vadd.f32 %v2114, %v2166
  %2168 = vdwg.mxu0
  %v2169 = vadd.f32 %v2151, %v2155
  %v2170 = vadd.f32 %v2169, %v2161
  %v2171 = vadd.f32 %v2170, %v2165
  %v2172 = vrot.slane %v2171, 4
  %v2173 = vadd.f32 %v2171, %v2172
  %v2174 = vrot.slane %v2173, 2
  %v2175 = vadd.f32 %v2173, %v2174
  %v2176 = vrot.slane %v2175, 1
  %v2177 = vadd.f32 %v2175, %v2176
  %v2178 = vadd.f32 %v2153, %v2157
  %v2179 = vadd.f32 %v2178, %v2163
  %v2180 = vadd.f32 %v2179, %v2167
  %v2181 = vrot.slane %v2180, 4
  %v2182 = vadd.f32 %v2180, %v2181
  %v2183 = vrot.slane %v2182, 2
  %v2184 = vadd.f32 %v2182, %v2183
  %v2185 = vrot.slane %v2184, 1
  %v2186 = vadd.f32 %v2184, %v2185
  %v2187 = vmul.f32 %v2177, 0.03125
  %v2188 = vmul.f32 %v2186, 0.03125
  %v2189 = vmul.f32 %v2151, %v2151
  %v2190 = vmul.f32 %v2153, %v2153
  %v2191 = vmul.f32 %v2155, %v2155
  %v2192 = vmul.f32 %v2157, %v2157
  %v2193 = vmul.f32 %v2161, %v2161
  %v2194 = vmul.f32 %v2163, %v2163
  %v2195 = vmul.f32 %v2165, %v2165
  %v2196 = vmul.f32 %v2167, %v2167
  %v2197 = vadd.f32 %v2189, %v2191
  %v2198 = vadd.f32 %v2197, %v2193
  %v2199 = vadd.f32 %v2198, %v2195
  %v2200 = vrot.slane %v2199, 4
  %v2201 = vadd.f32 %v2199, %v2200
  %v2202 = vrot.slane %v2201, 2
  %v2203 = vadd.f32 %v2201, %v2202
  %v2204 = vrot.slane %v2203, 1
  %v2205 = vadd.f32 %v2203, %v2204
  %v2206 = vadd.f32 %v2190, %v2192
  %v2207 = vadd.f32 %v2206, %v2194
  %v2208 = vadd.f32 %v2207, %v2196
  %v2209 = vrot.slane %v2208, 4
  %v2210 = vadd.f32 %v2208, %v2209
  %v2211 = vrot.slane %v2210, 2
  %v2212 = vadd.f32 %v2210, %v2211
  %v2213 = vrot.slane %v2212, 1
  %v2214 = vadd.f32 %v2212, %v2213
  %v2215 = vmul.f32 %v2205, 0.03125
  %v2216 = vmul.f32 %v2214, 0.03125
  %v2217 = vmul.f32 %v2187, %v2187
  %v2218 = vmul.f32 %v2188, %v2188
  %v2219 = vsub.f32 %v2215, %v2217
  %v2220 = vsub.f32 %v2216, %v2218
  %v2221 = vmax.f32 %v2219, 0.0
  %v2222 = vmax.f32 %v2220, 0.0
  %v2223 = vadd.f32 %v2221, 1e-05
  %v2224 = vadd.f32 %v2222, 1e-05
  %v2225 = vrsqrt.pop %v2223
  %v2226 = vrsqrt.pop %v2224
  %v2227 = vld [vmem:[%s2] sm:$0x3]
  %v2230 = vcombine.low %v2225, %v2226
  %v2232 = vunpack.c.l.s4 1966171168
  %v2233 = vunpack.c.0.s8 %v2232
  %v2234 = vlaneseq
  %v2235 = vshrl.u32 %v2234, 7
  %v2236 = vsub.s32 %v2233, %v2235
  %v2237 = vrot.slane %v2230, %v2236
  %v2239 = vunpack.c.l.s4 1966171168
  %v2240 = vunpack.c.0.s8 %v2239
  %v2241 = vlaneseq
  %v2242 = vshrl.u32 %v2241, 7
  %v2243 = vsub.s32 %v2240, %v2242
  %v2244 = vrot.slane %v2237, %v2243
  %v2246 = vmul.f32 %v2227, %v2244
  %v2247 = vld [vmem:[%s3] sm:$0x3]
  %v2249 = vlaneseq
  %v2250 = vshrl.u32 %v2249, 7
  %v2251 = vsub.s32 0, %v2250
  %v2252 = vrot.slane %v2246, %v2251
  %v2253 = vlaneseq
  %v2254 = vshrl.u32 %v2253, 7
  %v2255 = vsub.s32 1, %v2254
  %v2256 = vrot.slane %v2246, %v2255
  %v2259 = vmul.f32 %v2187, %v2252
  %v2260 = vmul.f32 %v2188, %v2256
  %v2263 = vcombine.low %v2259, %v2260
  %v2265 = vunpack.c.l.s4 1966171168
  %v2266 = vunpack.c.0.s8 %v2265
  %v2267 = vlaneseq
  %v2268 = vshrl.u32 %v2267, 7
  %v2269 = vsub.s32 %v2266, %v2268
  %v2270 = vrot.slane %v2263, %v2269
  %v2272 = vunpack.c.l.s4 1966171168
  %v2273 = vunpack.c.0.s8 %v2272
  %v2274 = vlaneseq
  %v2275 = vshrl.u32 %v2274, 7
  %v2276 = vsub.s32 %v2273, %v2275
  %v2277 = vrot.slane %v2270, %v2276
  %v2279 = vsub.f32 %v2247, %v2277
  %v2280 = vmul.f32 %v2151, %v2252
  %v2281 = vmul.f32 %v2153, %v2256
  %v2282 = vmul.f32 %v2155, %v2252
  %v2283 = vmul.f32 %v2157, %v2256
  %v2284 = vmul.f32 %v2161, %v2252
  %v2285 = vmul.f32 %v2163, %v2256
  %v2286 = vmul.f32 %v2165, %v2252
  %v2287 = vmul.f32 %v2167, %v2256
  %v2289 = vlaneseq
  %v2290 = vshrl.u32 %v2289, 7
  %v2291 = vsub.s32 0, %v2290
  %v2292 = vrot.slane %v2279, %v2291
  %v2293 = vlaneseq
  %v2294 = vshrl.u32 %v2293, 7
  %v2295 = vsub.s32 1, %v2294
  %v2296 = vrot.slane %v2279, %v2295
  %v2299 = vadd.f32 %v2280, %v2292
  %v2300 = vadd.f32 %v2281, %v2296
  %v2301 = vadd.f32 %v2282, %v2292
  %v2302 = vadd.f32 %v2283, %v2296
  %v2303 = vadd.f32 %v2284, %v2292
  %v2304 = vadd.f32 %v2285, %v2296
  %v2305 = vadd.f32 %v2286, %v2292
  %v2306 = vadd.f32 %v2287, %v2296
  %vm2307 = vcmp.gt.f32.partialorder %v2299, 0.0
  %vm2308 = vcmp.gt.f32.partialorder %v2300, 0.0
  %vm2309 = vcmp.gt.f32.partialorder %v2301, 0.0
  %vm2310 = vcmp.gt.f32.partialorder %v2302, 0.0
  %vm2311 = vcmp.gt.f32.partialorder %v2303, 0.0
  %vm2312 = vcmp.gt.f32.partialorder %v2304, 0.0
  %vm2313 = vcmp.gt.f32.partialorder %v2305, 0.0
  %vm2314 = vcmp.gt.f32.partialorder %v2306, 0.0
  %v2315 = vmul.f32 %v2299, 0.2
  %v2316 = vmul.f32 %v2300, 0.2
  %v2317 = vmul.f32 %v2301, 0.2
  %v2318 = vmul.f32 %v2302, 0.2
  %v2319 = vmul.f32 %v2303, 0.2
  %v2320 = vmul.f32 %v2304, 0.2
  %v2321 = vmul.f32 %v2305, 0.2
  %v2322 = vmul.f32 %v2306, 0.2
  %v2323 = vsel %vm2307, %v2299, %v2315
  %v2324 = vsel %vm2308, %v2300, %v2316
  %v2325 = vsel %vm2309, %v2301, %v2317
  %v2326 = vsel %vm2310, %v2302, %v2318
  %v2327 = vsel %vm2311, %v2303, %v2319
  %v2328 = vsel %vm2312, %v2304, %v2320
  %v2329 = vsel %vm2313, %v2305, %v2321
  %v2330 = vsel %vm2314, %v2306, %v2322
  %v2331 = vpack.c.bf16 %v2325, %v2323
  %v2332 = vpack.c.bf16 %v2326, %v2324
  %v2333 = vpack.c.bf16 %v2329, %v2327
  %v2334 = vpack.c.bf16 %v2330, %v2328
  %v2339 = vunpack.c.l.b16 %v2331
  %v2340 = vunpack.c.l.b16 %v2332
  %v2341 = vunpack.c.h.b16 %v2331
  %v2342 = vunpack.c.h.b16 %v2332
  %v2343 = vunpack.c.l.b16 %v2333
  %v2344 = vunpack.c.l.b16 %v2334
  %v2345 = vunpack.c.h.b16 %v2333
  %v2346 = vunpack.c.h.b16 %v2334
  %v2347 = vpack.c.b16 %v2340, %v2339
  %v2348 = vpack.c.b16 %v2342, %v2341
  %v2349 = vpack.c.b16 %v2344, %v2343
  %v2350 = vpack.c.b16 %v2346, %v2345
  %2355 = vst [vmem:[%s4] sm:$0xff] %v2347
  %2356 = vst [vmem:[%s4 + $0x8] sm:$0xff] %v2348
  %2357 = vst [vmem:[%s4 + $0x10] sm:$0xff] %v2349
  %2358 = vst [vmem:[%s4 + $0x18] sm:$0xff] %v2350
  // Predicated region
  $region18: #{_lambda_.6} parent=0 // pred_check
    _
  $region19: #{_lambda_.6} parent=0 // pred_check_branch
    %2360 = sbr.rel (0) target = $region21
  $region20: #{_lambda_.6} parent=0 // pred_region
    _
  $region21: #{_lambda_.6} parent=0 // pred_fallthru
    _
  // Predicated region
  $region22: #{_lambda_.6} parent=0 // pred_check
    _
  $region23: #{_lambda_.6} parent=0 // pred_check_branch
    %2362 = sbr.rel (0) target = $region25
  $region24: #{_lambda_.6} parent=0 // pred_region
    _
  $region25: #{_lambda_.6} parent=0 // pred_fallthru
    _

// kernel: _lambda_.7
$region0: #{_lambda_.7}
  #allocation0 [shape = 'u32[]', space=smem, size = 0x4, offset = 0x4, fixed_abs, tag = 'smem constant byte address 0x4 - core index']
  #allocation1 [shape = 'u32[144,128]{1,0:T(1,128)}', space=vmem, size = 0x12000, scoped, tag = 'internal scratch']
  %s0 = inlined_call_operand.vmem [shape: bf16[16,4096], index: 0, kind: input, shape index: {}]
  %s1 = inlined_call_operand.vmem [shape: bf16[4096,512], index: 1, kind: input, shape index: {}]
  %s2 = inlined_call_operand.vmem [shape: f32[1,512], index: 2, kind: input, shape index: {}]
  %s3 = inlined_call_operand.vmem [shape: f32[1,512], index: 3, kind: input, shape index: {}]
  %s4 = inlined_call_operand.vmem [shape: bf16[16,512], index: 4, kind: output, shape index: {}]
  %s5 = sld [smem:[#allocation0]]
  $region26: #{_lambda_.7} parent=0
    _
  %s7 = ssub.s32 1, %s5
  %s8 = scalar_select 0, %s7, %s5
  // Predicated region
  $region2: #{_lambda_.7} parent=0 // pred_check
    _
  $region3: #{_lambda_.7} parent=0 // pred_check_branch
    %10 = sbr.rel (0) target = $region5
  $region4: #{_lambda_.7} parent=0 // pred_region
    _
  $region5: #{_lambda_.7} parent=0 // pred_fallthru
    _
  // Predicated region
  $region6: #{_lambda_.7} parent=0 // pred_check
    _
  $region7: #{_lambda_.7} parent=0 // pred_check_branch
    %12 = sbr.rel (0) target = $region9
  $region8: #{_lambda_.7} parent=0 // pred_region
    _
  $region9: #{_lambda_.7} parent=0 // pred_fallthru
    _
  // Predicated region
  $region10: #{_lambda_.7} parent=0 // pred_check
    _
  $region11: #{_lambda_.7} parent=0 // pred_check_branch
    %14 = sbr.rel (0) target = $region13
  $region12: #{_lambda_.7} parent=0 // pred_region
    _
  $region13: #{_lambda_.7} parent=0 // pred_fallthru
    _
  // Predicated region
  $region14: #{_lambda_.7} parent=0 // pred_check
    _
  $region15: #{_lambda_.7} parent=0 // pred_check_branch
    %16 = sbr.rel (0) target = $region17
  $region16: #{_lambda_.7} parent=0 // pred_region
    _
  $region17: #{_lambda_.7} parent=0 // pred_fallthru
    _
  %v17 = vld [vmem:[%s0] sm:$0xff]
  %v18 = vld [vmem:[%s0 + $0x8] sm:$0xff]
  %v19 = vld [vmem:[%s0 + $0x10] sm:$0xff]
  %v20 = vld [vmem:[%s0 + $0x18] sm:$0xff]
  %v21 = vld [vmem:[%s0 + $0x20] sm:$0xff]
  %v22 = vld [vmem:[%s0 + $0x28] sm:$0xff]
  %v23 = vld [vmem:[%s0 + $0x30] sm:$0xff]
  %v24 = vld [vmem:[%s0 + $0x38] sm:$0xff]
  %v25 = vld [vmem:[%s0 + $0x40] sm:$0xff]
  %v26 = vld [vmem:[%s0 + $0x48] sm:$0xff]
  %v27 = vld [vmem:[%s0 + $0x50] sm:$0xff]
  %v28 = vld [vmem:[%s0 + $0x58] sm:$0xff]
  %v29 = vld [vmem:[%s0 + $0x60] sm:$0xff]
  %v30 = vld [vmem:[%s0 + $0x68] sm:$0xff]
  %v31 = vld [vmem:[%s0 + $0x70] sm:$0xff]
  %v32 = vld [vmem:[%s0 + $0x78] sm:$0xff]
  %v33 = vld [vmem:[%s0 + $0x80] sm:$0xff]
  %v34 = vld [vmem:[%s0 + $0x88] sm:$0xff]
  %v35 = vld [vmem:[%s0 + $0x90] sm:$0xff]
  %v36 = vld [vmem:[%s0 + $0x98] sm:$0xff]
  %v37 = vld [vmem:[%s0 + $0xa0] sm:$0xff]
  %v38 = vld [vmem:[%s0 + $0xa8] sm:$0xff]
  %v39 = vld [vmem:[%s0 + $0xb0] sm:$0xff]
  %v40 = vld [vmem:[%s0 + $0xb8] sm:$0xff]
  %v41 = vld [vmem:[%s0 + $0xc0] sm:$0xff]
  %v42 = vld [vmem:[%s0 + $0xc8] sm:$0xff]
  %v43 = vld [vmem:[%s0 + $0xd0] sm:$0xff]
  %v44 = vld [vmem:[%s0 + $0xd8] sm:$0xff]
  %v45 = vld [vmem:[%s0 + $0xe0] sm:$0xff]
  %v46 = vld [vmem:[%s0 + $0xe8] sm:$0xff]
  %v47 = vld [vmem:[%s0 + $0xf0] sm:$0xff]
  %v48 = vld [vmem:[%s0 + $0xf8] sm:$0xff]
  %v49 = vld [vmem:[%s1] sm:$0xff]
  %v50 = vld [vmem:[%s1 + $0x8] sm:$0xff]
  %v51 = vld [vmem:[%s1 + $0x10] sm:$0xff]
  %v52 = vld [vmem:[%s1 + $0x18] sm:$0xff]
  %v53 = vld [vmem:[%s1 + $0x20] sm:$0xff]
  %v54 = vld [vmem:[%s1 + $0x28] sm:$0xff]
  %v55 = vld [vmem:[%s1 + $0x30] sm:$0xff]
  %v56 = vld [vmem:[%s1 + $0x38] sm:$0xff]
  %v57 = vld [vmem:[%s1 + $0x40] sm:$0xff]
  %v58 = vld [vmem:[%s1 + $0x48] sm:$0xff]
  %v59 = vld [vmem:[%s1 + $0x50] sm:$0xff]
  %v60 = vld [vmem:[%s1 + $0x58] sm:$0xff]
  %v61 = vld [vmem:[%s1 + $0x60] sm:$0xff]
  %v62 = vld [vmem:[%s1 + $0x68] sm:$0xff]
  %v63 = vld [vmem:[%s1 + $0x70] sm:$0xff]
  %v64 = vld [vmem:[%s1 + $0x78] sm:$0xff]
  %v65 = vld [vmem:[%s1 + $0x80] sm:$0xff]
  %v66 = vld [vmem:[%s1 + $0x88] sm:$0xff]
  %v67 = vld [vmem:[%s1 + $0x90] sm:$0xff]
  %v68 = vld [vmem:[%s1 + $0x98] sm:$0xff]
  %v69 = vld [vmem:[%s1 + $0xa0] sm:$0xff]
  %v70 = vld [vmem:[%s1 + $0xa8] sm:$0xff]
  %v71 = vld [vmem:[%s1 + $0xb0] sm:$0xff]
  %v72 = vld [vmem:[%s1 + $0xb8] sm:$0xff]
  %v73 = vld [vmem:[%s1 + $0xc0] sm:$0xff]
  %v74 = vld [vmem:[%s1 + $0xc8] sm:$0xff]
  %v75 = vld [vmem:[%s1 + $0xd0] sm:$0xff]
  %v76 = vld [vmem:[%s1 + $0xd8] sm:$0xff]
  %v77 = vld [vmem:[%s1 + $0xe0] sm:$0xff]
  %v78 = vld [vmem:[%s1 + $0xe8] sm:$0xff]
  %v79 = vld [vmem:[%s1 + $0xf0] sm:$0xff]
  %v80 = vld [vmem:[%s1 + $0xf8] sm:$0xff]
  %v81 = vld [vmem:[%s1 + $0x100] sm:$0xff]
  %v82 = vld [vmem:[%s1 + $0x108] sm:$0xff]
  %v83 = vld [vmem:[%s1 + $0x110] sm:$0xff]
  %v84 = vld [vmem:[%s1 + $0x118] sm:$0xff]
  %v85 = vld [vmem:[%s1 + $0x120] sm:$0xff]
  %v86 = vld [vmem:[%s1 + $0x128] sm:$0xff]
  %v87 = vld [vmem:[%s1 + $0x130] sm:$0xff]
  %v88 = vld [vmem:[%s1 + $0x138] sm:$0xff]
  %v89 = vld [vmem:[%s1 + $0x140] sm:$0xff]
  %v90 = vld [vmem:[%s1 + $0x148] sm:$0xff]
  %v91 = vld [vmem:[%s1 + $0x150] sm:$0xff]
  %v92 = vld [vmem:[%s1 + $0x158] sm:$0xff]
  %v93 = vld [vmem:[%s1 + $0x160] sm:$0xff]
  %v94 = vld [vmem:[%s1 + $0x168] sm:$0xff]
  %v95 = vld [vmem:[%s1 + $0x170] sm:$0xff]
  %v96 = vld [vmem:[%s1 + $0x178] sm:$0xff]
  %v97 = vld [vmem:[%s1 + $0x180] sm:$0xff]
  %v98 = vld [vmem:[%s1 + $0x188] sm:$0xff]
  %v99 = vld [vmem:[%s1 + $0x190] sm:$0xff]
  %v100 = vld [vmem:[%s1 + $0x198] sm:$0xff]
  %v101 = vld [vmem:[%s1 + $0x1a0] sm:$0xff]
  %v102 = vld [vmem:[%s1 + $0x1a8] sm:$0xff]
  %v103 = vld [vmem:[%s1 + $0x1b0] sm:$0xff]
  %v104 = vld [vmem:[%s1 + $0x1b8] sm:$0xff]
  %v105 = vld [vmem:[%s1 + $0x1c0] sm:$0xff]
  %v106 = vld [vmem:[%s1 + $0x1c8] sm:$0xff]
  %v107 = vld [vmem:[%s1 + $0x1d0] sm:$0xff]
  %v108 = vld [vmem:[%s1 + $0x1d8] sm:$0xff]
  %v109 = vld [vmem:[%s1 + $0x1e0] sm:$0xff]
  %v110 = vld [vmem:[%s1 + $0x1e8] sm:$0xff]
  %v111 = vld [vmem:[%s1 + $0x1f0] sm:$0xff]
  %v112 = vld [vmem:[%s1 + $0x1f8] sm:$0xff]
  %v113 = vld [vmem:[%s1 + $0x200] sm:$0xff]
  %v114 = vld [vmem:[%s1 + $0x208] sm:$0xff]
  %v115 = vld [vmem:[%s1 + $0x210] sm:$0xff]
  %v116 = vld [vmem:[%s1 + $0x218] sm:$0xff]
  %v117 = vld [vmem:[%s1 + $0x220] sm:$0xff]
  %v118 = vld [vmem:[%s1 + $0x228] sm:$0xff]
  %v119 = vld [vmem:[%s1 + $0x230] sm:$0xff]
  %v120 = vld [vmem:[%s1 + $0x238] sm:$0xff]
  %v121 = vld [vmem:[%s1 + $0x240] sm:$0xff]
  %v122 = vld [vmem:[%s1 + $0x248] sm:$0xff]
  %v123 = vld [vmem:[%s1 + $0x250] sm:$0xff]
  %v124 = vld [vmem:[%s1 + $0x258] sm:$0xff]
  %v125 = vld [vmem:[%s1 + $0x260] sm:$0xff]
  %v126 = vld [vmem:[%s1 + $0x268] sm:$0xff]
  %v127 = vld [vmem:[%s1 + $0x270] sm:$0xff]
  %v128 = vld [vmem:[%s1 + $0x278] sm:$0xff]
  %v129 = vld [vmem:[%s1 + $0x280] sm:$0xff]
  %v130 = vld [vmem:[%s1 + $0x288] sm:$0xff]
  %v131 = vld [vmem:[%s1 + $0x290] sm:$0xff]
  %v132 = vld [vmem:[%s1 + $0x298] sm:$0xff]
  %v133 = vld [vmem:[%s1 + $0x2a0] sm:$0xff]
  %v134 = vld [vmem:[%s1 + $0x2a8] sm:$0xff]
  %v135 = vld [vmem:[%s1 + $0x2b0] sm:$0xff]
  %v136 = vld [vmem:[%s1 + $0x2b8] sm:$0xff]
  %v137 = vld [vmem:[%s1 + $0x2c0] sm:$0xff]
  %v138 = vld [vmem:[%s1 + $0x2c8] sm:$0xff]
  %v139 = vld [vmem:[%s1 + $0x2d0] sm:$0xff]
  %v140 = vld [vmem:[%s1 + $0x2d8] sm:$0xff]
  %v141 = vld [vmem:[%s1 + $0x2e0] sm:$0xff]
  %v142 = vld [vmem:[%s1 + $0x2e8] sm:$0xff]
  %v143 = vld [vmem:[%s1 + $0x2f0] sm:$0xff]
  %v144 = vld [vmem:[%s1 + $0x2f8] sm:$0xff]
  %v145 = vld [vmem:[%s1 + $0x300] sm:$0xff]
  %v146 = vld [vmem:[%s1 + $0x308] sm:$0xff]
  %v147 = vld [vmem:[%s1 + $0x310] sm:$0xff]
  %v148 = vld [vmem:[%s1 + $0x318] sm:$0xff]
  %v149 = vld [vmem:[%s1 + $0x320] sm:$0xff]
  %v150 = vld [vmem:[%s1 + $0x328] sm:$0xff]
  %v151 = vld [vmem:[%s1 + $0x330] sm:$0xff]
  %v152 = vld [vmem:[%s1 + $0x338] sm:$0xff]
  %v153 = vld [vmem:[%s1 + $0x340] sm:$0xff]
  %v154 = vld [vmem:[%s1 + $0x348] sm:$0xff]
  %v155 = vld [vmem:[%s1 + $0x350] sm:$0xff]
  %v156 = vld [vmem:[%s1 + $0x358] sm:$0xff]
  %v157 = vld [vmem:[%s1 + $0x360] sm:$0xff]
  %v158 = vld [vmem:[%s1 + $0x368] sm:$0xff]
  %v159 = vld [vmem:[%s1 + $0x370] sm:$0xff]
  %v160 = vld [vmem:[%s1 + $0x378] sm:$0xff]
  %v161 = vld [vmem:[%s1 + $0x380] sm:$0xff]
  %v162 = vld [vmem:[%s1 + $0x388] sm:$0xff]
  %v163 = vld [vmem:[%s1 + $0x390] sm:$0xff]
  %v164 = vld [vmem:[%s1 + $0x398] sm:$0xff]
  %v165 = vld [vmem:[%s1 + $0x3a0] sm:$0xff]
  %v166 = vld [vmem:[%s1 + $0x3a8] sm:$0xff]
  %v167 = vld [vmem:[%s1 + $0x3b0] sm:$0xff]
  %v168 = vld [vmem:[%s1 + $0x3b8] sm:$0xff]
  %v169 = vld [vmem:[%s1 + $0x3c0] sm:$0xff]
  %v170 = vld [vmem:[%s1 + $0x3c8] sm:$0xff]
  %v171 = vld [vmem:[%s1 + $0x3d0] sm:$0xff]
  %v172 = vld [vmem:[%s1 + $0x3d8] sm:$0xff]
  %v173 = vld [vmem:[%s1 + $0x3e0] sm:$0xff]
  %v174 = vld [vmem:[%s1 + $0x3e8] sm:$0xff]
  %v175 = vld [vmem:[%s1 + $0x3f0] sm:$0xff]
  %v176 = vld [vmem:[%s1 + $0x3f8] sm:$0xff]
  %v177 = vld [vmem:[%s1 + $0x400] sm:$0xff]
  %v178 = vld [vmem:[%s1 + $0x408] sm:$0xff]
  %v179 = vld [vmem:[%s1 + $0x410] sm:$0xff]
  %v180 = vld [vmem:[%s1 + $0x418] sm:$0xff]
  %v181 = vld [vmem:[%s1 + $0x420] sm:$0xff]
  %v182 = vld [vmem:[%s1 + $0x428] sm:$0xff]
  %v183 = vld [vmem:[%s1 + $0x430] sm:$0xff]
  %v184 = vld [vmem:[%s1 + $0x438] sm:$0xff]
  %v185 = vld [vmem:[%s1 + $0x440] sm:$0xff]
  %v186 = vld [vmem:[%s1 + $0x448] sm:$0xff]
  %v187 = vld [vmem:[%s1 + $0x450] sm:$0xff]
  %v188 = vld [vmem:[%s1 + $0x458] sm:$0xff]
  %v189 = vld [vmem:[%s1 + $0x460] sm:$0xff]
  %v190 = vld [vmem:[%s1 + $0x468] sm:$0xff]
  %v191 = vld [vmem:[%s1 + $0x470] sm:$0xff]
  %v192 = vld [vmem:[%s1 + $0x478] sm:$0xff]
  %v193 = vld [vmem:[%s1 + $0x480] sm:$0xff]
  %v194 = vld [vmem:[%s1 + $0x488] sm:$0xff]
  %v195 = vld [vmem:[%s1 + $0x490] sm:$0xff]
  %v196 = vld [vmem:[%s1 + $0x498] sm:$0xff]
  %v197 = vld [vmem:[%s1 + $0x4a0] sm:$0xff]
  %v198 = vld [vmem:[%s1 + $0x4a8] sm:$0xff]
  %v199 = vld [vmem:[%s1 + $0x4b0] sm:$0xff]
  %v200 = vld [vmem:[%s1 + $0x4b8] sm:$0xff]
  %v201 = vld [vmem:[%s1 + $0x4c0] sm:$0xff]
  %v202 = vld [vmem:[%s1 + $0x4c8] sm:$0xff]
  %v203 = vld [vmem:[%s1 + $0x4d0] sm:$0xff]
  %v204 = vld [vmem:[%s1 + $0x4d8] sm:$0xff]
  %v205 = vld [vmem:[%s1 + $0x4e0] sm:$0xff]
  %v206 = vld [vmem:[%s1 + $0x4e8] sm:$0xff]
  %v207 = vld [vmem:[%s1 + $0x4f0] sm:$0xff]
  %v208 = vld [vmem:[%s1 + $0x4f8] sm:$0xff]
  %v209 = vld [vmem:[%s1 + $0x500] sm:$0xff]
  %v210 = vld [vmem:[%s1 + $0x508] sm:$0xff]
  %v211 = vld [vmem:[%s1 + $0x510] sm:$0xff]
  %v212 = vld [vmem:[%s1 + $0x518] sm:$0xff]
  %v213 = vld [vmem:[%s1 + $0x520] sm:$0xff]
  %v214 = vld [vmem:[%s1 + $0x528] sm:$0xff]
  %v215 = vld [vmem:[%s1 + $0x530] sm:$0xff]
  %v216 = vld [vmem:[%s1 + $0x538] sm:$0xff]
  %v217 = vld [vmem:[%s1 + $0x540] sm:$0xff]
  %v218 = vld [vmem:[%s1 + $0x548] sm:$0xff]
  %v219 = vld [vmem:[%s1 + $0x550] sm:$0xff]
  %v220 = vld [vmem:[%s1 + $0x558] sm:$0xff]
  %v221 = vld [vmem:[%s1 + $0x560] sm:$0xff]
  %v222 = vld [vmem:[%s1 + $0x568] sm:$0xff]
  %v223 = vld [vmem:[%s1 + $0x570] sm:$0xff]
  %v224 = vld [vmem:[%s1 + $0x578] sm:$0xff]
  %v225 = vld [vmem:[%s1 + $0x580] sm:$0xff]
  %v226 = vld [vmem:[%s1 + $0x588] sm:$0xff]
  %v227 = vld [vmem:[%s1 + $0x590] sm:$0xff]
  %v228 = vld [vmem:[%s1 + $0x598] sm:$0xff]
  %v229 = vld [vmem:[%s1 + $0x5a0] sm:$0xff]
  %v230 = vld [vmem:[%s1 + $0x5a8] sm:$0xff]
  %v231 = vld [vmem:[%s1 + $0x5b0] sm:$0xff]
  %v232 = vld [vmem:[%s1 + $0x5b8] sm:$0xff]
  %v233 = vld [vmem:[%s1 + $0x5c0] sm:$0xff]
  %v234 = vld [vmem:[%s1 + $0x5c8] sm:$0xff]
  %v235 = vld [vmem:[%s1 + $0x5d0] sm:$0xff]
  %v236 = vld [vmem:[%s1 + $0x5d8] sm:$0xff]
  %v237 = vld [vmem:[%s1 + $0x5e0] sm:$0xff]
  %v238 = vld [vmem:[%s1 + $0x5e8] sm:$0xff]
  %v239 = vld [vmem:[%s1 + $0x5f0] sm:$0xff]
  %v240 = vld [vmem:[%s1 + $0x5f8] sm:$0xff]
  %v241 = vld [vmem:[%s1 + $0x600] sm:$0xff]
  %v242 = vld [vmem:[%s1 + $0x608] sm:$0xff]
  %v243 = vld [vmem:[%s1 + $0x610] sm:$0xff]
  %v244 = vld [vmem:[%s1 + $0x618] sm:$0xff]
  %v245 = vld [vmem:[%s1 + $0x620] sm:$0xff]
  %v246 = vld [vmem:[%s1 + $0x628] sm:$0xff]
  %v247 = vld [vmem:[%s1 + $0x630] sm:$0xff]
  %v248 = vld [vmem:[%s1 + $0x638] sm:$0xff]
  %v249 = vld [vmem:[%s1 + $0x640] sm:$0xff]
  %v250 = vld [vmem:[%s1 + $0x648] sm:$0xff]
  %v251 = vld [vmem:[%s1 + $0x650] sm:$0xff]
  %v252 = vld [vmem:[%s1 + $0x658] sm:$0xff]
  %v253 = vld [vmem:[%s1 + $0x660] sm:$0xff]
  %v254 = vld [vmem:[%s1 + $0x668] sm:$0xff]
  %v255 = vld [vmem:[%s1 + $0x670] sm:$0xff]
  %v256 = vld [vmem:[%s1 + $0x678] sm:$0xff]
  %v257 = vld [vmem:[%s1 + $0x680] sm:$0xff]
  %v258 = vld [vmem:[%s1 + $0x688] sm:$0xff]
  %v259 = vld [vmem:[%s1 + $0x690] sm:$0xff]
  %v260 = vld [vmem:[%s1 + $0x698] sm:$0xff]
  %v261 = vld [vmem:[%s1 + $0x6a0] sm:$0xff]
  %v262 = vld [vmem:[%s1 + $0x6a8] sm:$0xff]
  %v263 = vld [vmem:[%s1 + $0x6b0] sm:$0xff]
  %v264 = vld [vmem:[%s1 + $0x6b8] sm:$0xff]
  %v265 = vld [vmem:[%s1 + $0x6c0] sm:$0xff]
  %v266 = vld [vmem:[%s1 + $0x6c8] sm:$0xff]
  %v267 = vld [vmem:[%s1 + $0x6d0] sm:$0xff]
  %v268 = vld [vmem:[%s1 + $0x6d8] sm:$0xff]
  %v269 = vld [vmem:[%s1 + $0x6e0] sm:$0xff]
  %v270 = vld [vmem:[%s1 + $0x6e8] sm:$0xff]
  %v271 = vld [vmem:[%s1 + $0x6f0] sm:$0xff]
  %v272 = vld [vmem:[%s1 + $0x6f8] sm:$0xff]
  %v273 = vld [vmem:[%s1 + $0x700] sm:$0xff]
  %v274 = vld [vmem:[%s1 + $0x708] sm:$0xff]
  %v275 = vld [vmem:[%s1 + $0x710] sm:$0xff]
  %v276 = vld [vmem:[%s1 + $0x718] sm:$0xff]
  %v277 = vld [vmem:[%s1 + $0x720] sm:$0xff]
  %v278 = vld [vmem:[%s1 + $0x728] sm:$0xff]
  %v279 = vld [vmem:[%s1 + $0x730] sm:$0xff]
  %v280 = vld [vmem:[%s1 + $0x738] sm:$0xff]
  %v281 = vld [vmem:[%s1 + $0x740] sm:$0xff]
  %v282 = vld [vmem:[%s1 + $0x748] sm:$0xff]
  %v283 = vld [vmem:[%s1 + $0x750] sm:$0xff]
  %v284 = vld [vmem:[%s1 + $0x758] sm:$0xff]
  %v285 = vld [vmem:[%s1 + $0x760] sm:$0xff]
  %v286 = vld [vmem:[%s1 + $0x768] sm:$0xff]
  %v287 = vld [vmem:[%s1 + $0x770] sm:$0xff]
  %v288 = vld [vmem:[%s1 + $0x778] sm:$0xff]
  %v289 = vld [vmem:[%s1 + $0x780] sm:$0xff]
  %v290 = vld [vmem:[%s1 + $0x788] sm:$0xff]
  %v291 = vld [vmem:[%s1 + $0x790] sm:$0xff]
  %v292 = vld [vmem:[%s1 + $0x798] sm:$0xff]
  %v293 = vld [vmem:[%s1 + $0x7a0] sm:$0xff]
  %v294 = vld [vmem:[%s1 + $0x7a8] sm:$0xff]
  %v295 = vld [vmem:[%s1 + $0x7b0] sm:$0xff]
  %v296 = vld [vmem:[%s1 + $0x7b8] sm:$0xff]
  %v297 = vld [vmem:[%s1 + $0x7c0] sm:$0xff]
  %v298 = vld [vmem:[%s1 + $0x7c8] sm:$0xff]
  %v299 = vld [vmem:[%s1 + $0x7d0] sm:$0xff]
  %v300 = vld [vmem:[%s1 + $0x7d8] sm:$0xff]
  %v301 = vld [vmem:[%s1 + $0x7e0] sm:$0xff]
  %v302 = vld [vmem:[%s1 + $0x7e8] sm:$0xff]
  %v303 = vld [vmem:[%s1 + $0x7f0] sm:$0xff]
  %v304 = vld [vmem:[%s1 + $0x7f8] sm:$0xff]
  %v305 = vld [vmem:[%s1 + $0x800] sm:$0xff]
  %v306 = vld [vmem:[%s1 + $0x808] sm:$0xff]
  %v307 = vld [vmem:[%s1 + $0x810] sm:$0xff]
  %v308 = vld [vmem:[%s1 + $0x818] sm:$0xff]
  %v309 = vld [vmem:[%s1 + $0x820] sm:$0xff]
  %v310 = vld [vmem:[%s1 + $0x828] sm:$0xff]
  %v311 = vld [vmem:[%s1 + $0x830] sm:$0xff]
  %v312 = vld [vmem:[%s1 + $0x838] sm:$0xff]
  %v313 = vld [vmem:[%s1 + $0x840] sm:$0xff]
  %v314 = vld [vmem:[%s1 + $0x848] sm:$0xff]
  %v315 = vld [vmem:[%s1 + $0x850] sm:$0xff]
  %v316 = vld [vmem:[%s1 + $0x858] sm:$0xff]
  %v317 = vld [vmem:[%s1 + $0x860] sm:$0xff]
  %v318 = vld [vmem:[%s1 + $0x868] sm:$0xff]
  %v319 = vld [vmem:[%s1 + $0x870] sm:$0xff]
  %v320 = vld [vmem:[%s1 + $0x878] sm:$0xff]
  %v321 = vld [vmem:[%s1 + $0x880] sm:$0xff]
  %v322 = vld [vmem:[%s1 + $0x888] sm:$0xff]
  %v323 = vld [vmem:[%s1 + $0x890] sm:$0xff]
  %v324 = vld [vmem:[%s1 + $0x898] sm:$0xff]
  %v325 = vld [vmem:[%s1 + $0x8a0] sm:$0xff]
  %v326 = vld [vmem:[%s1 + $0x8a8] sm:$0xff]
  %v327 = vld [vmem:[%s1 + $0x8b0] sm:$0xff]
  %v328 = vld [vmem:[%s1 + $0x8b8] sm:$0xff]
  %v329 = vld [vmem:[%s1 + $0x8c0] sm:$0xff]
  %v330 = vld [vmem:[%s1 + $0x8c8] sm:$0xff]
  %v331 = vld [vmem:[%s1 + $0x8d0] sm:$0xff]
  %v332 = vld [vmem:[%s1 + $0x8d8] sm:$0xff]
  %v333 = vld [vmem:[%s1 + $0x8e0] sm:$0xff]
  %v334 = vld [vmem:[%s1 + $0x8e8] sm:$0xff]
  %v335 = vld [vmem:[%s1 + $0x8f0] sm:$0xff]
  %v336 = vld [vmem:[%s1 + $0x8f8] sm:$0xff]
  %v337 = vld [vmem:[%s1 + $0x900] sm:$0xff]
  %v338 = vld [vmem:[%s1 + $0x908] sm:$0xff]
  %v339 = vld [vmem:[%s1 + $0x910] sm:$0xff]
  %v340 = vld [vmem:[%s1 + $0x918] sm:$0xff]
  %v341 = vld [vmem:[%s1 + $0x920] sm:$0xff]
  %v342 = vld [vmem:[%s1 + $0x928] sm:$0xff]
  %v343 = vld [vmem:[%s1 + $0x930] sm:$0xff]
  %v344 = vld [vmem:[%s1 + $0x938] sm:$0xff]
  %v345 = vld [vmem:[%s1 + $0x940] sm:$0xff]
  %v346 = vld [vmem:[%s1 + $0x948] sm:$0xff]
  %v347 = vld [vmem:[%s1 + $0x950] sm:$0xff]
  %v348 = vld [vmem:[%s1 + $0x958] sm:$0xff]
  %v349 = vld [vmem:[%s1 + $0x960] sm:$0xff]
  %v350 = vld [vmem:[%s1 + $0x968] sm:$0xff]
  %v351 = vld [vmem:[%s1 + $0x970] sm:$0xff]
  %v352 = vld [vmem:[%s1 + $0x978] sm:$0xff]
  %v353 = vld [vmem:[%s1 + $0x980] sm:$0xff]
  %v354 = vld [vmem:[%s1 + $0x988] sm:$0xff]
  %v355 = vld [vmem:[%s1 + $0x990] sm:$0xff]
  %v356 = vld [vmem:[%s1 + $0x998] sm:$0xff]
  %v357 = vld [vmem:[%s1 + $0x9a0] sm:$0xff]
  %v358 = vld [vmem:[%s1 + $0x9a8] sm:$0xff]
  %v359 = vld [vmem:[%s1 + $0x9b0] sm:$0xff]
  %v360 = vld [vmem:[%s1 + $0x9b8] sm:$0xff]
  %v361 = vld [vmem:[%s1 + $0x9c0] sm:$0xff]
  %v362 = vld [vmem:[%s1 + $0x9c8] sm:$0xff]
  %v363 = vld [vmem:[%s1 + $0x9d0] sm:$0xff]
  %v364 = vld [vmem:[%s1 + $0x9d8] sm:$0xff]
  %v365 = vld [vmem:[%s1 + $0x9e0] sm:$0xff]
  %v366 = vld [vmem:[%s1 + $0x9e8] sm:$0xff]
  %v367 = vld [vmem:[%s1 + $0x9f0] sm:$0xff]
  %v368 = vld [vmem:[%s1 + $0x9f8] sm:$0xff]
  %v369 = vld [vmem:[%s1 + $0xa00] sm:$0xff]
  %v370 = vld [vmem:[%s1 + $0xa08] sm:$0xff]
  %v371 = vld [vmem:[%s1 + $0xa10] sm:$0xff]
  %v372 = vld [vmem:[%s1 + $0xa18] sm:$0xff]
  %v373 = vld [vmem:[%s1 + $0xa20] sm:$0xff]
  %v374 = vld [vmem:[%s1 + $0xa28] sm:$0xff]
  %v375 = vld [vmem:[%s1 + $0xa30] sm:$0xff]
  %v376 = vld [vmem:[%s1 + $0xa38] sm:$0xff]
  %v377 = vld [vmem:[%s1 + $0xa40] sm:$0xff]
  %v378 = vld [vmem:[%s1 + $0xa48] sm:$0xff]
  %v379 = vld [vmem:[%s1 + $0xa50] sm:$0xff]
  %v380 = vld [vmem:[%s1 + $0xa58] sm:$0xff]
  %v381 = vld [vmem:[%s1 + $0xa60] sm:$0xff]
  %v382 = vld [vmem:[%s1 + $0xa68] sm:$0xff]
  %v383 = vld [vmem:[%s1 + $0xa70] sm:$0xff]
  %v384 = vld [vmem:[%s1 + $0xa78] sm:$0xff]
  %v385 = vld [vmem:[%s1 + $0xa80] sm:$0xff]
  %v386 = vld [vmem:[%s1 + $0xa88] sm:$0xff]
  %v387 = vld [vmem:[%s1 + $0xa90] sm:$0xff]
  %v388 = vld [vmem:[%s1 + $0xa98] sm:$0xff]
  %v389 = vld [vmem:[%s1 + $0xaa0] sm:$0xff]
  %v390 = vld [vmem:[%s1 + $0xaa8] sm:$0xff]
  %v391 = vld [vmem:[%s1 + $0xab0] sm:$0xff]
  %v392 = vld [vmem:[%s1 + $0xab8] sm:$0xff]
  %v393 = vld [vmem:[%s1 + $0xac0] sm:$0xff]
  %v394 = vld [vmem:[%s1 + $0xac8] sm:$0xff]
  %v395 = vld [vmem:[%s1 + $0xad0] sm:$0xff]
  %v396 = vld [vmem:[%s1 + $0xad8] sm:$0xff]
  %v397 = vld [vmem:[%s1 + $0xae0] sm:$0xff]
  %v398 = vld [vmem:[%s1 + $0xae8] sm:$0xff]
  %v399 = vld [vmem:[%s1 + $0xaf0] sm:$0xff]
  %v400 = vld [vmem:[%s1 + $0xaf8] sm:$0xff]
  %v401 = vld [vmem:[%s1 + $0xb00] sm:$0xff]
  %v402 = vld [vmem:[%s1 + $0xb08] sm:$0xff]
  %v403 = vld [vmem:[%s1 + $0xb10] sm:$0xff]
  %v404 = vld [vmem:[%s1 + $0xb18] sm:$0xff]
  %v405 = vld [vmem:[%s1 + $0xb20] sm:$0xff]
  %v406 = vld [vmem:[%s1 + $0xb28] sm:$0xff]
  %v407 = vld [vmem:[%s1 + $0xb30] sm:$0xff]
  %v408 = vld [vmem:[%s1 + $0xb38] sm:$0xff]
  %v409 = vld [vmem:[%s1 + $0xb40] sm:$0xff]
  %v410 = vld [vmem:[%s1 + $0xb48] sm:$0xff]
  %v411 = vld [vmem:[%s1 + $0xb50] sm:$0xff]
  %v412 = vld [vmem:[%s1 + $0xb58] sm:$0xff]
  %v413 = vld [vmem:[%s1 + $0xb60] sm:$0xff]
  %v414 = vld [vmem:[%s1 + $0xb68] sm:$0xff]
  %v415 = vld [vmem:[%s1 + $0xb70] sm:$0xff]
  %v416 = vld [vmem:[%s1 + $0xb78] sm:$0xff]
  %v417 = vld [vmem:[%s1 + $0xb80] sm:$0xff]
  %v418 = vld [vmem:[%s1 + $0xb88] sm:$0xff]
  %v419 = vld [vmem:[%s1 + $0xb90] sm:$0xff]
  %v420 = vld [vmem:[%s1 + $0xb98] sm:$0xff]
  %v421 = vld [vmem:[%s1 + $0xba0] sm:$0xff]
  %v422 = vld [vmem:[%s1 + $0xba8] sm:$0xff]
  %v423 = vld [vmem:[%s1 + $0xbb0] sm:$0xff]
  %v424 = vld [vmem:[%s1 + $0xbb8] sm:$0xff]
  %v425 = vld [vmem:[%s1 + $0xbc0] sm:$0xff]
  %v426 = vld [vmem:[%s1 + $0xbc8] sm:$0xff]
  %v427 = vld [vmem:[%s1 + $0xbd0] sm:$0xff]
  %v428 = vld [vmem:[%s1 + $0xbd8] sm:$0xff]
  %v429 = vld [vmem:[%s1 + $0xbe0] sm:$0xff]
  %v430 = vld [vmem:[%s1 + $0xbe8] sm:$0xff]
  %v431 = vld [vmem:[%s1 + $0xbf0] sm:$0xff]
  %v432 = vld [vmem:[%s1 + $0xbf8] sm:$0xff]
  %v433 = vld [vmem:[%s1 + $0xc00] sm:$0xff]
  %v434 = vld [vmem:[%s1 + $0xc08] sm:$0xff]
  %v435 = vld [vmem:[%s1 + $0xc10] sm:$0xff]
  %v436 = vld [vmem:[%s1 + $0xc18] sm:$0xff]
  %v437 = vld [vmem:[%s1 + $0xc20] sm:$0xff]
  %v438 = vld [vmem:[%s1 + $0xc28] sm:$0xff]
  %v439 = vld [vmem:[%s1 + $0xc30] sm:$0xff]
  %v440 = vld [vmem:[%s1 + $0xc38] sm:$0xff]
  %v441 = vld [vmem:[%s1 + $0xc40] sm:$0xff]
  %v442 = vld [vmem:[%s1 + $0xc48] sm:$0xff]
  %v443 = vld [vmem:[%s1 + $0xc50] sm:$0xff]
  %v444 = vld [vmem:[%s1 + $0xc58] sm:$0xff]
  %v445 = vld [vmem:[%s1 + $0xc60] sm:$0xff]
  %v446 = vld [vmem:[%s1 + $0xc68] sm:$0xff]
  %v447 = vld [vmem:[%s1 + $0xc70] sm:$0xff]
  %v448 = vld [vmem:[%s1 + $0xc78] sm:$0xff]
  %v449 = vld [vmem:[%s1 + $0xc80] sm:$0xff]
  %v450 = vld [vmem:[%s1 + $0xc88] sm:$0xff]
  %v451 = vld [vmem:[%s1 + $0xc90] sm:$0xff]
  %v452 = vld [vmem:[%s1 + $0xc98] sm:$0xff]
  %v453 = vld [vmem:[%s1 + $0xca0] sm:$0xff]
  %v454 = vld [vmem:[%s1 + $0xca8] sm:$0xff]
  %v455 = vld [vmem:[%s1 + $0xcb0] sm:$0xff]
  %v456 = vld [vmem:[%s1 + $0xcb8] sm:$0xff]
  %v457 = vld [vmem:[%s1 + $0xcc0] sm:$0xff]
  %v458 = vld [vmem:[%s1 + $0xcc8] sm:$0xff]
  %v459 = vld [vmem:[%s1 + $0xcd0] sm:$0xff]
  %v460 = vld [vmem:[%s1 + $0xcd8] sm:$0xff]
  %v461 = vld [vmem:[%s1 + $0xce0] sm:$0xff]
  %v462 = vld [vmem:[%s1 + $0xce8] sm:$0xff]
  %v463 = vld [vmem:[%s1 + $0xcf0] sm:$0xff]
  %v464 = vld [vmem:[%s1 + $0xcf8] sm:$0xff]
  %v465 = vld [vmem:[%s1 + $0xd00] sm:$0xff]
  %v466 = vld [vmem:[%s1 + $0xd08] sm:$0xff]
  %v467 = vld [vmem:[%s1 + $0xd10] sm:$0xff]
  %v468 = vld [vmem:[%s1 + $0xd18] sm:$0xff]
  %v469 = vld [vmem:[%s1 + $0xd20] sm:$0xff]
  %v470 = vld [vmem:[%s1 + $0xd28] sm:$0xff]
  %v471 = vld [vmem:[%s1 + $0xd30] sm:$0xff]
  %v472 = vld [vmem:[%s1 + $0xd38] sm:$0xff]
  %v473 = vld [vmem:[%s1 + $0xd40] sm:$0xff]
  %v474 = vld [vmem:[%s1 + $0xd48] sm:$0xff]
  %v475 = vld [vmem:[%s1 + $0xd50] sm:$0xff]
  %v476 = vld [vmem:[%s1 + $0xd58] sm:$0xff]
  %v477 = vld [vmem:[%s1 + $0xd60] sm:$0xff]
  %v478 = vld [vmem:[%s1 + $0xd68] sm:$0xff]
  %v479 = vld [vmem:[%s1 + $0xd70] sm:$0xff]
  %v480 = vld [vmem:[%s1 + $0xd78] sm:$0xff]
  %v481 = vld [vmem:[%s1 + $0xd80] sm:$0xff]
  %v482 = vld [vmem:[%s1 + $0xd88] sm:$0xff]
  %v483 = vld [vmem:[%s1 + $0xd90] sm:$0xff]
  %v484 = vld [vmem:[%s1 + $0xd98] sm:$0xff]
  %v485 = vld [vmem:[%s1 + $0xda0] sm:$0xff]
  %v486 = vld [vmem:[%s1 + $0xda8] sm:$0xff]
  %v487 = vld [vmem:[%s1 + $0xdb0] sm:$0xff]
  %v488 = vld [vmem:[%s1 + $0xdb8] sm:$0xff]
  %v489 = vld [vmem:[%s1 + $0xdc0] sm:$0xff]
  %v490 = vld [vmem:[%s1 + $0xdc8] sm:$0xff]
  %v491 = vld [vmem:[%s1 + $0xdd0] sm:$0xff]
  %v492 = vld [vmem:[%s1 + $0xdd8] sm:$0xff]
  %v493 = vld [vmem:[%s1 + $0xde0] sm:$0xff]
  %v494 = vld [vmem:[%s1 + $0xde8] sm:$0xff]
  %v495 = vld [vmem:[%s1 + $0xdf0] sm:$0xff]
  %v496 = vld [vmem:[%s1 + $0xdf8] sm:$0xff]
  %v497 = vld [vmem:[%s1 + $0xe00] sm:$0xff]
  %v498 = vld [vmem:[%s1 + $0xe08] sm:$0xff]
  %v499 = vld [vmem:[%s1 + $0xe10] sm:$0xff]
  %v500 = vld [vmem:[%s1 + $0xe18] sm:$0xff]
  %v501 = vld [vmem:[%s1 + $0xe20] sm:$0xff]
  %v502 = vld [vmem:[%s1 + $0xe28] sm:$0xff]
  %v503 = vld [vmem:[%s1 + $0xe30] sm:$0xff]
  %v504 = vld [vmem:[%s1 + $0xe38] sm:$0xff]
  %v505 = vld [vmem:[%s1 + $0xe40] sm:$0xff]
  %v506 = vld [vmem:[%s1 + $0xe48] sm:$0xff]
  %v507 = vld [vmem:[%s1 + $0xe50] sm:$0xff]
  %v508 = vld [vmem:[%s1 + $0xe58] sm:$0xff]
  %v509 = vld [vmem:[%s1 + $0xe60] sm:$0xff]
  %v510 = vld [vmem:[%s1 + $0xe68] sm:$0xff]
  %v511 = vld [vmem:[%s1 + $0xe70] sm:$0xff]
  %v512 = vld [vmem:[%s1 + $0xe78] sm:$0xff]
  %v513 = vld [vmem:[%s1 + $0xe80] sm:$0xff]
  %v514 = vld [vmem:[%s1 + $0xe88] sm:$0xff]
  %v515 = vld [vmem:[%s1 + $0xe90] sm:$0xff]
  %v516 = vld [vmem:[%s1 + $0xe98] sm:$0xff]
  %v517 = vld [vmem:[%s1 + $0xea0] sm:$0xff]
  %v518 = vld [vmem:[%s1 + $0xea8] sm:$0xff]
  %v519 = vld [vmem:[%s1 + $0xeb0] sm:$0xff]
  %v520 = vld [vmem:[%s1 + $0xeb8] sm:$0xff]
  %v521 = vld [vmem:[%s1 + $0xec0] sm:$0xff]
  %v522 = vld [vmem:[%s1 + $0xec8] sm:$0xff]
  %v523 = vld [vmem:[%s1 + $0xed0] sm:$0xff]
  %v524 = vld [vmem:[%s1 + $0xed8] sm:$0xff]
  %v525 = vld [vmem:[%s1 + $0xee0] sm:$0xff]
  %v526 = vld [vmem:[%s1 + $0xee8] sm:$0xff]
  %v527 = vld [vmem:[%s1 + $0xef0] sm:$0xff]
  %v528 = vld [vmem:[%s1 + $0xef8] sm:$0xff]
  %v529 = vld [vmem:[%s1 + $0xf00] sm:$0xff]
  %v530 = vld [vmem:[%s1 + $0xf08] sm:$0xff]
  %v531 = vld [vmem:[%s1 + $0xf10] sm:$0xff]
  %v532 = vld [vmem:[%s1 + $0xf18] sm:$0xff]
  %v533 = vld [vmem:[%s1 + $0xf20] sm:$0xff]
  %v534 = vld [vmem:[%s1 + $0xf28] sm:$0xff]
  %v535 = vld [vmem:[%s1 + $0xf30] sm:$0xff]
  %v536 = vld [vmem:[%s1 + $0xf38] sm:$0xff]
  %v537 = vld [vmem:[%s1 + $0xf40] sm:$0xff]
  %v538 = vld [vmem:[%s1 + $0xf48] sm:$0xff]
  %v539 = vld [vmem:[%s1 + $0xf50] sm:$0xff]
  %v540 = vld [vmem:[%s1 + $0xf58] sm:$0xff]
  %v541 = vld [vmem:[%s1 + $0xf60] sm:$0xff]
  %v542 = vld [vmem:[%s1 + $0xf68] sm:$0xff]
  %v543 = vld [vmem:[%s1 + $0xf70] sm:$0xff]
  %v544 = vld [vmem:[%s1 + $0xf78] sm:$0xff]
  %v545 = vld [vmem:[%s1 + $0xf80] sm:$0xff]
  %v546 = vld [vmem:[%s1 + $0xf88] sm:$0xff]
  %v547 = vld [vmem:[%s1 + $0xf90] sm:$0xff]
  %v548 = vld [vmem:[%s1 + $0xf98] sm:$0xff]
  %v549 = vld [vmem:[%s1 + $0xfa0] sm:$0xff]
  %v550 = vld [vmem:[%s1 + $0xfa8] sm:$0xff]
  %v551 = vld [vmem:[%s1 + $0xfb0] sm:$0xff]
  %v552 = vld [vmem:[%s1 + $0xfb8] sm:$0xff]
  %v553 = vld [vmem:[%s1 + $0xfc0] sm:$0xff]
  %v554 = vld [vmem:[%s1 + $0xfc8] sm:$0xff]
  %v555 = vld [vmem:[%s1 + $0xfd0] sm:$0xff]
  %v556 = vld [vmem:[%s1 + $0xfd8] sm:$0xff]
  %v557 = vld [vmem:[%s1 + $0xfe0] sm:$0xff]
  %v558 = vld [vmem:[%s1 + $0xfe8] sm:$0xff]
  %v559 = vld [vmem:[%s1 + $0xff0] sm:$0xff]
  %v560 = vld [vmem:[%s1 + $0xff8] sm:$0xff]
  %v561 = vld [vmem:[%s1 + $0x1000] sm:$0xff]
  %v562 = vld [vmem:[%s1 + $0x1008] sm:$0xff]
  %v563 = vld [vmem:[%s1 + $0x1010] sm:$0xff]
  %v564 = vld [vmem:[%s1 + $0x1018] sm:$0xff]
  %v565 = vld [vmem:[%s1 + $0x1020] sm:$0xff]
  %v566 = vld [vmem:[%s1 + $0x1028] sm:$0xff]
  %v567 = vld [vmem:[%s1 + $0x1030] sm:$0xff]
  %v568 = vld [vmem:[%s1 + $0x1038] sm:$0xff]
  %v569 = vld [vmem:[%s1 + $0x1040] sm:$0xff]
  %v570 = vld [vmem:[%s1 + $0x1048] sm:$0xff]
  %v571 = vld [vmem:[%s1 + $0x1050] sm:$0xff]
  %v572 = vld [vmem:[%s1 + $0x1058] sm:$0xff]
  %v573 = vld [vmem:[%s1 + $0x1060] sm:$0xff]
  %v574 = vld [vmem:[%s1 + $0x1068] sm:$0xff]
  %v575 = vld [vmem:[%s1 + $0x1070] sm:$0xff]
  %v576 = vld [vmem:[%s1 + $0x1078] sm:$0xff]
  %v577 = vld [vmem:[%s1 + $0x1080] sm:$0xff]
  %v578 = vld [vmem:[%s1 + $0x1088] sm:$0xff]
  %v579 = vld [vmem:[%s1 + $0x1090] sm:$0xff]
  %v580 = vld [vmem:[%s1 + $0x1098] sm:$0xff]
  %v581 = vld [vmem:[%s1 + $0x10a0] sm:$0xff]
  %v582 = vld [vmem:[%s1 + $0x10a8] sm:$0xff]
  %v583 = vld [vmem:[%s1 + $0x10b0] sm:$0xff]
  %v584 = vld [vmem:[%s1 + $0x10b8] sm:$0xff]
  %v585 = vld [vmem:[%s1 + $0x10c0] sm:$0xff]
  %v586 = vld [vmem:[%s1 + $0x10c8] sm:$0xff]
  %v587 = vld [vmem:[%s1 + $0x10d0] sm:$0xff]
  %v588 = vld [vmem:[%s1 + $0x10d8] sm:$0xff]
  %v589 = vld [vmem:[%s1 + $0x10e0] sm:$0xff]
  %v590 = vld [vmem:[%s1 + $0x10e8] sm:$0xff]
  %v591 = vld [vmem:[%s1 + $0x10f0] sm:$0xff]
  %v592 = vld [vmem:[%s1 + $0x10f8] sm:$0xff]
  %v593 = vld [vmem:[%s1 + $0x1100] sm:$0xff]
  %v594 = vld [vmem:[%s1 + $0x1108] sm:$0xff]
  %v595 = vld [vmem:[%s1 + $0x1110] sm:$0xff]
  %v596 = vld [vmem:[%s1 + $0x1118] sm:$0xff]
  %v597 = vld [vmem:[%s1 + $0x1120] sm:$0xff]
  %v598 = vld [vmem:[%s1 + $0x1128] sm:$0xff]
  %v599 = vld [vmem:[%s1 + $0x1130] sm:$0xff]
  %v600 = vld [vmem:[%s1 + $0x1138] sm:$0xff]
  %v601 = vld [vmem:[%s1 + $0x1140] sm:$0xff]
  %v602 = vld [vmem:[%s1 + $0x1148] sm:$0xff]
  %v603 = vld [vmem:[%s1 + $0x1150] sm:$0xff]
  %v604 = vld [vmem:[%s1 + $0x1158] sm:$0xff]
  %v605 = vld [vmem:[%s1 + $0x1160] sm:$0xff]
  %v606 = vld [vmem:[%s1 + $0x1168] sm:$0xff]
  %v607 = vld [vmem:[%s1 + $0x1170] sm:$0xff]
  %v608 = vld [vmem:[%s1 + $0x1178] sm:$0xff]
  %v609 = vld [vmem:[%s1 + $0x1180] sm:$0xff]
  %v610 = vld [vmem:[%s1 + $0x1188] sm:$0xff]
  %v611 = vld [vmem:[%s1 + $0x1190] sm:$0xff]
  %v612 = vld [vmem:[%s1 + $0x1198] sm:$0xff]
  %v613 = vld [vmem:[%s1 + $0x11a0] sm:$0xff]
  %v614 = vld [vmem:[%s1 + $0x11a8] sm:$0xff]
  %v615 = vld [vmem:[%s1 + $0x11b0] sm:$0xff]
  %v616 = vld [vmem:[%s1 + $0x11b8] sm:$0xff]
  %v617 = vld [vmem:[%s1 + $0x11c0] sm:$0xff]
  %v618 = vld [vmem:[%s1 + $0x11c8] sm:$0xff]
  %v619 = vld [vmem:[%s1 + $0x11d0] sm:$0xff]
  %v620 = vld [vmem:[%s1 + $0x11d8] sm:$0xff]
  %v621 = vld [vmem:[%s1 + $0x11e0] sm:$0xff]
  %v622 = vld [vmem:[%s1 + $0x11e8] sm:$0xff]
  %v623 = vld [vmem:[%s1 + $0x11f0] sm:$0xff]
  %v624 = vld [vmem:[%s1 + $0x11f8] sm:$0xff]
  %v625 = vld [vmem:[%s1 + $0x1200] sm:$0xff]
  %v626 = vld [vmem:[%s1 + $0x1208] sm:$0xff]
  %v627 = vld [vmem:[%s1 + $0x1210] sm:$0xff]
  %v628 = vld [vmem:[%s1 + $0x1218] sm:$0xff]
  %v629 = vld [vmem:[%s1 + $0x1220] sm:$0xff]
  %v630 = vld [vmem:[%s1 + $0x1228] sm:$0xff]
  %v631 = vld [vmem:[%s1 + $0x1230] sm:$0xff]
  %v632 = vld [vmem:[%s1 + $0x1238] sm:$0xff]
  %v633 = vld [vmem:[%s1 + $0x1240] sm:$0xff]
  %v634 = vld [vmem:[%s1 + $0x1248] sm:$0xff]
  %v635 = vld [vmem:[%s1 + $0x1250] sm:$0xff]
  %v636 = vld [vmem:[%s1 + $0x1258] sm:$0xff]
  %v637 = vld [vmem:[%s1 + $0x1260] sm:$0xff]
  %v638 = vld [vmem:[%s1 + $0x1268] sm:$0xff]
  %v639 = vld [vmem:[%s1 + $0x1270] sm:$0xff]
  %v640 = vld [vmem:[%s1 + $0x1278] sm:$0xff]
  %v641 = vld [vmem:[%s1 + $0x1280] sm:$0xff]
  %v642 = vld [vmem:[%s1 + $0x1288] sm:$0xff]
  %v643 = vld [vmem:[%s1 + $0x1290] sm:$0xff]
  %v644 = vld [vmem:[%s1 + $0x1298] sm:$0xff]
  %v645 = vld [vmem:[%s1 + $0x12a0] sm:$0xff]
  %v646 = vld [vmem:[%s1 + $0x12a8] sm:$0xff]
  %v647 = vld [vmem:[%s1 + $0x12b0] sm:$0xff]
  %v648 = vld [vmem:[%s1 + $0x12b8] sm:$0xff]
  %v649 = vld [vmem:[%s1 + $0x12c0] sm:$0xff]
  %v650 = vld [vmem:[%s1 + $0x12c8] sm:$0xff]
  %v651 = vld [vmem:[%s1 + $0x12d0] sm:$0xff]
  %v652 = vld [vmem:[%s1 + $0x12d8] sm:$0xff]
  %v653 = vld [vmem:[%s1 + $0x12e0] sm:$0xff]
  %v654 = vld [vmem:[%s1 + $0x12e8] sm:$0xff]
  %v655 = vld [vmem:[%s1 + $0x12f0] sm:$0xff]
  %v656 = vld [vmem:[%s1 + $0x12f8] sm:$0xff]
  %v657 = vld [vmem:[%s1 + $0x1300] sm:$0xff]
  %v658 = vld [vmem:[%s1 + $0x1308] sm:$0xff]
  %v659 = vld [vmem:[%s1 + $0x1310] sm:$0xff]
  %v660 = vld [vmem:[%s1 + $0x1318] sm:$0xff]
  %v661 = vld [vmem:[%s1 + $0x1320] sm:$0xff]
  %v662 = vld [vmem:[%s1 + $0x1328] sm:$0xff]
  %v663 = vld [vmem:[%s1 + $0x1330] sm:$0xff]
  %v664 = vld [vmem:[%s1 + $0x1338] sm:$0xff]
  %v665 = vld [vmem:[%s1 + $0x1340] sm:$0xff]
  %v666 = vld [vmem:[%s1 + $0x1348] sm:$0xff]
  %v667 = vld [vmem:[%s1 + $0x1350] sm:$0xff]
  %v668 = vld [vmem:[%s1 + $0x1358] sm:$0xff]
  %v669 = vld [vmem:[%s1 + $0x1360] sm:$0xff]
  %v670 = vld [vmem:[%s1 + $0x1368] sm:$0xff]
  %v671 = vld [vmem:[%s1 + $0x1370] sm:$0xff]
  %v672 = vld [vmem:[%s1 + $0x1378] sm:$0xff]
  %v673 = vld [vmem:[%s1 + $0x1380] sm:$0xff]
  %v674 = vld [vmem:[%s1 + $0x1388] sm:$0xff]
  %v675 = vld [vmem:[%s1 + $0x1390] sm:$0xff]
  %v676 = vld [vmem:[%s1 + $0x1398] sm:$0xff]
  %v677 = vld [vmem:[%s1 + $0x13a0] sm:$0xff]
  %v678 = vld [vmem:[%s1 + $0x13a8] sm:$0xff]
  %v679 = vld [vmem:[%s1 + $0x13b0] sm:$0xff]
  %v680 = vld [vmem:[%s1 + $0x13b8] sm:$0xff]
  %v681 = vld [vmem:[%s1 + $0x13c0] sm:$0xff]
  %v682 = vld [vmem:[%s1 + $0x13c8] sm:$0xff]
  %v683 = vld [vmem:[%s1 + $0x13d0] sm:$0xff]
  %v684 = vld [vmem:[%s1 + $0x13d8] sm:$0xff]
  %v685 = vld [vmem:[%s1 + $0x13e0] sm:$0xff]
  %v686 = vld [vmem:[%s1 + $0x13e8] sm:$0xff]
  %v687 = vld [vmem:[%s1 + $0x13f0] sm:$0xff]
  %v688 = vld [vmem:[%s1 + $0x13f8] sm:$0xff]
  %v689 = vld [vmem:[%s1 + $0x1400] sm:$0xff]
  %v690 = vld [vmem:[%s1 + $0x1408] sm:$0xff]
  %v691 = vld [vmem:[%s1 + $0x1410] sm:$0xff]
  %v692 = vld [vmem:[%s1 + $0x1418] sm:$0xff]
  %v693 = vld [vmem:[%s1 + $0x1420] sm:$0xff]
  %v694 = vld [vmem:[%s1 + $0x1428] sm:$0xff]
  %v695 = vld [vmem:[%s1 + $0x1430] sm:$0xff]
  %v696 = vld [vmem:[%s1 + $0x1438] sm:$0xff]
  %v697 = vld [vmem:[%s1 + $0x1440] sm:$0xff]
  %v698 = vld [vmem:[%s1 + $0x1448] sm:$0xff]
  %v699 = vld [vmem:[%s1 + $0x1450] sm:$0xff]
  %v700 = vld [vmem:[%s1 + $0x1458] sm:$0xff]
  %v701 = vld [vmem:[%s1 + $0x1460] sm:$0xff]
  %v702 = vld [vmem:[%s1 + $0x1468] sm:$0xff]
  %v703 = vld [vmem:[%s1 + $0x1470] sm:$0xff]
  %v704 = vld [vmem:[%s1 + $0x1478] sm:$0xff]
  %v705 = vld [vmem:[%s1 + $0x1480] sm:$0xff]
  %v706 = vld [vmem:[%s1 + $0x1488] sm:$0xff]
  %v707 = vld [vmem:[%s1 + $0x1490] sm:$0xff]
  %v708 = vld [vmem:[%s1 + $0x1498] sm:$0xff]
  %v709 = vld [vmem:[%s1 + $0x14a0] sm:$0xff]
  %v710 = vld [vmem:[%s1 + $0x14a8] sm:$0xff]
  %v711 = vld [vmem:[%s1 + $0x14b0] sm:$0xff]
  %v712 = vld [vmem:[%s1 + $0x14b8] sm:$0xff]
  %v713 = vld [vmem:[%s1 + $0x14c0] sm:$0xff]
  %v714 = vld [vmem:[%s1 + $0x14c8] sm:$0xff]
  %v715 = vld [vmem:[%s1 + $0x14d0] sm:$0xff]
  %v716 = vld [vmem:[%s1 + $0x14d8] sm:$0xff]
  %v717 = vld [vmem:[%s1 + $0x14e0] sm:$0xff]
  %v718 = vld [vmem:[%s1 + $0x14e8] sm:$0xff]
  %v719 = vld [vmem:[%s1 + $0x14f0] sm:$0xff]
  %v720 = vld [vmem:[%s1 + $0x14f8] sm:$0xff]
  %v721 = vld [vmem:[%s1 + $0x1500] sm:$0xff]
  %v722 = vld [vmem:[%s1 + $0x1508] sm:$0xff]
  %v723 = vld [vmem:[%s1 + $0x1510] sm:$0xff]
  %v724 = vld [vmem:[%s1 + $0x1518] sm:$0xff]
  %v725 = vld [vmem:[%s1 + $0x1520] sm:$0xff]
  %v726 = vld [vmem:[%s1 + $0x1528] sm:$0xff]
  %v727 = vld [vmem:[%s1 + $0x1530] sm:$0xff]
  %v728 = vld [vmem:[%s1 + $0x1538] sm:$0xff]
  %v729 = vld [vmem:[%s1 + $0x1540] sm:$0xff]
  %v730 = vld [vmem:[%s1 + $0x1548] sm:$0xff]
  %v731 = vld [vmem:[%s1 + $0x1550] sm:$0xff]
  %v732 = vld [vmem:[%s1 + $0x1558] sm:$0xff]
  %v733 = vld [vmem:[%s1 + $0x1560] sm:$0xff]
  %v734 = vld [vmem:[%s1 + $0x1568] sm:$0xff]
  %v735 = vld [vmem:[%s1 + $0x1570] sm:$0xff]
  %v736 = vld [vmem:[%s1 + $0x1578] sm:$0xff]
  %v737 = vld [vmem:[%s1 + $0x1580] sm:$0xff]
  %v738 = vld [vmem:[%s1 + $0x1588] sm:$0xff]
  %v739 = vld [vmem:[%s1 + $0x1590] sm:$0xff]
  %v740 = vld [vmem:[%s1 + $0x1598] sm:$0xff]
  %v741 = vld [vmem:[%s1 + $0x15a0] sm:$0xff]
  %v742 = vld [vmem:[%s1 + $0x15a8] sm:$0xff]
  %v743 = vld [vmem:[%s1 + $0x15b0] sm:$0xff]
  %v744 = vld [vmem:[%s1 + $0x15b8] sm:$0xff]
  %v745 = vld [vmem:[%s1 + $0x15c0] sm:$0xff]
  %v746 = vld [vmem:[%s1 + $0x15c8] sm:$0xff]
  %v747 = vld [vmem:[%s1 + $0x15d0] sm:$0xff]
  %v748 = vld [vmem:[%s1 + $0x15d8] sm:$0xff]
  %v749 = vld [vmem:[%s1 + $0x15e0] sm:$0xff]
  %v750 = vld [vmem:[%s1 + $0x15e8] sm:$0xff]
  %v751 = vld [vmem:[%s1 + $0x15f0] sm:$0xff]
  %v752 = vld [vmem:[%s1 + $0x15f8] sm:$0xff]
  %v753 = vld [vmem:[%s1 + $0x1600] sm:$0xff]
  %v754 = vld [vmem:[%s1 + $0x1608] sm:$0xff]
  %v755 = vld [vmem:[%s1 + $0x1610] sm:$0xff]
  %v756 = vld [vmem:[%s1 + $0x1618] sm:$0xff]
  %v757 = vld [vmem:[%s1 + $0x1620] sm:$0xff]
  %v758 = vld [vmem:[%s1 + $0x1628] sm:$0xff]
  %v759 = vld [vmem:[%s1 + $0x1630] sm:$0xff]
  %v760 = vld [vmem:[%s1 + $0x1638] sm:$0xff]
  %v761 = vld [vmem:[%s1 + $0x1640] sm:$0xff]
  %v762 = vld [vmem:[%s1 + $0x1648] sm:$0xff]
  %v763 = vld [vmem:[%s1 + $0x1650] sm:$0xff]
  %v764 = vld [vmem:[%s1 + $0x1658] sm:$0xff]
  %v765 = vld [vmem:[%s1 + $0x1660] sm:$0xff]
  %v766 = vld [vmem:[%s1 + $0x1668] sm:$0xff]
  %v767 = vld [vmem:[%s1 + $0x1670] sm:$0xff]
  %v768 = vld [vmem:[%s1 + $0x1678] sm:$0xff]
  %v769 = vld [vmem:[%s1 + $0x1680] sm:$0xff]
  %v770 = vld [vmem:[%s1 + $0x1688] sm:$0xff]
  %v771 = vld [vmem:[%s1 + $0x1690] sm:$0xff]
  %v772 = vld [vmem:[%s1 + $0x1698] sm:$0xff]
  %v773 = vld [vmem:[%s1 + $0x16a0] sm:$0xff]
  %v774 = vld [vmem:[%s1 + $0x16a8] sm:$0xff]
  %v775 = vld [vmem:[%s1 + $0x16b0] sm:$0xff]
  %v776 = vld [vmem:[%s1 + $0x16b8] sm:$0xff]
  %v777 = vld [vmem:[%s1 + $0x16c0] sm:$0xff]
  %v778 = vld [vmem:[%s1 + $0x16c8] sm:$0xff]
  %v779 = vld [vmem:[%s1 + $0x16d0] sm:$0xff]
  %v780 = vld [vmem:[%s1 + $0x16d8] sm:$0xff]
  %v781 = vld [vmem:[%s1 + $0x16e0] sm:$0xff]
  %v782 = vld [vmem:[%s1 + $0x16e8] sm:$0xff]
  %v783 = vld [vmem:[%s1 + $0x16f0] sm:$0xff]
  %v784 = vld [vmem:[%s1 + $0x16f8] sm:$0xff]
  %v785 = vld [vmem:[%s1 + $0x1700] sm:$0xff]
  %v786 = vld [vmem:[%s1 + $0x1708] sm:$0xff]
  %v787 = vld [vmem:[%s1 + $0x1710] sm:$0xff]
  %v788 = vld [vmem:[%s1 + $0x1718] sm:$0xff]
  %v789 = vld [vmem:[%s1 + $0x1720] sm:$0xff]
  %v790 = vld [vmem:[%s1 + $0x1728] sm:$0xff]
  %v791 = vld [vmem:[%s1 + $0x1730] sm:$0xff]
  %v792 = vld [vmem:[%s1 + $0x1738] sm:$0xff]
  %v793 = vld [vmem:[%s1 + $0x1740] sm:$0xff]
  %v794 = vld [vmem:[%s1 + $0x1748] sm:$0xff]
  %v795 = vld [vmem:[%s1 + $0x1750] sm:$0xff]
  %v796 = vld [vmem:[%s1 + $0x1758] sm:$0xff]
  %v797 = vld [vmem:[%s1 + $0x1760] sm:$0xff]
  %v798 = vld [vmem:[%s1 + $0x1768] sm:$0xff]
  %v799 = vld [vmem:[%s1 + $0x1770] sm:$0xff]
  %v800 = vld [vmem:[%s1 + $0x1778] sm:$0xff]
  %v801 = vld [vmem:[%s1 + $0x1780] sm:$0xff]
  %v802 = vld [vmem:[%s1 + $0x1788] sm:$0xff]
  %v803 = vld [vmem:[%s1 + $0x1790] sm:$0xff]
  %v804 = vld [vmem:[%s1 + $0x1798] sm:$0xff]
  %v805 = vld [vmem:[%s1 + $0x17a0] sm:$0xff]
  %v806 = vld [vmem:[%s1 + $0x17a8] sm:$0xff]
  %v807 = vld [vmem:[%s1 + $0x17b0] sm:$0xff]
  %v808 = vld [vmem:[%s1 + $0x17b8] sm:$0xff]
  %v809 = vld [vmem:[%s1 + $0x17c0] sm:$0xff]
  %v810 = vld [vmem:[%s1 + $0x17c8] sm:$0xff]
  %v811 = vld [vmem:[%s1 + $0x17d0] sm:$0xff]
  %v812 = vld [vmem:[%s1 + $0x17d8] sm:$0xff]
  %v813 = vld [vmem:[%s1 + $0x17e0] sm:$0xff]
  %v814 = vld [vmem:[%s1 + $0x17e8] sm:$0xff]
  %v815 = vld [vmem:[%s1 + $0x17f0] sm:$0xff]
  %v816 = vld [vmem:[%s1 + $0x17f8] sm:$0xff]
  %v817 = vld [vmem:[%s1 + $0x1800] sm:$0xff]
  %v818 = vld [vmem:[%s1 + $0x1808] sm:$0xff]
  %v819 = vld [vmem:[%s1 + $0x1810] sm:$0xff]
  %v820 = vld [vmem:[%s1 + $0x1818] sm:$0xff]
  %v821 = vld [vmem:[%s1 + $0x1820] sm:$0xff]
  %v822 = vld [vmem:[%s1 + $0x1828] sm:$0xff]
  %v823 = vld [vmem:[%s1 + $0x1830] sm:$0xff]
  %v824 = vld [vmem:[%s1 + $0x1838] sm:$0xff]
  %v825 = vld [vmem:[%s1 + $0x1840] sm:$0xff]
  %v826 = vld [vmem:[%s1 + $0x1848] sm:$0xff]
  %v827 = vld [vmem:[%s1 + $0x1850] sm:$0xff]
  %v828 = vld [vmem:[%s1 + $0x1858] sm:$0xff]
  %v829 = vld [vmem:[%s1 + $0x1860] sm:$0xff]
  %v830 = vld [vmem:[%s1 + $0x1868] sm:$0xff]
  %v831 = vld [vmem:[%s1 + $0x1870] sm:$0xff]
  %v832 = vld [vmem:[%s1 + $0x1878] sm:$0xff]
  %v833 = vld [vmem:[%s1 + $0x1880] sm:$0xff]
  %v834 = vld [vmem:[%s1 + $0x1888] sm:$0xff]
  %v835 = vld [vmem:[%s1 + $0x1890] sm:$0xff]
  %v836 = vld [vmem:[%s1 + $0x1898] sm:$0xff]
  %v837 = vld [vmem:[%s1 + $0x18a0] sm:$0xff]
  %v838 = vld [vmem:[%s1 + $0x18a8] sm:$0xff]
  %v839 = vld [vmem:[%s1 + $0x18b0] sm:$0xff]
  %v840 = vld [vmem:[%s1 + $0x18b8] sm:$0xff]
  %v841 = vld [vmem:[%s1 + $0x18c0] sm:$0xff]
  %v842 = vld [vmem:[%s1 + $0x18c8] sm:$0xff]
  %v843 = vld [vmem:[%s1 + $0x18d0] sm:$0xff]
  %v844 = vld [vmem:[%s1 + $0x18d8] sm:$0xff]
  %v845 = vld [vmem:[%s1 + $0x18e0] sm:$0xff]
  %v846 = vld [vmem:[%s1 + $0x18e8] sm:$0xff]
  %v847 = vld [vmem:[%s1 + $0x18f0] sm:$0xff]
  %v848 = vld [vmem:[%s1 + $0x18f8] sm:$0xff]
  %v849 = vld [vmem:[%s1 + $0x1900] sm:$0xff]
  %v850 = vld [vmem:[%s1 + $0x1908] sm:$0xff]
  %v851 = vld [vmem:[%s1 + $0x1910] sm:$0xff]
  %v852 = vld [vmem:[%s1 + $0x1918] sm:$0xff]
  %v853 = vld [vmem:[%s1 + $0x1920] sm:$0xff]
  %v854 = vld [vmem:[%s1 + $0x1928] sm:$0xff]
  %v855 = vld [vmem:[%s1 + $0x1930] sm:$0xff]
  %v856 = vld [vmem:[%s1 + $0x1938] sm:$0xff]
  %v857 = vld [vmem:[%s1 + $0x1940] sm:$0xff]
  %v858 = vld [vmem:[%s1 + $0x1948] sm:$0xff]
  %v859 = vld [vmem:[%s1 + $0x1950] sm:$0xff]
  %v860 = vld [vmem:[%s1 + $0x1958] sm:$0xff]
  %v861 = vld [vmem:[%s1 + $0x1960] sm:$0xff]
  %v862 = vld [vmem:[%s1 + $0x1968] sm:$0xff]
  %v863 = vld [vmem:[%s1 + $0x1970] sm:$0xff]
  %v864 = vld [vmem:[%s1 + $0x1978] sm:$0xff]
  %v865 = vld [vmem:[%s1 + $0x1980] sm:$0xff]
  %v866 = vld [vmem:[%s1 + $0x1988] sm:$0xff]
  %v867 = vld [vmem:[%s1 + $0x1990] sm:$0xff]
  %v868 = vld [vmem:[%s1 + $0x1998] sm:$0xff]
  %v869 = vld [vmem:[%s1 + $0x19a0] sm:$0xff]
  %v870 = vld [vmem:[%s1 + $0x19a8] sm:$0xff]
  %v871 = vld [vmem:[%s1 + $0x19b0] sm:$0xff]
  %v872 = vld [vmem:[%s1 + $0x19b8] sm:$0xff]
  %v873 = vld [vmem:[%s1 + $0x19c0] sm:$0xff]
  %v874 = vld [vmem:[%s1 + $0x19c8] sm:$0xff]
  %v875 = vld [vmem:[%s1 + $0x19d0] sm:$0xff]
  %v876 = vld [vmem:[%s1 + $0x19d8] sm:$0xff]
  %v877 = vld [vmem:[%s1 + $0x19e0] sm:$0xff]
  %v878 = vld [vmem:[%s1 + $0x19e8] sm:$0xff]
  %v879 = vld [vmem:[%s1 + $0x19f0] sm:$0xff]
  %v880 = vld [vmem:[%s1 + $0x19f8] sm:$0xff]
  %v881 = vld [vmem:[%s1 + $0x1a00] sm:$0xff]
  %v882 = vld [vmem:[%s1 + $0x1a08] sm:$0xff]
  %v883 = vld [vmem:[%s1 + $0x1a10] sm:$0xff]
  %v884 = vld [vmem:[%s1 + $0x1a18] sm:$0xff]
  %v885 = vld [vmem:[%s1 + $0x1a20] sm:$0xff]
  %v886 = vld [vmem:[%s1 + $0x1a28] sm:$0xff]
  %v887 = vld [vmem:[%s1 + $0x1a30] sm:$0xff]
  %v888 = vld [vmem:[%s1 + $0x1a38] sm:$0xff]
  %v889 = vld [vmem:[%s1 + $0x1a40] sm:$0xff]
  %v890 = vld [vmem:[%s1 + $0x1a48] sm:$0xff]
  %v891 = vld [vmem:[%s1 + $0x1a50] sm:$0xff]
  %v892 = vld [vmem:[%s1 + $0x1a58] sm:$0xff]
  %v893 = vld [vmem:[%s1 + $0x1a60] sm:$0xff]
  %v894 = vld [vmem:[%s1 + $0x1a68] sm:$0xff]
  %v895 = vld [vmem:[%s1 + $0x1a70] sm:$0xff]
  %v896 = vld [vmem:[%s1 + $0x1a78] sm:$0xff]
  %v897 = vld [vmem:[%s1 + $0x1a80] sm:$0xff]
  %v898 = vld [vmem:[%s1 + $0x1a88] sm:$0xff]
  %v899 = vld [vmem:[%s1 + $0x1a90] sm:$0xff]
  %v900 = vld [vmem:[%s1 + $0x1a98] sm:$0xff]
  %v901 = vld [vmem:[%s1 + $0x1aa0] sm:$0xff]
  %v902 = vld [vmem:[%s1 + $0x1aa8] sm:$0xff]
  %v903 = vld [vmem:[%s1 + $0x1ab0] sm:$0xff]
  %v904 = vld [vmem:[%s1 + $0x1ab8] sm:$0xff]
  %v905 = vld [vmem:[%s1 + $0x1ac0] sm:$0xff]
  %v906 = vld [vmem:[%s1 + $0x1ac8] sm:$0xff]
  %v907 = vld [vmem:[%s1 + $0x1ad0] sm:$0xff]
  %v908 = vld [vmem:[%s1 + $0x1ad8] sm:$0xff]
  %v909 = vld [vmem:[%s1 + $0x1ae0] sm:$0xff]
  %v910 = vld [vmem:[%s1 + $0x1ae8] sm:$0xff]
  %v911 = vld [vmem:[%s1 + $0x1af0] sm:$0xff]
  %v912 = vld [vmem:[%s1 + $0x1af8] sm:$0xff]
  %v913 = vld [vmem:[%s1 + $0x1b00] sm:$0xff]
  %v914 = vld [vmem:[%s1 + $0x1b08] sm:$0xff]
  %v915 = vld [vmem:[%s1 + $0x1b10] sm:$0xff]
  %v916 = vld [vmem:[%s1 + $0x1b18] sm:$0xff]
  %v917 = vld [vmem:[%s1 + $0x1b20] sm:$0xff]
  %v918 = vld [vmem:[%s1 + $0x1b28] sm:$0xff]
  %v919 = vld [vmem:[%s1 + $0x1b30] sm:$0xff]
  %v920 = vld [vmem:[%s1 + $0x1b38] sm:$0xff]
  %v921 = vld [vmem:[%s1 + $0x1b40] sm:$0xff]
  %v922 = vld [vmem:[%s1 + $0x1b48] sm:$0xff]
  %v923 = vld [vmem:[%s1 + $0x1b50] sm:$0xff]
  %v924 = vld [vmem:[%s1 + $0x1b58] sm:$0xff]
  %v925 = vld [vmem:[%s1 + $0x1b60] sm:$0xff]
  %v926 = vld [vmem:[%s1 + $0x1b68] sm:$0xff]
  %v927 = vld [vmem:[%s1 + $0x1b70] sm:$0xff]
  %v928 = vld [vmem:[%s1 + $0x1b78] sm:$0xff]
  %v929 = vld [vmem:[%s1 + $0x1b80] sm:$0xff]
  %v930 = vld [vmem:[%s1 + $0x1b88] sm:$0xff]
  %v931 = vld [vmem:[%s1 + $0x1b90] sm:$0xff]
  %v932 = vld [vmem:[%s1 + $0x1b98] sm:$0xff]
  %v933 = vld [vmem:[%s1 + $0x1ba0] sm:$0xff]
  %v934 = vld [vmem:[%s1 + $0x1ba8] sm:$0xff]
  %v935 = vld [vmem:[%s1 + $0x1bb0] sm:$0xff]
  %v936 = vld [vmem:[%s1 + $0x1bb8] sm:$0xff]
  %v937 = vld [vmem:[%s1 + $0x1bc0] sm:$0xff]
  %v938 = vld [vmem:[%s1 + $0x1bc8] sm:$0xff]
  %v939 = vld [vmem:[%s1 + $0x1bd0] sm:$0xff]
  %v940 = vld [vmem:[%s1 + $0x1bd8] sm:$0xff]
  %v941 = vld [vmem:[%s1 + $0x1be0] sm:$0xff]
  %v942 = vld [vmem:[%s1 + $0x1be8] sm:$0xff]
  %v943 = vld [vmem:[%s1 + $0x1bf0] sm:$0xff]
  %v944 = vld [vmem:[%s1 + $0x1bf8] sm:$0xff]
  %v945 = vld [vmem:[%s1 + $0x1c00] sm:$0xff]
  %v946 = vld [vmem:[%s1 + $0x1c08] sm:$0xff]
  %v947 = vld [vmem:[%s1 + $0x1c10] sm:$0xff]
  %v948 = vld [vmem:[%s1 + $0x1c18] sm:$0xff]
  %v949 = vld [vmem:[%s1 + $0x1c20] sm:$0xff]
  %v950 = vld [vmem:[%s1 + $0x1c28] sm:$0xff]
  %v951 = vld [vmem:[%s1 + $0x1c30] sm:$0xff]
  %v952 = vld [vmem:[%s1 + $0x1c38] sm:$0xff]
  %v953 = vld [vmem:[%s1 + $0x1c40] sm:$0xff]
  %v954 = vld [vmem:[%s1 + $0x1c48] sm:$0xff]
  %v955 = vld [vmem:[%s1 + $0x1c50] sm:$0xff]
  %v956 = vld [vmem:[%s1 + $0x1c58] sm:$0xff]
  %v957 = vld [vmem:[%s1 + $0x1c60] sm:$0xff]
  %v958 = vld [vmem:[%s1 + $0x1c68] sm:$0xff]
  %v959 = vld [vmem:[%s1 + $0x1c70] sm:$0xff]
  %v960 = vld [vmem:[%s1 + $0x1c78] sm:$0xff]
  %v961 = vld [vmem:[%s1 + $0x1c80] sm:$0xff]
  %v962 = vld [vmem:[%s1 + $0x1c88] sm:$0xff]
  %v963 = vld [vmem:[%s1 + $0x1c90] sm:$0xff]
  %v964 = vld [vmem:[%s1 + $0x1c98] sm:$0xff]
  %v965 = vld [vmem:[%s1 + $0x1ca0] sm:$0xff]
  %v966 = vld [vmem:[%s1 + $0x1ca8] sm:$0xff]
  %v967 = vld [vmem:[%s1 + $0x1cb0] sm:$0xff]
  %v968 = vld [vmem:[%s1 + $0x1cb8] sm:$0xff]
  %v969 = vld [vmem:[%s1 + $0x1cc0] sm:$0xff]
  %v970 = vld [vmem:[%s1 + $0x1cc8] sm:$0xff]
  %v971 = vld [vmem:[%s1 + $0x1cd0] sm:$0xff]
  %v972 = vld [vmem:[%s1 + $0x1cd8] sm:$0xff]
  %v973 = vld [vmem:[%s1 + $0x1ce0] sm:$0xff]
  %v974 = vld [vmem:[%s1 + $0x1ce8] sm:$0xff]
  %v975 = vld [vmem:[%s1 + $0x1cf0] sm:$0xff]
  %v976 = vld [vmem:[%s1 + $0x1cf8] sm:$0xff]
  %v977 = vld [vmem:[%s1 + $0x1d00] sm:$0xff]
  %v978 = vld [vmem:[%s1 + $0x1d08] sm:$0xff]
  %v979 = vld [vmem:[%s1 + $0x1d10] sm:$0xff]
  %v980 = vld [vmem:[%s1 + $0x1d18] sm:$0xff]
  %v981 = vld [vmem:[%s1 + $0x1d20] sm:$0xff]
  %v982 = vld [vmem:[%s1 + $0x1d28] sm:$0xff]
  %v983 = vld [vmem:[%s1 + $0x1d30] sm:$0xff]
  %v984 = vld [vmem:[%s1 + $0x1d38] sm:$0xff]
  %v985 = vld [vmem:[%s1 + $0x1d40] sm:$0xff]
  %v986 = vld [vmem:[%s1 + $0x1d48] sm:$0xff]
  %v987 = vld [vmem:[%s1 + $0x1d50] sm:$0xff]
  %v988 = vld [vmem:[%s1 + $0x1d58] sm:$0xff]
  %v989 = vld [vmem:[%s1 + $0x1d60] sm:$0xff]
  %v990 = vld [vmem:[%s1 + $0x1d68] sm:$0xff]
  %v991 = vld [vmem:[%s1 + $0x1d70] sm:$0xff]
  %v992 = vld [vmem:[%s1 + $0x1d78] sm:$0xff]
  %v993 = vld [vmem:[%s1 + $0x1d80] sm:$0xff]
  %v994 = vld [vmem:[%s1 + $0x1d88] sm:$0xff]
  %v995 = vld [vmem:[%s1 + $0x1d90] sm:$0xff]
  %v996 = vld [vmem:[%s1 + $0x1d98] sm:$0xff]
  %v997 = vld [vmem:[%s1 + $0x1da0] sm:$0xff]
  %v998 = vld [vmem:[%s1 + $0x1da8] sm:$0xff]
  %v999 = vld [vmem:[%s1 + $0x1db0] sm:$0xff]
  %v1000 = vld [vmem:[%s1 + $0x1db8] sm:$0xff]
  %v1001 = vld [vmem:[%s1 + $0x1dc0] sm:$0xff]
  %v1002 = vld [vmem:[%s1 + $0x1dc8] sm:$0xff]
  %v1003 = vld [vmem:[%s1 + $0x1dd0] sm:$0xff]
  %v1004 = vld [vmem:[%s1 + $0x1dd8] sm:$0xff]
  %v1005 = vld [vmem:[%s1 + $0x1de0] sm:$0xff]
  %v1006 = vld [vmem:[%s1 + $0x1de8] sm:$0xff]
  %v1007 = vld [vmem:[%s1 + $0x1df0] sm:$0xff]
  %v1008 = vld [vmem:[%s1 + $0x1df8] sm:$0xff]
  %v1009 = vld [vmem:[%s1 + $0x1e00] sm:$0xff]
  %v1010 = vld [vmem:[%s1 + $0x1e08] sm:$0xff]
  %v1011 = vld [vmem:[%s1 + $0x1e10] sm:$0xff]
  %v1012 = vld [vmem:[%s1 + $0x1e18] sm:$0xff]
  %v1013 = vld [vmem:[%s1 + $0x1e20] sm:$0xff]
  %v1014 = vld [vmem:[%s1 + $0x1e28] sm:$0xff]
  %v1015 = vld [vmem:[%s1 + $0x1e30] sm:$0xff]
  %v1016 = vld [vmem:[%s1 + $0x1e38] sm:$0xff]
  %v1017 = vld [vmem:[%s1 + $0x1e40] sm:$0xff]
  %v1018 = vld [vmem:[%s1 + $0x1e48] sm:$0xff]
  %v1019 = vld [vmem:[%s1 + $0x1e50] sm:$0xff]
  %v1020 = vld [vmem:[%s1 + $0x1e58] sm:$0xff]
  %v1021 = vld [vmem:[%s1 + $0x1e60] sm:$0xff]
  %v1022 = vld [vmem:[%s1 + $0x1e68] sm:$0xff]
  %v1023 = vld [vmem:[%s1 + $0x1e70] sm:$0xff]
  %v1024 = vld [vmem:[%s1 + $0x1e78] sm:$0xff]
  %v1025 = vld [vmem:[%s1 + $0x1e80] sm:$0xff]
  %v1026 = vld [vmem:[%s1 + $0x1e88] sm:$0xff]
  %v1027 = vld [vmem:[%s1 + $0x1e90] sm:$0xff]
  %v1028 = vld [vmem:[%s1 + $0x1e98] sm:$0xff]
  %v1029 = vld [vmem:[%s1 + $0x1ea0] sm:$0xff]
  %v1030 = vld [vmem:[%s1 + $0x1ea8] sm:$0xff]
  %v1031 = vld [vmem:[%s1 + $0x1eb0] sm:$0xff]
  %v1032 = vld [vmem:[%s1 + $0x1eb8] sm:$0xff]
  %v1033 = vld [vmem:[%s1 + $0x1ec0] sm:$0xff]
  %v1034 = vld [vmem:[%s1 + $0x1ec8] sm:$0xff]
  %v1035 = vld [vmem:[%s1 + $0x1ed0] sm:$0xff]
  %v1036 = vld [vmem:[%s1 + $0x1ed8] sm:$0xff]
  %v1037 = vld [vmem:[%s1 + $0x1ee0] sm:$0xff]
  %v1038 = vld [vmem:[%s1 + $0x1ee8] sm:$0xff]
  %v1039 = vld [vmem:[%s1 + $0x1ef0] sm:$0xff]
  %v1040 = vld [vmem:[%s1 + $0x1ef8] sm:$0xff]
  %v1041 = vld [vmem:[%s1 + $0x1f00] sm:$0xff]
  %v1042 = vld [vmem:[%s1 + $0x1f08] sm:$0xff]
  %v1043 = vld [vmem:[%s1 + $0x1f10] sm:$0xff]
  %v1044 = vld [vmem:[%s1 + $0x1f18] sm:$0xff]
  %v1045 = vld [vmem:[%s1 + $0x1f20] sm:$0xff]
  %v1046 = vld [vmem:[%s1 + $0x1f28] sm:$0xff]
  %v1047 = vld [vmem:[%s1 + $0x1f30] sm:$0xff]
  %v1048 = vld [vmem:[%s1 + $0x1f38] sm:$0xff]
  %v1049 = vld [vmem:[%s1 + $0x1f40] sm:$0xff]
  %v1050 = vld [vmem:[%s1 + $0x1f48] sm:$0xff]
  %v1051 = vld [vmem:[%s1 + $0x1f50] sm:$0xff]
  %v1052 = vld [vmem:[%s1 + $0x1f58] sm:$0xff]
  %v1053 = vld [vmem:[%s1 + $0x1f60] sm:$0xff]
  %v1054 = vld [vmem:[%s1 + $0x1f68] sm:$0xff]
  %v1055 = vld [vmem:[%s1 + $0x1f70] sm:$0xff]
  %v1056 = vld [vmem:[%s1 + $0x1f78] sm:$0xff]
  %v1057 = vld [vmem:[%s1 + $0x1f80] sm:$0xff]
  %v1058 = vld [vmem:[%s1 + $0x1f88] sm:$0xff]
  %v1059 = vld [vmem:[%s1 + $0x1f90] sm:$0xff]
  %v1060 = vld [vmem:[%s1 + $0x1f98] sm:$0xff]
  %v1061 = vld [vmem:[%s1 + $0x1fa0] sm:$0xff]
  %v1062 = vld [vmem:[%s1 + $0x1fa8] sm:$0xff]
  %v1063 = vld [vmem:[%s1 + $0x1fb0] sm:$0xff]
  %v1064 = vld [vmem:[%s1 + $0x1fb8] sm:$0xff]
  %v1065 = vld [vmem:[%s1 + $0x1fc0] sm:$0xff]
  %v1066 = vld [vmem:[%s1 + $0x1fc8] sm:$0xff]
  %v1067 = vld [vmem:[%s1 + $0x1fd0] sm:$0xff]
  %v1068 = vld [vmem:[%s1 + $0x1fd8] sm:$0xff]
  %v1069 = vld [vmem:[%s1 + $0x1fe0] sm:$0xff]
  %v1070 = vld [vmem:[%s1 + $0x1fe8] sm:$0xff]
  %v1071 = vld [vmem:[%s1 + $0x1ff0] sm:$0xff]
  %v1072 = vld [vmem:[%s1 + $0x1ff8] sm:$0xff]
  %v1105 = vunpack.c.l.b16 %v17
  %v1106 = vunpack.c.h.b16 %v17
  %v1107 = vunpack.c.l.b16 %v18
  %v1108 = vunpack.c.h.b16 %v18
  %v1109 = vunpack.c.l.b16 %v19
  %v1110 = vunpack.c.h.b16 %v19
  %v1111 = vunpack.c.l.b16 %v20
  %v1112 = vunpack.c.h.b16 %v20
  %v1113 = vunpack.c.l.b16 %v21
  %v1114 = vunpack.c.h.b16 %v21
  %v1115 = vunpack.c.l.b16 %v22
  %v1116 = vunpack.c.h.b16 %v22
  %v1117 = vunpack.c.l.b16 %v23
  %v1118 = vunpack.c.h.b16 %v23
  %v1119 = vunpack.c.l.b16 %v24
  %v1120 = vunpack.c.h.b16 %v24
  %v1121 = vunpack.c.l.b16 %v25
  %v1122 = vunpack.c.h.b16 %v25
  %v1123 = vunpack.c.l.b16 %v26
  %v1124 = vunpack.c.h.b16 %v26
  %v1125 = vunpack.c.l.b16 %v27
  %v1126 = vunpack.c.h.b16 %v27
  %v1127 = vunpack.c.l.b16 %v28
  %v1128 = vunpack.c.h.b16 %v28
  %v1129 = vunpack.c.l.b16 %v29
  %v1130 = vunpack.c.h.b16 %v29
  %v1131 = vunpack.c.l.b16 %v30
  %v1132 = vunpack.c.h.b16 %v30
  %v1133 = vunpack.c.l.b16 %v31
  %v1134 = vunpack.c.h.b16 %v31
  %v1135 = vunpack.c.l.b16 %v32
  %v1136 = vunpack.c.h.b16 %v32
  %v1137 = vunpack.c.l.b16 %v33
  %v1138 = vunpack.c.h.b16 %v33
  %v1139 = vunpack.c.l.b16 %v34
  %v1140 = vunpack.c.h.b16 %v34
  %v1141 = vunpack.c.l.b16 %v35
  %v1142 = vunpack.c.h.b16 %v35
  %v1143 = vunpack.c.l.b16 %v36
  %v1144 = vunpack.c.h.b16 %v36
  %v1145 = vunpack.c.l.b16 %v37
  %v1146 = vunpack.c.h.b16 %v37
  %v1147 = vunpack.c.l.b16 %v38
  %v1148 = vunpack.c.h.b16 %v38
  %v1149 = vunpack.c.l.b16 %v39
  %v1150 = vunpack.c.h.b16 %v39
  %v1151 = vunpack.c.l.b16 %v40
  %v1152 = vunpack.c.h.b16 %v40
  %v1153 = vunpack.c.l.b16 %v41
  %v1154 = vunpack.c.h.b16 %v41
  %v1155 = vunpack.c.l.b16 %v42
  %v1156 = vunpack.c.h.b16 %v42
  %v1157 = vunpack.c.l.b16 %v43
  %v1158 = vunpack.c.h.b16 %v43
  %v1159 = vunpack.c.l.b16 %v44
  %v1160 = vunpack.c.h.b16 %v44
  %v1161 = vunpack.c.l.b16 %v45
  %v1162 = vunpack.c.h.b16 %v45
  %v1163 = vunpack.c.l.b16 %v46
  %v1164 = vunpack.c.h.b16 %v46
  %v1165 = vunpack.c.l.b16 %v47
  %v1166 = vunpack.c.h.b16 %v47
  %v1167 = vunpack.c.l.b16 %v48
  %v1168 = vunpack.c.h.b16 %v48
  %v1169 = vpack.c.b16 %v1137, %v1105
  %v1170 = vpack.c.b16 %v1138, %v1106
  %v1171 = vpack.c.b16 %v1139, %v1107
  %v1172 = vpack.c.b16 %v1140, %v1108
  %v1173 = vpack.c.b16 %v1141, %v1109
  %v1174 = vpack.c.b16 %v1142, %v1110
  %v1175 = vpack.c.b16 %v1143, %v1111
  %v1176 = vpack.c.b16 %v1144, %v1112
  %v1177 = vpack.c.b16 %v1145, %v1113
  %v1178 = vpack.c.b16 %v1146, %v1114
  %v1179 = vpack.c.b16 %v1147, %v1115
  %v1180 = vpack.c.b16 %v1148, %v1116
  %v1181 = vpack.c.b16 %v1149, %v1117
  %v1182 = vpack.c.b16 %v1150, %v1118
  %v1183 = vpack.c.b16 %v1151, %v1119
  %v1184 = vpack.c.b16 %v1152, %v1120
  %v1185 = vpack.c.b16 %v1153, %v1121
  %v1186 = vpack.c.b16 %v1154, %v1122
  %v1187 = vpack.c.b16 %v1155, %v1123
  %v1188 = vpack.c.b16 %v1156, %v1124
  %v1189 = vpack.c.b16 %v1157, %v1125
  %v1190 = vpack.c.b16 %v1158, %v1126
  %v1191 = vpack.c.b16 %v1159, %v1127
  %v1192 = vpack.c.b16 %v1160, %v1128
  %v1193 = vpack.c.b16 %v1161, %v1129
  %v1194 = vpack.c.b16 %v1162, %v1130
  %v1195 = vpack.c.b16 %v1163, %v1131
  %v1196 = vpack.c.b16 %v1164, %v1132
  %v1197 = vpack.c.b16 %v1165, %v1133
  %v1198 = vpack.c.b16 %v1166, %v1134
  %v1199 = vpack.c.b16 %v1167, %v1135
  %v1200 = vpack.c.b16 %v1168, %v1136
  %v2257 = vunpack.c.l.b16 %v49
  %v2258 = vunpack.c.h.b16 %v49
  %v2259 = vunpack.c.l.b16 %v50
  %v2260 = vunpack.c.h.b16 %v50
  %v2261 = vunpack.c.l.b16 %v51
  %v2262 = vunpack.c.h.b16 %v51
  %v2263 = vunpack.c.l.b16 %v52
  %v2264 = vunpack.c.h.b16 %v52
  %v2265 = vunpack.c.l.b16 %v53
  %v2266 = vunpack.c.h.b16 %v53
  %v2267 = vunpack.c.l.b16 %v54
  %v2268 = vunpack.c.h.b16 %v54
  %v2269 = vunpack.c.l.b16 %v55
  %v2270 = vunpack.c.h.b16 %v55
  %v2271 = vunpack.c.l.b16 %v56
  %v2272 = vunpack.c.h.b16 %v56
  %v2273 = vunpack.c.l.b16 %v57
  %v2274 = vunpack.c.h.b16 %v57
  %v2275 = vunpack.c.l.b16 %v58
  %v2276 = vunpack.c.h.b16 %v58
  %v2277 = vunpack.c.l.b16 %v59
  %v2278 = vunpack.c.h.b16 %v59
  %v2279 = vunpack.c.l.b16 %v60
  %v2280 = vunpack.c.h.b16 %v60
  %v2281 = vunpack.c.l.b16 %v61
  %v2282 = vunpack.c.h.b16 %v61
  %v2283 = vunpack.c.l.b16 %v62
  %v2284 = vunpack.c.h.b16 %v62
  %v2285 = vunpack.c.l.b16 %v63
  %v2286 = vunpack.c.h.b16 %v63
  %v2287 = vunpack.c.l.b16 %v64
  %v2288 = vunpack.c.h.b16 %v64
  %v2289 = vunpack.c.l.b16 %v65
  %v2290 = vunpack.c.h.b16 %v65
  %v2291 = vunpack.c.l.b16 %v66
  %v2292 = vunpack.c.h.b16 %v66
  %v2293 = vunpack.c.l.b16 %v67
  %v2294 = vunpack.c.h.b16 %v67
  %v2295 = vunpack.c.l.b16 %v68
  %v2296 = vunpack.c.h.b16 %v68
  %v2297 = vunpack.c.l.b16 %v69
  %v2298 = vunpack.c.h.b16 %v69
  %v2299 = vunpack.c.l.b16 %v70
  %v2300 = vunpack.c.h.b16 %v70
  %v2301 = vunpack.c.l.b16 %v71
  %v2302 = vunpack.c.h.b16 %v71
  %v2303 = vunpack.c.l.b16 %v72
  %v2304 = vunpack.c.h.b16 %v72
  %v2305 = vunpack.c.l.b16 %v73
  %v2306 = vunpack.c.h.b16 %v73
  %v2307 = vunpack.c.l.b16 %v74
  %v2308 = vunpack.c.h.b16 %v74
  %v2309 = vunpack.c.l.b16 %v75
  %v2310 = vunpack.c.h.b16 %v75
  %v2311 = vunpack.c.l.b16 %v76
  %v2312 = vunpack.c.h.b16 %v76
  %v2313 = vunpack.c.l.b16 %v77
  %v2314 = vunpack.c.h.b16 %v77
  %v2315 = vunpack.c.l.b16 %v78
  %v2316 = vunpack.c.h.b16 %v78
  %v2317 = vunpack.c.l.b16 %v79
  %v2318 = vunpack.c.h.b16 %v79
  %v2319 = vunpack.c.l.b16 %v80
  %v2320 = vunpack.c.h.b16 %v80
  %v2321 = vunpack.c.l.b16 %v81
  %v2322 = vunpack.c.h.b16 %v81
  %v2323 = vunpack.c.l.b16 %v82
  %v2324 = vunpack.c.h.b16 %v82
  %v2325 = vunpack.c.l.b16 %v83
  %v2326 = vunpack.c.h.b16 %v83
  %v2327 = vunpack.c.l.b16 %v84
  %v2328 = vunpack.c.h.b16 %v84
  %v2329 = vunpack.c.l.b16 %v85
  %v2330 = vunpack.c.h.b16 %v85
  %v2331 = vunpack.c.l.b16 %v86
  %v2332 = vunpack.c.h.b16 %v86
  %v2333 = vunpack.c.l.b16 %v87
  %v2334 = vunpack.c.h.b16 %v87
  %v2335 = vunpack.c.l.b16 %v88
  %v2336 = vunpack.c.h.b16 %v88
  %v2337 = vunpack.c.l.b16 %v89
  %v2338 = vunpack.c.h.b16 %v89
  %v2339 = vunpack.c.l.b16 %v90
  %v2340 = vunpack.c.h.b16 %v90
  %v2341 = vunpack.c.l.b16 %v91
  %v2342 = vunpack.c.h.b16 %v91
  %v2343 = vunpack.c.l.b16 %v92
  %v2344 = vunpack.c.h.b16 %v92
  %v2345 = vunpack.c.l.b16 %v93
  %v2346 = vunpack.c.h.b16 %v93
  %v2347 = vunpack.c.l.b16 %v94
  %v2348 = vunpack.c.h.b16 %v94
  %v2349 = vunpack.c.l.b16 %v95
  %v2350 = vunpack.c.h.b16 %v95
  %v2351 = vunpack.c.l.b16 %v96
  %v2352 = vunpack.c.h.b16 %v96
  %v2353 = vunpack.c.l.b16 %v97
  %v2354 = vunpack.c.h.b16 %v97
  %v2355 = vunpack.c.l.b16 %v98
  %v2356 = vunpack.c.h.b16 %v98
  %v2357 = vunpack.c.l.b16 %v99
  %v2358 = vunpack.c.h.b16 %v99
  %v2359 = vunpack.c.l.b16 %v100
  %v2360 = vunpack.c.h.b16 %v100
  %v2361 = vunpack.c.l.b16 %v101
  %v2362 = vunpack.c.h.b16 %v101
  %v2363 = vunpack.c.l.b16 %v102
  %v2364 = vunpack.c.h.b16 %v102
  %v2365 = vunpack.c.l.b16 %v103
  %v2366 = vunpack.c.h.b16 %v103
  %v2367 = vunpack.c.l.b16 %v104
  %v2368 = vunpack.c.h.b16 %v104
  %v2369 = vunpack.c.l.b16 %v105
  %v2370 = vunpack.c.h.b16 %v105
  %v2371 = vunpack.c.l.b16 %v106
  %v2372 = vunpack.c.h.b16 %v106
  %v2373 = vunpack.c.l.b16 %v107
  %v2374 = vunpack.c.h.b16 %v107
  %v2375 = vunpack.c.l.b16 %v108
  %v2376 = vunpack.c.h.b16 %v108
  %v2377 = vunpack.c.l.b16 %v109
  %v2378 = vunpack.c.h.b16 %v109
  %v2379 = vunpack.c.l.b16 %v110
  %v2380 = vunpack.c.h.b16 %v110
  %v2381 = vunpack.c.l.b16 %v111
  %v2382 = vunpack.c.h.b16 %v111
  %v2383 = vunpack.c.l.b16 %v112
  %v2384 = vunpack.c.h.b16 %v112
  %v2385 = vunpack.c.l.b16 %v113
  %v2386 = vunpack.c.h.b16 %v113
  %v2387 = vunpack.c.l.b16 %v114
  %v2388 = vunpack.c.h.b16 %v114
  %v2389 = vunpack.c.l.b16 %v115
  %v2390 = vunpack.c.h.b16 %v115
  %v2391 = vunpack.c.l.b16 %v116
  %v2392 = vunpack.c.h.b16 %v116
  %v2393 = vunpack.c.l.b16 %v117
  %v2394 = vunpack.c.h.b16 %v117
  %v2395 = vunpack.c.l.b16 %v118
  %v2396 = vunpack.c.h.b16 %v118
  %v2397 = vunpack.c.l.b16 %v119
  %v2398 = vunpack.c.h.b16 %v119
  %v2399 = vunpack.c.l.b16 %v120
  %v2400 = vunpack.c.h.b16 %v120
  %v2401 = vunpack.c.l.b16 %v121
  %v2402 = vunpack.c.h.b16 %v121
  %v2403 = vunpack.c.l.b16 %v122
  %v2404 = vunpack.c.h.b16 %v122
  %v2405 = vunpack.c.l.b16 %v123
  %v2406 = vunpack.c.h.b16 %v123
  %v2407 = vunpack.c.l.b16 %v124
  %v2408 = vunpack.c.h.b16 %v124
  %v2409 = vunpack.c.l.b16 %v125
  %v2410 = vunpack.c.h.b16 %v125
  %v2411 = vunpack.c.l.b16 %v126
  %v2412 = vunpack.c.h.b16 %v126
  %v2413 = vunpack.c.l.b16 %v127
  %v2414 = vunpack.c.h.b16 %v127
  %v2415 = vunpack.c.l.b16 %v128
  %v2416 = vunpack.c.h.b16 %v128
  %v2417 = vunpack.c.l.b16 %v129
  %v2418 = vunpack.c.h.b16 %v129
  %v2419 = vunpack.c.l.b16 %v130
  %v2420 = vunpack.c.h.b16 %v130
  %v2421 = vunpack.c.l.b16 %v131
  %v2422 = vunpack.c.h.b16 %v131
  %v2423 = vunpack.c.l.b16 %v132
  %v2424 = vunpack.c.h.b16 %v132
  %v2425 = vunpack.c.l.b16 %v133
  %v2426 = vunpack.c.h.b16 %v133
  %v2427 = vunpack.c.l.b16 %v134
  %v2428 = vunpack.c.h.b16 %v134
  %v2429 = vunpack.c.l.b16 %v135
  %v2430 = vunpack.c.h.b16 %v135
  %v2431 = vunpack.c.l.b16 %v136
  %v2432 = vunpack.c.h.b16 %v136
  %v2433 = vunpack.c.l.b16 %v137
  %v2434 = vunpack.c.h.b16 %v137
  %v2435 = vunpack.c.l.b16 %v138
  %v2436 = vunpack.c.h.b16 %v138
  %v2437 = vunpack.c.l.b16 %v139
  %v2438 = vunpack.c.h.b16 %v139
  %v2439 = vunpack.c.l.b16 %v140
  %v2440 = vunpack.c.h.b16 %v140
  %v2441 = vunpack.c.l.b16 %v141
  %v2442 = vunpack.c.h.b16 %v141
  %v2443 = vunpack.c.l.b16 %v142
  %v2444 = vunpack.c.h.b16 %v142
  %v2445 = vunpack.c.l.b16 %v143
  %v2446 = vunpack.c.h.b16 %v143
  %v2447 = vunpack.c.l.b16 %v144
  %v2448 = vunpack.c.h.b16 %v144
  %v2449 = vunpack.c.l.b16 %v145
  %v2450 = vunpack.c.h.b16 %v145
  %v2451 = vunpack.c.l.b16 %v146
  %v2452 = vunpack.c.h.b16 %v146
  %v2453 = vunpack.c.l.b16 %v147
  %v2454 = vunpack.c.h.b16 %v147
  %v2455 = vunpack.c.l.b16 %v148
  %v2456 = vunpack.c.h.b16 %v148
  %v2457 = vunpack.c.l.b16 %v149
  %v2458 = vunpack.c.h.b16 %v149
  %v2459 = vunpack.c.l.b16 %v150
  %v2460 = vunpack.c.h.b16 %v150
  %v2461 = vunpack.c.l.b16 %v151
  %v2462 = vunpack.c.h.b16 %v151
  %v2463 = vunpack.c.l.b16 %v152
  %v2464 = vunpack.c.h.b16 %v152
  %v2465 = vunpack.c.l.b16 %v153
  %v2466 = vunpack.c.h.b16 %v153
  %v2467 = vunpack.c.l.b16 %v154
  %v2468 = vunpack.c.h.b16 %v154
  %v2469 = vunpack.c.l.b16 %v155
  %v2470 = vunpack.c.h.b16 %v155
  %v2471 = vunpack.c.l.b16 %v156
  %v2472 = vunpack.c.h.b16 %v156
  %v2473 = vunpack.c.l.b16 %v157
  %v2474 = vunpack.c.h.b16 %v157
  %v2475 = vunpack.c.l.b16 %v158
  %v2476 = vunpack.c.h.b16 %v158
  %v2477 = vunpack.c.l.b16 %v159
  %v2478 = vunpack.c.h.b16 %v159
  %v2479 = vunpack.c.l.b16 %v160
  %v2480 = vunpack.c.h.b16 %v160
  %v2481 = vunpack.c.l.b16 %v161
  %v2482 = vunpack.c.h.b16 %v161
  %v2483 = vunpack.c.l.b16 %v162
  %v2484 = vunpack.c.h.b16 %v162
  %v2485 = vunpack.c.l.b16 %v163
  %v2486 = vunpack.c.h.b16 %v163
  %v2487 = vunpack.c.l.b16 %v164
  %v2488 = vunpack.c.h.b16 %v164
  %v2489 = vunpack.c.l.b16 %v165
  %v2490 = vunpack.c.h.b16 %v165
  %v2491 = vunpack.c.l.b16 %v166
  %v2492 = vunpack.c.h.b16 %v166
  %v2493 = vunpack.c.l.b16 %v167
  %v2494 = vunpack.c.h.b16 %v167
  %v2495 = vunpack.c.l.b16 %v168
  %v2496 = vunpack.c.h.b16 %v168
  %v2497 = vunpack.c.l.b16 %v169
  %v2498 = vunpack.c.h.b16 %v169
  %v2499 = vunpack.c.l.b16 %v170
  %v2500 = vunpack.c.h.b16 %v170
  %v2501 = vunpack.c.l.b16 %v171
  %v2502 = vunpack.c.h.b16 %v171
  %v2503 = vunpack.c.l.b16 %v172
  %v2504 = vunpack.c.h.b16 %v172
  %v2505 = vunpack.c.l.b16 %v173
  %v2506 = vunpack.c.h.b16 %v173
  %v2507 = vunpack.c.l.b16 %v174
  %v2508 = vunpack.c.h.b16 %v174
  %v2509 = vunpack.c.l.b16 %v175
  %v2510 = vunpack.c.h.b16 %v175
  %v2511 = vunpack.c.l.b16 %v176
  %v2512 = vunpack.c.h.b16 %v176
  %v2513 = vunpack.c.l.b16 %v177
  %v2514 = vunpack.c.h.b16 %v177
  %v2515 = vunpack.c.l.b16 %v178
  %v2516 = vunpack.c.h.b16 %v178
  %v2517 = vunpack.c.l.b16 %v179
  %v2518 = vunpack.c.h.b16 %v179
  %v2519 = vunpack.c.l.b16 %v180
  %v2520 = vunpack.c.h.b16 %v180
  %v2521 = vunpack.c.l.b16 %v181
  %v2522 = vunpack.c.h.b16 %v181
  %v2523 = vunpack.c.l.b16 %v182
  %v2524 = vunpack.c.h.b16 %v182
  %v2525 = vunpack.c.l.b16 %v183
  %v2526 = vunpack.c.h.b16 %v183
  %v2527 = vunpack.c.l.b16 %v184
  %v2528 = vunpack.c.h.b16 %v184
  %v2529 = vunpack.c.l.b16 %v185
  %v2530 = vunpack.c.h.b16 %v185
  %v2531 = vunpack.c.l.b16 %v186
  %v2532 = vunpack.c.h.b16 %v186
  %v2533 = vunpack.c.l.b16 %v187
  %v2534 = vunpack.c.h.b16 %v187
  %v2535 = vunpack.c.l.b16 %v188
  %v2536 = vunpack.c.h.b16 %v188
  %v2537 = vunpack.c.l.b16 %v189
  %v2538 = vunpack.c.h.b16 %v189
  %v2539 = vunpack.c.l.b16 %v190
  %v2540 = vunpack.c.h.b16 %v190
  %v2541 = vunpack.c.l.b16 %v191
  %v2542 = vunpack.c.h.b16 %v191
  %v2543 = vunpack.c.l.b16 %v192
  %v2544 = vunpack.c.h.b16 %v192
  %v2545 = vunpack.c.l.b16 %v193
  %v2546 = vunpack.c.h.b16 %v193
  %v2547 = vunpack.c.l.b16 %v194
  %v2548 = vunpack.c.h.b16 %v194
  %v2549 = vunpack.c.l.b16 %v195
  %v2550 = vunpack.c.h.b16 %v195
  %v2551 = vunpack.c.l.b16 %v196
  %v2552 = vunpack.c.h.b16 %v196
  %v2553 = vunpack.c.l.b16 %v197
  %v2554 = vunpack.c.h.b16 %v197
  %v2555 = vunpack.c.l.b16 %v198
  %v2556 = vunpack.c.h.b16 %v198
  %v2557 = vunpack.c.l.b16 %v199
  %v2558 = vunpack.c.h.b16 %v199
  %v2559 = vunpack.c.l.b16 %v200
  %v2560 = vunpack.c.h.b16 %v200
  %v2561 = vunpack.c.l.b16 %v201
  %v2562 = vunpack.c.h.b16 %v201
  %v2563 = vunpack.c.l.b16 %v202
  %v2564 = vunpack.c.h.b16 %v202
  %v2565 = vunpack.c.l.b16 %v203
  %v2566 = vunpack.c.h.b16 %v203
  %v2567 = vunpack.c.l.b16 %v204
  %v2568 = vunpack.c.h.b16 %v204
  %v2569 = vunpack.c.l.b16 %v205
  %v2570 = vunpack.c.h.b16 %v205
  %v2571 = vunpack.c.l.b16 %v206
  %v2572 = vunpack.c.h.b16 %v206
  %v2573 = vunpack.c.l.b16 %v207
  %v2574 = vunpack.c.h.b16 %v207
  %v2575 = vunpack.c.l.b16 %v208
  %v2576 = vunpack.c.h.b16 %v208
  %v2577 = vunpack.c.l.b16 %v209
  %v2578 = vunpack.c.h.b16 %v209
  %v2579 = vunpack.c.l.b16 %v210
  %v2580 = vunpack.c.h.b16 %v210
  %v2581 = vunpack.c.l.b16 %v211
  %v2582 = vunpack.c.h.b16 %v211
  %v2583 = vunpack.c.l.b16 %v212
  %v2584 = vunpack.c.h.b16 %v212
  %v2585 = vunpack.c.l.b16 %v213
  %v2586 = vunpack.c.h.b16 %v213
  %v2587 = vunpack.c.l.b16 %v214
  %v2588 = vunpack.c.h.b16 %v214
  %v2589 = vunpack.c.l.b16 %v215
  %v2590 = vunpack.c.h.b16 %v215
  %v2591 = vunpack.c.l.b16 %v216
  %v2592 = vunpack.c.h.b16 %v216
  %v2593 = vunpack.c.l.b16 %v217
  %v2594 = vunpack.c.h.b16 %v217
  %v2595 = vunpack.c.l.b16 %v218
  %v2596 = vunpack.c.h.b16 %v218
  %v2597 = vunpack.c.l.b16 %v219
  %v2598 = vunpack.c.h.b16 %v219
  %v2599 = vunpack.c.l.b16 %v220
  %v2600 = vunpack.c.h.b16 %v220
  %v2601 = vunpack.c.l.b16 %v221
  %v2602 = vunpack.c.h.b16 %v221
  %v2603 = vunpack.c.l.b16 %v222
  %v2604 = vunpack.c.h.b16 %v222
  %v2605 = vunpack.c.l.b16 %v223
  %v2606 = vunpack.c.h.b16 %v223
  %v2607 = vunpack.c.l.b16 %v224
  %v2608 = vunpack.c.h.b16 %v224
  %v2609 = vunpack.c.l.b16 %v225
  %v2610 = vunpack.c.h.b16 %v225
  %v2611 = vunpack.c.l.b16 %v226
  %v2612 = vunpack.c.h.b16 %v226
  %v2613 = vunpack.c.l.b16 %v227
  %v2614 = vunpack.c.h.b16 %v227
  %v2615 = vunpack.c.l.b16 %v228
  %v2616 = vunpack.c.h.b16 %v228
  %v2617 = vunpack.c.l.b16 %v229
  %v2618 = vunpack.c.h.b16 %v229
  %v2619 = vunpack.c.l.b16 %v230
  %v2620 = vunpack.c.h.b16 %v230
  %v2621 = vunpack.c.l.b16 %v231
  %v2622 = vunpack.c.h.b16 %v231
  %v2623 = vunpack.c.l.b16 %v232
  %v2624 = vunpack.c.h.b16 %v232
  %v2625 = vunpack.c.l.b16 %v233
  %v2626 = vunpack.c.h.b16 %v233
  %v2627 = vunpack.c.l.b16 %v234
  %v2628 = vunpack.c.h.b16 %v234
  %v2629 = vunpack.c.l.b16 %v235
  %v2630 = vunpack.c.h.b16 %v235
  %v2631 = vunpack.c.l.b16 %v236
  %v2632 = vunpack.c.h.b16 %v236
  %v2633 = vunpack.c.l.b16 %v237
  %v2634 = vunpack.c.h.b16 %v237
  %v2635 = vunpack.c.l.b16 %v238
  %v2636 = vunpack.c.h.b16 %v238
  %v2637 = vunpack.c.l.b16 %v239
  %v2638 = vunpack.c.h.b16 %v239
  %v2639 = vunpack.c.l.b16 %v240
  %v2640 = vunpack.c.h.b16 %v240
  %v2641 = vunpack.c.l.b16 %v241
  %v2642 = vunpack.c.h.b16 %v241
  %v2643 = vunpack.c.l.b16 %v242
  %v2644 = vunpack.c.h.b16 %v242
  %v2645 = vunpack.c.l.b16 %v243
  %v2646 = vunpack.c.h.b16 %v243
  %v2647 = vunpack.c.l.b16 %v244
  %v2648 = vunpack.c.h.b16 %v244
  %v2649 = vunpack.c.l.b16 %v245
  %v2650 = vunpack.c.h.b16 %v245
  %v2651 = vunpack.c.l.b16 %v246
  %v2652 = vunpack.c.h.b16 %v246
  %v2653 = vunpack.c.l.b16 %v247
  %v2654 = vunpack.c.h.b16 %v247
  %v2655 = vunpack.c.l.b16 %v248
  %v2656 = vunpack.c.h.b16 %v248
  %v2657 = vunpack.c.l.b16 %v249
  %v2658 = vunpack.c.h.b16 %v249
  %v2659 = vunpack.c.l.b16 %v250
  %v2660 = vunpack.c.h.b16 %v250
  %v2661 = vunpack.c.l.b16 %v251
  %v2662 = vunpack.c.h.b16 %v251
  %v2663 = vunpack.c.l.b16 %v252
  %v2664 = vunpack.c.h.b16 %v252
  %v2665 = vunpack.c.l.b16 %v253
  %v2666 = vunpack.c.h.b16 %v253
  %v2667 = vunpack.c.l.b16 %v254
  %v2668 = vunpack.c.h.b16 %v254
  %v2669 = vunpack.c.l.b16 %v255
  %v2670 = vunpack.c.h.b16 %v255
  %v2671 = vunpack.c.l.b16 %v256
  %v2672 = vunpack.c.h.b16 %v256
  %v2673 = vunpack.c.l.b16 %v257
  %v2674 = vunpack.c.h.b16 %v257
  %v2675 = vunpack.c.l.b16 %v258
  %v2676 = vunpack.c.h.b16 %v258
  %v2677 = vunpack.c.l.b16 %v259
  %v2678 = vunpack.c.h.b16 %v259
  %v2679 = vunpack.c.l.b16 %v260
  %v2680 = vunpack.c.h.b16 %v260
  %v2681 = vunpack.c.l.b16 %v261
  %v2682 = vunpack.c.h.b16 %v261
  %v2683 = vunpack.c.l.b16 %v262
  %v2684 = vunpack.c.h.b16 %v262
  %v2685 = vunpack.c.l.b16 %v263
  %v2686 = vunpack.c.h.b16 %v263
  %v2687 = vunpack.c.l.b16 %v264
  %v2688 = vunpack.c.h.b16 %v264
  %v2689 = vunpack.c.l.b16 %v265
  %v2690 = vunpack.c.h.b16 %v265
  %v2691 = vunpack.c.l.b16 %v266
  %v2692 = vunpack.c.h.b16 %v266
  %v2693 = vunpack.c.l.b16 %v267
  %v2694 = vunpack.c.h.b16 %v267
  %v2695 = vunpack.c.l.b16 %v268
  %v2696 = vunpack.c.h.b16 %v268
  %v2697 = vunpack.c.l.b16 %v269
  %v2698 = vunpack.c.h.b16 %v269
  %v2699 = vunpack.c.l.b16 %v270
  %v2700 = vunpack.c.h.b16 %v270
  %v2701 = vunpack.c.l.b16 %v271
  %v2702 = vunpack.c.h.b16 %v271
  %v2703 = vunpack.c.l.b16 %v272
  %v2704 = vunpack.c.h.b16 %v272
  %v2705 = vunpack.c.l.b16 %v273
  %v2706 = vunpack.c.h.b16 %v273
  %v2707 = vunpack.c.l.b16 %v274
  %v2708 = vunpack.c.h.b16 %v274
  %v2709 = vunpack.c.l.b16 %v275
  %v2710 = vunpack.c.h.b16 %v275
  %v2711 = vunpack.c.l.b16 %v276
  %v2712 = vunpack.c.h.b16 %v276
  %v2713 = vunpack.c.l.b16 %v277
  %v2714 = vunpack.c.h.b16 %v277
  %v2715 = vunpack.c.l.b16 %v278
  %v2716 = vunpack.c.h.b16 %v278
  %v2717 = vunpack.c.l.b16 %v279
  %v2718 = vunpack.c.h.b16 %v279
  %v2719 = vunpack.c.l.b16 %v280
  %v2720 = vunpack.c.h.b16 %v280
  %v2721 = vunpack.c.l.b16 %v281
  %v2722 = vunpack.c.h.b16 %v281
  %v2723 = vunpack.c.l.b16 %v282
  %v2724 = vunpack.c.h.b16 %v282
  %v2725 = vunpack.c.l.b16 %v283
  %v2726 = vunpack.c.h.b16 %v283
  %v2727 = vunpack.c.l.b16 %v284
  %v2728 = vunpack.c.h.b16 %v284
  %v2729 = vunpack.c.l.b16 %v285
  %v2730 = vunpack.c.h.b16 %v285
  %v2731 = vunpack.c.l.b16 %v286
  %v2732 = vunpack.c.h.b16 %v286
  %v2733 = vunpack.c.l.b16 %v287
  %v2734 = vunpack.c.h.b16 %v287
  %v2735 = vunpack.c.l.b16 %v288
  %v2736 = vunpack.c.h.b16 %v288
  %v2737 = vunpack.c.l.b16 %v289
  %v2738 = vunpack.c.h.b16 %v289
  %v2739 = vunpack.c.l.b16 %v290
  %v2740 = vunpack.c.h.b16 %v290
  %v2741 = vunpack.c.l.b16 %v291
  %v2742 = vunpack.c.h.b16 %v291
  %v2743 = vunpack.c.l.b16 %v292
  %v2744 = vunpack.c.h.b16 %v292
  %v2745 = vunpack.c.l.b16 %v293
  %v2746 = vunpack.c.h.b16 %v293
  %v2747 = vunpack.c.l.b16 %v294
  %v2748 = vunpack.c.h.b16 %v294
  %v2749 = vunpack.c.l.b16 %v295
  %v2750 = vunpack.c.h.b16 %v295
  %v2751 = vunpack.c.l.b16 %v296
  %v2752 = vunpack.c.h.b16 %v296
  %v2753 = vunpack.c.l.b16 %v297
  %v2754 = vunpack.c.h.b16 %v297
  %v2755 = vunpack.c.l.b16 %v298
  %v2756 = vunpack.c.h.b16 %v298
  %v2757 = vunpack.c.l.b16 %v299
  %v2758 = vunpack.c.h.b16 %v299
  %v2759 = vunpack.c.l.b16 %v300
  %v2760 = vunpack.c.h.b16 %v300
  %v2761 = vunpack.c.l.b16 %v301
  %v2762 = vunpack.c.h.b16 %v301
  %v2763 = vunpack.c.l.b16 %v302
  %v2764 = vunpack.c.h.b16 %v302
  %v2765 = vunpack.c.l.b16 %v303
  %v2766 = vunpack.c.h.b16 %v303
  %v2767 = vunpack.c.l.b16 %v304
  %v2768 = vunpack.c.h.b16 %v304
  %v2769 = vunpack.c.l.b16 %v305
  %v2770 = vunpack.c.h.b16 %v305
  %v2771 = vunpack.c.l.b16 %v306
  %v2772 = vunpack.c.h.b16 %v306
  %v2773 = vunpack.c.l.b16 %v307
  %v2774 = vunpack.c.h.b16 %v307
  %v2775 = vunpack.c.l.b16 %v308
  %v2776 = vunpack.c.h.b16 %v308
  %v2777 = vunpack.c.l.b16 %v309
  %v2778 = vunpack.c.h.b16 %v309
  %v2779 = vunpack.c.l.b16 %v310
  %v2780 = vunpack.c.h.b16 %v310
  %v2781 = vunpack.c.l.b16 %v311
  %v2782 = vunpack.c.h.b16 %v311
  %v2783 = vunpack.c.l.b16 %v312
  %v2784 = vunpack.c.h.b16 %v312
  %v2785 = vunpack.c.l.b16 %v313
  %v2786 = vunpack.c.h.b16 %v313
  %v2787 = vunpack.c.l.b16 %v314
  %v2788 = vunpack.c.h.b16 %v314
  %v2789 = vunpack.c.l.b16 %v315
  %v2790 = vunpack.c.h.b16 %v315
  %v2791 = vunpack.c.l.b16 %v316
  %v2792 = vunpack.c.h.b16 %v316
  %v2793 = vunpack.c.l.b16 %v317
  %v2794 = vunpack.c.h.b16 %v317
  %v2795 = vunpack.c.l.b16 %v318
  %v2796 = vunpack.c.h.b16 %v318
  %v2797 = vunpack.c.l.b16 %v319
  %v2798 = vunpack.c.h.b16 %v319
  %v2799 = vunpack.c.l.b16 %v320
  %v2800 = vunpack.c.h.b16 %v320
  %v2801 = vunpack.c.l.b16 %v321
  %v2802 = vunpack.c.h.b16 %v321
  %v2803 = vunpack.c.l.b16 %v322
  %v2804 = vunpack.c.h.b16 %v322
  %v2805 = vunpack.c.l.b16 %v323
  %v2806 = vunpack.c.h.b16 %v323
  %v2807 = vunpack.c.l.b16 %v324
  %v2808 = vunpack.c.h.b16 %v324
  %v2809 = vunpack.c.l.b16 %v325
  %v2810 = vunpack.c.h.b16 %v325
  %v2811 = vunpack.c.l.b16 %v326
  %v2812 = vunpack.c.h.b16 %v326
  %v2813 = vunpack.c.l.b16 %v327
  %v2814 = vunpack.c.h.b16 %v327
  %v2815 = vunpack.c.l.b16 %v328
  %v2816 = vunpack.c.h.b16 %v328
  %v2817 = vunpack.c.l.b16 %v329
  %v2818 = vunpack.c.h.b16 %v329
  %v2819 = vunpack.c.l.b16 %v330
  %v2820 = vunpack.c.h.b16 %v330
  %v2821 = vunpack.c.l.b16 %v331
  %v2822 = vunpack.c.h.b16 %v331
  %v2823 = vunpack.c.l.b16 %v332
  %v2824 = vunpack.c.h.b16 %v332
  %v2825 = vunpack.c.l.b16 %v333
  %v2826 = vunpack.c.h.b16 %v333
  %v2827 = vunpack.c.l.b16 %v334
  %v2828 = vunpack.c.h.b16 %v334
  %v2829 = vunpack.c.l.b16 %v335
  %v2830 = vunpack.c.h.b16 %v335
  %v2831 = vunpack.c.l.b16 %v336
  %v2832 = vunpack.c.h.b16 %v336
  %v2833 = vunpack.c.l.b16 %v337
  %v2834 = vunpack.c.h.b16 %v337
  %v2835 = vunpack.c.l.b16 %v338
  %v2836 = vunpack.c.h.b16 %v338
  %v2837 = vunpack.c.l.b16 %v339
  %v2838 = vunpack.c.h.b16 %v339
  %v2839 = vunpack.c.l.b16 %v340
  %v2840 = vunpack.c.h.b16 %v340
  %v2841 = vunpack.c.l.b16 %v341
  %v2842 = vunpack.c.h.b16 %v341
  %v2843 = vunpack.c.l.b16 %v342
  %v2844 = vunpack.c.h.b16 %v342
  %v2845 = vunpack.c.l.b16 %v343
  %v2846 = vunpack.c.h.b16 %v343
  %v2847 = vunpack.c.l.b16 %v344
  %v2848 = vunpack.c.h.b16 %v344
  %v2849 = vunpack.c.l.b16 %v345
  %v2850 = vunpack.c.h.b16 %v345
  %v2851 = vunpack.c.l.b16 %v346
  %v2852 = vunpack.c.h.b16 %v346
  %v2853 = vunpack.c.l.b16 %v347
  %v2854 = vunpack.c.h.b16 %v347
  %v2855 = vunpack.c.l.b16 %v348
  %v2856 = vunpack.c.h.b16 %v348
  %v2857 = vunpack.c.l.b16 %v349
  %v2858 = vunpack.c.h.b16 %v349
  %v2859 = vunpack.c.l.b16 %v350
  %v2860 = vunpack.c.h.b16 %v350
  %v2861 = vunpack.c.l.b16 %v351
  %v2862 = vunpack.c.h.b16 %v351
  %v2863 = vunpack.c.l.b16 %v352
  %v2864 = vunpack.c.h.b16 %v352
  %v2865 = vunpack.c.l.b16 %v353
  %v2866 = vunpack.c.h.b16 %v353
  %v2867 = vunpack.c.l.b16 %v354
  %v2868 = vunpack.c.h.b16 %v354
  %v2869 = vunpack.c.l.b16 %v355
  %v2870 = vunpack.c.h.b16 %v355
  %v2871 = vunpack.c.l.b16 %v356
  %v2872 = vunpack.c.h.b16 %v356
  %v2873 = vunpack.c.l.b16 %v357
  %v2874 = vunpack.c.h.b16 %v357
  %v2875 = vunpack.c.l.b16 %v358
  %v2876 = vunpack.c.h.b16 %v358
  %v2877 = vunpack.c.l.b16 %v359
  %v2878 = vunpack.c.h.b16 %v359
  %v2879 = vunpack.c.l.b16 %v360
  %v2880 = vunpack.c.h.b16 %v360
  %v2881 = vunpack.c.l.b16 %v361
  %v2882 = vunpack.c.h.b16 %v361
  %v2883 = vunpack.c.l.b16 %v362
  %v2884 = vunpack.c.h.b16 %v362
  %v2885 = vunpack.c.l.b16 %v363
  %v2886 = vunpack.c.h.b16 %v363
  %v2887 = vunpack.c.l.b16 %v364
  %v2888 = vunpack.c.h.b16 %v364
  %v2889 = vunpack.c.l.b16 %v365
  %v2890 = vunpack.c.h.b16 %v365
  %v2891 = vunpack.c.l.b16 %v366
  %v2892 = vunpack.c.h.b16 %v366
  %v2893 = vunpack.c.l.b16 %v367
  %v2894 = vunpack.c.h.b16 %v367
  %v2895 = vunpack.c.l.b16 %v368
  %v2896 = vunpack.c.h.b16 %v368
  %v2897 = vunpack.c.l.b16 %v369
  %v2898 = vunpack.c.h.b16 %v369
  %v2899 = vunpack.c.l.b16 %v370
  %v2900 = vunpack.c.h.b16 %v370
  %v2901 = vunpack.c.l.b16 %v371
  %v2902 = vunpack.c.h.b16 %v371
  %v2903 = vunpack.c.l.b16 %v372
  %v2904 = vunpack.c.h.b16 %v372
  %v2905 = vunpack.c.l.b16 %v373
  %v2906 = vunpack.c.h.b16 %v373
  %v2907 = vunpack.c.l.b16 %v374
  %v2908 = vunpack.c.h.b16 %v374
  %v2909 = vunpack.c.l.b16 %v375
  %v2910 = vunpack.c.h.b16 %v375
  %v2911 = vunpack.c.l.b16 %v376
  %v2912 = vunpack.c.h.b16 %v376
  %v2913 = vunpack.c.l.b16 %v377
  %v2914 = vunpack.c.h.b16 %v377
  %v2915 = vunpack.c.l.b16 %v378
  %v2916 = vunpack.c.h.b16 %v378
  %v2917 = vunpack.c.l.b16 %v379
  %v2918 = vunpack.c.h.b16 %v379
  %v2919 = vunpack.c.l.b16 %v380
  %v2920 = vunpack.c.h.b16 %v380
  %v2921 = vunpack.c.l.b16 %v381
  %v2922 = vunpack.c.h.b16 %v381
  %v2923 = vunpack.c.l.b16 %v382
  %v2924 = vunpack.c.h.b16 %v382
  %v2925 = vunpack.c.l.b16 %v383
  %v2926 = vunpack.c.h.b16 %v383
  %v2927 = vunpack.c.l.b16 %v384
  %v2928 = vunpack.c.h.b16 %v384
  %v2929 = vunpack.c.l.b16 %v385
  %v2930 = vunpack.c.h.b16 %v385
  %v2931 = vunpack.c.l.b16 %v386
  %v2932 = vunpack.c.h.b16 %v386
  %v2933 = vunpack.c.l.b16 %v387
  %v2934 = vunpack.c.h.b16 %v387
  %v2935 = vunpack.c.l.b16 %v388
  %v2936 = vunpack.c.h.b16 %v388
  %v2937 = vunpack.c.l.b16 %v389
  %v2938 = vunpack.c.h.b16 %v389
  %v2939 = vunpack.c.l.b16 %v390
  %v2940 = vunpack.c.h.b16 %v390
  %v2941 = vunpack.c.l.b16 %v391
  %v2942 = vunpack.c.h.b16 %v391
  %v2943 = vunpack.c.l.b16 %v392
  %v2944 = vunpack.c.h.b16 %v392
  %v2945 = vunpack.c.l.b16 %v393
  %v2946 = vunpack.c.h.b16 %v393
  %v2947 = vunpack.c.l.b16 %v394
  %v2948 = vunpack.c.h.b16 %v394
  %v2949 = vunpack.c.l.b16 %v395
  %v2950 = vunpack.c.h.b16 %v395
  %v2951 = vunpack.c.l.b16 %v396
  %v2952 = vunpack.c.h.b16 %v396
  %v2953 = vunpack.c.l.b16 %v397
  %v2954 = vunpack.c.h.b16 %v397
  %v2955 = vunpack.c.l.b16 %v398
  %v2956 = vunpack.c.h.b16 %v398
  %v2957 = vunpack.c.l.b16 %v399
  %v2958 = vunpack.c.h.b16 %v399
  %v2959 = vunpack.c.l.b16 %v400
  %v2960 = vunpack.c.h.b16 %v400
  %v2961 = vunpack.c.l.b16 %v401
  %v2962 = vunpack.c.h.b16 %v401
  %v2963 = vunpack.c.l.b16 %v402
  %v2964 = vunpack.c.h.b16 %v402
  %v2965 = vunpack.c.l.b16 %v403
  %v2966 = vunpack.c.h.b16 %v403
  %v2967 = vunpack.c.l.b16 %v404
  %v2968 = vunpack.c.h.b16 %v404
  %v2969 = vunpack.c.l.b16 %v405
  %v2970 = vunpack.c.h.b16 %v405
  %v2971 = vunpack.c.l.b16 %v406
  %v2972 = vunpack.c.h.b16 %v406
  %v2973 = vunpack.c.l.b16 %v407
  %v2974 = vunpack.c.h.b16 %v407
  %v2975 = vunpack.c.l.b16 %v408
  %v2976 = vunpack.c.h.b16 %v408
  %v2977 = vunpack.c.l.b16 %v409
  %v2978 = vunpack.c.h.b16 %v409
  %v2979 = vunpack.c.l.b16 %v410
  %v2980 = vunpack.c.h.b16 %v410
  %v2981 = vunpack.c.l.b16 %v411
  %v2982 = vunpack.c.h.b16 %v411
  %v2983 = vunpack.c.l.b16 %v412
  %v2984 = vunpack.c.h.b16 %v412
  %v2985 = vunpack.c.l.b16 %v413
  %v2986 = vunpack.c.h.b16 %v413
  %v2987 = vunpack.c.l.b16 %v414
  %v2988 = vunpack.c.h.b16 %v414
  %v2989 = vunpack.c.l.b16 %v415
  %v2990 = vunpack.c.h.b16 %v415
  %v2991 = vunpack.c.l.b16 %v416
  %v2992 = vunpack.c.h.b16 %v416
  %v2993 = vunpack.c.l.b16 %v417
  %v2994 = vunpack.c.h.b16 %v417
  %v2995 = vunpack.c.l.b16 %v418
  %v2996 = vunpack.c.h.b16 %v418
  %v2997 = vunpack.c.l.b16 %v419
  %v2998 = vunpack.c.h.b16 %v419
  %v2999 = vunpack.c.l.b16 %v420
  %v3000 = vunpack.c.h.b16 %v420
  %v3001 = vunpack.c.l.b16 %v421
  %v3002 = vunpack.c.h.b16 %v421
  %v3003 = vunpack.c.l.b16 %v422
  %v3004 = vunpack.c.h.b16 %v422
  %v3005 = vunpack.c.l.b16 %v423
  %v3006 = vunpack.c.h.b16 %v423
  %v3007 = vunpack.c.l.b16 %v424
  %v3008 = vunpack.c.h.b16 %v424
  %v3009 = vunpack.c.l.b16 %v425
  %v3010 = vunpack.c.h.b16 %v425
  %v3011 = vunpack.c.l.b16 %v426
  %v3012 = vunpack.c.h.b16 %v426
  %v3013 = vunpack.c.l.b16 %v427
  %v3014 = vunpack.c.h.b16 %v427
  %v3015 = vunpack.c.l.b16 %v428
  %v3016 = vunpack.c.h.b16 %v428
  %v3017 = vunpack.c.l.b16 %v429
  %v3018 = vunpack.c.h.b16 %v429
  %v3019 = vunpack.c.l.b16 %v430
  %v3020 = vunpack.c.h.b16 %v430
  %v3021 = vunpack.c.l.b16 %v431
  %v3022 = vunpack.c.h.b16 %v431
  %v3023 = vunpack.c.l.b16 %v432
  %v3024 = vunpack.c.h.b16 %v432
  %v3025 = vunpack.c.l.b16 %v433
  %v3026 = vunpack.c.h.b16 %v433
  %v3027 = vunpack.c.l.b16 %v434
  %v3028 = vunpack.c.h.b16 %v434
  %v3029 = vunpack.c.l.b16 %v435
  %v3030 = vunpack.c.h.b16 %v435
  %v3031 = vunpack.c.l.b16 %v436
  %v3032 = vunpack.c.h.b16 %v436
  %v3033 = vunpack.c.l.b16 %v437
  %v3034 = vunpack.c.h.b16 %v437
  %v3035 = vunpack.c.l.b16 %v438
  %v3036 = vunpack.c.h.b16 %v438
  %v3037 = vunpack.c.l.b16 %v439
  %v3038 = vunpack.c.h.b16 %v439
  %v3039 = vunpack.c.l.b16 %v440
  %v3040 = vunpack.c.h.b16 %v440
  %v3041 = vunpack.c.l.b16 %v441
  %v3042 = vunpack.c.h.b16 %v441
  %v3043 = vunpack.c.l.b16 %v442
  %v3044 = vunpack.c.h.b16 %v442
  %v3045 = vunpack.c.l.b16 %v443
  %v3046 = vunpack.c.h.b16 %v443
  %v3047 = vunpack.c.l.b16 %v444
  %v3048 = vunpack.c.h.b16 %v444
  %v3049 = vunpack.c.l.b16 %v445
  %v3050 = vunpack.c.h.b16 %v445
  %v3051 = vunpack.c.l.b16 %v446
  %v3052 = vunpack.c.h.b16 %v446
  %v3053 = vunpack.c.l.b16 %v447
  %v3054 = vunpack.c.h.b16 %v447
  %v3055 = vunpack.c.l.b16 %v448
  %v3056 = vunpack.c.h.b16 %v448
  %v3057 = vunpack.c.l.b16 %v449
  %v3058 = vunpack.c.h.b16 %v449
  %v3059 = vunpack.c.l.b16 %v450
  %v3060 = vunpack.c.h.b16 %v450
  %v3061 = vunpack.c.l.b16 %v451
  %v3062 = vunpack.c.h.b16 %v451
  %v3063 = vunpack.c.l.b16 %v452
  %v3064 = vunpack.c.h.b16 %v452
  %v3065 = vunpack.c.l.b16 %v453
  %v3066 = vunpack.c.h.b16 %v453
  %v3067 = vunpack.c.l.b16 %v454
  %v3068 = vunpack.c.h.b16 %v454
  %v3069 = vunpack.c.l.b16 %v455
  %v3070 = vunpack.c.h.b16 %v455
  %v3071 = vunpack.c.l.b16 %v456
  %v3072 = vunpack.c.h.b16 %v456
  %v3073 = vunpack.c.l.b16 %v457
  %v3074 = vunpack.c.h.b16 %v457
  %v3075 = vunpack.c.l.b16 %v458
  %v3076 = vunpack.c.h.b16 %v458
  %v3077 = vunpack.c.l.b16 %v459
  %v3078 = vunpack.c.h.b16 %v459
  %v3079 = vunpack.c.l.b16 %v460
  %v3080 = vunpack.c.h.b16 %v460
  %v3081 = vunpack.c.l.b16 %v461
  %v3082 = vunpack.c.h.b16 %v461
  %v3083 = vunpack.c.l.b16 %v462
  %v3084 = vunpack.c.h.b16 %v462
  %v3085 = vunpack.c.l.b16 %v463
  %v3086 = vunpack.c.h.b16 %v463
  %v3087 = vunpack.c.l.b16 %v464
  %v3088 = vunpack.c.h.b16 %v464
  %v3089 = vunpack.c.l.b16 %v465
  %v3090 = vunpack.c.h.b16 %v465
  %v3091 = vunpack.c.l.b16 %v466
  %v3092 = vunpack.c.h.b16 %v466
  %v3093 = vunpack.c.l.b16 %v467
  %v3094 = vunpack.c.h.b16 %v467
  %v3095 = vunpack.c.l.b16 %v468
  %v3096 = vunpack.c.h.b16 %v468
  %v3097 = vunpack.c.l.b16 %v469
  %v3098 = vunpack.c.h.b16 %v469
  %v3099 = vunpack.c.l.b16 %v470
  %v3100 = vunpack.c.h.b16 %v470
  %v3101 = vunpack.c.l.b16 %v471
  %v3102 = vunpack.c.h.b16 %v471
  %v3103 = vunpack.c.l.b16 %v472
  %v3104 = vunpack.c.h.b16 %v472
  %v3105 = vunpack.c.l.b16 %v473
  %v3106 = vunpack.c.h.b16 %v473
  %v3107 = vunpack.c.l.b16 %v474
  %v3108 = vunpack.c.h.b16 %v474
  %v3109 = vunpack.c.l.b16 %v475
  %v3110 = vunpack.c.h.b16 %v475
  %v3111 = vunpack.c.l.b16 %v476
  %v3112 = vunpack.c.h.b16 %v476
  %v3113 = vunpack.c.l.b16 %v477
  %v3114 = vunpack.c.h.b16 %v477
  %v3115 = vunpack.c.l.b16 %v478
  %v3116 = vunpack.c.h.b16 %v478
  %v3117 = vunpack.c.l.b16 %v479
  %v3118 = vunpack.c.h.b16 %v479
  %v3119 = vunpack.c.l.b16 %v480
  %v3120 = vunpack.c.h.b16 %v480
  %v3121 = vunpack.c.l.b16 %v481
  %v3122 = vunpack.c.h.b16 %v481
  %v3123 = vunpack.c.l.b16 %v482
  %v3124 = vunpack.c.h.b16 %v482
  %v3125 = vunpack.c.l.b16 %v483
  %v3126 = vunpack.c.h.b16 %v483
  %v3127 = vunpack.c.l.b16 %v484
  %v3128 = vunpack.c.h.b16 %v484
  %v3129 = vunpack.c.l.b16 %v485
  %v3130 = vunpack.c.h.b16 %v485
  %v3131 = vunpack.c.l.b16 %v486
  %v3132 = vunpack.c.h.b16 %v486
  %v3133 = vunpack.c.l.b16 %v487
  %v3134 = vunpack.c.h.b16 %v487
  %v3135 = vunpack.c.l.b16 %v488
  %v3136 = vunpack.c.h.b16 %v488
  %v3137 = vunpack.c.l.b16 %v489
  %v3138 = vunpack.c.h.b16 %v489
  %v3139 = vunpack.c.l.b16 %v490
  %v3140 = vunpack.c.h.b16 %v490
  %v3141 = vunpack.c.l.b16 %v491
  %v3142 = vunpack.c.h.b16 %v491
  %v3143 = vunpack.c.l.b16 %v492
  %v3144 = vunpack.c.h.b16 %v492
  %v3145 = vunpack.c.l.b16 %v493
  %v3146 = vunpack.c.h.b16 %v493
  %v3147 = vunpack.c.l.b16 %v494
  %v3148 = vunpack.c.h.b16 %v494
  %v3149 = vunpack.c.l.b16 %v495
  %v3150 = vunpack.c.h.b16 %v495
  %v3151 = vunpack.c.l.b16 %v496
  %v3152 = vunpack.c.h.b16 %v496
  %v3153 = vunpack.c.l.b16 %v497
  %v3154 = vunpack.c.h.b16 %v497
  %v3155 = vunpack.c.l.b16 %v498
  %v3156 = vunpack.c.h.b16 %v498
  %v3157 = vunpack.c.l.b16 %v499
  %v3158 = vunpack.c.h.b16 %v499
  %v3159 = vunpack.c.l.b16 %v500
  %v3160 = vunpack.c.h.b16 %v500
  %v3161 = vunpack.c.l.b16 %v501
  %v3162 = vunpack.c.h.b16 %v501
  %v3163 = vunpack.c.l.b16 %v502
  %v3164 = vunpack.c.h.b16 %v502
  %v3165 = vunpack.c.l.b16 %v503
  %v3166 = vunpack.c.h.b16 %v503
  %v3167 = vunpack.c.l.b16 %v504
  %v3168 = vunpack.c.h.b16 %v504
  %v3169 = vunpack.c.l.b16 %v505
  %v3170 = vunpack.c.h.b16 %v505
  %v3171 = vunpack.c.l.b16 %v506
  %v3172 = vunpack.c.h.b16 %v506
  %v3173 = vunpack.c.l.b16 %v507
  %v3174 = vunpack.c.h.b16 %v507
  %v3175 = vunpack.c.l.b16 %v508
  %v3176 = vunpack.c.h.b16 %v508
  %v3177 = vunpack.c.l.b16 %v509
  %v3178 = vunpack.c.h.b16 %v509
  %v3179 = vunpack.c.l.b16 %v510
  %v3180 = vunpack.c.h.b16 %v510
  %v3181 = vunpack.c.l.b16 %v511
  %v3182 = vunpack.c.h.b16 %v511
  %v3183 = vunpack.c.l.b16 %v512
  %v3184 = vunpack.c.h.b16 %v512
  %v3185 = vunpack.c.l.b16 %v513
  %v3186 = vunpack.c.h.b16 %v513
  %v3187 = vunpack.c.l.b16 %v514
  %v3188 = vunpack.c.h.b16 %v514
  %v3189 = vunpack.c.l.b16 %v515
  %v3190 = vunpack.c.h.b16 %v515
  %v3191 = vunpack.c.l.b16 %v516
  %v3192 = vunpack.c.h.b16 %v516
  %v3193 = vunpack.c.l.b16 %v517
  %v3194 = vunpack.c.h.b16 %v517
  %v3195 = vunpack.c.l.b16 %v518
  %v3196 = vunpack.c.h.b16 %v518
  %v3197 = vunpack.c.l.b16 %v519
  %v3198 = vunpack.c.h.b16 %v519
  %v3199 = vunpack.c.l.b16 %v520
  %v3200 = vunpack.c.h.b16 %v520
  %v3201 = vunpack.c.l.b16 %v521
  %v3202 = vunpack.c.h.b16 %v521
  %v3203 = vunpack.c.l.b16 %v522
  %v3204 = vunpack.c.h.b16 %v522
  %v3205 = vunpack.c.l.b16 %v523
  %v3206 = vunpack.c.h.b16 %v523
  %v3207 = vunpack.c.l.b16 %v524
  %v3208 = vunpack.c.h.b16 %v524
  %v3209 = vunpack.c.l.b16 %v525
  %v3210 = vunpack.c.h.b16 %v525
  %v3211 = vunpack.c.l.b16 %v526
  %v3212 = vunpack.c.h.b16 %v526
  %v3213 = vunpack.c.l.b16 %v527
  %v3214 = vunpack.c.h.b16 %v527
  %v3215 = vunpack.c.l.b16 %v528
  %v3216 = vunpack.c.h.b16 %v528
  %v3217 = vunpack.c.l.b16 %v529
  %v3218 = vunpack.c.h.b16 %v529
  %v3219 = vunpack.c.l.b16 %v530
  %v3220 = vunpack.c.h.b16 %v530
  %v3221 = vunpack.c.l.b16 %v531
  %v3222 = vunpack.c.h.b16 %v531
  %v3223 = vunpack.c.l.b16 %v532
  %v3224 = vunpack.c.h.b16 %v532
  %v3225 = vunpack.c.l.b16 %v533
  %v3226 = vunpack.c.h.b16 %v533
  %v3227 = vunpack.c.l.b16 %v534
  %v3228 = vunpack.c.h.b16 %v534
  %v3229 = vunpack.c.l.b16 %v535
  %v3230 = vunpack.c.h.b16 %v535
  %v3231 = vunpack.c.l.b16 %v536
  %v3232 = vunpack.c.h.b16 %v536
  %v3233 = vunpack.c.l.b16 %v537
  %v3234 = vunpack.c.h.b16 %v537
  %v3235 = vunpack.c.l.b16 %v538
  %v3236 = vunpack.c.h.b16 %v538
  %v3237 = vunpack.c.l.b16 %v539
  %v3238 = vunpack.c.h.b16 %v539
  %v3239 = vunpack.c.l.b16 %v540
  %v3240 = vunpack.c.h.b16 %v540
  %v3241 = vunpack.c.l.b16 %v541
  %v3242 = vunpack.c.h.b16 %v541
  %v3243 = vunpack.c.l.b16 %v542
  %v3244 = vunpack.c.h.b16 %v542
  %v3245 = vunpack.c.l.b16 %v543
  %v3246 = vunpack.c.h.b16 %v543
  %v3247 = vunpack.c.l.b16 %v544
  %v3248 = vunpack.c.h.b16 %v544
  %v3249 = vunpack.c.l.b16 %v545
  %v3250 = vunpack.c.h.b16 %v545
  %v3251 = vunpack.c.l.b16 %v546
  %v3252 = vunpack.c.h.b16 %v546
  %v3253 = vunpack.c.l.b16 %v547
  %v3254 = vunpack.c.h.b16 %v547
  %v3255 = vunpack.c.l.b16 %v548
  %v3256 = vunpack.c.h.b16 %v548
  %v3257 = vunpack.c.l.b16 %v549
  %v3258 = vunpack.c.h.b16 %v549
  %v3259 = vunpack.c.l.b16 %v550
  %v3260 = vunpack.c.h.b16 %v550
  %v3261 = vunpack.c.l.b16 %v551
  %v3262 = vunpack.c.h.b16 %v551
  %v3263 = vunpack.c.l.b16 %v552
  %v3264 = vunpack.c.h.b16 %v552
  %v3265 = vunpack.c.l.b16 %v553
  %v3266 = vunpack.c.h.b16 %v553
  %v3267 = vunpack.c.l.b16 %v554
  %v3268 = vunpack.c.h.b16 %v554
  %v3269 = vunpack.c.l.b16 %v555
  %v3270 = vunpack.c.h.b16 %v555
  %v3271 = vunpack.c.l.b16 %v556
  %v3272 = vunpack.c.h.b16 %v556
  %v3273 = vunpack.c.l.b16 %v557
  %v3274 = vunpack.c.h.b16 %v557
  %v3275 = vunpack.c.l.b16 %v558
  %v3276 = vunpack.c.h.b16 %v558
  %v3277 = vunpack.c.l.b16 %v559
  %v3278 = vunpack.c.h.b16 %v559
  %v3279 = vunpack.c.l.b16 %v560
  %v3280 = vunpack.c.h.b16 %v560
  %v3281 = vunpack.c.l.b16 %v561
  %v3282 = vunpack.c.h.b16 %v561
  %v3283 = vunpack.c.l.b16 %v562
  %v3284 = vunpack.c.h.b16 %v562
  %v3285 = vunpack.c.l.b16 %v563
  %v3286 = vunpack.c.h.b16 %v563
  %v3287 = vunpack.c.l.b16 %v564
  %v3288 = vunpack.c.h.b16 %v564
  %v3289 = vunpack.c.l.b16 %v565
  %v3290 = vunpack.c.h.b16 %v565
  %v3291 = vunpack.c.l.b16 %v566
  %v3292 = vunpack.c.h.b16 %v566
  %v3293 = vunpack.c.l.b16 %v567
  %v3294 = vunpack.c.h.b16 %v567
  %v3295 = vunpack.c.l.b16 %v568
  %v3296 = vunpack.c.h.b16 %v568
  %v3297 = vunpack.c.l.b16 %v569
  %v3298 = vunpack.c.h.b16 %v569
  %v3299 = vunpack.c.l.b16 %v570
  %v3300 = vunpack.c.h.b16 %v570
  %v3301 = vunpack.c.l.b16 %v571
  %v3302 = vunpack.c.h.b16 %v571
  %v3303 = vunpack.c.l.b16 %v572
  %v3304 = vunpack.c.h.b16 %v572
  %v3305 = vunpack.c.l.b16 %v573
  %v3306 = vunpack.c.h.b16 %v573
  %v3307 = vunpack.c.l.b16 %v574
  %v3308 = vunpack.c.h.b16 %v574
  %v3309 = vunpack.c.l.b16 %v575
  %v3310 = vunpack.c.h.b16 %v575
  %v3311 = vunpack.c.l.b16 %v576
  %v3312 = vunpack.c.h.b16 %v576
  %v3313 = vunpack.c.l.b16 %v577
  %v3314 = vunpack.c.h.b16 %v577
  %v3315 = vunpack.c.l.b16 %v578
  %v3316 = vunpack.c.h.b16 %v578
  %v3317 = vunpack.c.l.b16 %v579
  %v3318 = vunpack.c.h.b16 %v579
  %v3319 = vunpack.c.l.b16 %v580
  %v3320 = vunpack.c.h.b16 %v580
  %v3321 = vunpack.c.l.b16 %v581
  %v3322 = vunpack.c.h.b16 %v581
  %v3323 = vunpack.c.l.b16 %v582
  %v3324 = vunpack.c.h.b16 %v582
  %v3325 = vunpack.c.l.b16 %v583
  %v3326 = vunpack.c.h.b16 %v583
  %v3327 = vunpack.c.l.b16 %v584
  %v3328 = vunpack.c.h.b16 %v584
  %v3329 = vunpack.c.l.b16 %v585
  %v3330 = vunpack.c.h.b16 %v585
  %v3331 = vunpack.c.l.b16 %v586
  %v3332 = vunpack.c.h.b16 %v586
  %v3333 = vunpack.c.l.b16 %v587
  %v3334 = vunpack.c.h.b16 %v587
  %v3335 = vunpack.c.l.b16 %v588
  %v3336 = vunpack.c.h.b16 %v588
  %v3337 = vunpack.c.l.b16 %v589
  %v3338 = vunpack.c.h.b16 %v589
  %v3339 = vunpack.c.l.b16 %v590
  %v3340 = vunpack.c.h.b16 %v590
  %v3341 = vunpack.c.l.b16 %v591
  %v3342 = vunpack.c.h.b16 %v591
  %v3343 = vunpack.c.l.b16 %v592
  %v3344 = vunpack.c.h.b16 %v592
  %v3345 = vunpack.c.l.b16 %v593
  %v3346 = vunpack.c.h.b16 %v593
  %v3347 = vunpack.c.l.b16 %v594
  %v3348 = vunpack.c.h.b16 %v594
  %v3349 = vunpack.c.l.b16 %v595
  %v3350 = vunpack.c.h.b16 %v595
  %v3351 = vunpack.c.l.b16 %v596
  %v3352 = vunpack.c.h.b16 %v596
  %v3353 = vunpack.c.l.b16 %v597
  %v3354 = vunpack.c.h.b16 %v597
  %v3355 = vunpack.c.l.b16 %v598
  %v3356 = vunpack.c.h.b16 %v598
  %v3357 = vunpack.c.l.b16 %v599
  %v3358 = vunpack.c.h.b16 %v599
  %v3359 = vunpack.c.l.b16 %v600
  %v3360 = vunpack.c.h.b16 %v600
  %v3361 = vunpack.c.l.b16 %v601
  %v3362 = vunpack.c.h.b16 %v601
  %v3363 = vunpack.c.l.b16 %v602
  %v3364 = vunpack.c.h.b16 %v602
  %v3365 = vunpack.c.l.b16 %v603
  %v3366 = vunpack.c.h.b16 %v603
  %v3367 = vunpack.c.l.b16 %v604
  %v3368 = vunpack.c.h.b16 %v604
  %v3369 = vunpack.c.l.b16 %v605
  %v3370 = vunpack.c.h.b16 %v605
  %v3371 = vunpack.c.l.b16 %v606
  %v3372 = vunpack.c.h.b16 %v606
  %v3373 = vunpack.c.l.b16 %v607
  %v3374 = vunpack.c.h.b16 %v607
  %v3375 = vunpack.c.l.b16 %v608
  %v3376 = vunpack.c.h.b16 %v608
  %v3377 = vunpack.c.l.b16 %v609
  %v3378 = vunpack.c.h.b16 %v609
  %v3379 = vunpack.c.l.b16 %v610
  %v3380 = vunpack.c.h.b16 %v610
  %v3381 = vunpack.c.l.b16 %v611
  %v3382 = vunpack.c.h.b16 %v611
  %v3383 = vunpack.c.l.b16 %v612
  %v3384 = vunpack.c.h.b16 %v612
  %v3385 = vunpack.c.l.b16 %v613
  %v3386 = vunpack.c.h.b16 %v613
  %v3387 = vunpack.c.l.b16 %v614
  %v3388 = vunpack.c.h.b16 %v614
  %v3389 = vunpack.c.l.b16 %v615
  %v3390 = vunpack.c.h.b16 %v615
  %v3391 = vunpack.c.l.b16 %v616
  %v3392 = vunpack.c.h.b16 %v616
  %v3393 = vunpack.c.l.b16 %v617
  %v3394 = vunpack.c.h.b16 %v617
  %v3395 = vunpack.c.l.b16 %v618
  %v3396 = vunpack.c.h.b16 %v618
  %v3397 = vunpack.c.l.b16 %v619
  %v3398 = vunpack.c.h.b16 %v619
  %v3399 = vunpack.c.l.b16 %v620
  %v3400 = vunpack.c.h.b16 %v620
  %v3401 = vunpack.c.l.b16 %v621
  %v3402 = vunpack.c.h.b16 %v621
  %v3403 = vunpack.c.l.b16 %v622
  %v3404 = vunpack.c.h.b16 %v622
  %v3405 = vunpack.c.l.b16 %v623
  %v3406 = vunpack.c.h.b16 %v623
  %v3407 = vunpack.c.l.b16 %v624
  %v3408 = vunpack.c.h.b16 %v624
  %v3409 = vunpack.c.l.b16 %v625
  %v3410 = vunpack.c.h.b16 %v625
  %v3411 = vunpack.c.l.b16 %v626
  %v3412 = vunpack.c.h.b16 %v626
  %v3413 = vunpack.c.l.b16 %v627
  %v3414 = vunpack.c.h.b16 %v627
  %v3415 = vunpack.c.l.b16 %v628
  %v3416 = vunpack.c.h.b16 %v628
  %v3417 = vunpack.c.l.b16 %v629
  %v3418 = vunpack.c.h.b16 %v629
  %v3419 = vunpack.c.l.b16 %v630
  %v3420 = vunpack.c.h.b16 %v630
  %v3421 = vunpack.c.l.b16 %v631
  %v3422 = vunpack.c.h.b16 %v631
  %v3423 = vunpack.c.l.b16 %v632
  %v3424 = vunpack.c.h.b16 %v632
  %v3425 = vunpack.c.l.b16 %v633
  %v3426 = vunpack.c.h.b16 %v633
  %v3427 = vunpack.c.l.b16 %v634
  %v3428 = vunpack.c.h.b16 %v634
  %v3429 = vunpack.c.l.b16 %v635
  %v3430 = vunpack.c.h.b16 %v635
  %v3431 = vunpack.c.l.b16 %v636
  %v3432 = vunpack.c.h.b16 %v636
  %v3433 = vunpack.c.l.b16 %v637
  %v3434 = vunpack.c.h.b16 %v637
  %v3435 = vunpack.c.l.b16 %v638
  %v3436 = vunpack.c.h.b16 %v638
  %v3437 = vunpack.c.l.b16 %v639
  %v3438 = vunpack.c.h.b16 %v639
  %v3439 = vunpack.c.l.b16 %v640
  %v3440 = vunpack.c.h.b16 %v640
  %v3441 = vunpack.c.l.b16 %v641
  %v3442 = vunpack.c.h.b16 %v641
  %v3443 = vunpack.c.l.b16 %v642
  %v3444 = vunpack.c.h.b16 %v642
  %v3445 = vunpack.c.l.b16 %v643
  %v3446 = vunpack.c.h.b16 %v643
  %v3447 = vunpack.c.l.b16 %v644
  %v3448 = vunpack.c.h.b16 %v644
  %v3449 = vunpack.c.l.b16 %v645
  %v3450 = vunpack.c.h.b16 %v645
  %v3451 = vunpack.c.l.b16 %v646
  %v3452 = vunpack.c.h.b16 %v646
  %v3453 = vunpack.c.l.b16 %v647
  %v3454 = vunpack.c.h.b16 %v647
  %v3455 = vunpack.c.l.b16 %v648
  %v3456 = vunpack.c.h.b16 %v648
  %v3457 = vunpack.c.l.b16 %v649
  %v3458 = vunpack.c.h.b16 %v649
  %v3459 = vunpack.c.l.b16 %v650
  %v3460 = vunpack.c.h.b16 %v650
  %v3461 = vunpack.c.l.b16 %v651
  %v3462 = vunpack.c.h.b16 %v651
  %v3463 = vunpack.c.l.b16 %v652
  %v3464 = vunpack.c.h.b16 %v652
  %v3465 = vunpack.c.l.b16 %v653
  %v3466 = vunpack.c.h.b16 %v653
  %v3467 = vunpack.c.l.b16 %v654
  %v3468 = vunpack.c.h.b16 %v654
  %v3469 = vunpack.c.l.b16 %v655
  %v3470 = vunpack.c.h.b16 %v655
  %v3471 = vunpack.c.l.b16 %v656
  %v3472 = vunpack.c.h.b16 %v656
  %v3473 = vunpack.c.l.b16 %v657
  %v3474 = vunpack.c.h.b16 %v657
  %v3475 = vunpack.c.l.b16 %v658
  %v3476 = vunpack.c.h.b16 %v658
  %v3477 = vunpack.c.l.b16 %v659
  %v3478 = vunpack.c.h.b16 %v659
  %v3479 = vunpack.c.l.b16 %v660
  %v3480 = vunpack.c.h.b16 %v660
  %v3481 = vunpack.c.l.b16 %v661
  %v3482 = vunpack.c.h.b16 %v661
  %v3483 = vunpack.c.l.b16 %v662
  %v3484 = vunpack.c.h.b16 %v662
  %v3485 = vunpack.c.l.b16 %v663
  %v3486 = vunpack.c.h.b16 %v663
  %v3487 = vunpack.c.l.b16 %v664
  %v3488 = vunpack.c.h.b16 %v664
  %v3489 = vunpack.c.l.b16 %v665
  %v3490 = vunpack.c.h.b16 %v665
  %v3491 = vunpack.c.l.b16 %v666
  %v3492 = vunpack.c.h.b16 %v666
  %v3493 = vunpack.c.l.b16 %v667
  %v3494 = vunpack.c.h.b16 %v667
  %v3495 = vunpack.c.l.b16 %v668
  %v3496 = vunpack.c.h.b16 %v668
  %v3497 = vunpack.c.l.b16 %v669
  %v3498 = vunpack.c.h.b16 %v669
  %v3499 = vunpack.c.l.b16 %v670
  %v3500 = vunpack.c.h.b16 %v670
  %v3501 = vunpack.c.l.b16 %v671
  %v3502 = vunpack.c.h.b16 %v671
  %v3503 = vunpack.c.l.b16 %v672
  %v3504 = vunpack.c.h.b16 %v672
  %v3505 = vunpack.c.l.b16 %v673
  %v3506 = vunpack.c.h.b16 %v673
  %v3507 = vunpack.c.l.b16 %v674
  %v3508 = vunpack.c.h.b16 %v674
  %v3509 = vunpack.c.l.b16 %v675
  %v3510 = vunpack.c.h.b16 %v675
  %v3511 = vunpack.c.l.b16 %v676
  %v3512 = vunpack.c.h.b16 %v676
  %v3513 = vunpack.c.l.b16 %v677
  %v3514 = vunpack.c.h.b16 %v677
  %v3515 = vunpack.c.l.b16 %v678
  %v3516 = vunpack.c.h.b16 %v678
  %v3517 = vunpack.c.l.b16 %v679
  %v3518 = vunpack.c.h.b16 %v679
  %v3519 = vunpack.c.l.b16 %v680
  %v3520 = vunpack.c.h.b16 %v680
  %v3521 = vunpack.c.l.b16 %v681
  %v3522 = vunpack.c.h.b16 %v681
  %v3523 = vunpack.c.l.b16 %v682
  %v3524 = vunpack.c.h.b16 %v682
  %v3525 = vunpack.c.l.b16 %v683
  %v3526 = vunpack.c.h.b16 %v683
  %v3527 = vunpack.c.l.b16 %v684
  %v3528 = vunpack.c.h.b16 %v684
  %v3529 = vunpack.c.l.b16 %v685
  %v3530 = vunpack.c.h.b16 %v685
  %v3531 = vunpack.c.l.b16 %v686
  %v3532 = vunpack.c.h.b16 %v686
  %v3533 = vunpack.c.l.b16 %v687
  %v3534 = vunpack.c.h.b16 %v687
  %v3535 = vunpack.c.l.b16 %v688
  %v3536 = vunpack.c.h.b16 %v688
  %v3537 = vunpack.c.l.b16 %v689
  %v3538 = vunpack.c.h.b16 %v689
  %v3539 = vunpack.c.l.b16 %v690
  %v3540 = vunpack.c.h.b16 %v690
  %v3541 = vunpack.c.l.b16 %v691
  %v3542 = vunpack.c.h.b16 %v691
  %v3543 = vunpack.c.l.b16 %v692
  %v3544 = vunpack.c.h.b16 %v692
  %v3545 = vunpack.c.l.b16 %v693
  %v3546 = vunpack.c.h.b16 %v693
  %v3547 = vunpack.c.l.b16 %v694
  %v3548 = vunpack.c.h.b16 %v694
  %v3549 = vunpack.c.l.b16 %v695
  %v3550 = vunpack.c.h.b16 %v695
  %v3551 = vunpack.c.l.b16 %v696
  %v3552 = vunpack.c.h.b16 %v696
  %v3553 = vunpack.c.l.b16 %v697
  %v3554 = vunpack.c.h.b16 %v697
  %v3555 = vunpack.c.l.b16 %v698
  %v3556 = vunpack.c.h.b16 %v698
  %v3557 = vunpack.c.l.b16 %v699
  %v3558 = vunpack.c.h.b16 %v699
  %v3559 = vunpack.c.l.b16 %v700
  %v3560 = vunpack.c.h.b16 %v700
  %v3561 = vunpack.c.l.b16 %v701
  %v3562 = vunpack.c.h.b16 %v701
  %v3563 = vunpack.c.l.b16 %v702
  %v3564 = vunpack.c.h.b16 %v702
  %v3565 = vunpack.c.l.b16 %v703
  %v3566 = vunpack.c.h.b16 %v703
  %v3567 = vunpack.c.l.b16 %v704
  %v3568 = vunpack.c.h.b16 %v704
  %v3569 = vunpack.c.l.b16 %v705
  %v3570 = vunpack.c.h.b16 %v705
  %v3571 = vunpack.c.l.b16 %v706
  %v3572 = vunpack.c.h.b16 %v706
  %v3573 = vunpack.c.l.b16 %v707
  %v3574 = vunpack.c.h.b16 %v707
  %v3575 = vunpack.c.l.b16 %v708
  %v3576 = vunpack.c.h.b16 %v708
  %v3577 = vunpack.c.l.b16 %v709
  %v3578 = vunpack.c.h.b16 %v709
  %v3579 = vunpack.c.l.b16 %v710
  %v3580 = vunpack.c.h.b16 %v710
  %v3581 = vunpack.c.l.b16 %v711
  %v3582 = vunpack.c.h.b16 %v711
  %v3583 = vunpack.c.l.b16 %v712
  %v3584 = vunpack.c.h.b16 %v712
  %v3585 = vunpack.c.l.b16 %v713
  %v3586 = vunpack.c.h.b16 %v713
  %v3587 = vunpack.c.l.b16 %v714
  %v3588 = vunpack.c.h.b16 %v714
  %v3589 = vunpack.c.l.b16 %v715
  %v3590 = vunpack.c.h.b16 %v715
  %v3591 = vunpack.c.l.b16 %v716
  %v3592 = vunpack.c.h.b16 %v716
  %v3593 = vunpack.c.l.b16 %v717
  %v3594 = vunpack.c.h.b16 %v717
  %v3595 = vunpack.c.l.b16 %v718
  %v3596 = vunpack.c.h.b16 %v718
  %v3597 = vunpack.c.l.b16 %v719
  %v3598 = vunpack.c.h.b16 %v719
  %v3599 = vunpack.c.l.b16 %v720
  %v3600 = vunpack.c.h.b16 %v720
  %v3601 = vunpack.c.l.b16 %v721
  %v3602 = vunpack.c.h.b16 %v721
  %v3603 = vunpack.c.l.b16 %v722
  %v3604 = vunpack.c.h.b16 %v722
  %v3605 = vunpack.c.l.b16 %v723
  %v3606 = vunpack.c.h.b16 %v723
  %v3607 = vunpack.c.l.b16 %v724
  %v3608 = vunpack.c.h.b16 %v724
  %v3609 = vunpack.c.l.b16 %v725
  %v3610 = vunpack.c.h.b16 %v725
  %v3611 = vunpack.c.l.b16 %v726
  %v3612 = vunpack.c.h.b16 %v726
  %v3613 = vunpack.c.l.b16 %v727
  %v3614 = vunpack.c.h.b16 %v727
  %v3615 = vunpack.c.l.b16 %v728
  %v3616 = vunpack.c.h.b16 %v728
  %v3617 = vunpack.c.l.b16 %v729
  %v3618 = vunpack.c.h.b16 %v729
  %v3619 = vunpack.c.l.b16 %v730
  %v3620 = vunpack.c.h.b16 %v730
  %v3621 = vunpack.c.l.b16 %v731
  %v3622 = vunpack.c.h.b16 %v731
  %v3623 = vunpack.c.l.b16 %v732
  %v3624 = vunpack.c.h.b16 %v732
  %v3625 = vunpack.c.l.b16 %v733
  %v3626 = vunpack.c.h.b16 %v733
  %v3627 = vunpack.c.l.b16 %v734
  %v3628 = vunpack.c.h.b16 %v734
  %v3629 = vunpack.c.l.b16 %v735
  %v3630 = vunpack.c.h.b16 %v735
  %v3631 = vunpack.c.l.b16 %v736
  %v3632 = vunpack.c.h.b16 %v736
  %v3633 = vunpack.c.l.b16 %v737
  %v3634 = vunpack.c.h.b16 %v737
  %v3635 = vunpack.c.l.b16 %v738
  %v3636 = vunpack.c.h.b16 %v738
  %v3637 = vunpack.c.l.b16 %v739
  %v3638 = vunpack.c.h.b16 %v739
  %v3639 = vunpack.c.l.b16 %v740
  %v3640 = vunpack.c.h.b16 %v740
  %v3641 = vunpack.c.l.b16 %v741
  %v3642 = vunpack.c.h.b16 %v741
  %v3643 = vunpack.c.l.b16 %v742
  %v3644 = vunpack.c.h.b16 %v742
  %v3645 = vunpack.c.l.b16 %v743
  %v3646 = vunpack.c.h.b16 %v743
  %v3647 = vunpack.c.l.b16 %v744
  %v3648 = vunpack.c.h.b16 %v744
  %v3649 = vunpack.c.l.b16 %v745
  %v3650 = vunpack.c.h.b16 %v745
  %v3651 = vunpack.c.l.b16 %v746
  %v3652 = vunpack.c.h.b16 %v746
  %v3653 = vunpack.c.l.b16 %v747
  %v3654 = vunpack.c.h.b16 %v747
  %v3655 = vunpack.c.l.b16 %v748
  %v3656 = vunpack.c.h.b16 %v748
  %v3657 = vunpack.c.l.b16 %v749
  %v3658 = vunpack.c.h.b16 %v749
  %v3659 = vunpack.c.l.b16 %v750
  %v3660 = vunpack.c.h.b16 %v750
  %v3661 = vunpack.c.l.b16 %v751
  %v3662 = vunpack.c.h.b16 %v751
  %v3663 = vunpack.c.l.b16 %v752
  %v3664 = vunpack.c.h.b16 %v752
  %v3665 = vunpack.c.l.b16 %v753
  %v3666 = vunpack.c.h.b16 %v753
  %v3667 = vunpack.c.l.b16 %v754
  %v3668 = vunpack.c.h.b16 %v754
  %v3669 = vunpack.c.l.b16 %v755
  %v3670 = vunpack.c.h.b16 %v755
  %v3671 = vunpack.c.l.b16 %v756
  %v3672 = vunpack.c.h.b16 %v756
  %v3673 = vunpack.c.l.b16 %v757
  %v3674 = vunpack.c.h.b16 %v757
  %v3675 = vunpack.c.l.b16 %v758
  %v3676 = vunpack.c.h.b16 %v758
  %v3677 = vunpack.c.l.b16 %v759
  %v3678 = vunpack.c.h.b16 %v759
  %v3679 = vunpack.c.l.b16 %v760
  %v3680 = vunpack.c.h.b16 %v760
  %v3681 = vunpack.c.l.b16 %v761
  %v3682 = vunpack.c.h.b16 %v761
  %v3683 = vunpack.c.l.b16 %v762
  %v3684 = vunpack.c.h.b16 %v762
  %v3685 = vunpack.c.l.b16 %v763
  %v3686 = vunpack.c.h.b16 %v763
  %v3687 = vunpack.c.l.b16 %v764
  %v3688 = vunpack.c.h.b16 %v764
  %v3689 = vunpack.c.l.b16 %v765
  %v3690 = vunpack.c.h.b16 %v765
  %v3691 = vunpack.c.l.b16 %v766
  %v3692 = vunpack.c.h.b16 %v766
  %v3693 = vunpack.c.l.b16 %v767
  %v3694 = vunpack.c.h.b16 %v767
  %v3695 = vunpack.c.l.b16 %v768
  %v3696 = vunpack.c.h.b16 %v768
  %v3697 = vunpack.c.l.b16 %v769
  %v3698 = vunpack.c.h.b16 %v769
  %v3699 = vunpack.c.l.b16 %v770
  %v3700 = vunpack.c.h.b16 %v770
  %v3701 = vunpack.c.l.b16 %v771
  %v3702 = vunpack.c.h.b16 %v771
  %v3703 = vunpack.c.l.b16 %v772
  %v3704 = vunpack.c.h.b16 %v772
  %v3705 = vunpack.c.l.b16 %v773
  %v3706 = vunpack.c.h.b16 %v773
  %v3707 = vunpack.c.l.b16 %v774
  %v3708 = vunpack.c.h.b16 %v774
  %v3709 = vunpack.c.l.b16 %v775
  %v3710 = vunpack.c.h.b16 %v775
  %v3711 = vunpack.c.l.b16 %v776
  %v3712 = vunpack.c.h.b16 %v776
  %v3713 = vunpack.c.l.b16 %v777
  %v3714 = vunpack.c.h.b16 %v777
  %v3715 = vunpack.c.l.b16 %v778
  %v3716 = vunpack.c.h.b16 %v778
  %v3717 = vunpack.c.l.b16 %v779
  %v3718 = vunpack.c.h.b16 %v779
  %v3719 = vunpack.c.l.b16 %v780
  %v3720 = vunpack.c.h.b16 %v780
  %v3721 = vunpack.c.l.b16 %v781
  %v3722 = vunpack.c.h.b16 %v781
  %v3723 = vunpack.c.l.b16 %v782
  %v3724 = vunpack.c.h.b16 %v782
  %v3725 = vunpack.c.l.b16 %v783
  %v3726 = vunpack.c.h.b16 %v783
  %v3727 = vunpack.c.l.b16 %v784
  %v3728 = vunpack.c.h.b16 %v784
  %v3729 = vunpack.c.l.b16 %v785
  %v3730 = vunpack.c.h.b16 %v785
  %v3731 = vunpack.c.l.b16 %v786
  %v3732 = vunpack.c.h.b16 %v786
  %v3733 = vunpack.c.l.b16 %v787
  %v3734 = vunpack.c.h.b16 %v787
  %v3735 = vunpack.c.l.b16 %v788
  %v3736 = vunpack.c.h.b16 %v788
  %v3737 = vunpack.c.l.b16 %v789
  %v3738 = vunpack.c.h.b16 %v789
  %v3739 = vunpack.c.l.b16 %v790
  %v3740 = vunpack.c.h.b16 %v790
  %v3741 = vunpack.c.l.b16 %v791
  %v3742 = vunpack.c.h.b16 %v791
  %v3743 = vunpack.c.l.b16 %v792
  %v3744 = vunpack.c.h.b16 %v792
  %v3745 = vunpack.c.l.b16 %v793
  %v3746 = vunpack.c.h.b16 %v793
  %v3747 = vunpack.c.l.b16 %v794
  %v3748 = vunpack.c.h.b16 %v794
  %v3749 = vunpack.c.l.b16 %v795
  %v3750 = vunpack.c.h.b16 %v795
  %v3751 = vunpack.c.l.b16 %v796
  %v3752 = vunpack.c.h.b16 %v796
  %v3753 = vunpack.c.l.b16 %v797
  %v3754 = vunpack.c.h.b16 %v797
  %v3755 = vunpack.c.l.b16 %v798
  %v3756 = vunpack.c.h.b16 %v798
  %v3757 = vunpack.c.l.b16 %v799
  %v3758 = vunpack.c.h.b16 %v799
  %v3759 = vunpack.c.l.b16 %v800
  %v3760 = vunpack.c.h.b16 %v800
  %v3761 = vunpack.c.l.b16 %v801
  %v3762 = vunpack.c.h.b16 %v801
  %v3763 = vunpack.c.l.b16 %v802
  %v3764 = vunpack.c.h.b16 %v802
  %v3765 = vunpack.c.l.b16 %v803
  %v3766 = vunpack.c.h.b16 %v803
  %v3767 = vunpack.c.l.b16 %v804
  %v3768 = vunpack.c.h.b16 %v804
  %v3769 = vunpack.c.l.b16 %v805
  %v3770 = vunpack.c.h.b16 %v805
  %v3771 = vunpack.c.l.b16 %v806
  %v3772 = vunpack.c.h.b16 %v806
  %v3773 = vunpack.c.l.b16 %v807
  %v3774 = vunpack.c.h.b16 %v807
  %v3775 = vunpack.c.l.b16 %v808
  %v3776 = vunpack.c.h.b16 %v808
  %v3777 = vunpack.c.l.b16 %v809
  %v3778 = vunpack.c.h.b16 %v809
  %v3779 = vunpack.c.l.b16 %v810
  %v3780 = vunpack.c.h.b16 %v810
  %v3781 = vunpack.c.l.b16 %v811
  %v3782 = vunpack.c.h.b16 %v811
  %v3783 = vunpack.c.l.b16 %v812
  %v3784 = vunpack.c.h.b16 %v812
  %v3785 = vunpack.c.l.b16 %v813
  %v3786 = vunpack.c.h.b16 %v813
  %v3787 = vunpack.c.l.b16 %v814
  %v3788 = vunpack.c.h.b16 %v814
  %v3789 = vunpack.c.l.b16 %v815
  %v3790 = vunpack.c.h.b16 %v815
  %v3791 = vunpack.c.l.b16 %v816
  %v3792 = vunpack.c.h.b16 %v816
  %v3793 = vunpack.c.l.b16 %v817
  %v3794 = vunpack.c.h.b16 %v817
  %v3795 = vunpack.c.l.b16 %v818
  %v3796 = vunpack.c.h.b16 %v818
  %v3797 = vunpack.c.l.b16 %v819
  %v3798 = vunpack.c.h.b16 %v819
  %v3799 = vunpack.c.l.b16 %v820
  %v3800 = vunpack.c.h.b16 %v820
  %v3801 = vunpack.c.l.b16 %v821
  %v3802 = vunpack.c.h.b16 %v821
  %v3803 = vunpack.c.l.b16 %v822
  %v3804 = vunpack.c.h.b16 %v822
  %v3805 = vunpack.c.l.b16 %v823
  %v3806 = vunpack.c.h.b16 %v823
  %v3807 = vunpack.c.l.b16 %v824
  %v3808 = vunpack.c.h.b16 %v824
  %v3809 = vunpack.c.l.b16 %v825
  %v3810 = vunpack.c.h.b16 %v825
  %v3811 = vunpack.c.l.b16 %v826
  %v3812 = vunpack.c.h.b16 %v826
  %v3813 = vunpack.c.l.b16 %v827
  %v3814 = vunpack.c.h.b16 %v827
  %v3815 = vunpack.c.l.b16 %v828
  %v3816 = vunpack.c.h.b16 %v828
  %v3817 = vunpack.c.l.b16 %v829
  %v3818 = vunpack.c.h.b16 %v829
  %v3819 = vunpack.c.l.b16 %v830
  %v3820 = vunpack.c.h.b16 %v830
  %v3821 = vunpack.c.l.b16 %v831
  %v3822 = vunpack.c.h.b16 %v831
  %v3823 = vunpack.c.l.b16 %v832
  %v3824 = vunpack.c.h.b16 %v832
  %v3825 = vunpack.c.l.b16 %v833
  %v3826 = vunpack.c.h.b16 %v833
  %v3827 = vunpack.c.l.b16 %v834
  %v3828 = vunpack.c.h.b16 %v834
  %v3829 = vunpack.c.l.b16 %v835
  %v3830 = vunpack.c.h.b16 %v835
  %v3831 = vunpack.c.l.b16 %v836
  %v3832 = vunpack.c.h.b16 %v836
  %v3833 = vunpack.c.l.b16 %v837
  %v3834 = vunpack.c.h.b16 %v837
  %v3835 = vunpack.c.l.b16 %v838
  %v3836 = vunpack.c.h.b16 %v838
  %v3837 = vunpack.c.l.b16 %v839
  %v3838 = vunpack.c.h.b16 %v839
  %v3839 = vunpack.c.l.b16 %v840
  %v3840 = vunpack.c.h.b16 %v840
  %v3841 = vunpack.c.l.b16 %v841
  %v3842 = vunpack.c.h.b16 %v841
  %v3843 = vunpack.c.l.b16 %v842
  %v3844 = vunpack.c.h.b16 %v842
  %v3845 = vunpack.c.l.b16 %v843
  %v3846 = vunpack.c.h.b16 %v843
  %v3847 = vunpack.c.l.b16 %v844
  %v3848 = vunpack.c.h.b16 %v844
  %v3849 = vunpack.c.l.b16 %v845
  %v3850 = vunpack.c.h.b16 %v845
  %v3851 = vunpack.c.l.b16 %v846
  %v3852 = vunpack.c.h.b16 %v846
  %v3853 = vunpack.c.l.b16 %v847
  %v3854 = vunpack.c.h.b16 %v847
  %v3855 = vunpack.c.l.b16 %v848
  %v3856 = vunpack.c.h.b16 %v848
  %v3857 = vunpack.c.l.b16 %v849
  %v3858 = vunpack.c.h.b16 %v849
  %v3859 = vunpack.c.l.b16 %v850
  %v3860 = vunpack.c.h.b16 %v850
  %v3861 = vunpack.c.l.b16 %v851
  %v3862 = vunpack.c.h.b16 %v851
  %v3863 = vunpack.c.l.b16 %v852
  %v3864 = vunpack.c.h.b16 %v852
  %v3865 = vunpack.c.l.b16 %v853
  %v3866 = vunpack.c.h.b16 %v853
  %v3867 = vunpack.c.l.b16 %v854
  %v3868 = vunpack.c.h.b16 %v854
  %v3869 = vunpack.c.l.b16 %v855
  %v3870 = vunpack.c.h.b16 %v855
  %v3871 = vunpack.c.l.b16 %v856
  %v3872 = vunpack.c.h.b16 %v856
  %v3873 = vunpack.c.l.b16 %v857
  %v3874 = vunpack.c.h.b16 %v857
  %v3875 = vunpack.c.l.b16 %v858
  %v3876 = vunpack.c.h.b16 %v858
  %v3877 = vunpack.c.l.b16 %v859
  %v3878 = vunpack.c.h.b16 %v859
  %v3879 = vunpack.c.l.b16 %v860
  %v3880 = vunpack.c.h.b16 %v860
  %v3881 = vunpack.c.l.b16 %v861
  %v3882 = vunpack.c.h.b16 %v861
  %v3883 = vunpack.c.l.b16 %v862
  %v3884 = vunpack.c.h.b16 %v862
  %v3885 = vunpack.c.l.b16 %v863
  %v3886 = vunpack.c.h.b16 %v863
  %v3887 = vunpack.c.l.b16 %v864
  %v3888 = vunpack.c.h.b16 %v864
  %v3889 = vunpack.c.l.b16 %v865
  %v3890 = vunpack.c.h.b16 %v865
  %v3891 = vunpack.c.l.b16 %v866
  %v3892 = vunpack.c.h.b16 %v866
  %v3893 = vunpack.c.l.b16 %v867
  %v3894 = vunpack.c.h.b16 %v867
  %v3895 = vunpack.c.l.b16 %v868
  %v3896 = vunpack.c.h.b16 %v868
  %v3897 = vunpack.c.l.b16 %v869
  %v3898 = vunpack.c.h.b16 %v869
  %v3899 = vunpack.c.l.b16 %v870
  %v3900 = vunpack.c.h.b16 %v870
  %v3901 = vunpack.c.l.b16 %v871
  %v3902 = vunpack.c.h.b16 %v871
  %v3903 = vunpack.c.l.b16 %v872
  %v3904 = vunpack.c.h.b16 %v872
  %v3905 = vunpack.c.l.b16 %v873
  %v3906 = vunpack.c.h.b16 %v873
  %v3907 = vunpack.c.l.b16 %v874
  %v3908 = vunpack.c.h.b16 %v874
  %v3909 = vunpack.c.l.b16 %v875
  %v3910 = vunpack.c.h.b16 %v875
  %v3911 = vunpack.c.l.b16 %v876
  %v3912 = vunpack.c.h.b16 %v876
  %v3913 = vunpack.c.l.b16 %v877
  %v3914 = vunpack.c.h.b16 %v877
  %v3915 = vunpack.c.l.b16 %v878
  %v3916 = vunpack.c.h.b16 %v878
  %v3917 = vunpack.c.l.b16 %v879
  %v3918 = vunpack.c.h.b16 %v879
  %v3919 = vunpack.c.l.b16 %v880
  %v3920 = vunpack.c.h.b16 %v880
  %v3921 = vunpack.c.l.b16 %v881
  %v3922 = vunpack.c.h.b16 %v881
  %v3923 = vunpack.c.l.b16 %v882
  %v3924 = vunpack.c.h.b16 %v882
  %v3925 = vunpack.c.l.b16 %v883
  %v3926 = vunpack.c.h.b16 %v883
  %v3927 = vunpack.c.l.b16 %v884
  %v3928 = vunpack.c.h.b16 %v884
  %v3929 = vunpack.c.l.b16 %v885
  %v3930 = vunpack.c.h.b16 %v885
  %v3931 = vunpack.c.l.b16 %v886
  %v3932 = vunpack.c.h.b16 %v886
  %v3933 = vunpack.c.l.b16 %v887
  %v3934 = vunpack.c.h.b16 %v887
  %v3935 = vunpack.c.l.b16 %v888
  %v3936 = vunpack.c.h.b16 %v888
  %v3937 = vunpack.c.l.b16 %v889
  %v3938 = vunpack.c.h.b16 %v889
  %v3939 = vunpack.c.l.b16 %v890
  %v3940 = vunpack.c.h.b16 %v890
  %v3941 = vunpack.c.l.b16 %v891
  %v3942 = vunpack.c.h.b16 %v891
  %v3943 = vunpack.c.l.b16 %v892
  %v3944 = vunpack.c.h.b16 %v892
  %v3945 = vunpack.c.l.b16 %v893
  %v3946 = vunpack.c.h.b16 %v893
  %v3947 = vunpack.c.l.b16 %v894
  %v3948 = vunpack.c.h.b16 %v894
  %v3949 = vunpack.c.l.b16 %v895
  %v3950 = vunpack.c.h.b16 %v895
  %v3951 = vunpack.c.l.b16 %v896
  %v3952 = vunpack.c.h.b16 %v896
  %v3953 = vunpack.c.l.b16 %v897
  %v3954 = vunpack.c.h.b16 %v897
  %v3955 = vunpack.c.l.b16 %v898
  %v3956 = vunpack.c.h.b16 %v898
  %v3957 = vunpack.c.l.b16 %v899
  %v3958 = vunpack.c.h.b16 %v899
  %v3959 = vunpack.c.l.b16 %v900
  %v3960 = vunpack.c.h.b16 %v900
  %v3961 = vunpack.c.l.b16 %v901
  %v3962 = vunpack.c.h.b16 %v901
  %v3963 = vunpack.c.l.b16 %v902
  %v3964 = vunpack.c.h.b16 %v902
  %v3965 = vunpack.c.l.b16 %v903
  %v3966 = vunpack.c.h.b16 %v903
  %v3967 = vunpack.c.l.b16 %v904
  %v3968 = vunpack.c.h.b16 %v904
  %v3969 = vunpack.c.l.b16 %v905
  %v3970 = vunpack.c.h.b16 %v905
  %v3971 = vunpack.c.l.b16 %v906
  %v3972 = vunpack.c.h.b16 %v906
  %v3973 = vunpack.c.l.b16 %v907
  %v3974 = vunpack.c.h.b16 %v907
  %v3975 = vunpack.c.l.b16 %v908
  %v3976 = vunpack.c.h.b16 %v908
  %v3977 = vunpack.c.l.b16 %v909
  %v3978 = vunpack.c.h.b16 %v909
  %v3979 = vunpack.c.l.b16 %v910
  %v3980 = vunpack.c.h.b16 %v910
  %v3981 = vunpack.c.l.b16 %v911
  %v3982 = vunpack.c.h.b16 %v911
  %v3983 = vunpack.c.l.b16 %v912
  %v3984 = vunpack.c.h.b16 %v912
  %v3985 = vunpack.c.l.b16 %v913
  %v3986 = vunpack.c.h.b16 %v913
  %v3987 = vunpack.c.l.b16 %v914
  %v3988 = vunpack.c.h.b16 %v914
  %v3989 = vunpack.c.l.b16 %v915
  %v3990 = vunpack.c.h.b16 %v915
  %v3991 = vunpack.c.l.b16 %v916
  %v3992 = vunpack.c.h.b16 %v916
  %v3993 = vunpack.c.l.b16 %v917
  %v3994 = vunpack.c.h.b16 %v917
  %v3995 = vunpack.c.l.b16 %v918
  %v3996 = vunpack.c.h.b16 %v918
  %v3997 = vunpack.c.l.b16 %v919
  %v3998 = vunpack.c.h.b16 %v919
  %v3999 = vunpack.c.l.b16 %v920
  %v4000 = vunpack.c.h.b16 %v920
  %v4001 = vunpack.c.l.b16 %v921
  %v4002 = vunpack.c.h.b16 %v921
  %v4003 = vunpack.c.l.b16 %v922
  %v4004 = vunpack.c.h.b16 %v922
  %v4005 = vunpack.c.l.b16 %v923
  %v4006 = vunpack.c.h.b16 %v923
  %v4007 = vunpack.c.l.b16 %v924
  %v4008 = vunpack.c.h.b16 %v924
  %v4009 = vunpack.c.l.b16 %v925
  %v4010 = vunpack.c.h.b16 %v925
  %v4011 = vunpack.c.l.b16 %v926
  %v4012 = vunpack.c.h.b16 %v926
  %v4013 = vunpack.c.l.b16 %v927
  %v4014 = vunpack.c.h.b16 %v927
  %v4015 = vunpack.c.l.b16 %v928
  %v4016 = vunpack.c.h.b16 %v928
  %v4017 = vunpack.c.l.b16 %v929
  %v4018 = vunpack.c.h.b16 %v929
  %v4019 = vunpack.c.l.b16 %v930
  %v4020 = vunpack.c.h.b16 %v930
  %v4021 = vunpack.c.l.b16 %v931
  %v4022 = vunpack.c.h.b16 %v931
  %v4023 = vunpack.c.l.b16 %v932
  %v4024 = vunpack.c.h.b16 %v932
  %v4025 = vunpack.c.l.b16 %v933
  %v4026 = vunpack.c.h.b16 %v933
  %v4027 = vunpack.c.l.b16 %v934
  %v4028 = vunpack.c.h.b16 %v934
  %v4029 = vunpack.c.l.b16 %v935
  %v4030 = vunpack.c.h.b16 %v935
  %v4031 = vunpack.c.l.b16 %v936
  %v4032 = vunpack.c.h.b16 %v936
  %v4033 = vunpack.c.l.b16 %v937
  %v4034 = vunpack.c.h.b16 %v937
  %v4035 = vunpack.c.l.b16 %v938
  %v4036 = vunpack.c.h.b16 %v938
  %v4037 = vunpack.c.l.b16 %v939
  %v4038 = vunpack.c.h.b16 %v939
  %v4039 = vunpack.c.l.b16 %v940
  %v4040 = vunpack.c.h.b16 %v940
  %v4041 = vunpack.c.l.b16 %v941
  %v4042 = vunpack.c.h.b16 %v941
  %v4043 = vunpack.c.l.b16 %v942
  %v4044 = vunpack.c.h.b16 %v942
  %v4045 = vunpack.c.l.b16 %v943
  %v4046 = vunpack.c.h.b16 %v943
  %v4047 = vunpack.c.l.b16 %v944
  %v4048 = vunpack.c.h.b16 %v944
  %v4049 = vunpack.c.l.b16 %v945
  %v4050 = vunpack.c.h.b16 %v945
  %v4051 = vunpack.c.l.b16 %v946
  %v4052 = vunpack.c.h.b16 %v946
  %v4053 = vunpack.c.l.b16 %v947
  %v4054 = vunpack.c.h.b16 %v947
  %v4055 = vunpack.c.l.b16 %v948
  %v4056 = vunpack.c.h.b16 %v948
  %v4057 = vunpack.c.l.b16 %v949
  %v4058 = vunpack.c.h.b16 %v949
  %v4059 = vunpack.c.l.b16 %v950
  %v4060 = vunpack.c.h.b16 %v950
  %v4061 = vunpack.c.l.b16 %v951
  %v4062 = vunpack.c.h.b16 %v951
  %v4063 = vunpack.c.l.b16 %v952
  %v4064 = vunpack.c.h.b16 %v952
  %v4065 = vunpack.c.l.b16 %v953
  %v4066 = vunpack.c.h.b16 %v953
  %v4067 = vunpack.c.l.b16 %v954
  %v4068 = vunpack.c.h.b16 %v954
  %v4069 = vunpack.c.l.b16 %v955
  %v4070 = vunpack.c.h.b16 %v955
  %v4071 = vunpack.c.l.b16 %v956
  %v4072 = vunpack.c.h.b16 %v956
  %v4073 = vunpack.c.l.b16 %v957
  %v4074 = vunpack.c.h.b16 %v957
  %v4075 = vunpack.c.l.b16 %v958
  %v4076 = vunpack.c.h.b16 %v958
  %v4077 = vunpack.c.l.b16 %v959
  %v4078 = vunpack.c.h.b16 %v959
  %v4079 = vunpack.c.l.b16 %v960
  %v4080 = vunpack.c.h.b16 %v960
  %v4081 = vunpack.c.l.b16 %v961
  %v4082 = vunpack.c.h.b16 %v961
  %v4083 = vunpack.c.l.b16 %v962
  %v4084 = vunpack.c.h.b16 %v962
  %v4085 = vunpack.c.l.b16 %v963
  %v4086 = vunpack.c.h.b16 %v963
  %v4087 = vunpack.c.l.b16 %v964
  %v4088 = vunpack.c.h.b16 %v964
  %v4089 = vunpack.c.l.b16 %v965
  %v4090 = vunpack.c.h.b16 %v965
  %v4091 = vunpack.c.l.b16 %v966
  %v4092 = vunpack.c.h.b16 %v966
  %v4093 = vunpack.c.l.b16 %v967
  %v4094 = vunpack.c.h.b16 %v967
  %v4095 = vunpack.c.l.b16 %v968
  %v4096 = vunpack.c.h.b16 %v968
  %v4097 = vunpack.c.l.b16 %v969
  %v4098 = vunpack.c.h.b16 %v969
  %v4099 = vunpack.c.l.b16 %v970
  %v4100 = vunpack.c.h.b16 %v970
  %v4101 = vunpack.c.l.b16 %v971
  %v4102 = vunpack.c.h.b16 %v971
  %v4103 = vunpack.c.l.b16 %v972
  %v4104 = vunpack.c.h.b16 %v972
  %v4105 = vunpack.c.l.b16 %v973
  %v4106 = vunpack.c.h.b16 %v973
  %v4107 = vunpack.c.l.b16 %v974
  %v4108 = vunpack.c.h.b16 %v974
  %v4109 = vunpack.c.l.b16 %v975
  %v4110 = vunpack.c.h.b16 %v975
  %v4111 = vunpack.c.l.b16 %v976
  %v4112 = vunpack.c.h.b16 %v976
  %v4113 = vunpack.c.l.b16 %v977
  %v4114 = vunpack.c.h.b16 %v977
  %v4115 = vunpack.c.l.b16 %v978
  %v4116 = vunpack.c.h.b16 %v978
  %v4117 = vunpack.c.l.b16 %v979
  %v4118 = vunpack.c.h.b16 %v979
  %v4119 = vunpack.c.l.b16 %v980
  %v4120 = vunpack.c.h.b16 %v980
  %v4121 = vunpack.c.l.b16 %v981
  %v4122 = vunpack.c.h.b16 %v981
  %v4123 = vunpack.c.l.b16 %v982
  %v4124 = vunpack.c.h.b16 %v982
  %v4125 = vunpack.c.l.b16 %v983
  %v4126 = vunpack.c.h.b16 %v983
  %v4127 = vunpack.c.l.b16 %v984
  %v4128 = vunpack.c.h.b16 %v984
  %v4129 = vunpack.c.l.b16 %v985
  %v4130 = vunpack.c.h.b16 %v985
  %v4131 = vunpack.c.l.b16 %v986
  %v4132 = vunpack.c.h.b16 %v986
  %v4133 = vunpack.c.l.b16 %v987
  %v4134 = vunpack.c.h.b16 %v987
  %v4135 = vunpack.c.l.b16 %v988
  %v4136 = vunpack.c.h.b16 %v988
  %v4137 = vunpack.c.l.b16 %v989
  %v4138 = vunpack.c.h.b16 %v989
  %v4139 = vunpack.c.l.b16 %v990
  %v4140 = vunpack.c.h.b16 %v990
  %v4141 = vunpack.c.l.b16 %v991
  %v4142 = vunpack.c.h.b16 %v991
  %v4143 = vunpack.c.l.b16 %v992
  %v4144 = vunpack.c.h.b16 %v992
  %v4145 = vunpack.c.l.b16 %v993
  %v4146 = vunpack.c.h.b16 %v993
  %v4147 = vunpack.c.l.b16 %v994
  %v4148 = vunpack.c.h.b16 %v994
  %v4149 = vunpack.c.l.b16 %v995
  %v4150 = vunpack.c.h.b16 %v995
  %v4151 = vunpack.c.l.b16 %v996
  %v4152 = vunpack.c.h.b16 %v996
  %v4153 = vunpack.c.l.b16 %v997
  %v4154 = vunpack.c.h.b16 %v997
  %v4155 = vunpack.c.l.b16 %v998
  %v4156 = vunpack.c.h.b16 %v998
  %v4157 = vunpack.c.l.b16 %v999
  %v4158 = vunpack.c.h.b16 %v999
  %v4159 = vunpack.c.l.b16 %v1000
  %v4160 = vunpack.c.h.b16 %v1000
  %v4161 = vunpack.c.l.b16 %v1001
  %v4162 = vunpack.c.h.b16 %v1001
  %v4163 = vunpack.c.l.b16 %v1002
  %v4164 = vunpack.c.h.b16 %v1002
  %v4165 = vunpack.c.l.b16 %v1003
  %v4166 = vunpack.c.h.b16 %v1003
  %v4167 = vunpack.c.l.b16 %v1004
  %v4168 = vunpack.c.h.b16 %v1004
  %v4169 = vunpack.c.l.b16 %v1005
  %v4170 = vunpack.c.h.b16 %v1005
  %v4171 = vunpack.c.l.b16 %v1006
  %v4172 = vunpack.c.h.b16 %v1006
  %v4173 = vunpack.c.l.b16 %v1007
  %v4174 = vunpack.c.h.b16 %v1007
  %v4175 = vunpack.c.l.b16 %v1008
  %v4176 = vunpack.c.h.b16 %v1008
  %v4177 = vunpack.c.l.b16 %v1009
  %v4178 = vunpack.c.h.b16 %v1009
  %v4179 = vunpack.c.l.b16 %v1010
  %v4180 = vunpack.c.h.b16 %v1010
  %v4181 = vunpack.c.l.b16 %v1011
  %v4182 = vunpack.c.h.b16 %v1011
  %v4183 = vunpack.c.l.b16 %v1012
  %v4184 = vunpack.c.h.b16 %v1012
  %v4185 = vunpack.c.l.b16 %v1013
  %v4186 = vunpack.c.h.b16 %v1013
  %v4187 = vunpack.c.l.b16 %v1014
  %v4188 = vunpack.c.h.b16 %v1014
  %v4189 = vunpack.c.l.b16 %v1015
  %v4190 = vunpack.c.h.b16 %v1015
  %v4191 = vunpack.c.l.b16 %v1016
  %v4192 = vunpack.c.h.b16 %v1016
  %v4193 = vunpack.c.l.b16 %v1017
  %v4194 = vunpack.c.h.b16 %v1017
  %v4195 = vunpack.c.l.b16 %v1018
  %v4196 = vunpack.c.h.b16 %v1018
  %v4197 = vunpack.c.l.b16 %v1019
  %v4198 = vunpack.c.h.b16 %v1019
  %v4199 = vunpack.c.l.b16 %v1020
  %v4200 = vunpack.c.h.b16 %v1020
  %v4201 = vunpack.c.l.b16 %v1021
  %v4202 = vunpack.c.h.b16 %v1021
  %v4203 = vunpack.c.l.b16 %v1022
  %v4204 = vunpack.c.h.b16 %v1022
  %v4205 = vunpack.c.l.b16 %v1023
  %v4206 = vunpack.c.h.b16 %v1023
  %v4207 = vunpack.c.l.b16 %v1024
  %v4208 = vunpack.c.h.b16 %v1024
  %v4209 = vunpack.c.l.b16 %v1025
  %v4210 = vunpack.c.h.b16 %v1025
  %v4211 = vunpack.c.l.b16 %v1026
  %v4212 = vunpack.c.h.b16 %v1026
  %v4213 = vunpack.c.l.b16 %v1027
  %v4214 = vunpack.c.h.b16 %v1027
  %v4215 = vunpack.c.l.b16 %v1028
  %v4216 = vunpack.c.h.b16 %v1028
  %v4217 = vunpack.c.l.b16 %v1029
  %v4218 = vunpack.c.h.b16 %v1029
  %v4219 = vunpack.c.l.b16 %v1030
  %v4220 = vunpack.c.h.b16 %v1030
  %v4221 = vunpack.c.l.b16 %v1031
  %v4222 = vunpack.c.h.b16 %v1031
  %v4223 = vunpack.c.l.b16 %v1032
  %v4224 = vunpack.c.h.b16 %v1032
  %v4225 = vunpack.c.l.b16 %v1033
  %v4226 = vunpack.c.h.b16 %v1033
  %v4227 = vunpack.c.l.b16 %v1034
  %v4228 = vunpack.c.h.b16 %v1034
  %v4229 = vunpack.c.l.b16 %v1035
  %v4230 = vunpack.c.h.b16 %v1035
  %v4231 = vunpack.c.l.b16 %v1036
  %v4232 = vunpack.c.h.b16 %v1036
  %v4233 = vunpack.c.l.b16 %v1037
  %v4234 = vunpack.c.h.b16 %v1037
  %v4235 = vunpack.c.l.b16 %v1038
  %v4236 = vunpack.c.h.b16 %v1038
  %v4237 = vunpack.c.l.b16 %v1039
  %v4238 = vunpack.c.h.b16 %v1039
  %v4239 = vunpack.c.l.b16 %v1040
  %v4240 = vunpack.c.h.b16 %v1040
  %v4241 = vunpack.c.l.b16 %v1041
  %v4242 = vunpack.c.h.b16 %v1041
  %v4243 = vunpack.c.l.b16 %v1042
  %v4244 = vunpack.c.h.b16 %v1042
  %v4245 = vunpack.c.l.b16 %v1043
  %v4246 = vunpack.c.h.b16 %v1043
  %v4247 = vunpack.c.l.b16 %v1044
  %v4248 = vunpack.c.h.b16 %v1044
  %v4249 = vunpack.c.l.b16 %v1045
  %v4250 = vunpack.c.h.b16 %v1045
  %v4251 = vunpack.c.l.b16 %v1046
  %v4252 = vunpack.c.h.b16 %v1046
  %v4253 = vunpack.c.l.b16 %v1047
  %v4254 = vunpack.c.h.b16 %v1047
  %v4255 = vunpack.c.l.b16 %v1048
  %v4256 = vunpack.c.h.b16 %v1048
  %v4257 = vunpack.c.l.b16 %v1049
  %v4258 = vunpack.c.h.b16 %v1049
  %v4259 = vunpack.c.l.b16 %v1050
  %v4260 = vunpack.c.h.b16 %v1050
  %v4261 = vunpack.c.l.b16 %v1051
  %v4262 = vunpack.c.h.b16 %v1051
  %v4263 = vunpack.c.l.b16 %v1052
  %v4264 = vunpack.c.h.b16 %v1052
  %v4265 = vunpack.c.l.b16 %v1053
  %v4266 = vunpack.c.h.b16 %v1053
  %v4267 = vunpack.c.l.b16 %v1054
  %v4268 = vunpack.c.h.b16 %v1054
  %v4269 = vunpack.c.l.b16 %v1055
  %v4270 = vunpack.c.h.b16 %v1055
  %v4271 = vunpack.c.l.b16 %v1056
  %v4272 = vunpack.c.h.b16 %v1056
  %v4273 = vunpack.c.l.b16 %v1057
  %v4274 = vunpack.c.h.b16 %v1057
  %v4275 = vunpack.c.l.b16 %v1058
  %v4276 = vunpack.c.h.b16 %v1058
  %v4277 = vunpack.c.l.b16 %v1059
  %v4278 = vunpack.c.h.b16 %v1059
  %v4279 = vunpack.c.l.b16 %v1060
  %v4280 = vunpack.c.h.b16 %v1060
  %v4281 = vunpack.c.l.b16 %v1061
  %v4282 = vunpack.c.h.b16 %v1061
  %v4283 = vunpack.c.l.b16 %v1062
  %v4284 = vunpack.c.h.b16 %v1062
  %v4285 = vunpack.c.l.b16 %v1063
  %v4286 = vunpack.c.h.b16 %v1063
  %v4287 = vunpack.c.l.b16 %v1064
  %v4288 = vunpack.c.h.b16 %v1064
  %v4289 = vunpack.c.l.b16 %v1065
  %v4290 = vunpack.c.h.b16 %v1065
  %v4291 = vunpack.c.l.b16 %v1066
  %v4292 = vunpack.c.h.b16 %v1066
  %v4293 = vunpack.c.l.b16 %v1067
  %v4294 = vunpack.c.h.b16 %v1067
  %v4295 = vunpack.c.l.b16 %v1068
  %v4296 = vunpack.c.h.b16 %v1068
  %v4297 = vunpack.c.l.b16 %v1069
  %v4298 = vunpack.c.h.b16 %v1069
  %v4299 = vunpack.c.l.b16 %v1070
  %v4300 = vunpack.c.h.b16 %v1070
  %v4301 = vunpack.c.l.b16 %v1071
  %v4302 = vunpack.c.h.b16 %v1071
  %v4303 = vunpack.c.l.b16 %v1072
  %v4304 = vunpack.c.h.b16 %v1072
  %v4305 = vpack.c.b16 %v2261, %v2257
  %v4306 = vpack.c.b16 %v2262, %v2258
  %v4307 = vpack.c.b16 %v2263, %v2259
  %v4308 = vpack.c.b16 %v2264, %v2260
  %v4309 = vpack.c.b16 %v2269, %v2265
  %v4310 = vpack.c.b16 %v2270, %v2266
  %v4311 = vpack.c.b16 %v2271, %v2267
  %v4312 = vpack.c.b16 %v2272, %v2268
  %v4313 = vpack.c.b16 %v2277, %v2273
  %v4314 = vpack.c.b16 %v2278, %v2274
  %v4315 = vpack.c.b16 %v2279, %v2275
  %v4316 = vpack.c.b16 %v2280, %v2276
  %v4317 = vpack.c.b16 %v2285, %v2281
  %v4318 = vpack.c.b16 %v2286, %v2282
  %v4319 = vpack.c.b16 %v2287, %v2283
  %v4320 = vpack.c.b16 %v2288, %v2284
  %v4321 = vpack.c.b16 %v2293, %v2289
  %v4322 = vpack.c.b16 %v2294, %v2290
  %v4323 = vpack.c.b16 %v2295, %v2291
  %v4324 = vpack.c.b16 %v2296, %v2292
  %v4325 = vpack.c.b16 %v2301, %v2297
  %v4326 = vpack.c.b16 %v2302, %v2298
  %v4327 = vpack.c.b16 %v2303, %v2299
  %v4328 = vpack.c.b16 %v2304, %v2300
  %v4329 = vpack.c.b16 %v2309, %v2305
  %v4330 = vpack.c.b16 %v2310, %v2306
  %v4331 = vpack.c.b16 %v2311, %v2307
  %v4332 = vpack.c.b16 %v2312, %v2308
  %v4333 = vpack.c.b16 %v2317, %v2313
  %v4334 = vpack.c.b16 %v2318, %v2314
  %v4335 = vpack.c.b16 %v2319, %v2315
  %v4336 = vpack.c.b16 %v2320, %v2316
  %v4337 = vpack.c.b16 %v2325, %v2321
  %v4338 = vpack.c.b16 %v2326, %v2322
  %v4339 = vpack.c.b16 %v2327, %v2323
  %v4340 = vpack.c.b16 %v2328, %v2324
  %v4341 = vpack.c.b16 %v2333, %v2329
  %v4342 = vpack.c.b16 %v2334, %v2330
  %v4343 = vpack.c.b16 %v2335, %v2331
  %v4344 = vpack.c.b16 %v2336, %v2332
  %v4345 = vpack.c.b16 %v2341, %v2337
  %v4346 = vpack.c.b16 %v2342, %v2338
  %v4347 = vpack.c.b16 %v2343, %v2339
  %v4348 = vpack.c.b16 %v2344, %v2340
  %v4349 = vpack.c.b16 %v2349, %v2345
  %v4350 = vpack.c.b16 %v2350, %v2346
  %v4351 = vpack.c.b16 %v2351, %v2347
  %v4352 = vpack.c.b16 %v2352, %v2348
  %v4353 = vpack.c.b16 %v2357, %v2353
  %v4354 = vpack.c.b16 %v2358, %v2354
  %v4355 = vpack.c.b16 %v2359, %v2355
  %v4356 = vpack.c.b16 %v2360, %v2356
  %v4357 = vpack.c.b16 %v2365, %v2361
  %v4358 = vpack.c.b16 %v2366, %v2362
  %v4359 = vpack.c.b16 %v2367, %v2363
  %v4360 = vpack.c.b16 %v2368, %v2364
  %v4361 = vpack.c.b16 %v2373, %v2369
  %v4362 = vpack.c.b16 %v2374, %v2370
  %v4363 = vpack.c.b16 %v2375, %v2371
  %v4364 = vpack.c.b16 %v2376, %v2372
  %v4365 = vpack.c.b16 %v2381, %v2377
  %v4366 = vpack.c.b16 %v2382, %v2378
  %v4367 = vpack.c.b16 %v2383, %v2379
  %v4368 = vpack.c.b16 %v2384, %v2380
  %v4369 = vpack.c.b16 %v2389, %v2385
  %v4370 = vpack.c.b16 %v2390, %v2386
  %v4371 = vpack.c.b16 %v2391, %v2387
  %v4372 = vpack.c.b16 %v2392, %v2388
  %v4373 = vpack.c.b16 %v2397, %v2393
  %v4374 = vpack.c.b16 %v2398, %v2394
  %v4375 = vpack.c.b16 %v2399, %v2395
  %v4376 = vpack.c.b16 %v2400, %v2396
  %v4377 = vpack.c.b16 %v2405, %v2401
  %v4378 = vpack.c.b16 %v2406, %v2402
  %v4379 = vpack.c.b16 %v2407, %v2403
  %v4380 = vpack.c.b16 %v2408, %v2404
  %v4381 = vpack.c.b16 %v2413, %v2409
  %v4382 = vpack.c.b16 %v2414, %v2410
  %v4383 = vpack.c.b16 %v2415, %v2411
  %v4384 = vpack.c.b16 %v2416, %v2412
  %v4385 = vpack.c.b16 %v2421, %v2417
  %v4386 = vpack.c.b16 %v2422, %v2418
  %v4387 = vpack.c.b16 %v2423, %v2419
  %v4388 = vpack.c.b16 %v2424, %v2420
  %v4389 = vpack.c.b16 %v2429, %v2425
  %v4390 = vpack.c.b16 %v2430, %v2426
  %v4391 = vpack.c.b16 %v2431, %v2427
  %v4392 = vpack.c.b16 %v2432, %v2428
  %v4393 = vpack.c.b16 %v2437, %v2433
  %v4394 = vpack.c.b16 %v2438, %v2434
  %v4395 = vpack.c.b16 %v2439, %v2435
  %v4396 = vpack.c.b16 %v2440, %v2436
  %v4397 = vpack.c.b16 %v2445, %v2441
  %v4398 = vpack.c.b16 %v2446, %v2442
  %v4399 = vpack.c.b16 %v2447, %v2443
  %v4400 = vpack.c.b16 %v2448, %v2444
  %v4401 = vpack.c.b16 %v2453, %v2449
  %v4402 = vpack.c.b16 %v2454, %v2450
  %v4403 = vpack.c.b16 %v2455, %v2451
  %v4404 = vpack.c.b16 %v2456, %v2452
  %v4405 = vpack.c.b16 %v2461, %v2457
  %v4406 = vpack.c.b16 %v2462, %v2458
  %v4407 = vpack.c.b16 %v2463, %v2459
  %v4408 = vpack.c.b16 %v2464, %v2460
  %v4409 = vpack.c.b16 %v2469, %v2465
  %v4410 = vpack.c.b16 %v2470, %v2466
  %v4411 = vpack.c.b16 %v2471, %v2467
  %v4412 = vpack.c.b16 %v2472, %v2468
  %v4413 = vpack.c.b16 %v2477, %v2473
  %v4414 = vpack.c.b16 %v2478, %v2474
  %v4415 = vpack.c.b16 %v2479, %v2475
  %v4416 = vpack.c.b16 %v2480, %v2476
  %v4417 = vpack.c.b16 %v2485, %v2481
  %v4418 = vpack.c.b16 %v2486, %v2482
  %v4419 = vpack.c.b16 %v2487, %v2483
  %v4420 = vpack.c.b16 %v2488, %v2484
  %v4421 = vpack.c.b16 %v2493, %v2489
  %v4422 = vpack.c.b16 %v2494, %v2490
  %v4423 = vpack.c.b16 %v2495, %v2491
  %v4424 = vpack.c.b16 %v2496, %v2492
  %v4425 = vpack.c.b16 %v2501, %v2497
  %v4426 = vpack.c.b16 %v2502, %v2498
  %v4427 = vpack.c.b16 %v2503, %v2499
  %v4428 = vpack.c.b16 %v2504, %v2500
  %v4429 = vpack.c.b16 %v2509, %v2505
  %v4430 = vpack.c.b16 %v2510, %v2506
  %v4431 = vpack.c.b16 %v2511, %v2507
  %v4432 = vpack.c.b16 %v2512, %v2508
  %v4433 = vpack.c.b16 %v2517, %v2513
  %v4434 = vpack.c.b16 %v2518, %v2514
  %v4435 = vpack.c.b16 %v2519, %v2515
  %v4436 = vpack.c.b16 %v2520, %v2516
  %v4437 = vpack.c.b16 %v2525, %v2521
  %v4438 = vpack.c.b16 %v2526, %v2522
  %v4439 = vpack.c.b16 %v2527, %v2523
  %v4440 = vpack.c.b16 %v2528, %v2524
  %v4441 = vpack.c.b16 %v2533, %v2529
  %v4442 = vpack.c.b16 %v2534, %v2530
  %v4443 = vpack.c.b16 %v2535, %v2531
  %v4444 = vpack.c.b16 %v2536, %v2532
  %v4445 = vpack.c.b16 %v2541, %v2537
  %v4446 = vpack.c.b16 %v2542, %v2538
  %v4447 = vpack.c.b16 %v2543, %v2539
  %v4448 = vpack.c.b16 %v2544, %v2540
  %v4449 = vpack.c.b16 %v2549, %v2545
  %v4450 = vpack.c.b16 %v2550, %v2546
  %v4451 = vpack.c.b16 %v2551, %v2547
  %v4452 = vpack.c.b16 %v2552, %v2548
  %v4453 = vpack.c.b16 %v2557, %v2553
  %v4454 = vpack.c.b16 %v2558, %v2554
  %v4455 = vpack.c.b16 %v2559, %v2555
  %v4456 = vpack.c.b16 %v2560, %v2556
  %v4457 = vpack.c.b16 %v2565, %v2561
  %v4458 = vpack.c.b16 %v2566, %v2562
  %v4459 = vpack.c.b16 %v2567, %v2563
  %v4460 = vpack.c.b16 %v2568, %v2564
  %v4461 = vpack.c.b16 %v2573, %v2569
  %v4462 = vpack.c.b16 %v2574, %v2570
  %v4463 = vpack.c.b16 %v2575, %v2571
  %v4464 = vpack.c.b16 %v2576, %v2572
  %v4465 = vpack.c.b16 %v2581, %v2577
  %v4466 = vpack.c.b16 %v2582, %v2578
  %v4467 = vpack.c.b16 %v2583, %v2579
  %v4468 = vpack.c.b16 %v2584, %v2580
  %v4469 = vpack.c.b16 %v2589, %v2585
  %v4470 = vpack.c.b16 %v2590, %v2586
  %v4471 = vpack.c.b16 %v2591, %v2587
  %v4472 = vpack.c.b16 %v2592, %v2588
  %v4473 = vpack.c.b16 %v2597, %v2593
  %v4474 = vpack.c.b16 %v2598, %v2594
  %v4475 = vpack.c.b16 %v2599, %v2595
  %v4476 = vpack.c.b16 %v2600, %v2596
  %v4477 = vpack.c.b16 %v2605, %v2601
  %v4478 = vpack.c.b16 %v2606, %v2602
  %v4479 = vpack.c.b16 %v2607, %v2603
  %v4480 = vpack.c.b16 %v2608, %v2604
  %v4481 = vpack.c.b16 %v2613, %v2609
  %v4482 = vpack.c.b16 %v2614, %v2610
  %v4483 = vpack.c.b16 %v2615, %v2611
  %v4484 = vpack.c.b16 %v2616, %v2612
  %v4485 = vpack.c.b16 %v2621, %v2617
  %v4486 = vpack.c.b16 %v2622, %v2618
  %v4487 = vpack.c.b16 %v2623, %v2619
  %v4488 = vpack.c.b16 %v2624, %v2620
  %v4489 = vpack.c.b16 %v2629, %v2625
  %v4490 = vpack.c.b16 %v2630, %v2626
  %v4491 = vpack.c.b16 %v2631, %v2627
  %v4492 = vpack.c.b16 %v2632, %v2628
  %v4493 = vpack.c.b16 %v2637, %v2633
  %v4494 = vpack.c.b16 %v2638, %v2634
  %v4495 = vpack.c.b16 %v2639, %v2635
  %v4496 = vpack.c.b16 %v2640, %v2636
  %v4497 = vpack.c.b16 %v2645, %v2641
  %v4498 = vpack.c.b16 %v2646, %v2642
  %v4499 = vpack.c.b16 %v2647, %v2643
  %v4500 = vpack.c.b16 %v2648, %v2644
  %v4501 = vpack.c.b16 %v2653, %v2649
  %v4502 = vpack.c.b16 %v2654, %v2650
  %v4503 = vpack.c.b16 %v2655, %v2651
  %v4504 = vpack.c.b16 %v2656, %v2652
  %v4505 = vpack.c.b16 %v2661, %v2657
  %v4506 = vpack.c.b16 %v2662, %v2658
  %v4507 = vpack.c.b16 %v2663, %v2659
  %v4508 = vpack.c.b16 %v2664, %v2660
  %v4509 = vpack.c.b16 %v2669, %v2665
  %v4510 = vpack.c.b16 %v2670, %v2666
  %v4511 = vpack.c.b16 %v2671, %v2667
  %v4512 = vpack.c.b16 %v2672, %v2668
  %v4513 = vpack.c.b16 %v2677, %v2673
  %v4514 = vpack.c.b16 %v2678, %v2674
  %v4515 = vpack.c.b16 %v2679, %v2675
  %v4516 = vpack.c.b16 %v2680, %v2676
  %v4517 = vpack.c.b16 %v2685, %v2681
  %v4518 = vpack.c.b16 %v2686, %v2682
  %v4519 = vpack.c.b16 %v2687, %v2683
  %v4520 = vpack.c.b16 %v2688, %v2684
  %v4521 = vpack.c.b16 %v2693, %v2689
  %v4522 = vpack.c.b16 %v2694, %v2690
  %v4523 = vpack.c.b16 %v2695, %v2691
  %v4524 = vpack.c.b16 %v2696, %v2692
  %v4525 = vpack.c.b16 %v2701, %v2697
  %v4526 = vpack.c.b16 %v2702, %v2698
  %v4527 = vpack.c.b16 %v2703, %v2699
  %v4528 = vpack.c.b16 %v2704, %v2700
  %v4529 = vpack.c.b16 %v2709, %v2705
  %v4530 = vpack.c.b16 %v2710, %v2706
  %v4531 = vpack.c.b16 %v2711, %v2707
  %v4532 = vpack.c.b16 %v2712, %v2708
  %v4533 = vpack.c.b16 %v2717, %v2713
  %v4534 = vpack.c.b16 %v2718, %v2714
  %v4535 = vpack.c.b16 %v2719, %v2715
  %v4536 = vpack.c.b16 %v2720, %v2716
  %v4537 = vpack.c.b16 %v2725, %v2721
  %v4538 = vpack.c.b16 %v2726, %v2722
  %v4539 = vpack.c.b16 %v2727, %v2723
  %v4540 = vpack.c.b16 %v2728, %v2724
  %v4541 = vpack.c.b16 %v2733, %v2729
  %v4542 = vpack.c.b16 %v2734, %v2730
  %v4543 = vpack.c.b16 %v2735, %v2731
  %v4544 = vpack.c.b16 %v2736, %v2732
  %v4545 = vpack.c.b16 %v2741, %v2737
  %v4546 = vpack.c.b16 %v2742, %v2738
  %v4547 = vpack.c.b16 %v2743, %v2739
  %v4548 = vpack.c.b16 %v2744, %v2740
  %v4549 = vpack.c.b16 %v2749, %v2745
  %v4550 = vpack.c.b16 %v2750, %v2746
  %v4551 = vpack.c.b16 %v2751, %v2747
  %v4552 = vpack.c.b16 %v2752, %v2748
  %v4553 = vpack.c.b16 %v2757, %v2753
  %v4554 = vpack.c.b16 %v2758, %v2754
  %v4555 = vpack.c.b16 %v2759, %v2755
  %v4556 = vpack.c.b16 %v2760, %v2756
  %v4557 = vpack.c.b16 %v2765, %v2761
  %v4558 = vpack.c.b16 %v2766, %v2762
  %v4559 = vpack.c.b16 %v2767, %v2763
  %v4560 = vpack.c.b16 %v2768, %v2764
  %v4561 = vpack.c.b16 %v2773, %v2769
  %v4562 = vpack.c.b16 %v2774, %v2770
  %v4563 = vpack.c.b16 %v2775, %v2771
  %v4564 = vpack.c.b16 %v2776, %v2772
  %v4565 = vpack.c.b16 %v2781, %v2777
  %v4566 = vpack.c.b16 %v2782, %v2778
  %v4567 = vpack.c.b16 %v2783, %v2779
  %v4568 = vpack.c.b16 %v2784, %v2780
  %v4569 = vpack.c.b16 %v2789, %v2785
  %v4570 = vpack.c.b16 %v2790, %v2786
  %v4571 = vpack.c.b16 %v2791, %v2787
  %v4572 = vpack.c.b16 %v2792, %v2788
  %v4573 = vpack.c.b16 %v2797, %v2793
  %v4574 = vpack.c.b16 %v2798, %v2794
  %v4575 = vpack.c.b16 %v2799, %v2795
  %v4576 = vpack.c.b16 %v2800, %v2796
  %v4577 = vpack.c.b16 %v2805, %v2801
  %v4578 = vpack.c.b16 %v2806, %v2802
  %v4579 = vpack.c.b16 %v2807, %v2803
  %v4580 = vpack.c.b16 %v2808, %v2804
  %v4581 = vpack.c.b16 %v2813, %v2809
  %v4582 = vpack.c.b16 %v2814, %v2810
  %v4583 = vpack.c.b16 %v2815, %v2811
  %v4584 = vpack.c.b16 %v2816, %v2812
  %v4585 = vpack.c.b16 %v2821, %v2817
  %v4586 = vpack.c.b16 %v2822, %v2818
  %v4587 = vpack.c.b16 %v2823, %v2819
  %v4588 = vpack.c.b16 %v2824, %v2820
  %v4589 = vpack.c.b16 %v2829, %v2825
  %v4590 = vpack.c.b16 %v2830, %v2826
  %v4591 = vpack.c.b16 %v2831, %v2827
  %v4592 = vpack.c.b16 %v2832, %v2828
  %v4593 = vpack.c.b16 %v2837, %v2833
  %v4594 = vpack.c.b16 %v2838, %v2834
  %v4595 = vpack.c.b16 %v2839, %v2835
  %v4596 = vpack.c.b16 %v2840, %v2836
  %v4597 = vpack.c.b16 %v2845, %v2841
  %v4598 = vpack.c.b16 %v2846, %v2842
  %v4599 = vpack.c.b16 %v2847, %v2843
  %v4600 = vpack.c.b16 %v2848, %v2844
  %v4601 = vpack.c.b16 %v2853, %v2849
  %v4602 = vpack.c.b16 %v2854, %v2850
  %v4603 = vpack.c.b16 %v2855, %v2851
  %v4604 = vpack.c.b16 %v2856, %v2852
  %v4605 = vpack.c.b16 %v2861, %v2857
  %v4606 = vpack.c.b16 %v2862, %v2858
  %v4607 = vpack.c.b16 %v2863, %v2859
  %v4608 = vpack.c.b16 %v2864, %v2860
  %v4609 = vpack.c.b16 %v2869, %v2865
  %v4610 = vpack.c.b16 %v2870, %v2866
  %v4611 = vpack.c.b16 %v2871, %v2867
  %v4612 = vpack.c.b16 %v2872, %v2868
  %v4613 = vpack.c.b16 %v2877, %v2873
  %v4614 = vpack.c.b16 %v2878, %v2874
  %v4615 = vpack.c.b16 %v2879, %v2875
  %v4616 = vpack.c.b16 %v2880, %v2876
  %v4617 = vpack.c.b16 %v2885, %v2881
  %v4618 = vpack.c.b16 %v2886, %v2882
  %v4619 = vpack.c.b16 %v2887, %v2883
  %v4620 = vpack.c.b16 %v2888, %v2884
  %v4621 = vpack.c.b16 %v2893, %v2889
  %v4622 = vpack.c.b16 %v2894, %v2890
  %v4623 = vpack.c.b16 %v2895, %v2891
  %v4624 = vpack.c.b16 %v2896, %v2892
  %v4625 = vpack.c.b16 %v2901, %v2897
  %v4626 = vpack.c.b16 %v2902, %v2898
  %v4627 = vpack.c.b16 %v2903, %v2899
  %v4628 = vpack.c.b16 %v2904, %v2900
  %v4629 = vpack.c.b16 %v2909, %v2905
  %v4630 = vpack.c.b16 %v2910, %v2906
  %v4631 = vpack.c.b16 %v2911, %v2907
  %v4632 = vpack.c.b16 %v2912, %v2908
  %v4633 = vpack.c.b16 %v2917, %v2913
  %v4634 = vpack.c.b16 %v2918, %v2914
  %v4635 = vpack.c.b16 %v2919, %v2915
  %v4636 = vpack.c.b16 %v2920, %v2916
  %v4637 = vpack.c.b16 %v2925, %v2921
  %v4638 = vpack.c.b16 %v2926, %v2922
  %v4639 = vpack.c.b16 %v2927, %v2923
  %v4640 = vpack.c.b16 %v2928, %v2924
  %v4641 = vpack.c.b16 %v2933, %v2929
  %v4642 = vpack.c.b16 %v2934, %v2930
  %v4643 = vpack.c.b16 %v2935, %v2931
  %v4644 = vpack.c.b16 %v2936, %v2932
  %v4645 = vpack.c.b16 %v2941, %v2937
  %v4646 = vpack.c.b16 %v2942, %v2938
  %v4647 = vpack.c.b16 %v2943, %v2939
  %v4648 = vpack.c.b16 %v2944, %v2940
  %v4649 = vpack.c.b16 %v2949, %v2945
  %v4650 = vpack.c.b16 %v2950, %v2946
  %v4651 = vpack.c.b16 %v2951, %v2947
  %v4652 = vpack.c.b16 %v2952, %v2948
  %v4653 = vpack.c.b16 %v2957, %v2953
  %v4654 = vpack.c.b16 %v2958, %v2954
  %v4655 = vpack.c.b16 %v2959, %v2955
  %v4656 = vpack.c.b16 %v2960, %v2956
  %v4657 = vpack.c.b16 %v2965, %v2961
  %v4658 = vpack.c.b16 %v2966, %v2962
  %v4659 = vpack.c.b16 %v2967, %v2963
  %v4660 = vpack.c.b16 %v2968, %v2964
  %v4661 = vpack.c.b16 %v2973, %v2969
  %v4662 = vpack.c.b16 %v2974, %v2970
  %v4663 = vpack.c.b16 %v2975, %v2971
  %v4664 = vpack.c.b16 %v2976, %v2972
  %v4665 = vpack.c.b16 %v2981, %v2977
  %v4666 = vpack.c.b16 %v2982, %v2978
  %v4667 = vpack.c.b16 %v2983, %v2979
  %v4668 = vpack.c.b16 %v2984, %v2980
  %v4669 = vpack.c.b16 %v2989, %v2985
  %v4670 = vpack.c.b16 %v2990, %v2986
  %v4671 = vpack.c.b16 %v2991, %v2987
  %v4672 = vpack.c.b16 %v2992, %v2988
  %v4673 = vpack.c.b16 %v2997, %v2993
  %v4674 = vpack.c.b16 %v2998, %v2994
  %v4675 = vpack.c.b16 %v2999, %v2995
  %v4676 = vpack.c.b16 %v3000, %v2996
  %v4677 = vpack.c.b16 %v3005, %v3001
  %v4678 = vpack.c.b16 %v3006, %v3002
  %v4679 = vpack.c.b16 %v3007, %v3003
  %v4680 = vpack.c.b16 %v3008, %v3004
  %v4681 = vpack.c.b16 %v3013, %v3009
  %v4682 = vpack.c.b16 %v3014, %v3010
  %v4683 = vpack.c.b16 %v3015, %v3011
  %v4684 = vpack.c.b16 %v3016, %v3012
  %v4685 = vpack.c.b16 %v3021, %v3017
  %v4686 = vpack.c.b16 %v3022, %v3018
  %v4687 = vpack.c.b16 %v3023, %v3019
  %v4688 = vpack.c.b16 %v3024, %v3020
  %v4689 = vpack.c.b16 %v3029, %v3025
  %v4690 = vpack.c.b16 %v3030, %v3026
  %v4691 = vpack.c.b16 %v3031, %v3027
  %v4692 = vpack.c.b16 %v3032, %v3028
  %v4693 = vpack.c.b16 %v3037, %v3033
  %v4694 = vpack.c.b16 %v3038, %v3034
  %v4695 = vpack.c.b16 %v3039, %v3035
  %v4696 = vpack.c.b16 %v3040, %v3036
  %v4697 = vpack.c.b16 %v3045, %v3041
  %v4698 = vpack.c.b16 %v3046, %v3042
  %v4699 = vpack.c.b16 %v3047, %v3043
  %v4700 = vpack.c.b16 %v3048, %v3044
  %v4701 = vpack.c.b16 %v3053, %v3049
  %v4702 = vpack.c.b16 %v3054, %v3050
  %v4703 = vpack.c.b16 %v3055, %v3051
  %v4704 = vpack.c.b16 %v3056, %v3052
  %v4705 = vpack.c.b16 %v3061, %v3057
  %v4706 = vpack.c.b16 %v3062, %v3058
  %v4707 = vpack.c.b16 %v3063, %v3059
  %v4708 = vpack.c.b16 %v3064, %v3060
  %v4709 = vpack.c.b16 %v3069, %v3065
  %v4710 = vpack.c.b16 %v3070, %v3066
  %v4711 = vpack.c.b16 %v3071, %v3067
  %v4712 = vpack.c.b16 %v3072, %v3068
  %v4713 = vpack.c.b16 %v3077, %v3073
  %v4714 = vpack.c.b16 %v3078, %v3074
  %v4715 = vpack.c.b16 %v3079, %v3075
  %v4716 = vpack.c.b16 %v3080, %v3076
  %v4717 = vpack.c.b16 %v3085, %v3081
  %v4718 = vpack.c.b16 %v3086, %v3082
  %v4719 = vpack.c.b16 %v3087, %v3083
  %v4720 = vpack.c.b16 %v3088, %v3084
  %v4721 = vpack.c.b16 %v3093, %v3089
  %v4722 = vpack.c.b16 %v3094, %v3090
  %v4723 = vpack.c.b16 %v3095, %v3091
  %v4724 = vpack.c.b16 %v3096, %v3092
  %v4725 = vpack.c.b16 %v3101, %v3097
  %v4726 = vpack.c.b16 %v3102, %v3098
  %v4727 = vpack.c.b16 %v3103, %v3099
  %v4728 = vpack.c.b16 %v3104, %v3100
  %v4729 = vpack.c.b16 %v3109, %v3105
  %v4730 = vpack.c.b16 %v3110, %v3106
  %v4731 = vpack.c.b16 %v3111, %v3107
  %v4732 = vpack.c.b16 %v3112, %v3108
  %v4733 = vpack.c.b16 %v3117, %v3113
  %v4734 = vpack.c.b16 %v3118, %v3114
  %v4735 = vpack.c.b16 %v3119, %v3115
  %v4736 = vpack.c.b16 %v3120, %v3116
  %v4737 = vpack.c.b16 %v3125, %v3121
  %v4738 = vpack.c.b16 %v3126, %v3122
  %v4739 = vpack.c.b16 %v3127, %v3123
  %v4740 = vpack.c.b16 %v3128, %v3124
  %v4741 = vpack.c.b16 %v3133, %v3129
  %v4742 = vpack.c.b16 %v3134, %v3130
  %v4743 = vpack.c.b16 %v3135, %v3131
  %v4744 = vpack.c.b16 %v3136, %v3132
  %v4745 = vpack.c.b16 %v3141, %v3137
  %v4746 = vpack.c.b16 %v3142, %v3138
  %v4747 = vpack.c.b16 %v3143, %v3139
  %v4748 = vpack.c.b16 %v3144, %v3140
  %v4749 = vpack.c.b16 %v3149, %v3145
  %v4750 = vpack.c.b16 %v3150, %v3146
  %v4751 = vpack.c.b16 %v3151, %v3147
  %v4752 = vpack.c.b16 %v3152, %v3148
  %v4753 = vpack.c.b16 %v3157, %v3153
  %v4754 = vpack.c.b16 %v3158, %v3154
  %v4755 = vpack.c.b16 %v3159, %v3155
  %v4756 = vpack.c.b16 %v3160, %v3156
  %v4757 = vpack.c.b16 %v3165, %v3161
  %v4758 = vpack.c.b16 %v3166, %v3162
  %v4759 = vpack.c.b16 %v3167, %v3163
  %v4760 = vpack.c.b16 %v3168, %v3164
  %v4761 = vpack.c.b16 %v3173, %v3169
  %v4762 = vpack.c.b16 %v3174, %v3170
  %v4763 = vpack.c.b16 %v3175, %v3171
  %v4764 = vpack.c.b16 %v3176, %v3172
  %v4765 = vpack.c.b16 %v3181, %v3177
  %v4766 = vpack.c.b16 %v3182, %v3178
  %v4767 = vpack.c.b16 %v3183, %v3179
  %v4768 = vpack.c.b16 %v3184, %v3180
  %v4769 = vpack.c.b16 %v3189, %v3185
  %v4770 = vpack.c.b16 %v3190, %v3186
  %v4771 = vpack.c.b16 %v3191, %v3187
  %v4772 = vpack.c.b16 %v3192, %v3188
  %v4773 = vpack.c.b16 %v3197, %v3193
  %v4774 = vpack.c.b16 %v3198, %v3194
  %v4775 = vpack.c.b16 %v3199, %v3195
  %v4776 = vpack.c.b16 %v3200, %v3196
  %v4777 = vpack.c.b16 %v3205, %v3201
  %v4778 = vpack.c.b16 %v3206, %v3202
  %v4779 = vpack.c.b16 %v3207, %v3203
  %v4780 = vpack.c.b16 %v3208, %v3204
  %v4781 = vpack.c.b16 %v3213, %v3209
  %v4782 = vpack.c.b16 %v3214, %v3210
  %v4783 = vpack.c.b16 %v3215, %v3211
  %v4784 = vpack.c.b16 %v3216, %v3212
  %v4785 = vpack.c.b16 %v3221, %v3217
  %v4786 = vpack.c.b16 %v3222, %v3218
  %v4787 = vpack.c.b16 %v3223, %v3219
  %v4788 = vpack.c.b16 %v3224, %v3220
  %v4789 = vpack.c.b16 %v3229, %v3225
  %v4790 = vpack.c.b16 %v3230, %v3226
  %v4791 = vpack.c.b16 %v3231, %v3227
  %v4792 = vpack.c.b16 %v3232, %v3228
  %v4793 = vpack.c.b16 %v3237, %v3233
  %v4794 = vpack.c.b16 %v3238, %v3234
  %v4795 = vpack.c.b16 %v3239, %v3235
  %v4796 = vpack.c.b16 %v3240, %v3236
  %v4797 = vpack.c.b16 %v3245, %v3241
  %v4798 = vpack.c.b16 %v3246, %v3242
  %v4799 = vpack.c.b16 %v3247, %v3243
  %v4800 = vpack.c.b16 %v3248, %v3244
  %v4801 = vpack.c.b16 %v3253, %v3249
  %v4802 = vpack.c.b16 %v3254, %v3250
  %v4803 = vpack.c.b16 %v3255, %v3251
  %v4804 = vpack.c.b16 %v3256, %v3252
  %v4805 = vpack.c.b16 %v3261, %v3257
  %v4806 = vpack.c.b16 %v3262, %v3258
  %v4807 = vpack.c.b16 %v3263, %v3259
  %v4808 = vpack.c.b16 %v3264, %v3260
  %v4809 = vpack.c.b16 %v3269, %v3265
  %v4810 = vpack.c.b16 %v3270, %v3266
  %v4811 = vpack.c.b16 %v3271, %v3267
  %v4812 = vpack.c.b16 %v3272, %v3268
  %v4813 = vpack.c.b16 %v3277, %v3273
  %v4814 = vpack.c.b16 %v3278, %v3274
  %v4815 = vpack.c.b16 %v3279, %v3275
  %v4816 = vpack.c.b16 %v3280, %v3276
  %v4817 = vpack.c.b16 %v3285, %v3281
  %v4818 = vpack.c.b16 %v3286, %v3282
  %v4819 = vpack.c.b16 %v3287, %v3283
  %v4820 = vpack.c.b16 %v3288, %v3284
  %v4821 = vpack.c.b16 %v3293, %v3289
  %v4822 = vpack.c.b16 %v3294, %v3290
  %v4823 = vpack.c.b16 %v3295, %v3291
  %v4824 = vpack.c.b16 %v3296, %v3292
  %v4825 = vpack.c.b16 %v3301, %v3297
  %v4826 = vpack.c.b16 %v3302, %v3298
  %v4827 = vpack.c.b16 %v3303, %v3299
  %v4828 = vpack.c.b16 %v3304, %v3300
  %v4829 = vpack.c.b16 %v3309, %v3305
  %v4830 = vpack.c.b16 %v3310, %v3306
  %v4831 = vpack.c.b16 %v3311, %v3307
  %v4832 = vpack.c.b16 %v3312, %v3308
  %v4833 = vpack.c.b16 %v3317, %v3313
  %v4834 = vpack.c.b16 %v3318, %v3314
  %v4835 = vpack.c.b16 %v3319, %v3315
  %v4836 = vpack.c.b16 %v3320, %v3316
  %v4837 = vpack.c.b16 %v3325, %v3321
  %v4838 = vpack.c.b16 %v3326, %v3322
  %v4839 = vpack.c.b16 %v3327, %v3323
  %v4840 = vpack.c.b16 %v3328, %v3324
  %v4841 = vpack.c.b16 %v3333, %v3329
  %v4842 = vpack.c.b16 %v3334, %v3330
  %v4843 = vpack.c.b16 %v3335, %v3331
  %v4844 = vpack.c.b16 %v3336, %v3332
  %v4845 = vpack.c.b16 %v3341, %v3337
  %v4846 = vpack.c.b16 %v3342, %v3338
  %v4847 = vpack.c.b16 %v3343, %v3339
  %v4848 = vpack.c.b16 %v3344, %v3340
  %v4849 = vpack.c.b16 %v3349, %v3345
  %v4850 = vpack.c.b16 %v3350, %v3346
  %v4851 = vpack.c.b16 %v3351, %v3347
  %v4852 = vpack.c.b16 %v3352, %v3348
  %v4853 = vpack.c.b16 %v3357, %v3353
  %v4854 = vpack.c.b16 %v3358, %v3354
  %v4855 = vpack.c.b16 %v3359, %v3355
  %v4856 = vpack.c.b16 %v3360, %v3356
  %v4857 = vpack.c.b16 %v3365, %v3361
  %v4858 = vpack.c.b16 %v3366, %v3362
  %v4859 = vpack.c.b16 %v3367, %v3363
  %v4860 = vpack.c.b16 %v3368, %v3364
  %v4861 = vpack.c.b16 %v3373, %v3369
  %v4862 = vpack.c.b16 %v3374, %v3370
  %v4863 = vpack.c.b16 %v3375, %v3371
  %v4864 = vpack.c.b16 %v3376, %v3372
  %v4865 = vpack.c.b16 %v3381, %v3377
  %v4866 = vpack.c.b16 %v3382, %v3378
  %v4867 = vpack.c.b16 %v3383, %v3379
  %v4868 = vpack.c.b16 %v3384, %v3380
  %v4869 = vpack.c.b16 %v3389, %v3385
  %v4870 = vpack.c.b16 %v3390, %v3386
  %v4871 = vpack.c.b16 %v3391, %v3387
  %v4872 = vpack.c.b16 %v3392, %v3388
  %v4873 = vpack.c.b16 %v3397, %v3393
  %v4874 = vpack.c.b16 %v3398, %v3394
  %v4875 = vpack.c.b16 %v3399, %v3395
  %v4876 = vpack.c.b16 %v3400, %v3396
  %v4877 = vpack.c.b16 %v3405, %v3401
  %v4878 = vpack.c.b16 %v3406, %v3402
  %v4879 = vpack.c.b16 %v3407, %v3403
  %v4880 = vpack.c.b16 %v3408, %v3404
  %v4881 = vpack.c.b16 %v3413, %v3409
  %v4882 = vpack.c.b16 %v3414, %v3410
  %v4883 = vpack.c.b16 %v3415, %v3411
  %v4884 = vpack.c.b16 %v3416, %v3412
  %v4885 = vpack.c.b16 %v3421, %v3417
  %v4886 = vpack.c.b16 %v3422, %v3418
  %v4887 = vpack.c.b16 %v3423, %v3419
  %v4888 = vpack.c.b16 %v3424, %v3420
  %v4889 = vpack.c.b16 %v3429, %v3425
  %v4890 = vpack.c.b16 %v3430, %v3426
  %v4891 = vpack.c.b16 %v3431, %v3427
  %v4892 = vpack.c.b16 %v3432, %v3428
  %v4893 = vpack.c.b16 %v3437, %v3433
  %v4894 = vpack.c.b16 %v3438, %v3434
  %v4895 = vpack.c.b16 %v3439, %v3435
  %v4896 = vpack.c.b16 %v3440, %v3436
  %v4897 = vpack.c.b16 %v3445, %v3441
  %v4898 = vpack.c.b16 %v3446, %v3442
  %v4899 = vpack.c.b16 %v3447, %v3443
  %v4900 = vpack.c.b16 %v3448, %v3444
  %v4901 = vpack.c.b16 %v3453, %v3449
  %v4902 = vpack.c.b16 %v3454, %v3450
  %v4903 = vpack.c.b16 %v3455, %v3451
  %v4904 = vpack.c.b16 %v3456, %v3452
  %v4905 = vpack.c.b16 %v3461, %v3457
  %v4906 = vpack.c.b16 %v3462, %v3458
  %v4907 = vpack.c.b16 %v3463, %v3459
  %v4908 = vpack.c.b16 %v3464, %v3460
  %v4909 = vpack.c.b16 %v3469, %v3465
  %v4910 = vpack.c.b16 %v3470, %v3466
  %v4911 = vpack.c.b16 %v3471, %v3467
  %v4912 = vpack.c.b16 %v3472, %v3468
  %v4913 = vpack.c.b16 %v3477, %v3473
  %v4914 = vpack.c.b16 %v3478, %v3474
  %v4915 = vpack.c.b16 %v3479, %v3475
  %v4916 = vpack.c.b16 %v3480, %v3476
  %v4917 = vpack.c.b16 %v3485, %v3481
  %v4918 = vpack.c.b16 %v3486, %v3482
  %v4919 = vpack.c.b16 %v3487, %v3483
  %v4920 = vpack.c.b16 %v3488, %v3484
  %v4921 = vpack.c.b16 %v3493, %v3489
  %v4922 = vpack.c.b16 %v3494, %v3490
  %v4923 = vpack.c.b16 %v3495, %v3491
  %v4924 = vpack.c.b16 %v3496, %v3492
  %v4925 = vpack.c.b16 %v3501, %v3497
  %v4926 = vpack.c.b16 %v3502, %v3498
  %v4927 = vpack.c.b16 %v3503, %v3499
  %v4928 = vpack.c.b16 %v3504, %v3500
  %v4929 = vpack.c.b16 %v3509, %v3505
  %v4930 = vpack.c.b16 %v3510, %v3506
  %v4931 = vpack.c.b16 %v3511, %v3507
  %v4932 = vpack.c.b16 %v3512, %v3508
  %v4933 = vpack.c.b16 %v3517, %v3513
  %v4934 = vpack.c.b16 %v3518, %v3514
  %v4935 = vpack.c.b16 %v3519, %v3515
  %v4936 = vpack.c.b16 %v3520, %v3516
  %v4937 = vpack.c.b16 %v3525, %v3521
  %v4938 = vpack.c.b16 %v3526, %v3522
  %v4939 = vpack.c.b16 %v3527, %v3523
  %v4940 = vpack.c.b16 %v3528, %v3524
  %v4941 = vpack.c.b16 %v3533, %v3529
  %v4942 = vpack.c.b16 %v3534, %v3530
  %v4943 = vpack.c.b16 %v3535, %v3531
  %v4944 = vpack.c.b16 %v3536, %v3532
  %v4945 = vpack.c.b16 %v3541, %v3537
  %v4946 = vpack.c.b16 %v3542, %v3538
  %v4947 = vpack.c.b16 %v3543, %v3539
  %v4948 = vpack.c.b16 %v3544, %v3540
  %v4949 = vpack.c.b16 %v3549, %v3545
  %v4950 = vpack.c.b16 %v3550, %v3546
  %v4951 = vpack.c.b16 %v3551, %v3547
  %v4952 = vpack.c.b16 %v3552, %v3548
  %v4953 = vpack.c.b16 %v3557, %v3553
  %v4954 = vpack.c.b16 %v3558, %v3554
  %v4955 = vpack.c.b16 %v3559, %v3555
  %v4956 = vpack.c.b16 %v3560, %v3556
  %v4957 = vpack.c.b16 %v3565, %v3561
  %v4958 = vpack.c.b16 %v3566, %v3562
  %v4959 = vpack.c.b16 %v3567, %v3563
  %v4960 = vpack.c.b16 %v3568, %v3564
  %v4961 = vpack.c.b16 %v3573, %v3569
  %v4962 = vpack.c.b16 %v3574, %v3570
  %v4963 = vpack.c.b16 %v3575, %v3571
  %v4964 = vpack.c.b16 %v3576, %v3572
  %v4965 = vpack.c.b16 %v3581, %v3577
  %v4966 = vpack.c.b16 %v3582, %v3578
  %v4967 = vpack.c.b16 %v3583, %v3579
  %v4968 = vpack.c.b16 %v3584, %v3580
  %v4969 = vpack.c.b16 %v3589, %v3585
  %v4970 = vpack.c.b16 %v3590, %v3586
  %v4971 = vpack.c.b16 %v3591, %v3587
  %v4972 = vpack.c.b16 %v3592, %v3588
  %v4973 = vpack.c.b16 %v3597, %v3593
  %v4974 = vpack.c.b16 %v3598, %v3594
  %v4975 = vpack.c.b16 %v3599, %v3595
  %v4976 = vpack.c.b16 %v3600, %v3596
  %v4977 = vpack.c.b16 %v3605, %v3601
  %v4978 = vpack.c.b16 %v3606, %v3602
  %v4979 = vpack.c.b16 %v3607, %v3603
  %v4980 = vpack.c.b16 %v3608, %v3604
  %v4981 = vpack.c.b16 %v3613, %v3609
  %v4982 = vpack.c.b16 %v3614, %v3610
  %v4983 = vpack.c.b16 %v3615, %v3611
  %v4984 = vpack.c.b16 %v3616, %v3612
  %v4985 = vpack.c.b16 %v3621, %v3617
  %v4986 = vpack.c.b16 %v3622, %v3618
  %v4987 = vpack.c.b16 %v3623, %v3619
  %v4988 = vpack.c.b16 %v3624, %v3620
  %v4989 = vpack.c.b16 %v3629, %v3625
  %v4990 = vpack.c.b16 %v3630, %v3626
  %v4991 = vpack.c.b16 %v3631, %v3627
  %v4992 = vpack.c.b16 %v3632, %v3628
  %v4993 = vpack.c.b16 %v3637, %v3633
  %v4994 = vpack.c.b16 %v3638, %v3634
  %v4995 = vpack.c.b16 %v3639, %v3635
  %v4996 = vpack.c.b16 %v3640, %v3636
  %v4997 = vpack.c.b16 %v3645, %v3641
  %v4998 = vpack.c.b16 %v3646, %v3642
  %v4999 = vpack.c.b16 %v3647, %v3643
  %v5000 = vpack.c.b16 %v3648, %v3644
  %v5001 = vpack.c.b16 %v3653, %v3649
  %v5002 = vpack.c.b16 %v3654, %v3650
  %v5003 = vpack.c.b16 %v3655, %v3651
  %v5004 = vpack.c.b16 %v3656, %v3652
  %v5005 = vpack.c.b16 %v3661, %v3657
  %v5006 = vpack.c.b16 %v3662, %v3658
  %v5007 = vpack.c.b16 %v3663, %v3659
  %v5008 = vpack.c.b16 %v3664, %v3660
  %v5009 = vpack.c.b16 %v3669, %v3665
  %v5010 = vpack.c.b16 %v3670, %v3666
  %v5011 = vpack.c.b16 %v3671, %v3667
  %v5012 = vpack.c.b16 %v3672, %v3668
  %v5013 = vpack.c.b16 %v3677, %v3673
  %v5014 = vpack.c.b16 %v3678, %v3674
  %v5015 = vpack.c.b16 %v3679, %v3675
  %v5016 = vpack.c.b16 %v3680, %v3676
  %v5017 = vpack.c.b16 %v3685, %v3681
  %v5018 = vpack.c.b16 %v3686, %v3682
  %v5019 = vpack.c.b16 %v3687, %v3683
  %v5020 = vpack.c.b16 %v3688, %v3684
  %v5021 = vpack.c.b16 %v3693, %v3689
  %v5022 = vpack.c.b16 %v3694, %v3690
  %v5023 = vpack.c.b16 %v3695, %v3691
  %v5024 = vpack.c.b16 %v3696, %v3692
  %v5025 = vpack.c.b16 %v3701, %v3697
  %v5026 = vpack.c.b16 %v3702, %v3698
  %v5027 = vpack.c.b16 %v3703, %v3699
  %v5028 = vpack.c.b16 %v3704, %v3700
  %v5029 = vpack.c.b16 %v3709, %v3705
  %v5030 = vpack.c.b16 %v3710, %v3706
  %v5031 = vpack.c.b16 %v3711, %v3707
  %v5032 = vpack.c.b16 %v3712, %v3708
  %v5033 = vpack.c.b16 %v3717, %v3713
  %v5034 = vpack.c.b16 %v3718, %v3714
  %v5035 = vpack.c.b16 %v3719, %v3715
  %v5036 = vpack.c.b16 %v3720, %v3716
  %v5037 = vpack.c.b16 %v3725, %v3721
  %v5038 = vpack.c.b16 %v3726, %v3722
  %v5039 = vpack.c.b16 %v3727, %v3723
  %v5040 = vpack.c.b16 %v3728, %v3724
  %v5041 = vpack.c.b16 %v3733, %v3729
  %v5042 = vpack.c.b16 %v3734, %v3730
  %v5043 = vpack.c.b16 %v3735, %v3731
  %v5044 = vpack.c.b16 %v3736, %v3732
  %v5045 = vpack.c.b16 %v3741, %v3737
  %v5046 = vpack.c.b16 %v3742, %v3738
  %v5047 = vpack.c.b16 %v3743, %v3739
  %v5048 = vpack.c.b16 %v3744, %v3740
  %v5049 = vpack.c.b16 %v3749, %v3745
  %v5050 = vpack.c.b16 %v3750, %v3746
  %v5051 = vpack.c.b16 %v3751, %v3747
  %v5052 = vpack.c.b16 %v3752, %v3748
  %v5053 = vpack.c.b16 %v3757, %v3753
  %v5054 = vpack.c.b16 %v3758, %v3754
  %v5055 = vpack.c.b16 %v3759, %v3755
  %v5056 = vpack.c.b16 %v3760, %v3756
  %v5057 = vpack.c.b16 %v3765, %v3761
  %v5058 = vpack.c.b16 %v3766, %v3762
  %v5059 = vpack.c.b16 %v3767, %v3763
  %v5060 = vpack.c.b16 %v3768, %v3764
  %v5061 = vpack.c.b16 %v3773, %v3769
  %v5062 = vpack.c.b16 %v3774, %v3770
  %v5063 = vpack.c.b16 %v3775, %v3771
  %v5064 = vpack.c.b16 %v3776, %v3772
  %v5065 = vpack.c.b16 %v3781, %v3777
  %v5066 = vpack.c.b16 %v3782, %v3778
  %v5067 = vpack.c.b16 %v3783, %v3779
  %v5068 = vpack.c.b16 %v3784, %v3780
  %v5069 = vpack.c.b16 %v3789, %v3785
  %v5070 = vpack.c.b16 %v3790, %v3786
  %v5071 = vpack.c.b16 %v3791, %v3787
  %v5072 = vpack.c.b16 %v3792, %v3788
  %v5073 = vpack.c.b16 %v3797, %v3793
  %v5074 = vpack.c.b16 %v3798, %v3794
  %v5075 = vpack.c.b16 %v3799, %v3795
  %v5076 = vpack.c.b16 %v3800, %v3796
  %v5077 = vpack.c.b16 %v3805, %v3801
  %v5078 = vpack.c.b16 %v3806, %v3802
  %v5079 = vpack.c.b16 %v3807, %v3803
  %v5080 = vpack.c.b16 %v3808, %v3804
  %v5081 = vpack.c.b16 %v3813, %v3809
  %v5082 = vpack.c.b16 %v3814, %v3810
  %v5083 = vpack.c.b16 %v3815, %v3811
  %v5084 = vpack.c.b16 %v3816, %v3812
  %v5085 = vpack.c.b16 %v3821, %v3817
  %v5086 = vpack.c.b16 %v3822, %v3818
  %v5087 = vpack.c.b16 %v3823, %v3819
  %v5088 = vpack.c.b16 %v3824, %v3820
  %v5089 = vpack.c.b16 %v3829, %v3825
  %v5090 = vpack.c.b16 %v3830, %v3826
  %v5091 = vpack.c.b16 %v3831, %v3827
  %v5092 = vpack.c.b16 %v3832, %v3828
  %v5093 = vpack.c.b16 %v3837, %v3833
  %v5094 = vpack.c.b16 %v3838, %v3834
  %v5095 = vpack.c.b16 %v3839, %v3835
  %v5096 = vpack.c.b16 %v3840, %v3836
  %v5097 = vpack.c.b16 %v3845, %v3841
  %v5098 = vpack.c.b16 %v3846, %v3842
  %v5099 = vpack.c.b16 %v3847, %v3843
  %v5100 = vpack.c.b16 %v3848, %v3844
  %v5101 = vpack.c.b16 %v3853, %v3849
  %v5102 = vpack.c.b16 %v3854, %v3850
  %v5103 = vpack.c.b16 %v3855, %v3851
  %v5104 = vpack.c.b16 %v3856, %v3852
  %v5105 = vpack.c.b16 %v3861, %v3857
  %v5106 = vpack.c.b16 %v3862, %v3858
  %v5107 = vpack.c.b16 %v3863, %v3859
  %v5108 = vpack.c.b16 %v3864, %v3860
  %v5109 = vpack.c.b16 %v3869, %v3865
  %v5110 = vpack.c.b16 %v3870, %v3866
  %v5111 = vpack.c.b16 %v3871, %v3867
  %v5112 = vpack.c.b16 %v3872, %v3868
  %v5113 = vpack.c.b16 %v3877, %v3873
  %v5114 = vpack.c.b16 %v3878, %v3874
  %v5115 = vpack.c.b16 %v3879, %v3875
  %v5116 = vpack.c.b16 %v3880, %v3876
  %v5117 = vpack.c.b16 %v3885, %v3881
  %v5118 = vpack.c.b16 %v3886, %v3882
  %v5119 = vpack.c.b16 %v3887, %v3883
  %v5120 = vpack.c.b16 %v3888, %v3884
  %v5121 = vpack.c.b16 %v3893, %v3889
  %v5122 = vpack.c.b16 %v3894, %v3890
  %v5123 = vpack.c.b16 %v3895, %v3891
  %v5124 = vpack.c.b16 %v3896, %v3892
  %v5125 = vpack.c.b16 %v3901, %v3897
  %v5126 = vpack.c.b16 %v3902, %v3898
  %v5127 = vpack.c.b16 %v3903, %v3899
  %v5128 = vpack.c.b16 %v3904, %v3900
  %v5129 = vpack.c.b16 %v3909, %v3905
  %v5130 = vpack.c.b16 %v3910, %v3906
  %v5131 = vpack.c.b16 %v3911, %v3907
  %v5132 = vpack.c.b16 %v3912, %v3908
  %v5133 = vpack.c.b16 %v3917, %v3913
  %v5134 = vpack.c.b16 %v3918, %v3914
  %v5135 = vpack.c.b16 %v3919, %v3915
  %v5136 = vpack.c.b16 %v3920, %v3916
  %v5137 = vpack.c.b16 %v3925, %v3921
  %v5138 = vpack.c.b16 %v3926, %v3922
  %v5139 = vpack.c.b16 %v3927, %v3923
  %v5140 = vpack.c.b16 %v3928, %v3924
  %v5141 = vpack.c.b16 %v3933, %v3929
  %v5142 = vpack.c.b16 %v3934, %v3930
  %v5143 = vpack.c.b16 %v3935, %v3931
  %v5144 = vpack.c.b16 %v3936, %v3932
  %v5145 = vpack.c.b16 %v3941, %v3937
  %v5146 = vpack.c.b16 %v3942, %v3938
  %v5147 = vpack.c.b16 %v3943, %v3939
  %v5148 = vpack.c.b16 %v3944, %v3940
  %v5149 = vpack.c.b16 %v3949, %v3945
  %v5150 = vpack.c.b16 %v3950, %v3946
  %v5151 = vpack.c.b16 %v3951, %v3947
  %v5152 = vpack.c.b16 %v3952, %v3948
  %v5153 = vpack.c.b16 %v3957, %v3953
  %v5154 = vpack.c.b16 %v3958, %v3954
  %v5155 = vpack.c.b16 %v3959, %v3955
  %v5156 = vpack.c.b16 %v3960, %v3956
  %v5157 = vpack.c.b16 %v3965, %v3961
  %v5158 = vpack.c.b16 %v3966, %v3962
  %v5159 = vpack.c.b16 %v3967, %v3963
  %v5160 = vpack.c.b16 %v3968, %v3964
  %v5161 = vpack.c.b16 %v3973, %v3969
  %v5162 = vpack.c.b16 %v3974, %v3970
  %v5163 = vpack.c.b16 %v3975, %v3971
  %v5164 = vpack.c.b16 %v3976, %v3972
  %v5165 = vpack.c.b16 %v3981, %v3977
  %v5166 = vpack.c.b16 %v3982, %v3978
  %v5167 = vpack.c.b16 %v3983, %v3979
  %v5168 = vpack.c.b16 %v3984, %v3980
  %v5169 = vpack.c.b16 %v3989, %v3985
  %v5170 = vpack.c.b16 %v3990, %v3986
  %v5171 = vpack.c.b16 %v3991, %v3987
  %v5172 = vpack.c.b16 %v3992, %v3988
  %v5173 = vpack.c.b16 %v3997, %v3993
  %v5174 = vpack.c.b16 %v3998, %v3994
  %v5175 = vpack.c.b16 %v3999, %v3995
  %v5176 = vpack.c.b16 %v4000, %v3996
  %v5177 = vpack.c.b16 %v4005, %v4001
  %v5178 = vpack.c.b16 %v4006, %v4002
  %v5179 = vpack.c.b16 %v4007, %v4003
  %v5180 = vpack.c.b16 %v4008, %v4004
  %v5181 = vpack.c.b16 %v4013, %v4009
  %v5182 = vpack.c.b16 %v4014, %v4010
  %v5183 = vpack.c.b16 %v4015, %v4011
  %v5184 = vpack.c.b16 %v4016, %v4012
  %v5185 = vpack.c.b16 %v4021, %v4017
  %v5186 = vpack.c.b16 %v4022, %v4018
  %v5187 = vpack.c.b16 %v4023, %v4019
  %v5188 = vpack.c.b16 %v4024, %v4020
  %v5189 = vpack.c.b16 %v4029, %v4025
  %v5190 = vpack.c.b16 %v4030, %v4026
  %v5191 = vpack.c.b16 %v4031, %v4027
  %v5192 = vpack.c.b16 %v4032, %v4028
  %v5193 = vpack.c.b16 %v4037, %v4033
  %v5194 = vpack.c.b16 %v4038, %v4034
  %v5195 = vpack.c.b16 %v4039, %v4035
  %v5196 = vpack.c.b16 %v4040, %v4036
  %v5197 = vpack.c.b16 %v4045, %v4041
  %v5198 = vpack.c.b16 %v4046, %v4042
  %v5199 = vpack.c.b16 %v4047, %v4043
  %v5200 = vpack.c.b16 %v4048, %v4044
  %v5201 = vpack.c.b16 %v4053, %v4049
  %v5202 = vpack.c.b16 %v4054, %v4050
  %v5203 = vpack.c.b16 %v4055, %v4051
  %v5204 = vpack.c.b16 %v4056, %v4052
  %v5205 = vpack.c.b16 %v4061, %v4057
  %v5206 = vpack.c.b16 %v4062, %v4058
  %v5207 = vpack.c.b16 %v4063, %v4059
  %v5208 = vpack.c.b16 %v4064, %v4060
  %v5209 = vpack.c.b16 %v4069, %v4065
  %v5210 = vpack.c.b16 %v4070, %v4066
  %v5211 = vpack.c.b16 %v4071, %v4067
  %v5212 = vpack.c.b16 %v4072, %v4068
  %v5213 = vpack.c.b16 %v4077, %v4073
  %v5214 = vpack.c.b16 %v4078, %v4074
  %v5215 = vpack.c.b16 %v4079, %v4075
  %v5216 = vpack.c.b16 %v4080, %v4076
  %v5217 = vpack.c.b16 %v4085, %v4081
  %v5218 = vpack.c.b16 %v4086, %v4082
  %v5219 = vpack.c.b16 %v4087, %v4083
  %v5220 = vpack.c.b16 %v4088, %v4084
  %v5221 = vpack.c.b16 %v4093, %v4089
  %v5222 = vpack.c.b16 %v4094, %v4090
  %v5223 = vpack.c.b16 %v4095, %v4091
  %v5224 = vpack.c.b16 %v4096, %v4092
  %v5225 = vpack.c.b16 %v4101, %v4097
  %v5226 = vpack.c.b16 %v4102, %v4098
  %v5227 = vpack.c.b16 %v4103, %v4099
  %v5228 = vpack.c.b16 %v4104, %v4100
  %v5229 = vpack.c.b16 %v4109, %v4105
  %v5230 = vpack.c.b16 %v4110, %v4106
  %v5231 = vpack.c.b16 %v4111, %v4107
  %v5232 = vpack.c.b16 %v4112, %v4108
  %v5233 = vpack.c.b16 %v4117, %v4113
  %v5234 = vpack.c.b16 %v4118, %v4114
  %v5235 = vpack.c.b16 %v4119, %v4115
  %v5236 = vpack.c.b16 %v4120, %v4116
  %v5237 = vpack.c.b16 %v4125, %v4121
  %v5238 = vpack.c.b16 %v4126, %v4122
  %v5239 = vpack.c.b16 %v4127, %v4123
  %v5240 = vpack.c.b16 %v4128, %v4124
  %v5241 = vpack.c.b16 %v4133, %v4129
  %v5242 = vpack.c.b16 %v4134, %v4130
  %v5243 = vpack.c.b16 %v4135, %v4131
  %v5244 = vpack.c.b16 %v4136, %v4132
  %v5245 = vpack.c.b16 %v4141, %v4137
  %v5246 = vpack.c.b16 %v4142, %v4138
  %v5247 = vpack.c.b16 %v4143, %v4139
  %v5248 = vpack.c.b16 %v4144, %v4140
  %v5249 = vpack.c.b16 %v4149, %v4145
  %v5250 = vpack.c.b16 %v4150, %v4146
  %v5251 = vpack.c.b16 %v4151, %v4147
  %v5252 = vpack.c.b16 %v4152, %v4148
  %v5253 = vpack.c.b16 %v4157, %v4153
  %v5254 = vpack.c.b16 %v4158, %v4154
  %v5255 = vpack.c.b16 %v4159, %v4155
  %v5256 = vpack.c.b16 %v4160, %v4156
  %v5257 = vpack.c.b16 %v4165, %v4161
  %v5258 = vpack.c.b16 %v4166, %v4162
  %v5259 = vpack.c.b16 %v4167, %v4163
  %v5260 = vpack.c.b16 %v4168, %v4164
  %v5261 = vpack.c.b16 %v4173, %v4169
  %v5262 = vpack.c.b16 %v4174, %v4170
  %v5263 = vpack.c.b16 %v4175, %v4171
  %v5264 = vpack.c.b16 %v4176, %v4172
  %v5265 = vpack.c.b16 %v4181, %v4177
  %v5266 = vpack.c.b16 %v4182, %v4178
  %v5267 = vpack.c.b16 %v4183, %v4179
  %v5268 = vpack.c.b16 %v4184, %v4180
  %v5269 = vpack.c.b16 %v4189, %v4185
  %v5270 = vpack.c.b16 %v4190, %v4186
  %v5271 = vpack.c.b16 %v4191, %v4187
  %v5272 = vpack.c.b16 %v4192, %v4188
  %v5273 = vpack.c.b16 %v4197, %v4193
  %v5274 = vpack.c.b16 %v4198, %v4194
  %v5275 = vpack.c.b16 %v4199, %v4195
  %v5276 = vpack.c.b16 %v4200, %v4196
  %v5277 = vpack.c.b16 %v4205, %v4201
  %v5278 = vpack.c.b16 %v4206, %v4202
  %v5279 = vpack.c.b16 %v4207, %v4203
  %v5280 = vpack.c.b16 %v4208, %v4204
  %v5281 = vpack.c.b16 %v4213, %v4209
  %v5282 = vpack.c.b16 %v4214, %v4210
  %v5283 = vpack.c.b16 %v4215, %v4211
  %v5284 = vpack.c.b16 %v4216, %v4212
  %v5285 = vpack.c.b16 %v4221, %v4217
  %v5286 = vpack.c.b16 %v4222, %v4218
  %v5287 = vpack.c.b16 %v4223, %v4219
  %v5288 = vpack.c.b16 %v4224, %v4220
  %v5289 = vpack.c.b16 %v4229, %v4225
  %v5290 = vpack.c.b16 %v4230, %v4226
  %v5291 = vpack.c.b16 %v4231, %v4227
  %v5292 = vpack.c.b16 %v4232, %v4228
  %v5293 = vpack.c.b16 %v4237, %v4233
  %v5294 = vpack.c.b16 %v4238, %v4234
  %v5295 = vpack.c.b16 %v4239, %v4235
  %v5296 = vpack.c.b16 %v4240, %v4236
  %v5297 = vpack.c.b16 %v4245, %v4241
  %v5298 = vpack.c.b16 %v4246, %v4242
  %v5299 = vpack.c.b16 %v4247, %v4243
  %v5300 = vpack.c.b16 %v4248, %v4244
  %v5301 = vpack.c.b16 %v4253, %v4249
  %v5302 = vpack.c.b16 %v4254, %v4250
  %v5303 = vpack.c.b16 %v4255, %v4251
  %v5304 = vpack.c.b16 %v4256, %v4252
  %v5305 = vpack.c.b16 %v4261, %v4257
  %v5306 = vpack.c.b16 %v4262, %v4258
  %v5307 = vpack.c.b16 %v4263, %v4259
  %v5308 = vpack.c.b16 %v4264, %v4260
  %v5309 = vpack.c.b16 %v4269, %v4265
  %v5310 = vpack.c.b16 %v4270, %v4266
  %v5311 = vpack.c.b16 %v4271, %v4267
  %v5312 = vpack.c.b16 %v4272, %v4268
  %v5313 = vpack.c.b16 %v4277, %v4273
  %v5314 = vpack.c.b16 %v4278, %v4274
  %v5315 = vpack.c.b16 %v4279, %v4275
  %v5316 = vpack.c.b16 %v4280, %v4276
  %v5317 = vpack.c.b16 %v4285, %v4281
  %v5318 = vpack.c.b16 %v4286, %v4282
  %v5319 = vpack.c.b16 %v4287, %v4283
  %v5320 = vpack.c.b16 %v4288, %v4284
  %v5321 = vpack.c.b16 %v4293, %v4289
  %v5322 = vpack.c.b16 %v4294, %v4290
  %v5323 = vpack.c.b16 %v4295, %v4291
  %v5324 = vpack.c.b16 %v4296, %v4292
  %v5325 = vpack.c.b16 %v4301, %v4297
  %v5326 = vpack.c.b16 %v4302, %v4298
  %v5327 = vpack.c.b16 %v4303, %v4299
  %v5328 = vpack.c.b16 %v4304, %v4300
  %6353 = vmatprep.subr.bf16.mxu0 %v4306
  %6354 = vmatpush1.bf16.msra.mxu0 %v4305
  %6355 = vmatprep.subr.bf16.mxu0 %v4310
  %6356 = vmatpush1.bf16.msra.mxu0 %v4309
  %6357 = vmatprep.subr.bf16.mxu0 %v4314
  %6358 = vmatpush1.bf16.msra.mxu0 %v4313
  %6359 = vmatprep.subr.bf16.mxu0 %v4318
  %6360 = vmatpush1.bf16.msra.mxu0 %v4317
  %6361 = vmatprep.subr.bf16.mxu0 %v4322
  %6362 = vmatpush1.bf16.msra.mxu0 %v4321
  %6363 = vmatprep.subr.bf16.mxu0 %v4326
  %6364 = vmatpush1.bf16.msra.mxu0 %v4325
  %6365 = vmatprep.subr.bf16.mxu0 %v4330
  %6366 = vmatpush1.bf16.msra.mxu0 %v4329
  %6367 = vmatprep.subr.bf16.mxu0 %v4334
  %6368 = vmatpush1.bf16.msra.mxu0 %v4333
  %6369 = vmatprep.subr.bf16.mxu0 %v4338
  %6370 = vmatpush1.bf16.msra.mxu0 %v4337
  %6371 = vmatprep.subr.bf16.mxu0 %v4342
  %6372 = vmatpush1.bf16.msra.mxu0 %v4341
  %6373 = vmatprep.subr.bf16.mxu0 %v4346
  %6374 = vmatpush1.bf16.msra.mxu0 %v4345
  %6375 = vmatprep.subr.bf16.mxu0 %v4350
  %6376 = vmatpush1.bf16.msra.mxu0 %v4349
  %6377 = vmatprep.subr.bf16.mxu0 %v4354
  %6378 = vmatpush1.bf16.msra.mxu0 %v4353
  %6379 = vmatprep.subr.bf16.mxu0 %v4358
  %6380 = vmatpush1.bf16.msra.mxu0 %v4357
  %6381 = vmatprep.subr.bf16.mxu0 %v4362
  %6382 = vmatpush1.bf16.msra.mxu0 %v4361
  %6383 = vmatprep.subr.bf16.mxu0 %v4366
  %6384 = vmatpush1.bf16.msra.mxu0 %v4365
  %6385 = vmatprep.mubr.bf16.mxu0 %v1170
  %6386 = vmatmul.mubr.bf16.gmra.mrb[0].mxu0 %v1169
  %v6387 = vpop.f32.mrb[0].mxu0
  %v6388 = vadd.f32 0.0, %v6387
  %v6389 = vpop.f32.mrb[0].mxu0
  %v6390 = vadd.f32 0.0, %v6389
  %v6391 = vpop.f32.mrb[0].mxu0
  %v6392 = vadd.f32 0.0, %v6391
  %v6393 = vpop.f32.mrb[0].mxu0
  %v6394 = vadd.f32 0.0, %v6393
  %6395 = vdwg.mxu0
  %6396 = vmatprep.subr.bf16.mxu0 %v4370
  %6397 = vmatpush1.bf16.msra.mxu0 %v4369
  %6398 = vmatprep.subr.bf16.mxu0 %v4374
  %6399 = vmatpush1.bf16.msra.mxu0 %v4373
  %6400 = vmatprep.subr.bf16.mxu0 %v4378
  %6401 = vmatpush1.bf16.msra.mxu0 %v4377
  %6402 = vmatprep.subr.bf16.mxu0 %v4382
  %6403 = vmatpush1.bf16.msra.mxu0 %v4381
  %6404 = vmatprep.subr.bf16.mxu0 %v4386
  %6405 = vmatpush1.bf16.msra.mxu0 %v4385
  %6406 = vmatprep.subr.bf16.mxu0 %v4390
  %6407 = vmatpush1.bf16.msra.mxu0 %v4389
  %6408 = vmatprep.subr.bf16.mxu0 %v4394
  %6409 = vmatpush1.bf16.msra.mxu0 %v4393
  %6410 = vmatprep.subr.bf16.mxu0 %v4398
  %6411 = vmatpush1.bf16.msra.mxu0 %v4397
  %6412 = vmatprep.subr.bf16.mxu0 %v4402
  %6413 = vmatpush1.bf16.msra.mxu0 %v4401
  %6414 = vmatprep.subr.bf16.mxu0 %v4406
  %6415 = vmatpush1.bf16.msra.mxu0 %v4405
  %6416 = vmatprep.subr.bf16.mxu0 %v4410
  %6417 = vmatpush1.bf16.msra.mxu0 %v4409
  %6418 = vmatprep.subr.bf16.mxu0 %v4414
  %6419 = vmatpush1.bf16.msra.mxu0 %v4413
  %6420 = vmatprep.subr.bf16.mxu0 %v4418
  %6421 = vmatpush1.bf16.msra.mxu0 %v4417
  %6422 = vmatprep.subr.bf16.mxu0 %v4422
  %6423 = vmatpush1.bf16.msra.mxu0 %v4421
  %6424 = vmatprep.subr.bf16.mxu0 %v4426
  %6425 = vmatpush1.bf16.msra.mxu0 %v4425
  %6426 = vmatprep.subr.bf16.mxu0 %v4430
  %6427 = vmatpush1.bf16.msra.mxu0 %v4429
  %6428 = vmatprep.mubr.bf16.mxu0 %v1172
  %6429 = vmatmul.mubr.bf16.gmra.mrb[0].mxu0 %v1171
  %v6430 = vpop.f32.mrb[0].mxu0
  %v6431 = vadd.f32 %v6388, %v6430
  %v6432 = vpop.f32.mrb[0].mxu0
  %v6433 = vadd.f32 %v6390, %v6432
  %v6434 = vpop.f32.mrb[0].mxu0
  %v6435 = vadd.f32 %v6392, %v6434
  %v6436 = vpop.f32.mrb[0].mxu0
  %v6437 = vadd.f32 %v6394, %v6436
  %6438 = vdwg.mxu0
  %6439 = vmatprep.subr.bf16.mxu0 %v4434
  %6440 = vmatpush1.bf16.msra.mxu0 %v4433
  %6441 = vmatprep.subr.bf16.mxu0 %v4438
  %6442 = vmatpush1.bf16.msra.mxu0 %v4437
  %6443 = vmatprep.subr.bf16.mxu0 %v4442
  %6444 = vmatpush1.bf16.msra.mxu0 %v4441
  %6445 = vmatprep.subr.bf16.mxu0 %v4446
  %6446 = vmatpush1.bf16.msra.mxu0 %v4445
  %6447 = vmatprep.subr.bf16.mxu0 %v4450
  %6448 = vmatpush1.bf16.msra.mxu0 %v4449
  %6449 = vmatprep.subr.bf16.mxu0 %v4454
  %6450 = vmatpush1.bf16.msra.mxu0 %v4453
  %6451 = vmatprep.subr.bf16.mxu0 %v4458
  %6452 = vmatpush1.bf16.msra.mxu0 %v4457
  %6453 = vmatprep.subr.bf16.mxu0 %v4462
  %6454 = vmatpush1.bf16.msra.mxu0 %v4461
  %6455 = vmatprep.subr.bf16.mxu0 %v4466
  %6456 = vmatpush1.bf16.msra.mxu0 %v4465
  %6457 = vmatprep.subr.bf16.mxu0 %v4470
  %6458 = vmatpush1.bf16.msra.mxu0 %v4469
  %6459 = vmatprep.subr.bf16.mxu0 %v4474
  %6460 = vmatpush1.bf16.msra.mxu0 %v4473
  %6461 = vmatprep.subr.bf16.mxu0 %v4478
  %6462 = vmatpush1.bf16.msra.mxu0 %v4477
  %6463 = vmatprep.subr.bf16.mxu0 %v4482
  %6464 = vmatpush1.bf16.msra.mxu0 %v4481
  %6465 = vmatprep.subr.bf16.mxu0 %v4486
  %6466 = vmatpush1.bf16.msra.mxu0 %v4485
  %6467 = vmatprep.subr.bf16.mxu0 %v4490
  %6468 = vmatpush1.bf16.msra.mxu0 %v4489
  %6469 = vmatprep.subr.bf16.mxu0 %v4494
  %6470 = vmatpush1.bf16.msra.mxu0 %v4493
  %6471 = vmatprep.mubr.bf16.mxu0 %v1174
  %6472 = vmatmul.mubr.bf16.gmra.mrb[0].mxu0 %v1173
  %v6473 = vpop.f32.mrb[0].mxu0
  %v6474 = vadd.f32 %v6431, %v6473
  %v6475 = vpop.f32.mrb[0].mxu0
  %v6476 = vadd.f32 %v6433, %v6475
  %v6477 = vpop.f32.mrb[0].mxu0
  %v6478 = vadd.f32 %v6435, %v6477
  %v6479 = vpop.f32.mrb[0].mxu0
  %v6480 = vadd.f32 %v6437, %v6479
  %6481 = vdwg.mxu0
  %6482 = vmatprep.subr.bf16.mxu0 %v4498
  %6483 = vmatpush1.bf16.msra.mxu0 %v4497
  %6484 = vmatprep.subr.bf16.mxu0 %v4502
  %6485 = vmatpush1.bf16.msra.mxu0 %v4501
  %6486 = vmatprep.subr.bf16.mxu0 %v4506
  %6487 = vmatpush1.bf16.msra.mxu0 %v4505
  %6488 = vmatprep.subr.bf16.mxu0 %v4510
  %6489 = vmatpush1.bf16.msra.mxu0 %v4509
  %6490 = vmatprep.subr.bf16.mxu0 %v4514
  %6491 = vmatpush1.bf16.msra.mxu0 %v4513
  %6492 = vmatprep.subr.bf16.mxu0 %v4518
  %6493 = vmatpush1.bf16.msra.mxu0 %v4517
  %6494 = vmatprep.subr.bf16.mxu0 %v4522
  %6495 = vmatpush1.bf16.msra.mxu0 %v4521
  %6496 = vmatprep.subr.bf16.mxu0 %v4526
  %6497 = vmatpush1.bf16.msra.mxu0 %v4525
  %6498 = vmatprep.subr.bf16.mxu0 %v4530
  %6499 = vmatpush1.bf16.msra.mxu0 %v4529
  %6500 = vmatprep.subr.bf16.mxu0 %v4534
  %6501 = vmatpush1.bf16.msra.mxu0 %v4533
  %6502 = vmatprep.subr.bf16.mxu0 %v4538
  %6503 = vmatpush1.bf16.msra.mxu0 %v4537
  %6504 = vmatprep.subr.bf16.mxu0 %v4542
  %6505 = vmatpush1.bf16.msra.mxu0 %v4541
  %6506 = vmatprep.subr.bf16.mxu0 %v4546
  %6507 = vmatpush1.bf16.msra.mxu0 %v4545
  %6508 = vmatprep.subr.bf16.mxu0 %v4550
  %6509 = vmatpush1.bf16.msra.mxu0 %v4549
  %6510 = vmatprep.subr.bf16.mxu0 %v4554
  %6511 = vmatpush1.bf16.msra.mxu0 %v4553
  %6512 = vmatprep.subr.bf16.mxu0 %v4558
  %6513 = vmatpush1.bf16.msra.mxu0 %v4557
  %6514 = vmatprep.mubr.bf16.mxu0 %v1176
  %6515 = vmatmul.mubr.bf16.gmra.mrb[0].mxu0 %v1175
  %v6516 = vpop.f32.mrb[0].mxu0
  %v6517 = vadd.f32 %v6474, %v6516
  %v6518 = vpop.f32.mrb[0].mxu0
  %v6519 = vadd.f32 %v6476, %v6518
  %v6520 = vpop.f32.mrb[0].mxu0
  %v6521 = vadd.f32 %v6478, %v6520
  %v6522 = vpop.f32.mrb[0].mxu0
  %v6523 = vadd.f32 %v6480, %v6522
  %6524 = vdwg.mxu0
  %6525 = vmatprep.subr.bf16.mxu0 %v4562
  %6526 = vmatpush1.bf16.msra.mxu0 %v4561
  %6527 = vmatprep.subr.bf16.mxu0 %v4566
  %6528 = vmatpush1.bf16.msra.mxu0 %v4565
  %6529 = vmatprep.subr.bf16.mxu0 %v4570
  %6530 = vmatpush1.bf16.msra.mxu0 %v4569
  %6531 = vmatprep.subr.bf16.mxu0 %v4574
  %6532 = vmatpush1.bf16.msra.mxu0 %v4573
  %6533 = vmatprep.subr.bf16.mxu0 %v4578
  %6534 = vmatpush1.bf16.msra.mxu0 %v4577
  %6535 = vmatprep.subr.bf16.mxu0 %v4582
  %6536 = vmatpush1.bf16.msra.mxu0 %v4581
  %6537 = vmatprep.subr.bf16.mxu0 %v4586
  %6538 = vmatpush1.bf16.msra.mxu0 %v4585
  %6539 = vmatprep.subr.bf16.mxu0 %v4590
  %6540 = vmatpush1.bf16.msra.mxu0 %v4589
  %6541 = vmatprep.subr.bf16.mxu0 %v4594
  %6542 = vmatpush1.bf16.msra.mxu0 %v4593
  %6543 = vmatprep.subr.bf16.mxu0 %v4598
  %6544 = vmatpush1.bf16.msra.mxu0 %v4597
  %6545 = vmatprep.subr.bf16.mxu0 %v4602
  %6546 = vmatpush1.bf16.msra.mxu0 %v4601
  %6547 = vmatprep.subr.bf16.mxu0 %v4606
  %6548 = vmatpush1.bf16.msra.mxu0 %v4605
  %6549 = vmatprep.subr.bf16.mxu0 %v4610
  %6550 = vmatpush1.bf16.msra.mxu0 %v4609
  %6551 = vmatprep.subr.bf16.mxu0 %v4614
  %6552 = vmatpush1.bf16.msra.mxu0 %v4613
  %6553 = vmatprep.subr.bf16.mxu0 %v4618
  %6554 = vmatpush1.bf16.msra.mxu0 %v4617
  %6555 = vmatprep.subr.bf16.mxu0 %v4622
  %6556 = vmatpush1.bf16.msra.mxu0 %v4621
  %6557 = vmatprep.mubr.bf16.mxu0 %v1178
  %6558 = vmatmul.mubr.bf16.gmra.mrb[0].mxu0 %v1177
  %v6559 = vpop.f32.mrb[0].mxu0
  %v6560 = vadd.f32 %v6517, %v6559
  %v6561 = vpop.f32.mrb[0].mxu0
  %v6562 = vadd.f32 %v6519, %v6561
  %v6563 = vpop.f32.mrb[0].mxu0
  %v6564 = vadd.f32 %v6521, %v6563
  %v6565 = vpop.f32.mrb[0].mxu0
  %v6566 = vadd.f32 %v6523, %v6565
  %6567 = vdwg.mxu0
  %6568 = vmatprep.subr.bf16.mxu0 %v4626
  %6569 = vmatpush1.bf16.msra.mxu0 %v4625
  %6570 = vmatprep.subr.bf16.mxu0 %v4630
  %6571 = vmatpush1.bf16.msra.mxu0 %v4629
  %6572 = vmatprep.subr.bf16.mxu0 %v4634
  %6573 = vmatpush1.bf16.msra.mxu0 %v4633
  %6574 = vmatprep.subr.bf16.mxu0 %v4638
  %6575 = vmatpush1.bf16.msra.mxu0 %v4637
  %6576 = vmatprep.subr.bf16.mxu0 %v4642
  %6577 = vmatpush1.bf16.msra.mxu0 %v4641
  %6578 = vmatprep.subr.bf16.mxu0 %v4646
  %6579 = vmatpush1.bf16.msra.mxu0 %v4645
  %6580 = vmatprep.subr.bf16.mxu0 %v4650
  %6581 = vmatpush1.bf16.msra.mxu0 %v4649
  %6582 = vmatprep.subr.bf16.mxu0 %v4654
  %6583 = vmatpush1.bf16.msra.mxu0 %v4653
  %6584 = vmatprep.subr.bf16.mxu0 %v4658
  %6585 = vmatpush1.bf16.msra.mxu0 %v4657
  %6586 = vmatprep.subr.bf16.mxu0 %v4662
  %6587 = vmatpush1.bf16.msra.mxu0 %v4661
  %6588 = vmatprep.subr.bf16.mxu0 %v4666
  %6589 = vmatpush1.bf16.msra.mxu0 %v4665
  %6590 = vmatprep.subr.bf16.mxu0 %v4670
  %6591 = vmatpush1.bf16.msra.mxu0 %v4669
  %6592 = vmatprep.subr.bf16.mxu0 %v4674
  %6593 = vmatpush1.bf16.msra.mxu0 %v4673
  %6594 = vmatprep.subr.bf16.mxu0 %v4678
  %6595 = vmatpush1.bf16.msra.mxu0 %v4677
  %6596 = vmatprep.subr.bf16.mxu0 %v4682
  %6597 = vmatpush1.bf16.msra.mxu0 %v4681
  %6598 = vmatprep.subr.bf16.mxu0 %v4686
  %6599 = vmatpush1.bf16.msra.mxu0 %v4685
  %6600 = vmatprep.mubr.bf16.mxu0 %v1180
  %6601 = vmatmul.mubr.bf16.gmra.mrb[0].mxu0 %v1179
  %v6602 = vpop.f32.mrb[0].mxu0
  %v6603 = vadd.f32 %v6560, %v6602
  %v6604 = vpop.f32.mrb[0].mxu0
  %v6605 = vadd.f32 %v6562, %v6604
  %v6606 = vpop.f32.mrb[0].mxu0
  %v6607 = vadd.f32 %v6564, %v6606
  %v6608 = vpop.f32.mrb[0].mxu0
  %v6609 = vadd.f32 %v6566, %v6608
  %6610 = vdwg.mxu0
  %6611 = vmatprep.subr.bf16.mxu0 %v4690
  %6612 = vmatpush1.bf16.msra.mxu0 %v4689
  %6613 = vmatprep.subr.bf16.mxu0 %v4694
  %6614 = vmatpush1.bf16.msra.mxu0 %v4693
  %6615 = vmatprep.subr.bf16.mxu0 %v4698
  %6616 = vmatpush1.bf16.msra.mxu0 %v4697
  %6617 = vmatprep.subr.bf16.mxu0 %v4702
  %6618 = vmatpush1.bf16.msra.mxu0 %v4701
  %6619 = vmatprep.subr.bf16.mxu0 %v4706
  %6620 = vmatpush1.bf16.msra.mxu0 %v4705
  %6621 = vmatprep.subr.bf16.mxu0 %v4710
  %6622 = vmatpush1.bf16.msra.mxu0 %v4709
  %6623 = vmatprep.subr.bf16.mxu0 %v4714
  %6624 = vmatpush1.bf16.msra.mxu0 %v4713
  %6625 = vmatprep.subr.bf16.mxu0 %v4718
  %6626 = vmatpush1.bf16.msra.mxu0 %v4717
  %6627 = vmatprep.subr.bf16.mxu0 %v4722
  %6628 = vmatpush1.bf16.msra.mxu0 %v4721
  %6629 = vmatprep.subr.bf16.mxu0 %v4726
  %6630 = vmatpush1.bf16.msra.mxu0 %v4725
  %6631 = vmatprep.subr.bf16.mxu0 %v4730
  %6632 = vmatpush1.bf16.msra.mxu0 %v4729
  %6633 = vmatprep.subr.bf16.mxu0 %v4734
  %6634 = vmatpush1.bf16.msra.mxu0 %v4733
  %6635 = vmatprep.subr.bf16.mxu0 %v4738
  %6636 = vmatpush1.bf16.msra.mxu0 %v4737
  %6637 = vmatprep.subr.bf16.mxu0 %v4742
  %6638 = vmatpush1.bf16.msra.mxu0 %v4741
  %6639 = vmatprep.subr.bf16.mxu0 %v4746
  %6640 = vmatpush1.bf16.msra.mxu0 %v4745
  %6641 = vmatprep.subr.bf16.mxu0 %v4750
  %6642 = vmatpush1.bf16.msra.mxu0 %v4749
  %6643 = vmatprep.mubr.bf16.mxu0 %v1182
  %6644 = vmatmul.mubr.bf16.gmra.mrb[0].mxu0 %v1181
  %v6645 = vpop.f32.mrb[0].mxu0
  %v6646 = vadd.f32 %v6603, %v6645
  %v6647 = vpop.f32.mrb[0].mxu0
  %v6648 = vadd.f32 %v6605, %v6647
  %v6649 = vpop.f32.mrb[0].mxu0
  %v6650 = vadd.f32 %v6607, %v6649
  %v6651 = vpop.f32.mrb[0].mxu0
  %v6652 = vadd.f32 %v6609, %v6651
  %6653 = vdwg.mxu0
  %6654 = vmatprep.subr.bf16.mxu0 %v4754
  %6655 = vmatpush1.bf16.msra.mxu0 %v4753
  %6656 = vmatprep.subr.bf16.mxu0 %v4758
  %6657 = vmatpush1.bf16.msra.mxu0 %v4757
  %6658 = vmatprep.subr.bf16.mxu0 %v4762
  %6659 = vmatpush1.bf16.msra.mxu0 %v4761
  %6660 = vmatprep.subr.bf16.mxu0 %v4766
  %6661 = vmatpush1.bf16.msra.mxu0 %v4765
  %6662 = vmatprep.subr.bf16.mxu0 %v4770
  %6663 = vmatpush1.bf16.msra.mxu0 %v4769
  %6664 = vmatprep.subr.bf16.mxu0 %v4774
  %6665 = vmatpush1.bf16.msra.mxu0 %v4773
  %6666 = vmatprep.subr.bf16.mxu0 %v4778
  %6667 = vmatpush1.bf16.msra.mxu0 %v4777
  %6668 = vmatprep.subr.bf16.mxu0 %v4782
  %6669 = vmatpush1.bf16.msra.mxu0 %v4781
  %6670 = vmatprep.subr.bf16.mxu0 %v4786
  %6671 = vmatpush1.bf16.msra.mxu0 %v4785
  %6672 = vmatprep.subr.bf16.mxu0 %v4790
  %6673 = vmatpush1.bf16.msra.mxu0 %v4789
  %6674 = vmatprep.subr.bf16.mxu0 %v4794
  %6675 = vmatpush1.bf16.msra.mxu0 %v4793
  %6676 = vmatprep.subr.bf16.mxu0 %v4798
  %6677 = vmatpush1.bf16.msra.mxu0 %v4797
  %6678 = vmatprep.subr.bf16.mxu0 %v4802
  %6679 = vmatpush1.bf16.msra.mxu0 %v4801
  %6680 = vmatprep.subr.bf16.mxu0 %v4806
  %6681 = vmatpush1.bf16.msra.mxu0 %v4805
  %6682 = vmatprep.subr.bf16.mxu0 %v4810
  %6683 = vmatpush1.bf16.msra.mxu0 %v4809
  %6684 = vmatprep.subr.bf16.mxu0 %v4814
  %6685 = vmatpush1.bf16.msra.mxu0 %v4813
  %6686 = vmatprep.mubr.bf16.mxu0 %v1184
  %6687 = vmatmul.mubr.bf16.gmra.mrb[0].mxu0 %v1183
  %v6688 = vpop.f32.mrb[0].mxu0
  %v6689 = vadd.f32 %v6646, %v6688
  %v6690 = vpop.f32.mrb[0].mxu0
  %v6691 = vadd.f32 %v6648, %v6690
  %v6692 = vpop.f32.mrb[0].mxu0
  %v6693 = vadd.f32 %v6650, %v6692
  %v6694 = vpop.f32.mrb[0].mxu0
  %v6695 = vadd.f32 %v6652, %v6694
  %6696 = vdwg.mxu0
  %6697 = vmatprep.subr.bf16.mxu0 %v4818
  %6698 = vmatpush1.bf16.msra.mxu0 %v4817
  %6699 = vmatprep.subr.bf16.mxu0 %v4822
  %6700 = vmatpush1.bf16.msra.mxu0 %v4821
  %6701 = vmatprep.subr.bf16.mxu0 %v4826
  %6702 = vmatpush1.bf16.msra.mxu0 %v4825
  %6703 = vmatprep.subr.bf16.mxu0 %v4830
  %6704 = vmatpush1.bf16.msra.mxu0 %v4829
  %6705 = vmatprep.subr.bf16.mxu0 %v4834
  %6706 = vmatpush1.bf16.msra.mxu0 %v4833
  %6707 = vmatprep.subr.bf16.mxu0 %v4838
  %6708 = vmatpush1.bf16.msra.mxu0 %v4837
  %6709 = vmatprep.subr.bf16.mxu0 %v4842
  %6710 = vmatpush1.bf16.msra.mxu0 %v4841
  %6711 = vmatprep.subr.bf16.mxu0 %v4846
  %6712 = vmatpush1.bf16.msra.mxu0 %v4845
  %6713 = vmatprep.subr.bf16.mxu0 %v4850
  %6714 = vmatpush1.bf16.msra.mxu0 %v4849
  %6715 = vmatprep.subr.bf16.mxu0 %v4854
  %6716 = vmatpush1.bf16.msra.mxu0 %v4853
  %6717 = vmatprep.subr.bf16.mxu0 %v4858
  %6718 = vmatpush1.bf16.msra.mxu0 %v4857
  %6719 = vmatprep.subr.bf16.mxu0 %v4862
  %6720 = vmatpush1.bf16.msra.mxu0 %v4861
  %6721 = vmatprep.subr.bf16.mxu0 %v4866
  %6722 = vmatpush1.bf16.msra.mxu0 %v4865
  %6723 = vmatprep.subr.bf16.mxu0 %v4870
  %6724 = vmatpush1.bf16.msra.mxu0 %v4869
  %6725 = vmatprep.subr.bf16.mxu0 %v4874
  %6726 = vmatpush1.bf16.msra.mxu0 %v4873
  %6727 = vmatprep.subr.bf16.mxu0 %v4878
  %6728 = vmatpush1.bf16.msra.mxu0 %v4877
  %6729 = vmatprep.mubr.bf16.mxu0 %v1186
  %6730 = vmatmul.mubr.bf16.gmra.mrb[0].mxu0 %v1185
  %v6731 = vpop.f32.mrb[0].mxu0
  %v6732 = vadd.f32 %v6689, %v6731
  %v6733 = vpop.f32.mrb[0].mxu0
  %v6734 = vadd.f32 %v6691, %v6733
  %v6735 = vpop.f32.mrb[0].mxu0
  %v6736 = vadd.f32 %v6693, %v6735
  %v6737 = vpop.f32.mrb[0].mxu0
  %v6738 = vadd.f32 %v6695, %v6737
  %6739 = vdwg.mxu0
  %6740 = vmatprep.subr.bf16.mxu0 %v4882
  %6741 = vmatpush1.bf16.msra.mxu0 %v4881
  %6742 = vmatprep.subr.bf16.mxu0 %v4886
  %6743 = vmatpush1.bf16.msra.mxu0 %v4885
  %6744 = vmatprep.subr.bf16.mxu0 %v4890
  %6745 = vmatpush1.bf16.msra.mxu0 %v4889
  %6746 = vmatprep.subr.bf16.mxu0 %v4894
  %6747 = vmatpush1.bf16.msra.mxu0 %v4893
  %6748 = vmatprep.subr.bf16.mxu0 %v4898
  %6749 = vmatpush1.bf16.msra.mxu0 %v4897
  %6750 = vmatprep.subr.bf16.mxu0 %v4902
  %6751 = vmatpush1.bf16.msra.mxu0 %v4901
  %6752 = vmatprep.subr.bf16.mxu0 %v4906
  %6753 = vmatpush1.bf16.msra.mxu0 %v4905
  %6754 = vmatprep.subr.bf16.mxu0 %v4910
  %6755 = vmatpush1.bf16.msra.mxu0 %v4909
  %6756 = vmatprep.subr.bf16.mxu0 %v4914
  %6757 = vmatpush1.bf16.msra.mxu0 %v4913
  %6758 = vmatprep.subr.bf16.mxu0 %v4918
  %6759 = vmatpush1.bf16.msra.mxu0 %v4917
  %6760 = vmatprep.subr.bf16.mxu0 %v4922
  %6761 = vmatpush1.bf16.msra.mxu0 %v4921
  %6762 = vmatprep.subr.bf16.mxu0 %v4926
  %6763 = vmatpush1.bf16.msra.mxu0 %v4925
  %6764 = vmatprep.subr.bf16.mxu0 %v4930
  %6765 = vmatpush1.bf16.msra.mxu0 %v4929
  %6766 = vmatprep.subr.bf16.mxu0 %v4934
  %6767 = vmatpush1.bf16.msra.mxu0 %v4933
  %6768 = vmatprep.subr.bf16.mxu0 %v4938
  %6769 = vmatpush1.bf16.msra.mxu0 %v4937
  %6770 = vmatprep.subr.bf16.mxu0 %v4942
  %6771 = vmatpush1.bf16.msra.mxu0 %v4941
  %6772 = vmatprep.mubr.bf16.mxu0 %v1188
  %6773 = vmatmul.mubr.bf16.gmra.mrb[0].mxu0 %v1187
  %v6774 = vpop.f32.mrb[0].mxu0
  %v6775 = vadd.f32 %v6732, %v6774
  %v6776 = vpop.f32.mrb[0].mxu0
  %v6777 = vadd.f32 %v6734, %v6776
  %v6778 = vpop.f32.mrb[0].mxu0
  %v6779 = vadd.f32 %v6736, %v6778
  %v6780 = vpop.f32.mrb[0].mxu0
  %v6781 = vadd.f32 %v6738, %v6780
  %6782 = vdwg.mxu0
  %6783 = vmatprep.subr.bf16.mxu0 %v4946
  %6784 = vmatpush1.bf16.msra.mxu0 %v4945
  %6785 = vmatprep.subr.bf16.mxu0 %v4950
  %6786 = vmatpush1.bf16.msra.mxu0 %v4949
  %6787 = vmatprep.subr.bf16.mxu0 %v4954
  %6788 = vmatpush1.bf16.msra.mxu0 %v4953
  %6789 = vmatprep.subr.bf16.mxu0 %v4958
  %6790 = vmatpush1.bf16.msra.mxu0 %v4957
  %6791 = vmatprep.subr.bf16.mxu0 %v4962
  %6792 = vmatpush1.bf16.msra.mxu0 %v4961
  %6793 = vmatprep.subr.bf16.mxu0 %v4966
  %6794 = vmatpush1.bf16.msra.mxu0 %v4965
  %6795 = vmatprep.subr.bf16.mxu0 %v4970
  %6796 = vmatpush1.bf16.msra.mxu0 %v4969
  %6797 = vmatprep.subr.bf16.mxu0 %v4974
  %6798 = vmatpush1.bf16.msra.mxu0 %v4973
  %6799 = vmatprep.subr.bf16.mxu0 %v4978
  %6800 = vmatpush1.bf16.msra.mxu0 %v4977
  %6801 = vmatprep.subr.bf16.mxu0 %v4982
  %6802 = vmatpush1.bf16.msra.mxu0 %v4981
  %6803 = vmatprep.subr.bf16.mxu0 %v4986
  %6804 = vmatpush1.bf16.msra.mxu0 %v4985
  %6805 = vmatprep.subr.bf16.mxu0 %v4990
  %6806 = vmatpush1.bf16.msra.mxu0 %v4989
  %6807 = vmatprep.subr.bf16.mxu0 %v4994
  %6808 = vmatpush1.bf16.msra.mxu0 %v4993
  %6809 = vmatprep.subr.bf16.mxu0 %v4998
  %6810 = vmatpush1.bf16.msra.mxu0 %v4997
  %6811 = vmatprep.subr.bf16.mxu0 %v5002
  %6812 = vmatpush1.bf16.msra.mxu0 %v5001
  %6813 = vmatprep.subr.bf16.mxu0 %v5006
  %6814 = vmatpush1.bf16.msra.mxu0 %v5005
  %6815 = vmatprep.mubr.bf16.mxu0 %v1190
  %6816 = vmatmul.mubr.bf16.gmra.mrb[0].mxu0 %v1189
  %v6817 = vpop.f32.mrb[0].mxu0
  %v6818 = vadd.f32 %v6775, %v6817
  %v6819 = vpop.f32.mrb[0].mxu0
  %v6820 = vadd.f32 %v6777, %v6819
  %v6821 = vpop.f32.mrb[0].mxu0
  %v6822 = vadd.f32 %v6779, %v6821
  %v6823 = vpop.f32.mrb[0].mxu0
  %v6824 = vadd.f32 %v6781, %v6823
  %6825 = vdwg.mxu0
  %6826 = vmatprep.subr.bf16.mxu0 %v5010
  %6827 = vmatpush1.bf16.msra.mxu0 %v5009
  %6828 = vmatprep.subr.bf16.mxu0 %v5014
  %6829 = vmatpush1.bf16.msra.mxu0 %v5013
  %6830 = vmatprep.subr.bf16.mxu0 %v5018
  %6831 = vmatpush1.bf16.msra.mxu0 %v5017
  %6832 = vmatprep.subr.bf16.mxu0 %v5022
  %6833 = vmatpush1.bf16.msra.mxu0 %v5021
  %6834 = vmatprep.subr.bf16.mxu0 %v5026
  %6835 = vmatpush1.bf16.msra.mxu0 %v5025
  %6836 = vmatprep.subr.bf16.mxu0 %v5030
  %6837 = vmatpush1.bf16.msra.mxu0 %v5029
  %6838 = vmatprep.subr.bf16.mxu0 %v5034
  %6839 = vmatpush1.bf16.msra.mxu0 %v5033
  %6840 = vmatprep.subr.bf16.mxu0 %v5038
  %6841 = vmatpush1.bf16.msra.mxu0 %v5037
  %6842 = vmatprep.subr.bf16.mxu0 %v5042
  %6843 = vmatpush1.bf16.msra.mxu0 %v5041
  %6844 = vmatprep.subr.bf16.mxu0 %v5046
  %6845 = vmatpush1.bf16.msra.mxu0 %v5045
  %6846 = vmatprep.subr.bf16.mxu0 %v5050
  %6847 = vmatpush1.bf16.msra.mxu0 %v5049
  %6848 = vmatprep.subr.bf16.mxu0 %v5054
  %6849 = vmatpush1.bf16.msra.mxu0 %v5053
  %6850 = vmatprep.subr.bf16.mxu0 %v5058
  %6851 = vmatpush1.bf16.msra.mxu0 %v5057
  %6852 = vmatprep.subr.bf16.mxu0 %v5062
  %6853 = vmatpush1.bf16.msra.mxu0 %v5061
  %6854 = vmatprep.subr.bf16.mxu0 %v5066
  %6855 = vmatpush1.bf16.msra.mxu0 %v5065
  %6856 = vmatprep.subr.bf16.mxu0 %v5070
  %6857 = vmatpush1.bf16.msra.mxu0 %v5069
  %6858 = vmatprep.mubr.bf16.mxu0 %v1192
  %6859 = vmatmul.mubr.bf16.gmra.mrb[0].mxu0 %v1191
  %v6860 = vpop.f32.mrb[0].mxu0
  %v6861 = vadd.f32 %v6818, %v6860
  %v6862 = vpop.f32.mrb[0].mxu0
  %v6863 = vadd.f32 %v6820, %v6862
  %v6864 = vpop.f32.mrb[0].mxu0
  %v6865 = vadd.f32 %v6822, %v6864
  %v6866 = vpop.f32.mrb[0].mxu0
  %v6867 = vadd.f32 %v6824, %v6866
  %6868 = vdwg.mxu0
  %6869 = vmatprep.subr.bf16.mxu0 %v5074
  %6870 = vmatpush1.bf16.msra.mxu0 %v5073
  %6871 = vmatprep.subr.bf16.mxu0 %v5078
  %6872 = vmatpush1.bf16.msra.mxu0 %v5077
  %6873 = vmatprep.subr.bf16.mxu0 %v5082
  %6874 = vmatpush1.bf16.msra.mxu0 %v5081
  %6875 = vmatprep.subr.bf16.mxu0 %v5086
  %6876 = vmatpush1.bf16.msra.mxu0 %v5085
  %6877 = vmatprep.subr.bf16.mxu0 %v5090
  %6878 = vmatpush1.bf16.msra.mxu0 %v5089
  %6879 = vmatprep.subr.bf16.mxu0 %v5094
  %6880 = vmatpush1.bf16.msra.mxu0 %v5093
  %6881 = vmatprep.subr.bf16.mxu0 %v5098
  %6882 = vmatpush1.bf16.msra.mxu0 %v5097
  %6883 = vmatprep.subr.bf16.mxu0 %v5102
  %6884 = vmatpush1.bf16.msra.mxu0 %v5101
  %6885 = vmatprep.subr.bf16.mxu0 %v5106
  %6886 = vmatpush1.bf16.msra.mxu0 %v5105
  %6887 = vmatprep.subr.bf16.mxu0 %v5110
  %6888 = vmatpush1.bf16.msra.mxu0 %v5109
  %6889 = vmatprep.subr.bf16.mxu0 %v5114
  %6890 = vmatpush1.bf16.msra.mxu0 %v5113
  %6891 = vmatprep.subr.bf16.mxu0 %v5118
  %6892 = vmatpush1.bf16.msra.mxu0 %v5117
  %6893 = vmatprep.subr.bf16.mxu0 %v5122
  %6894 = vmatpush1.bf16.msra.mxu0 %v5121
  %6895 = vmatprep.subr.bf16.mxu0 %v5126
  %6896 = vmatpush1.bf16.msra.mxu0 %v5125
  %6897 = vmatprep.subr.bf16.mxu0 %v5130
  %6898 = vmatpush1.bf16.msra.mxu0 %v5129
  %6899 = vmatprep.subr.bf16.mxu0 %v5134
  %6900 = vmatpush1.bf16.msra.mxu0 %v5133
  %6901 = vmatprep.mubr.bf16.mxu0 %v1194
  %6902 = vmatmul.mubr.bf16.gmra.mrb[0].mxu0 %v1193
  %v6903 = vpop.f32.mrb[0].mxu0
  %v6904 = vadd.f32 %v6861, %v6903
  %v6905 = vpop.f32.mrb[0].mxu0
  %v6906 = vadd.f32 %v6863, %v6905
  %v6907 = vpop.f32.mrb[0].mxu0
  %v6908 = vadd.f32 %v6865, %v6907
  %v6909 = vpop.f32.mrb[0].mxu0
  %v6910 = vadd.f32 %v6867, %v6909
  %6911 = vdwg.mxu0
  %6912 = vmatprep.subr.bf16.mxu0 %v5138
  %6913 = vmatpush1.bf16.msra.mxu0 %v5137
  %6914 = vmatprep.subr.bf16.mxu0 %v5142
  %6915 = vmatpush1.bf16.msra.mxu0 %v5141
  %6916 = vmatprep.subr.bf16.mxu0 %v5146
  %6917 = vmatpush1.bf16.msra.mxu0 %v5145
  %6918 = vmatprep.subr.bf16.mxu0 %v5150
  %6919 = vmatpush1.bf16.msra.mxu0 %v5149
  %6920 = vmatprep.subr.bf16.mxu0 %v5154
  %6921 = vmatpush1.bf16.msra.mxu0 %v5153
  %6922 = vmatprep.subr.bf16.mxu0 %v5158
  %6923 = vmatpush1.bf16.msra.mxu0 %v5157
  %6924 = vmatprep.subr.bf16.mxu0 %v5162
  %6925 = vmatpush1.bf16.msra.mxu0 %v5161
  %6926 = vmatprep.subr.bf16.mxu0 %v5166
  %6927 = vmatpush1.bf16.msra.mxu0 %v5165
  %6928 = vmatprep.subr.bf16.mxu0 %v5170
  %6929 = vmatpush1.bf16.msra.mxu0 %v5169
  %6930 = vmatprep.subr.bf16.mxu0 %v5174
  %6931 = vmatpush1.bf16.msra.mxu0 %v5173
  %6932 = vmatprep.subr.bf16.mxu0 %v5178
  %6933 = vmatpush1.bf16.msra.mxu0 %v5177
  %6934 = vmatprep.subr.bf16.mxu0 %v5182
  %6935 = vmatpush1.bf16.msra.mxu0 %v5181
  %6936 = vmatprep.subr.bf16.mxu0 %v5186
  %6937 = vmatpush1.bf16.msra.mxu0 %v5185
  %6938 = vmatprep.subr.bf16.mxu0 %v5190
  %6939 = vmatpush1.bf16.msra.mxu0 %v5189
  %6940 = vmatprep.subr.bf16.mxu0 %v5194
  %6941 = vmatpush1.bf16.msra.mxu0 %v5193
  %6942 = vmatprep.subr.bf16.mxu0 %v5198
  %6943 = vmatpush1.bf16.msra.mxu0 %v5197
  %6944 = vmatprep.mubr.bf16.mxu0 %v1196
  %6945 = vmatmul.mubr.bf16.gmra.mrb[0].mxu0 %v1195
  %v6946 = vpop.f32.mrb[0].mxu0
  %v6947 = vadd.f32 %v6904, %v6946
  %v6948 = vpop.f32.mrb[0].mxu0
  %v6949 = vadd.f32 %v6906, %v6948
  %v6950 = vpop.f32.mrb[0].mxu0
  %v6951 = vadd.f32 %v6908, %v6950
  %v6952 = vpop.f32.mrb[0].mxu0
  %v6953 = vadd.f32 %v6910, %v6952
  %6954 = vdwg.mxu0
  %6955 = vmatprep.subr.bf16.mxu0 %v5202
  %6956 = vmatpush1.bf16.msra.mxu0 %v5201
  %6957 = vmatprep.subr.bf16.mxu0 %v5206
  %6958 = vmatpush1.bf16.msra.mxu0 %v5205
  %6959 = vmatprep.subr.bf16.mxu0 %v5210
  %6960 = vmatpush1.bf16.msra.mxu0 %v5209
  %6961 = vmatprep.subr.bf16.mxu0 %v5214
  %6962 = vmatpush1.bf16.msra.mxu0 %v5213
  %6963 = vmatprep.subr.bf16.mxu0 %v5218
  %6964 = vmatpush1.bf16.msra.mxu0 %v5217
  %6965 = vmatprep.subr.bf16.mxu0 %v5222
  %6966 = vmatpush1.bf16.msra.mxu0 %v5221
  %6967 = vmatprep.subr.bf16.mxu0 %v5226
  %6968 = vmatpush1.bf16.msra.mxu0 %v5225
  %6969 = vmatprep.subr.bf16.mxu0 %v5230
  %6970 = vmatpush1.bf16.msra.mxu0 %v5229
  %6971 = vmatprep.subr.bf16.mxu0 %v5234
  %6972 = vmatpush1.bf16.msra.mxu0 %v5233
  %6973 = vmatprep.subr.bf16.mxu0 %v5238
  %6974 = vmatpush1.bf16.msra.mxu0 %v5237
  %6975 = vmatprep.subr.bf16.mxu0 %v5242
  %6976 = vmatpush1.bf16.msra.mxu0 %v5241
  %6977 = vmatprep.subr.bf16.mxu0 %v5246
  %6978 = vmatpush1.bf16.msra.mxu0 %v5245
  %6979 = vmatprep.subr.bf16.mxu0 %v5250
  %6980 = vmatpush1.bf16.msra.mxu0 %v5249
  %6981 = vmatprep.subr.bf16.mxu0 %v5254
  %6982 = vmatpush1.bf16.msra.mxu0 %v5253
  %6983 = vmatprep.subr.bf16.mxu0 %v5258
  %6984 = vmatpush1.bf16.msra.mxu0 %v5257
  %6985 = vmatprep.subr.bf16.mxu0 %v5262
  %6986 = vmatpush1.bf16.msra.mxu0 %v5261
  %6987 = vmatprep.mubr.bf16.mxu0 %v1198
  %6988 = vmatmul.mubr.bf16.gmra.mrb[0].mxu0 %v1197
  %v6989 = vpop.f32.mrb[0].mxu0
  %v6990 = vadd.f32 %v6947, %v6989
  %v6991 = vpop.f32.mrb[0].mxu0
  %v6992 = vadd.f32 %v6949, %v6991
  %v6993 = vpop.f32.mrb[0].mxu0
  %v6994 = vadd.f32 %v6951, %v6993
  %v6995 = vpop.f32.mrb[0].mxu0
  %v6996 = vadd.f32 %v6953, %v6995
  %6997 = vdwg.mxu0
  %6998 = vmatprep.subr.bf16.mxu0 %v5266
  %6999 = vmatpush1.bf16.msra.mxu0 %v5265
  %7000 = vmatprep.subr.bf16.mxu0 %v5270
  %7001 = vmatpush1.bf16.msra.mxu0 %v5269
  %7002 = vmatprep.subr.bf16.mxu0 %v5274
  %7003 = vmatpush1.bf16.msra.mxu0 %v5273
  %7004 = vmatprep.subr.bf16.mxu0 %v5278
  %7005 = vmatpush1.bf16.msra.mxu0 %v5277
  %7006 = vmatprep.subr.bf16.mxu0 %v5282
  %7007 = vmatpush1.bf16.msra.mxu0 %v5281
  %7008 = vmatprep.subr.bf16.mxu0 %v5286
  %7009 = vmatpush1.bf16.msra.mxu0 %v5285
  %7010 = vmatprep.subr.bf16.mxu0 %v5290
  %7011 = vmatpush1.bf16.msra.mxu0 %v5289
  %7012 = vmatprep.subr.bf16.mxu0 %v5294
  %7013 = vmatpush1.bf16.msra.mxu0 %v5293
  %7014 = vmatprep.subr.bf16.mxu0 %v5298
  %7015 = vmatpush1.bf16.msra.mxu0 %v5297
  %7016 = vmatprep.subr.bf16.mxu0 %v5302
  %7017 = vmatpush1.bf16.msra.mxu0 %v5301
  %7018 = vmatprep.subr.bf16.mxu0 %v5306
  %7019 = vmatpush1.bf16.msra.mxu0 %v5305
  %7020 = vmatprep.subr.bf16.mxu0 %v5310
  %7021 = vmatpush1.bf16.msra.mxu0 %v5309
  %7022 = vmatprep.subr.bf16.mxu0 %v5314
  %7023 = vmatpush1.bf16.msra.mxu0 %v5313
  %7024 = vmatprep.subr.bf16.mxu0 %v5318
  %7025 = vmatpush1.bf16.msra.mxu0 %v5317
  %7026 = vmatprep.subr.bf16.mxu0 %v5322
  %7027 = vmatpush1.bf16.msra.mxu0 %v5321
  %7028 = vmatprep.subr.bf16.mxu0 %v5326
  %7029 = vmatpush1.bf16.msra.mxu0 %v5325
  %7030 = vmatprep.mubr.bf16.mxu0 %v1200
  %7031 = vmatmul.mubr.bf16.gmra.mrb[0].mxu0 %v1199
  %v7032 = vpop.f32.mrb[0].mxu0
  %v7033 = vadd.f32 %v6990, %v7032
  %v7034 = vpop.f32.mrb[0].mxu0
  %v7035 = vadd.f32 %v6992, %v7034
  %v7036 = vpop.f32.mrb[0].mxu0
  %v7037 = vadd.f32 %v6994, %v7036
  %v7038 = vpop.f32.mrb[0].mxu0
  %v7039 = vadd.f32 %v6996, %v7038
  %7040 = vdwg.mxu0
  %7041 = vmatprep.subr.bf16.mxu0 %v4308
  %7042 = vmatpush1.bf16.msra.mxu0 %v4307
  %7043 = vmatprep.subr.bf16.mxu0 %v4312
  %7044 = vmatpush1.bf16.msra.mxu0 %v4311
  %7045 = vmatprep.subr.bf16.mxu0 %v4316
  %7046 = vmatpush1.bf16.msra.mxu0 %v4315
  %7047 = vmatprep.subr.bf16.mxu0 %v4320
  %7048 = vmatpush1.bf16.msra.mxu0 %v4319
  %7049 = vmatprep.subr.bf16.mxu0 %v4324
  %7050 = vmatpush1.bf16.msra.mxu0 %v4323
  %7051 = vmatprep.subr.bf16.mxu0 %v4328
  %7052 = vmatpush1.bf16.msra.mxu0 %v4327
  %7053 = vmatprep.subr.bf16.mxu0 %v4332
  %7054 = vmatpush1.bf16.msra.mxu0 %v4331
  %7055 = vmatprep.subr.bf16.mxu0 %v4336
  %7056 = vmatpush1.bf16.msra.mxu0 %v4335
  %7057 = vmatprep.subr.bf16.mxu0 %v4340
  %7058 = vmatpush1.bf16.msra.mxu0 %v4339
  %7059 = vmatprep.subr.bf16.mxu0 %v4344
  %7060 = vmatpush1.bf16.msra.mxu0 %v4343
  %7061 = vmatprep.subr.bf16.mxu0 %v4348
  %7062 = vmatpush1.bf16.msra.mxu0 %v4347
  %7063 = vmatprep.subr.bf16.mxu0 %v4352
  %7064 = vmatpush1.bf16.msra.mxu0 %v4351
  %7065 = vmatprep.subr.bf16.mxu0 %v4356
  %7066 = vmatpush1.bf16.msra.mxu0 %v4355
  %7067 = vmatprep.subr.bf16.mxu0 %v4360
  %7068 = vmatpush1.bf16.msra.mxu0 %v4359
  %7069 = vmatprep.subr.bf16.mxu0 %v4364
  %7070 = vmatpush1.bf16.msra.mxu0 %v4363
  %7071 = vmatprep.subr.bf16.mxu0 %v4368
  %7072 = vmatpush1.bf16.msra.mxu0 %v4367
  %7073 = vmatprep.mubr.bf16.mxu0 %v1170
  %7074 = vmatmul.mubr.bf16.gmra.mrb[0].mxu0 %v1169
  %v7075 = vpop.f32.mrb[0].mxu0
  %v7076 = vadd.f32 0.0, %v7075
  %v7077 = vpop.f32.mrb[0].mxu0
  %v7078 = vadd.f32 0.0, %v7077
  %v7079 = vpop.f32.mrb[0].mxu0
  %v7080 = vadd.f32 0.0, %v7079
  %v7081 = vpop.f32.mrb[0].mxu0
  %v7082 = vadd.f32 0.0, %v7081
  %7083 = vdwg.mxu0
  %7084 = vmatprep.subr.bf16.mxu0 %v4372
  %7085 = vmatpush1.bf16.msra.mxu0 %v4371
  %7086 = vmatprep.subr.bf16.mxu0 %v4376
  %7087 = vmatpush1.bf16.msra.mxu0 %v4375
  %7088 = vmatprep.subr.bf16.mxu0 %v4380
  %7089 = vmatpush1.bf16.msra.mxu0 %v4379
  %7090 = vmatprep.subr.bf16.mxu0 %v4384
  %7091 = vmatpush1.bf16.msra.mxu0 %v4383
  %7092 = vmatprep.subr.bf16.mxu0 %v4388
  %7093 = vmatpush1.bf16.msra.mxu0 %v4387
  %7094 = vmatprep.subr.bf16.mxu0 %v4392
  %7095 = vmatpush1.bf16.msra.mxu0 %v4391
  %7096 = vmatprep.subr.bf16.mxu0 %v4396
  %7097 = vmatpush1.bf16.msra.mxu0 %v4395
  %7098 = vmatprep.subr.bf16.mxu0 %v4400
  %7099 = vmatpush1.bf16.msra.mxu0 %v4399
  %7100 = vmatprep.subr.bf16.mxu0 %v4404
  %7101 = vmatpush1.bf16.msra.mxu0 %v4403
  %7102 = vmatprep.subr.bf16.mxu0 %v4408
  %7103 = vmatpush1.bf16.msra.mxu0 %v4407
  %7104 = vmatprep.subr.bf16.mxu0 %v4412
  %7105 = vmatpush1.bf16.msra.mxu0 %v4411
  %7106 = vmatprep.subr.bf16.mxu0 %v4416
  %7107 = vmatpush1.bf16.msra.mxu0 %v4415
  %7108 = vmatprep.subr.bf16.mxu0 %v4420
  %7109 = vmatpush1.bf16.msra.mxu0 %v4419
  %7110 = vmatprep.subr.bf16.mxu0 %v4424
  %7111 = vmatpush1.bf16.msra.mxu0 %v4423
  %7112 = vmatprep.subr.bf16.mxu0 %v4428
  %7113 = vmatpush1.bf16.msra.mxu0 %v4427
  %7114 = vmatprep.subr.bf16.mxu0 %v4432
  %7115 = vmatpush1.bf16.msra.mxu0 %v4431
  %7116 = vmatprep.mubr.bf16.mxu0 %v1172
  %7117 = vmatmul.mubr.bf16.gmra.mrb[0].mxu0 %v1171
  %v7118 = vpop.f32.mrb[0].mxu0
  %v7119 = vadd.f32 %v7076, %v7118
  %v7120 = vpop.f32.mrb[0].mxu0
  %v7121 = vadd.f32 %v7078, %v7120
  %v7122 = vpop.f32.mrb[0].mxu0
  %v7123 = vadd.f32 %v7080, %v7122
  %v7124 = vpop.f32.mrb[0].mxu0
  %v7125 = vadd.f32 %v7082, %v7124
  %7126 = vdwg.mxu0
  %7127 = vmatprep.subr.bf16.mxu0 %v4436
  %7128 = vmatpush1.bf16.msra.mxu0 %v4435
  %7129 = vmatprep.subr.bf16.mxu0 %v4440
  %7130 = vmatpush1.bf16.msra.mxu0 %v4439
  %7131 = vmatprep.subr.bf16.mxu0 %v4444
  %7132 = vmatpush1.bf16.msra.mxu0 %v4443
  %7133 = vmatprep.subr.bf16.mxu0 %v4448
  %7134 = vmatpush1.bf16.msra.mxu0 %v4447
  %7135 = vmatprep.subr.bf16.mxu0 %v4452
  %7136 = vmatpush1.bf16.msra.mxu0 %v4451
  %7137 = vmatprep.subr.bf16.mxu0 %v4456
  %7138 = vmatpush1.bf16.msra.mxu0 %v4455
  %7139 = vmatprep.subr.bf16.mxu0 %v4460
  %7140 = vmatpush1.bf16.msra.mxu0 %v4459
  %7141 = vmatprep.subr.bf16.mxu0 %v4464
  %7142 = vmatpush1.bf16.msra.mxu0 %v4463
  %7143 = vmatprep.subr.bf16.mxu0 %v4468
  %7144 = vmatpush1.bf16.msra.mxu0 %v4467
  %7145 = vmatprep.subr.bf16.mxu0 %v4472
  %7146 = vmatpush1.bf16.msra.mxu0 %v4471
  %7147 = vmatprep.subr.bf16.mxu0 %v4476
  %7148 = vmatpush1.bf16.msra.mxu0 %v4475
  %7149 = vmatprep.subr.bf16.mxu0 %v4480
  %7150 = vmatpush1.bf16.msra.mxu0 %v4479
  %7151 = vmatprep.subr.bf16.mxu0 %v4484
  %7152 = vmatpush1.bf16.msra.mxu0 %v4483
  %7153 = vmatprep.subr.bf16.mxu0 %v4488
  %7154 = vmatpush1.bf16.msra.mxu0 %v4487
  %7155 = vmatprep.subr.bf16.mxu0 %v4492
  %7156 = vmatpush1.bf16.msra.mxu0 %v4491
  %7157 = vmatprep.subr.bf16.mxu0 %v4496
  %7158 = vmatpush1.bf16.msra.mxu0 %v4495
  %7159 = vmatprep.mubr.bf16.mxu0 %v1174
  %7160 = vmatmul.mubr.bf16.gmra.mrb[0].mxu0 %v1173
  %v7161 = vpop.f32.mrb[0].mxu0
  %v7162 = vadd.f32 %v7119, %v7161
  %v7163 = vpop.f32.mrb[0].mxu0
  %v7164 = vadd.f32 %v7121, %v7163
  %v7165 = vpop.f32.mrb[0].mxu0
  %v7166 = vadd.f32 %v7123, %v7165
  %v7167 = vpop.f32.mrb[0].mxu0
  %v7168 = vadd.f32 %v7125, %v7167
  %7169 = vdwg.mxu0
  %7170 = vmatprep.subr.bf16.mxu0 %v4500
  %7171 = vmatpush1.bf16.msra.mxu0 %v4499
  %7172 = vmatprep.subr.bf16.mxu0 %v4504
  %7173 = vmatpush1.bf16.msra.mxu0 %v4503
  %7174 = vmatprep.subr.bf16.mxu0 %v4508
  %7175 = vmatpush1.bf16.msra.mxu0 %v4507
  %7176 = vmatprep.subr.bf16.mxu0 %v4512
  %7177 = vmatpush1.bf16.msra.mxu0 %v4511
  %7178 = vmatprep.subr.bf16.mxu0 %v4516
  %7179 = vmatpush1.bf16.msra.mxu0 %v4515
  %7180 = vmatprep.subr.bf16.mxu0 %v4520
  %7181 = vmatpush1.bf16.msra.mxu0 %v4519
  %7182 = vmatprep.subr.bf16.mxu0 %v4524
  %7183 = vmatpush1.bf16.msra.mxu0 %v4523
  %7184 = vmatprep.subr.bf16.mxu0 %v4528
  %7185 = vmatpush1.bf16.msra.mxu0 %v4527
  %7186 = vmatprep.subr.bf16.mxu0 %v4532
  %7187 = vmatpush1.bf16.msra.mxu0 %v4531
  %7188 = vmatprep.subr.bf16.mxu0 %v4536
  %7189 = vmatpush1.bf16.msra.mxu0 %v4535
  %7190 = vmatprep.subr.bf16.mxu0 %v4540
  %7191 = vmatpush1.bf16.msra.mxu0 %v4539
  %7192 = vmatprep.subr.bf16.mxu0 %v4544
  %7193 = vmatpush1.bf16.msra.mxu0 %v4543
  %7194 = vmatprep.subr.bf16.mxu0 %v4548
  %7195 = vmatpush1.bf16.msra.mxu0 %v4547
  %7196 = vmatprep.subr.bf16.mxu0 %v4552
  %7197 = vmatpush1.bf16.msra.mxu0 %v4551
  %7198 = vmatprep.subr.bf16.mxu0 %v4556
  %7199 = vmatpush1.bf16.msra.mxu0 %v4555
  %7200 = vmatprep.subr.bf16.mxu0 %v4560
  %7201 = vmatpush1.bf16.msra.mxu0 %v4559
  %7202 = vmatprep.mubr.bf16.mxu0 %v1176
  %7203 = vmatmul.mubr.bf16.gmra.mrb[0].mxu0 %v1175
  %v7204 = vpop.f32.mrb[0].mxu0
  %v7205 = vadd.f32 %v7162, %v7204
  %v7206 = vpop.f32.mrb[0].mxu0
  %v7207 = vadd.f32 %v7164, %v7206
  %v7208 = vpop.f32.mrb[0].mxu0
  %v7209 = vadd.f32 %v7166, %v7208
  %v7210 = vpop.f32.mrb[0].mxu0
  %v7211 = vadd.f32 %v7168, %v7210
  %7212 = vdwg.mxu0
  %7213 = vmatprep.subr.bf16.mxu0 %v4564
  %7214 = vmatpush1.bf16.msra.mxu0 %v4563
  %7215 = vmatprep.subr.bf16.mxu0 %v4568
  %7216 = vmatpush1.bf16.msra.mxu0 %v4567
  %7217 = vmatprep.subr.bf16.mxu0 %v4572
  %7218 = vmatpush1.bf16.msra.mxu0 %v4571
  %7219 = vmatprep.subr.bf16.mxu0 %v4576
  %7220 = vmatpush1.bf16.msra.mxu0 %v4575
  %7221 = vmatprep.subr.bf16.mxu0 %v4580
  %7222 = vmatpush1.bf16.msra.mxu0 %v4579
  %7223 = vmatprep.subr.bf16.mxu0 %v4584
  %7224 = vmatpush1.bf16.msra.mxu0 %v4583
  %7225 = vmatprep.subr.bf16.mxu0 %v4588
  %7226 = vmatpush1.bf16.msra.mxu0 %v4587
  %7227 = vmatprep.subr.bf16.mxu0 %v4592
  %7228 = vmatpush1.bf16.msra.mxu0 %v4591
  %7229 = vmatprep.subr.bf16.mxu0 %v4596
  %7230 = vmatpush1.bf16.msra.mxu0 %v4595
  %7231 = vmatprep.subr.bf16.mxu0 %v4600
  %7232 = vmatpush1.bf16.msra.mxu0 %v4599
  %7233 = vmatprep.subr.bf16.mxu0 %v4604
  %7234 = vmatpush1.bf16.msra.mxu0 %v4603
  %7235 = vmatprep.subr.bf16.mxu0 %v4608
  %7236 = vmatpush1.bf16.msra.mxu0 %v4607
  %7237 = vmatprep.subr.bf16.mxu0 %v4612
  %7238 = vmatpush1.bf16.msra.mxu0 %v4611
  %7239 = vmatprep.subr.bf16.mxu0 %v4616
  %7240 = vmatpush1.bf16.msra.mxu0 %v4615
  %7241 = vmatprep.subr.bf16.mxu0 %v4620
  %7242 = vmatpush1.bf16.msra.mxu0 %v4619
  %7243 = vmatprep.subr.bf16.mxu0 %v4624
  %7244 = vmatpush1.bf16.msra.mxu0 %v4623
  %7245 = vmatprep.mubr.bf16.mxu0 %v1178
  %7246 = vmatmul.mubr.bf16.gmra.mrb[0].mxu0 %v1177
  %v7247 = vpop.f32.mrb[0].mxu0
  %v7248 = vadd.f32 %v7205, %v7247
  %v7249 = vpop.f32.mrb[0].mxu0
  %v7250 = vadd.f32 %v7207, %v7249
  %v7251 = vpop.f32.mrb[0].mxu0
  %v7252 = vadd.f32 %v7209, %v7251
  %v7253 = vpop.f32.mrb[0].mxu0
  %v7254 = vadd.f32 %v7211, %v7253
  %7255 = vdwg.mxu0
  %7256 = vmatprep.subr.bf16.mxu0 %v4628
  %7257 = vmatpush1.bf16.msra.mxu0 %v4627
  %7258 = vmatprep.subr.bf16.mxu0 %v4632
  %7259 = vmatpush1.bf16.msra.mxu0 %v4631
  %7260 = vmatprep.subr.bf16.mxu0 %v4636
  %7261 = vmatpush1.bf16.msra.mxu0 %v4635
  %7262 = vmatprep.subr.bf16.mxu0 %v4640
  %7263 = vmatpush1.bf16.msra.mxu0 %v4639
  %7264 = vmatprep.subr.bf16.mxu0 %v4644
  %7265 = vmatpush1.bf16.msra.mxu0 %v4643
  %7266 = vmatprep.subr.bf16.mxu0 %v4648
  %7267 = vmatpush1.bf16.msra.mxu0 %v4647
  %7268 = vmatprep.subr.bf16.mxu0 %v4652
  %7269 = vmatpush1.bf16.msra.mxu0 %v4651
  %7270 = vmatprep.subr.bf16.mxu0 %v4656
  %7271 = vmatpush1.bf16.msra.mxu0 %v4655
  %7272 = vmatprep.subr.bf16.mxu0 %v4660
  %7273 = vmatpush1.bf16.msra.mxu0 %v4659
  %7274 = vmatprep.subr.bf16.mxu0 %v4664
  %7275 = vmatpush1.bf16.msra.mxu0 %v4663
  %7276 = vmatprep.subr.bf16.mxu0 %v4668
  %7277 = vmatpush1.bf16.msra.mxu0 %v4667
  %7278 = vmatprep.subr.bf16.mxu0 %v4672
  %7279 = vmatpush1.bf16.msra.mxu0 %v4671
  %7280 = vmatprep.subr.bf16.mxu0 %v4676
  %7281 = vmatpush1.bf16.msra.mxu0 %v4675
  %7282 = vmatprep.subr.bf16.mxu0 %v4680
  %7283 = vmatpush1.bf16.msra.mxu0 %v4679
  %7284 = vmatprep.subr.bf16.mxu0 %v4684
  %7285 = vmatpush1.bf16.msra.mxu0 %v4683
  %7286 = vmatprep.subr.bf16.mxu0 %v4688
  %7287 = vmatpush1.bf16.msra.mxu0 %v4687
  %7288 = vmatprep.mubr.bf16.mxu0 %v1180
  %7289 = vmatmul.mubr.bf16.gmra.mrb[0].mxu0 %v1179
  %v7290 = vpop.f32.mrb[0].mxu0
  %v7291 = vadd.f32 %v7248, %v7290
  %v7292 = vpop.f32.mrb[0].mxu0
  %v7293 = vadd.f32 %v7250, %v7292
  %v7294 = vpop.f32.mrb[0].mxu0
  %v7295 = vadd.f32 %v7252, %v7294
  %v7296 = vpop.f32.mrb[0].mxu0
  %v7297 = vadd.f32 %v7254, %v7296
  %7298 = vdwg.mxu0
  %7299 = vmatprep.subr.bf16.mxu0 %v4692
  %7300 = vmatpush1.bf16.msra.mxu0 %v4691
  %7301 = vmatprep.subr.bf16.mxu0 %v4696
  %7302 = vmatpush1.bf16.msra.mxu0 %v4695
  %7303 = vmatprep.subr.bf16.mxu0 %v4700
  %7304 = vmatpush1.bf16.msra.mxu0 %v4699
  %7305 = vmatprep.subr.bf16.mxu0 %v4704
  %7306 = vmatpush1.bf16.msra.mxu0 %v4703
  %7307 = vmatprep.subr.bf16.mxu0 %v4708
  %7308 = vmatpush1.bf16.msra.mxu0 %v4707
  %7309 = vmatprep.subr.bf16.mxu0 %v4712
  %7310 = vmatpush1.bf16.msra.mxu0 %v4711
  %7311 = vmatprep.subr.bf16.mxu0 %v4716
  %7312 = vmatpush1.bf16.msra.mxu0 %v4715
  %7313 = vmatprep.subr.bf16.mxu0 %v4720
  %7314 = vmatpush1.bf16.msra.mxu0 %v4719
  %7315 = vmatprep.subr.bf16.mxu0 %v4724
  %7316 = vmatpush1.bf16.msra.mxu0 %v4723
  %7317 = vmatprep.subr.bf16.mxu0 %v4728
  %7318 = vmatpush1.bf16.msra.mxu0 %v4727
  %7319 = vmatprep.subr.bf16.mxu0 %v4732
  %7320 = vmatpush1.bf16.msra.mxu0 %v4731
  %7321 = vmatprep.subr.bf16.mxu0 %v4736
  %7322 = vmatpush1.bf16.msra.mxu0 %v4735
  %7323 = vmatprep.subr.bf16.mxu0 %v4740
  %7324 = vmatpush1.bf16.msra.mxu0 %v4739
  %7325 = vmatprep.subr.bf16.mxu0 %v4744
  %7326 = vmatpush1.bf16.msra.mxu0 %v4743
  %7327 = vmatprep.subr.bf16.mxu0 %v4748
  %7328 = vmatpush1.bf16.msra.mxu0 %v4747
  %7329 = vmatprep.subr.bf16.mxu0 %v4752
  %7330 = vmatpush1.bf16.msra.mxu0 %v4751
  %7331 = vmatprep.mubr.bf16.mxu0 %v1182
  %7332 = vmatmul.mubr.bf16.gmra.mrb[0].mxu0 %v1181
  %v7333 = vpop.f32.mrb[0].mxu0
  %v7334 = vadd.f32 %v7291, %v7333
  %v7335 = vpop.f32.mrb[0].mxu0
  %v7336 = vadd.f32 %v7293, %v7335
  %v7337 = vpop.f32.mrb[0].mxu0
  %v7338 = vadd.f32 %v7295, %v7337
  %v7339 = vpop.f32.mrb[0].mxu0
  %v7340 = vadd.f32 %v7297, %v7339
  %7341 = vdwg.mxu0
  %7342 = vmatprep.subr.bf16.mxu0 %v4756
  %7343 = vmatpush1.bf16.msra.mxu0 %v4755
  %7344 = vmatprep.subr.bf16.mxu0 %v4760
  %7345 = vmatpush1.bf16.msra.mxu0 %v4759
  %7346 = vmatprep.subr.bf16.mxu0 %v4764
  %7347 = vmatpush1.bf16.msra.mxu0 %v4763
  %7348 = vmatprep.subr.bf16.mxu0 %v4768
  %7349 = vmatpush1.bf16.msra.mxu0 %v4767
  %7350 = vmatprep.subr.bf16.mxu0 %v4772
  %7351 = vmatpush1.bf16.msra.mxu0 %v4771
  %7352 = vmatprep.subr.bf16.mxu0 %v4776
  %7353 = vmatpush1.bf16.msra.mxu0 %v4775
  %7354 = vmatprep.subr.bf16.mxu0 %v4780
  %7355 = vmatpush1.bf16.msra.mxu0 %v4779
  %7356 = vmatprep.subr.bf16.mxu0 %v4784
  %7357 = vmatpush1.bf16.msra.mxu0 %v4783
  %7358 = vmatprep.subr.bf16.mxu0 %v4788
  %7359 = vmatpush1.bf16.msra.mxu0 %v4787
  %7360 = vmatprep.subr.bf16.mxu0 %v4792
  %7361 = vmatpush1.bf16.msra.mxu0 %v4791
  %7362 = vmatprep.subr.bf16.mxu0 %v4796
  %7363 = vmatpush1.bf16.msra.mxu0 %v4795
  %7364 = vmatprep.subr.bf16.mxu0 %v4800
  %7365 = vmatpush1.bf16.msra.mxu0 %v4799
  %7366 = vmatprep.subr.bf16.mxu0 %v4804
  %7367 = vmatpush1.bf16.msra.mxu0 %v4803
  %7368 = vmatprep.subr.bf16.mxu0 %v4808
  %7369 = vmatpush1.bf16.msra.mxu0 %v4807
  %7370 = vmatprep.subr.bf16.mxu0 %v4812
  %7371 = vmatpush1.bf16.msra.mxu0 %v4811
  %7372 = vmatprep.subr.bf16.mxu0 %v4816
  %7373 = vmatpush1.bf16.msra.mxu0 %v4815
  %7374 = vmatprep.mubr.bf16.mxu0 %v1184
  %7375 = vmatmul.mubr.bf16.gmra.mrb[0].mxu0 %v1183
  %v7376 = vpop.f32.mrb[0].mxu0
  %v7377 = vadd.f32 %v7334, %v7376
  %v7378 = vpop.f32.mrb[0].mxu0
  %v7379 = vadd.f32 %v7336, %v7378
  %v7380 = vpop.f32.mrb[0].mxu0
  %v7381 = vadd.f32 %v7338, %v7380
  %v7382 = vpop.f32.mrb[0].mxu0
  %v7383 = vadd.f32 %v7340, %v7382
  %7384 = vdwg.mxu0
  %7385 = vmatprep.subr.bf16.mxu0 %v4820
  %7386 = vmatpush1.bf16.msra.mxu0 %v4819
  %7387 = vmatprep.subr.bf16.mxu0 %v4824
  %7388 = vmatpush1.bf16.msra.mxu0 %v4823
  %7389 = vmatprep.subr.bf16.mxu0 %v4828
  %7390 = vmatpush1.bf16.msra.mxu0 %v4827
  %7391 = vmatprep.subr.bf16.mxu0 %v4832
  %7392 = vmatpush1.bf16.msra.mxu0 %v4831
  %7393 = vmatprep.subr.bf16.mxu0 %v4836
  %7394 = vmatpush1.bf16.msra.mxu0 %v4835
  %7395 = vmatprep.subr.bf16.mxu0 %v4840
  %7396 = vmatpush1.bf16.msra.mxu0 %v4839
  %7397 = vmatprep.subr.bf16.mxu0 %v4844
  %7398 = vmatpush1.bf16.msra.mxu0 %v4843
  %7399 = vmatprep.subr.bf16.mxu0 %v4848
  %7400 = vmatpush1.bf16.msra.mxu0 %v4847
  %7401 = vmatprep.subr.bf16.mxu0 %v4852
  %7402 = vmatpush1.bf16.msra.mxu0 %v4851
  %7403 = vmatprep.subr.bf16.mxu0 %v4856
  %7404 = vmatpush1.bf16.msra.mxu0 %v4855
  %7405 = vmatprep.subr.bf16.mxu0 %v4860
  %7406 = vmatpush1.bf16.msra.mxu0 %v4859
  %7407 = vmatprep.subr.bf16.mxu0 %v4864
  %7408 = vmatpush1.bf16.msra.mxu0 %v4863
  %7409 = vmatprep.subr.bf16.mxu0 %v4868
  %7410 = vmatpush1.bf16.msra.mxu0 %v4867
  %7411 = vmatprep.subr.bf16.mxu0 %v4872
  %7412 = vmatpush1.bf16.msra.mxu0 %v4871
  %7413 = vmatprep.subr.bf16.mxu0 %v4876
  %7414 = vmatpush1.bf16.msra.mxu0 %v4875
  %7415 = vmatprep.subr.bf16.mxu0 %v4880
  %7416 = vmatpush1.bf16.msra.mxu0 %v4879
  %7417 = vmatprep.mubr.bf16.mxu0 %v1186
  %7418 = vmatmul.mubr.bf16.gmra.mrb[0].mxu0 %v1185
  %v7419 = vpop.f32.mrb[0].mxu0
  %v7420 = vadd.f32 %v7377, %v7419
  %v7421 = vpop.f32.mrb[0].mxu0
  %v7422 = vadd.f32 %v7379, %v7421
  %v7423 = vpop.f32.mrb[0].mxu0
  %v7424 = vadd.f32 %v7381, %v7423
  %v7425 = vpop.f32.mrb[0].mxu0
  %v7426 = vadd.f32 %v7383, %v7425
  %7427 = vdwg.mxu0
  %7428 = vmatprep.subr.bf16.mxu0 %v4884
  %7429 = vmatpush1.bf16.msra.mxu0 %v4883
  %7430 = vmatprep.subr.bf16.mxu0 %v4888
  %7431 = vmatpush1.bf16.msra.mxu0 %v4887
  %7432 = vmatprep.subr.bf16.mxu0 %v4892
  %7433 = vmatpush1.bf16.msra.mxu0 %v4891
  %7434 = vmatprep.subr.bf16.mxu0 %v4896
  %7435 = vmatpush1.bf16.msra.mxu0 %v4895
  %7436 = vmatprep.subr.bf16.mxu0 %v4900
  %7437 = vmatpush1.bf16.msra.mxu0 %v4899
  %7438 = vmatprep.subr.bf16.mxu0 %v4904
  %7439 = vmatpush1.bf16.msra.mxu0 %v4903
  %7440 = vmatprep.subr.bf16.mxu0 %v4908
  %7441 = vmatpush1.bf16.msra.mxu0 %v4907
  %7442 = vmatprep.subr.bf16.mxu0 %v4912
  %7443 = vmatpush1.bf16.msra.mxu0 %v4911
  %7444 = vmatprep.subr.bf16.mxu0 %v4916
  %7445 = vmatpush1.bf16.msra.mxu0 %v4915
  %7446 = vmatprep.subr.bf16.mxu0 %v4920
  %7447 = vmatpush1.bf16.msra.mxu0 %v4919
  %7448 = vmatprep.subr.bf16.mxu0 %v4924
  %7449 = vmatpush1.bf16.msra.mxu0 %v4923
  %7450 = vmatprep.subr.bf16.mxu0 %v4928
  %7451 = vmatpush1.bf16.msra.mxu0 %v4927
  %7452 = vmatprep.subr.bf16.mxu0 %v4932
  %7453 = vmatpush1.bf16.msra.mxu0 %v4931
  %7454 = vmatprep.subr.bf16.mxu0 %v4936
  %7455 = vmatpush1.bf16.msra.mxu0 %v4935
  %7456 = vmatprep.subr.bf16.mxu0 %v4940
  %7457 = vmatpush1.bf16.msra.mxu0 %v4939
  %7458 = vmatprep.subr.bf16.mxu0 %v4944
  %7459 = vmatpush1.bf16.msra.mxu0 %v4943
  %7460 = vmatprep.mubr.bf16.mxu0 %v1188
  %7461 = vmatmul.mubr.bf16.gmra.mrb[0].mxu0 %v1187
  %v7462 = vpop.f32.mrb[0].mxu0
  %v7463 = vadd.f32 %v7420, %v7462
  %v7464 = vpop.f32.mrb[0].mxu0
  %v7465 = vadd.f32 %v7422, %v7464
  %v7466 = vpop.f32.mrb[0].mxu0
  %v7467 = vadd.f32 %v7424, %v7466
  %v7468 = vpop.f32.mrb[0].mxu0
  %v7469 = vadd.f32 %v7426, %v7468
  %7470 = vdwg.mxu0
  %7471 = vmatprep.subr.bf16.mxu0 %v4948
  %7472 = vmatpush1.bf16.msra.mxu0 %v4947
  %7473 = vmatprep.subr.bf16.mxu0 %v4952
  %7474 = vmatpush1.bf16.msra.mxu0 %v4951
  %7475 = vmatprep.subr.bf16.mxu0 %v4956
  %7476 = vmatpush1.bf16.msra.mxu0 %v4955
  %7477 = vmatprep.subr.bf16.mxu0 %v4960
  %7478 = vmatpush1.bf16.msra.mxu0 %v4959
  %7479 = vmatprep.subr.bf16.mxu0 %v4964
  %7480 = vmatpush1.bf16.msra.mxu0 %v4963
  %7481 = vmatprep.subr.bf16.mxu0 %v4968
  %7482 = vmatpush1.bf16.msra.mxu0 %v4967
  %7483 = vmatprep.subr.bf16.mxu0 %v4972
  %7484 = vmatpush1.bf16.msra.mxu0 %v4971
  %7485 = vmatprep.subr.bf16.mxu0 %v4976
  %7486 = vmatpush1.bf16.msra.mxu0 %v4975
  %7487 = vmatprep.subr.bf16.mxu0 %v4980
  %7488 = vmatpush1.bf16.msra.mxu0 %v4979
  %7489 = vmatprep.subr.bf16.mxu0 %v4984
  %7490 = vmatpush1.bf16.msra.mxu0 %v4983
  %7491 = vmatprep.subr.bf16.mxu0 %v4988
  %7492 = vmatpush1.bf16.msra.mxu0 %v4987
  %7493 = vmatprep.subr.bf16.mxu0 %v4992
  %7494 = vmatpush1.bf16.msra.mxu0 %v4991
  %7495 = vmatprep.subr.bf16.mxu0 %v4996
  %7496 = vmatpush1.bf16.msra.mxu0 %v4995
  %7497 = vmatprep.subr.bf16.mxu0 %v5000
  %7498 = vmatpush1.bf16.msra.mxu0 %v4999
  %7499 = vmatprep.subr.bf16.mxu0 %v5004
  %7500 = vmatpush1.bf16.msra.mxu0 %v5003
  %7501 = vmatprep.subr.bf16.mxu0 %v5008
  %7502 = vmatpush1.bf16.msra.mxu0 %v5007
  %7503 = vmatprep.mubr.bf16.mxu0 %v1190
  %7504 = vmatmul.mubr.bf16.gmra.mrb[0].mxu0 %v1189
  %v7505 = vpop.f32.mrb[0].mxu0
  %v7506 = vadd.f32 %v7463, %v7505
  %v7507 = vpop.f32.mrb[0].mxu0
  %v7508 = vadd.f32 %v7465, %v7507
  %v7509 = vpop.f32.mrb[0].mxu0
  %v7510 = vadd.f32 %v7467, %v7509
  %v7511 = vpop.f32.mrb[0].mxu0
  %v7512 = vadd.f32 %v7469, %v7511
  %7513 = vdwg.mxu0
  %7514 = vmatprep.subr.bf16.mxu0 %v5012
  %7515 = vmatpush1.bf16.msra.mxu0 %v5011
  %7516 = vmatprep.subr.bf16.mxu0 %v5016
  %7517 = vmatpush1.bf16.msra.mxu0 %v5015
  %7518 = vmatprep.subr.bf16.mxu0 %v5020
  %7519 = vmatpush1.bf16.msra.mxu0 %v5019
  %7520 = vmatprep.subr.bf16.mxu0 %v5024
  %7521 = vmatpush1.bf16.msra.mxu0 %v5023
  %7522 = vmatprep.subr.bf16.mxu0 %v5028
  %7523 = vmatpush1.bf16.msra.mxu0 %v5027
  %7524 = vmatprep.subr.bf16.mxu0 %v5032
  %7525 = vmatpush1.bf16.msra.mxu0 %v5031
  %7526 = vmatprep.subr.bf16.mxu0 %v5036
  %7527 = vmatpush1.bf16.msra.mxu0 %v5035
  %7528 = vmatprep.subr.bf16.mxu0 %v5040
  %7529 = vmatpush1.bf16.msra.mxu0 %v5039
  %7530 = vmatprep.subr.bf16.mxu0 %v5044
  %7531 = vmatpush1.bf16.msra.mxu0 %v5043
  %7532 = vmatprep.subr.bf16.mxu0 %v5048
  %7533 = vmatpush1.bf16.msra.mxu0 %v5047
  %7534 = vmatprep.subr.bf16.mxu0 %v5052
  %7535 = vmatpush1.bf16.msra.mxu0 %v5051
  %7536 = vmatprep.subr.bf16.mxu0 %v5056
  %7537 = vmatpush1.bf16.msra.mxu0 %v5055
  %7538 = vmatprep.subr.bf16.mxu0 %v5060
  %7539 = vmatpush1.bf16.msra.mxu0 %v5059
  %7540 = vmatprep.subr.bf16.mxu0 %v5064
  %7541 = vmatpush1.bf16.msra.mxu0 %v5063
  %7542 = vmatprep.subr.bf16.mxu0 %v5068
  %7543 = vmatpush1.bf16.msra.mxu0 %v5067
  %7544 = vmatprep.subr.bf16.mxu0 %v5072
  %7545 = vmatpush1.bf16.msra.mxu0 %v5071
  %7546 = vmatprep.mubr.bf16.mxu0 %v1192
  %7547 = vmatmul.mubr.bf16.gmra.mrb[0].mxu0 %v1191
  %v7548 = vpop.f32.mrb[0].mxu0
  %v7549 = vadd.f32 %v7506, %v7548
  %v7550 = vpop.f32.mrb[0].mxu0
  %v7551 = vadd.f32 %v7508, %v7550
  %v7552 = vpop.f32.mrb[0].mxu0
  %v7553 = vadd.f32 %v7510, %v7552
  %v7554 = vpop.f32.mrb[0].mxu0
  %v7555 = vadd.f32 %v7512, %v7554
  %7556 = vdwg.mxu0
  %7557 = vmatprep.subr.bf16.mxu0 %v5076
  %7558 = vmatpush1.bf16.msra.mxu0 %v5075
  %7559 = vmatprep.subr.bf16.mxu0 %v5080
  %7560 = vmatpush1.bf16.msra.mxu0 %v5079
  %7561 = vmatprep.subr.bf16.mxu0 %v5084
  %7562 = vmatpush1.bf16.msra.mxu0 %v5083
  %7563 = vmatprep.subr.bf16.mxu0 %v5088
  %7564 = vmatpush1.bf16.msra.mxu0 %v5087
  %7565 = vmatprep.subr.bf16.mxu0 %v5092
  %7566 = vmatpush1.bf16.msra.mxu0 %v5091
  %7567 = vmatprep.subr.bf16.mxu0 %v5096
  %7568 = vmatpush1.bf16.msra.mxu0 %v5095
  %7569 = vmatprep.subr.bf16.mxu0 %v5100
  %7570 = vmatpush1.bf16.msra.mxu0 %v5099
  %7571 = vmatprep.subr.bf16.mxu0 %v5104
  %7572 = vmatpush1.bf16.msra.mxu0 %v5103
  %7573 = vmatprep.subr.bf16.mxu0 %v5108
  %7574 = vmatpush1.bf16.msra.mxu0 %v5107
  %7575 = vmatprep.subr.bf16.mxu0 %v5112
  %7576 = vmatpush1.bf16.msra.mxu0 %v5111
  %7577 = vmatprep.subr.bf16.mxu0 %v5116
  %7578 = vmatpush1.bf16.msra.mxu0 %v5115
  %7579 = vmatprep.subr.bf16.mxu0 %v5120
  %7580 = vmatpush1.bf16.msra.mxu0 %v5119
  %7581 = vmatprep.subr.bf16.mxu0 %v5124
  %7582 = vmatpush1.bf16.msra.mxu0 %v5123
  %7583 = vmatprep.subr.bf16.mxu0 %v5128
  %7584 = vmatpush1.bf16.msra.mxu0 %v5127
  %7585 = vmatprep.subr.bf16.mxu0 %v5132
  %7586 = vmatpush1.bf16.msra.mxu0 %v5131
  %7587 = vmatprep.subr.bf16.mxu0 %v5136
  %7588 = vmatpush1.bf16.msra.mxu0 %v5135
  %7589 = vmatprep.mubr.bf16.mxu0 %v1194
  %7590 = vmatmul.mubr.bf16.gmra.mrb[0].mxu0 %v1193
  %v7591 = vpop.f32.mrb[0].mxu0
  %v7592 = vadd.f32 %v7549, %v7591
  %v7593 = vpop.f32.mrb[0].mxu0
  %v7594 = vadd.f32 %v7551, %v7593
  %v7595 = vpop.f32.mrb[0].mxu0
  %v7596 = vadd.f32 %v7553, %v7595
  %v7597 = vpop.f32.mrb[0].mxu0
  %v7598 = vadd.f32 %v7555, %v7597
  %7599 = vdwg.mxu0
  %7600 = vmatprep.subr.bf16.mxu0 %v5140
  %7601 = vmatpush1.bf16.msra.mxu0 %v5139
  %7602 = vmatprep.subr.bf16.mxu0 %v5144
  %7603 = vmatpush1.bf16.msra.mxu0 %v5143
  %7604 = vmatprep.subr.bf16.mxu0 %v5148
  %7605 = vmatpush1.bf16.msra.mxu0 %v5147
  %7606 = vmatprep.subr.bf16.mxu0 %v5152
  %7607 = vmatpush1.bf16.msra.mxu0 %v5151
  %7608 = vmatprep.subr.bf16.mxu0 %v5156
  %7609 = vmatpush1.bf16.msra.mxu0 %v5155
  %7610 = vmatprep.subr.bf16.mxu0 %v5160
  %7611 = vmatpush1.bf16.msra.mxu0 %v5159
  %7612 = vmatprep.subr.bf16.mxu0 %v5164
  %7613 = vmatpush1.bf16.msra.mxu0 %v5163
  %7614 = vmatprep.subr.bf16.mxu0 %v5168
  %7615 = vmatpush1.bf16.msra.mxu0 %v5167
  %7616 = vmatprep.subr.bf16.mxu0 %v5172
  %7617 = vmatpush1.bf16.msra.mxu0 %v5171
  %7618 = vmatprep.subr.bf16.mxu0 %v5176
  %7619 = vmatpush1.bf16.msra.mxu0 %v5175
  %7620 = vmatprep.subr.bf16.mxu0 %v5180
  %7621 = vmatpush1.bf16.msra.mxu0 %v5179
  %7622 = vmatprep.subr.bf16.mxu0 %v5184
  %7623 = vmatpush1.bf16.msra.mxu0 %v5183
  %7624 = vmatprep.subr.bf16.mxu0 %v5188
  %7625 = vmatpush1.bf16.msra.mxu0 %v5187
  %7626 = vmatprep.subr.bf16.mxu0 %v5192
  %7627 = vmatpush1.bf16.msra.mxu0 %v5191
  %7628 = vmatprep.subr.bf16.mxu0 %v5196
  %7629 = vmatpush1.bf16.msra.mxu0 %v5195
  %7630 = vmatprep.subr.bf16.mxu0 %v5200
  %7631 = vmatpush1.bf16.msra.mxu0 %v5199
  %7632 = vmatprep.mubr.bf16.mxu0 %v1196
  %7633 = vmatmul.mubr.bf16.gmra.mrb[0].mxu0 %v1195
  %v7634 = vpop.f32.mrb[0].mxu0
  %v7635 = vadd.f32 %v7592, %v7634
  %v7636 = vpop.f32.mrb[0].mxu0
  %v7637 = vadd.f32 %v7594, %v7636
  %v7638 = vpop.f32.mrb[0].mxu0
  %v7639 = vadd.f32 %v7596, %v7638
  %v7640 = vpop.f32.mrb[0].mxu0
  %v7641 = vadd.f32 %v7598, %v7640
  %7642 = vdwg.mxu0
  %7643 = vmatprep.subr.bf16.mxu0 %v5204
  %7644 = vmatpush1.bf16.msra.mxu0 %v5203
  %7645 = vmatprep.subr.bf16.mxu0 %v5208
  %7646 = vmatpush1.bf16.msra.mxu0 %v5207
  %7647 = vmatprep.subr.bf16.mxu0 %v5212
  %7648 = vmatpush1.bf16.msra.mxu0 %v5211
  %7649 = vmatprep.subr.bf16.mxu0 %v5216
  %7650 = vmatpush1.bf16.msra.mxu0 %v5215
  %7651 = vmatprep.subr.bf16.mxu0 %v5220
  %7652 = vmatpush1.bf16.msra.mxu0 %v5219
  %7653 = vmatprep.subr.bf16.mxu0 %v5224
  %7654 = vmatpush1.bf16.msra.mxu0 %v5223
  %7655 = vmatprep.subr.bf16.mxu0 %v5228
  %7656 = vmatpush1.bf16.msra.mxu0 %v5227
  %7657 = vmatprep.subr.bf16.mxu0 %v5232
  %7658 = vmatpush1.bf16.msra.mxu0 %v5231
  %7659 = vmatprep.subr.bf16.mxu0 %v5236
  %7660 = vmatpush1.bf16.msra.mxu0 %v5235
  %7661 = vmatprep.subr.bf16.mxu0 %v5240
  %7662 = vmatpush1.bf16.msra.mxu0 %v5239
  %7663 = vmatprep.subr.bf16.mxu0 %v5244
  %7664 = vmatpush1.bf16.msra.mxu0 %v5243
  %7665 = vmatprep.subr.bf16.mxu0 %v5248
  %7666 = vmatpush1.bf16.msra.mxu0 %v5247
  %7667 = vmatprep.subr.bf16.mxu0 %v5252
  %7668 = vmatpush1.bf16.msra.mxu0 %v5251
  %7669 = vmatprep.subr.bf16.mxu0 %v5256
  %7670 = vmatpush1.bf16.msra.mxu0 %v5255
  %7671 = vmatprep.subr.bf16.mxu0 %v5260
  %7672 = vmatpush1.bf16.msra.mxu0 %v5259
  %7673 = vmatprep.subr.bf16.mxu0 %v5264
  %7674 = vmatpush1.bf16.msra.mxu0 %v5263
  %7675 = vmatprep.mubr.bf16.mxu0 %v1198
  %7676 = vmatmul.mubr.bf16.gmra.mrb[0].mxu0 %v1197
  %v7677 = vpop.f32.mrb[0].mxu0
  %v7678 = vadd.f32 %v7635, %v7677
  %v7679 = vpop.f32.mrb[0].mxu0
  %v7680 = vadd.f32 %v7637, %v7679
  %v7681 = vpop.f32.mrb[0].mxu0
  %v7682 = vadd.f32 %v7639, %v7681
  %v7683 = vpop.f32.mrb[0].mxu0
  %v7684 = vadd.f32 %v7641, %v7683
  %7685 = vdwg.mxu0
  %7686 = vmatprep.subr.bf16.mxu0 %v5268
  %7687 = vmatpush1.bf16.msra.mxu0 %v5267
  %7688 = vmatprep.subr.bf16.mxu0 %v5272
  %7689 = vmatpush1.bf16.msra.mxu0 %v5271
  %7690 = vmatprep.subr.bf16.mxu0 %v5276
  %7691 = vmatpush1.bf16.msra.mxu0 %v5275
  %7692 = vmatprep.subr.bf16.mxu0 %v5280
  %7693 = vmatpush1.bf16.msra.mxu0 %v5279
  %7694 = vmatprep.subr.bf16.mxu0 %v5284
  %7695 = vmatpush1.bf16.msra.mxu0 %v5283
  %7696 = vmatprep.subr.bf16.mxu0 %v5288
  %7697 = vmatpush1.bf16.msra.mxu0 %v5287
  %7698 = vmatprep.subr.bf16.mxu0 %v5292
  %7699 = vmatpush1.bf16.msra.mxu0 %v5291
  %7700 = vmatprep.subr.bf16.mxu0 %v5296
  %7701 = vmatpush1.bf16.msra.mxu0 %v5295
  %7702 = vmatprep.subr.bf16.mxu0 %v5300
  %7703 = vmatpush1.bf16.msra.mxu0 %v5299
  %7704 = vmatprep.subr.bf16.mxu0 %v5304
  %7705 = vmatpush1.bf16.msra.mxu0 %v5303
  %7706 = vmatprep.subr.bf16.mxu0 %v5308
  %7707 = vmatpush1.bf16.msra.mxu0 %v5307
  %7708 = vmatprep.subr.bf16.mxu0 %v5312
  %7709 = vmatpush1.bf16.msra.mxu0 %v5311
  %7710 = vmatprep.subr.bf16.mxu0 %v5316
  %7711 = vmatpush1.bf16.msra.mxu0 %v5315
  %7712 = vmatprep.subr.bf16.mxu0 %v5320
  %7713 = vmatpush1.bf16.msra.mxu0 %v5319
  %7714 = vmatprep.subr.bf16.mxu0 %v5324
  %7715 = vmatpush1.bf16.msra.mxu0 %v5323
  %7716 = vmatprep.subr.bf16.mxu0 %v5328
  %7717 = vmatpush1.bf16.msra.mxu0 %v5327
  %7718 = vmatprep.mubr.bf16.mxu0 %v1200
  %7719 = vmatmul.mubr.bf16.gmra.mrb[0].mxu0 %v1199
  %v7720 = vpop.f32.mrb[0].mxu0
  %v7721 = vadd.f32 %v7678, %v7720
  %v7722 = vpop.f32.mrb[0].mxu0
  %v7723 = vadd.f32 %v7680, %v7722
  %v7724 = vpop.f32.mrb[0].mxu0
  %v7725 = vadd.f32 %v7682, %v7724
  %v7726 = vpop.f32.mrb[0].mxu0
  %v7727 = vadd.f32 %v7684, %v7726
  %7728 = vdwg.mxu0
  %v7729 = vadd.f32 %v7033, %v7037
  %v7730 = vrot.slane %v7729, 4
  %v7731 = vadd.f32 %v7729, %v7730
  %v7732 = vrot.slane %v7731, 2
  %v7733 = vadd.f32 %v7731, %v7732
  %v7734 = vrot.slane %v7733, 1
  %v7735 = vadd.f32 %v7733, %v7734
  %v7736 = vadd.f32 %v7035, %v7039
  %v7737 = vrot.slane %v7736, 4
  %v7738 = vadd.f32 %v7736, %v7737
  %v7739 = vrot.slane %v7738, 2
  %v7740 = vadd.f32 %v7738, %v7739
  %v7741 = vrot.slane %v7740, 1
  %v7742 = vadd.f32 %v7740, %v7741
  %v7743 = vadd.f32 %v7721, %v7725
  %v7744 = vrot.slane %v7743, 4
  %v7745 = vadd.f32 %v7743, %v7744
  %v7746 = vrot.slane %v7745, 2
  %v7747 = vadd.f32 %v7745, %v7746
  %v7748 = vrot.slane %v7747, 1
  %v7749 = vadd.f32 %v7747, %v7748
  %v7750 = vadd.f32 %v7723, %v7727
  %v7751 = vrot.slane %v7750, 4
  %v7752 = vadd.f32 %v7750, %v7751
  %v7753 = vrot.slane %v7752, 2
  %v7754 = vadd.f32 %v7752, %v7753
  %v7755 = vrot.slane %v7754, 1
  %v7756 = vadd.f32 %v7754, %v7755
  %v7757 = vmul.f32 %v7735, 0.125
  %v7758 = vmul.f32 %v7742, 0.125
  %v7759 = vmul.f32 %v7749, 0.125
  %v7760 = vmul.f32 %v7756, 0.125
  %v7761 = vmul.f32 %v7033, %v7033
  %v7762 = vmul.f32 %v7035, %v7035
  %v7763 = vmul.f32 %v7721, %v7721
  %v7764 = vmul.f32 %v7723, %v7723
  %v7765 = vmul.f32 %v7037, %v7037
  %v7766 = vmul.f32 %v7039, %v7039
  %v7767 = vmul.f32 %v7725, %v7725
  %v7768 = vmul.f32 %v7727, %v7727
  %v7769 = vadd.f32 %v7761, %v7765
  %v7770 = vrot.slane %v7769, 4
  %v7771 = vadd.f32 %v7769, %v7770
  %v7772 = vrot.slane %v7771, 2
  %v7773 = vadd.f32 %v7771, %v7772
  %v7774 = vrot.slane %v7773, 1
  %v7775 = vadd.f32 %v7773, %v7774
  %v7776 = vadd.f32 %v7762, %v7766
  %v7777 = vrot.slane %v7776, 4
  %v7778 = vadd.f32 %v7776, %v7777
  %v7779 = vrot.slane %v7778, 2
  %v7780 = vadd.f32 %v7778, %v7779
  %v7781 = vrot.slane %v7780, 1
  %v7782 = vadd.f32 %v7780, %v7781
  %v7783 = vadd.f32 %v7763, %v7767
  %v7784 = vrot.slane %v7783, 4
  %v7785 = vadd.f32 %v7783, %v7784
  %v7786 = vrot.slane %v7785, 2
  %v7787 = vadd.f32 %v7785, %v7786
  %v7788 = vrot.slane %v7787, 1
  %v7789 = vadd.f32 %v7787, %v7788
  %v7790 = vadd.f32 %v7764, %v7768
  %v7791 = vrot.slane %v7790, 4
  %v7792 = vadd.f32 %v7790, %v7791
  %v7793 = vrot.slane %v7792, 2
  %v7794 = vadd.f32 %v7792, %v7793
  %v7795 = vrot.slane %v7794, 1
  %v7796 = vadd.f32 %v7794, %v7795
  %v7797 = vmul.f32 %v7775, 0.125
  %v7798 = vmul.f32 %v7782, 0.125
  %v7799 = vmul.f32 %v7789, 0.125
  %v7800 = vmul.f32 %v7796, 0.125
  %v7801 = vmul.f32 %v7757, %v7757
  %v7802 = vmul.f32 %v7758, %v7758
  %v7803 = vmul.f32 %v7759, %v7759
  %v7804 = vmul.f32 %v7760, %v7760
  %v7805 = vsub.f32 %v7797, %v7801
  %v7806 = vsub.f32 %v7798, %v7802
  %v7807 = vsub.f32 %v7799, %v7803
  %v7808 = vsub.f32 %v7800, %v7804
  %v7809 = vmax.f32 %v7805, 0.0
  %v7810 = vmax.f32 %v7806, 0.0
  %v7811 = vmax.f32 %v7807, 0.0
  %v7812 = vmax.f32 %v7808, 0.0
  %v7813 = vadd.f32 %v7809, 1e-05
  %v7814 = vadd.f32 %v7810, 1e-05
  %v7815 = vadd.f32 %v7811, 1e-05
  %v7816 = vadd.f32 %v7812, 1e-05
  %v7817 = vrsqrt.pop %v7813
  %v7818 = vrsqrt.pop %v7814
  %v7819 = vrsqrt.pop %v7815
  %v7820 = vrsqrt.pop %v7816
  %v7821 = vld [vmem:[%s2] sm:$0xf]
  %v7826 = vcombine.low %v7817, %v7818
  %v7827 = vcombine.low %v7819, %v7820
  %v7829 = vunpack.c.l.s4 1966171168
  %v7830 = vunpack.c.0.s8 %v7829
  %v7831 = vlaneseq
  %v7832 = vshrl.u32 %v7831, 7
  %v7833 = vsub.s32 %v7830, %v7832
  %v7834 = vrot.slane %v7826, %v7833
  %v7836 = vunpack.c.l.s4 1966171168
  %v7837 = vunpack.c.0.s8 %v7836
  %v7838 = vlaneseq
  %v7839 = vshrl.u32 %v7838, 7
  %v7840 = vsub.s32 %v7837, %v7839
  %v7841 = vrot.slane %v7827, %v7840
  %v7842 = vcombine.low %v7834, %v7841
  %v7844 = vunpack.c.l.s4 1966171168
  %v7845 = vunpack.c.0.s8 %v7844
  %v7846 = vlaneseq
  %v7847 = vshrl.u32 %v7846, 7
  %v7848 = vsub.s32 %v7845, %v7847
  %v7849 = vrot.slane %v7842, %v7848
  %v7851 = vmul.f32 %v7821, %v7849
  %v7852 = vld [vmem:[%s3] sm:$0xf]
  %v7854 = vlaneseq
  %v7855 = vshrl.u32 %v7854, 7
  %v7856 = vsub.s32 0, %v7855
  %v7857 = vrot.slane %v7851, %v7856
  %v7858 = vlaneseq
  %v7859 = vshrl.u32 %v7858, 7
  %v7860 = vsub.s32 1, %v7859
  %v7861 = vrot.slane %v7851, %v7860
  %v7862 = vlaneseq
  %v7863 = vshrl.u32 %v7862, 7
  %v7864 = vsub.s32 2, %v7863
  %v7865 = vrot.slane %v7851, %v7864
  %v7866 = vlaneseq
  %v7867 = vshrl.u32 %v7866, 7
  %v7868 = vsub.s32 3, %v7867
  %v7869 = vrot.slane %v7851, %v7868
  %v7874 = vmul.f32 %v7757, %v7857
  %v7875 = vmul.f32 %v7758, %v7861
  %v7876 = vmul.f32 %v7759, %v7865
  %v7877 = vmul.f32 %v7760, %v7869
  %v7882 = vcombine.low %v7874, %v7875
  %v7883 = vcombine.low %v7876, %v7877
  %v7885 = vunpack.c.l.s4 1966171168
  %v7886 = vunpack.c.0.s8 %v7885
  %v7887 = vlaneseq
  %v7888 = vshrl.u32 %v7887, 7
  %v7889 = vsub.s32 %v7886, %v7888
  %v7890 = vrot.slane %v7882, %v7889
  %v7892 = vunpack.c.l.s4 1966171168
  %v7893 = vunpack.c.0.s8 %v7892
  %v7894 = vlaneseq
  %v7895 = vshrl.u32 %v7894, 7
  %v7896 = vsub.s32 %v7893, %v7895
  %v7897 = vrot.slane %v7883, %v7896
  %v7898 = vcombine.low %v7890, %v7897
  %v7900 = vunpack.c.l.s4 1966171168
  %v7901 = vunpack.c.0.s8 %v7900
  %v7902 = vlaneseq
  %v7903 = vshrl.u32 %v7902, 7
  %v7904 = vsub.s32 %v7901, %v7903
  %v7905 = vrot.slane %v7898, %v7904
  %v7907 = vsub.f32 %v7852, %v7905
  %v7908 = vmul.f32 %v7033, %v7857
  %v7909 = vmul.f32 %v7035, %v7861
  %v7910 = vmul.f32 %v7721, %v7865
  %v7911 = vmul.f32 %v7723, %v7869
  %v7912 = vmul.f32 %v7037, %v7857
  %v7913 = vmul.f32 %v7039, %v7861
  %v7914 = vmul.f32 %v7725, %v7865
  %v7915 = vmul.f32 %v7727, %v7869
  %v7917 = vlaneseq
  %v7918 = vshrl.u32 %v7917, 7
  %v7919 = vsub.s32 0, %v7918
  %v7920 = vrot.slane %v7907, %v7919
  %v7921 = vlaneseq
  %v7922 = vshrl.u32 %v7921, 7
  %v7923 = vsub.s32 1, %v7922
  %v7924 = vrot.slane %v7907, %v7923
  %v7925 = vlaneseq
  %v7926 = vshrl.u32 %v7925, 7
  %v7927 = vsub.s32 2, %v7926
  %v7928 = vrot.slane %v7907, %v7927
  %v7929 = vlaneseq
  %v7930 = vshrl.u32 %v7929, 7
  %v7931 = vsub.s32 3, %v7930
  %v7932 = vrot.slane %v7907, %v7931
  %v7937 = vadd.f32 %v7908, %v7920
  %v7938 = vadd.f32 %v7909, %v7924
  %v7939 = vadd.f32 %v7910, %v7928
  %v7940 = vadd.f32 %v7911, %v7932
  %v7941 = vadd.f32 %v7912, %v7920
  %v7942 = vadd.f32 %v7913, %v7924
  %v7943 = vadd.f32 %v7914, %v7928
  %v7944 = vadd.f32 %v7915, %v7932
  %vm7945 = vcmp.gt.f32.partialorder %v7937, 0.0
  %vm7946 = vcmp.gt.f32.partialorder %v7938, 0.0
  %vm7947 = vcmp.gt.f32.partialorder %v7939, 0.0
  %vm7948 = vcmp.gt.f32.partialorder %v7940, 0.0
  %vm7949 = vcmp.gt.f32.partialorder %v7941, 0.0
  %vm7950 = vcmp.gt.f32.partialorder %v7942, 0.0
  %vm7951 = vcmp.gt.f32.partialorder %v7943, 0.0
  %vm7952 = vcmp.gt.f32.partialorder %v7944, 0.0
  %v7953 = vmul.f32 %v7937, 0.2
  %v7954 = vmul.f32 %v7938, 0.2
  %v7955 = vmul.f32 %v7939, 0.2
  %v7956 = vmul.f32 %v7940, 0.2
  %v7957 = vmul.f32 %v7941, 0.2
  %v7958 = vmul.f32 %v7942, 0.2
  %v7959 = vmul.f32 %v7943, 0.2
  %v7960 = vmul.f32 %v7944, 0.2
  %v7961 = vsel %vm7945, %v7937, %v7953
  %v7962 = vsel %vm7946, %v7938, %v7954
  %v7963 = vsel %vm7947, %v7939, %v7955
  %v7964 = vsel %vm7948, %v7940, %v7956
  %v7965 = vsel %vm7949, %v7941, %v7957
  %v7966 = vsel %vm7950, %v7942, %v7958
  %v7967 = vsel %vm7951, %v7943, %v7959
  %v7968 = vsel %vm7952, %v7944, %v7960
  %v7969 = vpack.c.bf16 %v7965, %v7961
  %v7970 = vpack.c.bf16 %v7966, %v7962
  %v7971 = vpack.c.bf16 %v7967, %v7963
  %v7972 = vpack.c.bf16 %v7968, %v7964
  %v7977 = vunpack.c.l.b16 %v7969
  %v7978 = vunpack.c.l.b16 %v7970
  %v7979 = vunpack.c.l.b16 %v7971
  %v7980 = vunpack.c.l.b16 %v7972
  %v7981 = vunpack.c.h.b16 %v7969
  %v7982 = vunpack.c.h.b16 %v7970
  %v7983 = vunpack.c.h.b16 %v7971
  %v7984 = vunpack.c.h.b16 %v7972
  %v7985 = vpack.c.b16 %v7978, %v7977
  %v7986 = vpack.c.b16 %v7980, %v7979
  %v7987 = vpack.c.b16 %v7982, %v7981
  %v7988 = vpack.c.b16 %v7984, %v7983
  %7993 = vst [vmem:[%s4] sm:$0xff] %v7985
  %7994 = vst [vmem:[%s4 + $0x8] sm:$0xff] %v7986
  %7995 = vst [vmem:[%s4 + $0x10] sm:$0xff] %v7987
  %7996 = vst [vmem:[%s4 + $0x18] sm:$0xff] %v7988
  // Predicated region
  $region18: #{_lambda_.7} parent=0 // pred_check
    _
  $region19: #{_lambda_.7} parent=0 // pred_check_branch
    %7998 = sbr.rel (0) target = $region21
  $region20: #{_lambda_.7} parent=0 // pred_region
    _
  $region21: #{_lambda_.7} parent=0 // pred_fallthru
    _
  // Predicated region
  $region22: #{_lambda_.7} parent=0 // pred_check
    _
  $region23: #{_lambda_.7} parent=0 // pred_check_branch
    %8000 = sbr.rel (0) target = $region25
  $region24: #{_lambda_.7} parent=0 // pred_region
    _
  $region25: #{_lambda_.7} parent=0 // pred_fallthru
    _

</llo_original>
